<compile_context>
chip_gen: v7x
topology: tpu7x:2x2x1
jax: 0.10.0
libtpu: 0.0.40
codegen_flags: <defaults>
</compile_context>

<pallas_src>
import functools
import math

import jax
import jax.numpy as jnp
from jax.experimental import pallas as pl
from jax.experimental.pallas import tpu as pltpu

_VMEM_LIMIT = 48 * 1024 * 1024  # headroom below v7x's 64 MiB physical VMEM
_EPS = 1e-5


# ---------------------------------------------------------------------------
# Small helpers (traced inside kernels)
# ---------------------------------------------------------------------------

def _row_tile(n):
    """Largest row tile (multiple of 8, <=512) that divides n, else n itself."""
    for t in (512, 256, 128, 64, 32, 16, 8):
        if n % t == 0:
            return t
    return n


def _row_spec(tn, d):
    return pl.BlockSpec((tn, d), lambda i: (i, 0))


def _const_spec(shape):
    # Weight / bias blocks: constant block index so they stay VMEM-resident.
    return pl.BlockSpec(shape, lambda *_: (0, 0))


def _silu(x):
    return x * (1.0 / (1.0 + jnp.exp(-x)))


def _mm(x, w_ref, b_ref):
    """bf16 MXU matmul with f32 accumulation + f32 bias."""
    return jnp.dot(x.astype(jnp.bfloat16), w_ref[...],
                   preferred_element_type=jnp.float32) + b_ref[...]


def _layernorm(y, g, b, eps):
    mu = jnp.mean(y, axis=-1, keepdims=True)
    yc = y - mu
    var = jnp.mean(yc * yc, axis=-1, keepdims=True)
    return yc * jax.lax.rsqrt(var + eps) * g + b


def _attend(q, k, v, scale):
    """Single-head full attention softmax(q k^T * scale) v (f32 softmax)."""
    # TODO(synk): block the W dimension (flash-style online softmax) for long
    # frame counts (W -> 350+) so the WxW score matrix never materializes.
    s = jax.lax.dot_general(q.astype(jnp.bfloat16), k.astype(jnp.bfloat16),
                            (((1,), (1,)), ((), ())),
                            preferred_element_type=jnp.float32) * scale
    s = s - jnp.max(s, axis=-1, keepdims=True)
    p = jnp.exp(s)
    p = p * pl.reciprocal(jnp.sum(p, axis=-1, keepdims=True), approx=True)
    return jnp.dot(p.astype(jnp.bfloat16), v.astype(jnp.bfloat16),
                   preferred_element_type=jnp.float32)


# ---------------------------------------------------------------------------
# Fused Pallas kernels
# ---------------------------------------------------------------------------

def _deprenet_kernel(x_ref, pe_ref, wl_ref, bl_ref, w1_ref, b1_ref,
                     w2_ref, b2_ref, o_ref):
    y = _mm(x_ref[...], wl_ref, bl_ref)            # Linear(C*H, hidden)
    y = _silu(_mm(y, w1_ref, b1_ref))              # Conv1d k=1 (+folded BN)+SiLU
    y = _silu(_mm(y, w2_ref, b2_ref))              # Conv1d k=1 (+folded BN)+SiLU
    o_ref[...] = y + pe_ref[...]                   # positional enc. (dropout=id)


def deprenet(x, pe_rows, p):
    n, din = x.shape
    h = p["pre_w_lin"].shape[1]
    tn = _row_tile(n)
    return pl.pallas_call(
        _deprenet_kernel,
        out_shape=jax.ShapeDtypeStruct((n, h), jnp.float32),
        grid=(n // tn,),
        in_specs=[_row_spec(tn, din), _row_spec(tn, h),
                  _const_spec((din, h)), _const_spec((1, h)),
                  _const_spec((h, h)), _const_spec((1, h)),
                  _const_spec((h, h)), _const_spec((1, h))],
        out_specs=_row_spec(tn, h),
        compiler_params=pltpu.CompilerParams(
            dimension_semantics=("parallel",), vmem_limit_bytes=_VMEM_LIMIT),
    )(x, pe_rows, p["pre_w_lin"], p["pre_b_lin"],
      p["pre_w_c1"], p["pre_b_c1"], p["pre_w_c2"], p["pre_b_c2"])


def _encoder_layer_kernel(x_ref, wqkv_ref, bqkv_ref, wo_ref, bo_ref,
                          ln1g_ref, ln1b_ref, w1_ref, b1_ref, w2_ref, b2_ref,
                          ln2g_ref, ln2b_ref, o_ref, *, h, scale, eps):
    x = x_ref[0]                                               # (W, h) f32
    qkv = _mm(x, wqkv_ref, bqkv_ref)                           # fused Q/K/V
    a = _attend(qkv[:, :h], qkv[:, h:2 * h], qkv[:, 2 * h:], scale)
    a = _mm(a, wo_ref, bo_ref)
    y = _layernorm(x + a, ln1g_ref[...], ln1b_ref[...], eps)
    f = _mm(_silu(_mm(y, w1_ref, b1_ref)), w2_ref, b2_ref)     # SiLU FFN
    o_ref[0] = _layernorm(y + f, ln2g_ref[...], ln2b_ref[...], eps)


def encoder_layer(x3, p):
    b, w, h = x3.shape
    dff = p["ff_w1"].shape[1]
    seq = pl.BlockSpec((1, w, h), lambda i: (i, 0, 0))
    return pl.pallas_call(
        functools.partial(_encoder_layer_kernel, h=h,
                          scale=1.0 / math.sqrt(h), eps=_EPS),
        out_shape=jax.ShapeDtypeStruct((b, w, h), jnp.float32),
        grid=(b,),
        in_specs=[seq,
                  _const_spec((h, 3 * h)), _const_spec((1, 3 * h)),
                  _const_spec((h, h)), _const_spec((1, h)),
                  _const_spec((1, h)), _const_spec((1, h)),
                  _const_spec((h, dff)), _const_spec((1, dff)),
                  _const_spec((dff, h)), _const_spec((1, h)),
                  _const_spec((1, h)), _const_spec((1, h))],
        out_specs=seq,
        compiler_params=pltpu.CompilerParams(
            dimension_semantics=("parallel",), vmem_limit_bytes=_VMEM_LIMIT),
    )(x3, p["wqkv"], p["bqkv"], p["wo"], p["bo"],
      p["ln1_g"], p["ln1_b"], p["ff_w1"], p["ff_b1"],
      p["ff_w2"], p["ff_b2"], p["ln2_g"], p["ln2_b"])


def _decoder_layer_kernel(x_ref, m_ref,
                          sa_wqkv_ref, sa_bqkv_ref, sa_wo_ref, sa_bo_ref,
                          ln1g_ref, ln1b_ref,
                          ca_wq_ref, ca_bq_ref, ca_wkv_ref, ca_bkv_ref,
                          ca_wo_ref, ca_bo_ref, ln2g_ref, ln2b_ref,
                          w1_ref, b1_ref, w2_ref, b2_ref, ln3g_ref, ln3b_ref,
                          o_ref, *, h, scale, eps):
    x = x_ref[0]                                               # (W, h) f32
    m = m_ref[0]                                               # encoder memory
    # self-attention
    qkv = _mm(x, sa_wqkv_ref, sa_bqkv_ref)
    a = _attend(qkv[:, :h], qkv[:, h:2 * h], qkv[:, 2 * h:], scale)
    a = _mm(a, sa_wo_ref, sa_bo_ref)
    y = _layernorm(x + a, ln1g_ref[...], ln1b_ref[...], eps)
    # cross-attention against encoder memory (fused K/V projection)
    q = _mm(y, ca_wq_ref, ca_bq_ref)
    kv = _mm(m, ca_wkv_ref, ca_bkv_ref)
    a = _attend(q, kv[:, :h], kv[:, h:], scale)
    a = _mm(a, ca_wo_ref, ca_bo_ref)
    y = _layernorm(y + a, ln2g_ref[...], ln2b_ref[...], eps)
    # FFN
    f = _mm(_silu(_mm(y, w1_ref, b1_ref)), w2_ref, b2_ref)
    o_ref[0] = _layernorm(y + f, ln3g_ref[...], ln3b_ref[...], eps)


def decoder_layer(x3, m3, p):
    b, w, h = x3.shape
    dff = p["ff_w1"].shape[1]
    seq = pl.BlockSpec((1, w, h), lambda i: (i, 0, 0))
    return pl.pallas_call(
        functools.partial(_decoder_layer_kernel, h=h,
                          scale=1.0 / math.sqrt(h), eps=_EPS),
        out_shape=jax.ShapeDtypeStruct((b, w, h), jnp.float32),
        grid=(b,),
        in_specs=[seq, seq,
                  _const_spec((h, 3 * h)), _const_spec((1, 3 * h)),
                  _const_spec((h, h)), _const_spec((1, h)),
                  _const_spec((1, h)), _const_spec((1, h)),
                  _const_spec((h, h)), _const_spec((1, h)),
                  _const_spec((h, 2 * h)), _const_spec((1, 2 * h)),
                  _const_spec((h, h)), _const_spec((1, h)),
                  _const_spec((1, h)), _const_spec((1, h)),
                  _const_spec((h, dff)), _const_spec((1, dff)),
                  _const_spec((dff, h)), _const_spec((1, h)),
                  _const_spec((1, h)), _const_spec((1, h))],
        out_specs=seq,
        compiler_params=pltpu.CompilerParams(
            dimension_semantics=("parallel",), vmem_limit_bytes=_VMEM_LIMIT),
    )(x3, m3,
      p["sa_wqkv"], p["sa_bqkv"], p["sa_wo"], p["sa_bo"],
      p["ln1_g"], p["ln1_b"],
      p["ca_wq"], p["ca_bq"], p["ca_wkv"], p["ca_bkv"],
      p["ca_wo"], p["ca_bo"], p["ln2_g"], p["ln2_b"],
      p["ff_w1"], p["ff_b1"], p["ff_w2"], p["ff_b2"],
      p["ln3_g"], p["ln3_b"])


def _posnet_kernel(x_ref, wc1_ref, bc1_ref, wl1_ref, bl1_ref,
                   wc2_ref, bc2_ref, wl2_ref, bl2_ref, o_ref):
    y = _silu(_mm(x_ref[...], wc1_ref, bc1_ref))      # Conv1d (+folded BN)+SiLU
    y = _mm(y, wl1_ref, bl1_ref)                      # Linear(h, h)
    y = _silu(_mm(y, wc2_ref, bc2_ref))               # Conv1d + SiLU
    o_ref[...] = jnp.maximum(_mm(y, wl2_ref, bl2_ref), 0.0)  # Linear + ReLU


def posnet(x, p):
    n, h = x.shape
    dout = p["pos_w_l2"].shape[1]
    tn = _row_tile(n)
    return pl.pallas_call(
        _posnet_kernel,
        out_shape=jax.ShapeDtypeStruct((n, dout), jnp.float32),
        grid=(n // tn,),
        in_specs=[_row_spec(tn, h),
                  _const_spec((h, h)), _const_spec((1, h)),
                  _const_spec((h, h)), _const_spec((1, h)),
                  _const_spec((h, h)), _const_spec((1, h)),
                  _const_spec((h, dout)), _const_spec((1, dout))],
        out_specs=_row_spec(tn, dout),
        compiler_params=pltpu.CompilerParams(
            dimension_semantics=("parallel",), vmem_limit_bytes=_VMEM_LIMIT),
    )(x, p["pos_w_c1"], p["pos_b_c1"], p["pos_w_l1"], p["pos_b_l1"],
      p["pos_w_c2"], p["pos_b_c2"], p["pos_w_l2"], p["pos_b_l2"])


def _mul_kernel(a_ref, b_ref, o_ref):
    o_ref[...] = a_ref[...] * b_ref[...]


def elementwise_mul(a, b):
    n, d = a.shape
    tn = _row_tile(n)
    return pl.pallas_call(
        _mul_kernel,
        out_shape=jax.ShapeDtypeStruct((n, d), jnp.float32),
        grid=(n // tn,),
        in_specs=[_row_spec(tn, d), _row_spec(tn, d)],
        out_specs=_row_spec(tn, d),
        compiler_params=pltpu.CompilerParams(
            dimension_semantics=("parallel",), vmem_limit_bytes=_VMEM_LIMIT),
    )(a, b)


# ---------------------------------------------------------------------------
# Parameter initialization (deterministic, synthetic; eval-mode BN folded)
# ---------------------------------------------------------------------------

def _dense(key, din, dout, scale=0.1):
    kw, kb = jax.random.split(key)
    w = scale * jax.random.normal(kw, (din, dout), jnp.float32)
    b = scale * jax.random.normal(kb, (dout,), jnp.float32)
    return w, b


def _fold_bn(key, w, b, eps=_EPS):
    """Fold an eval-mode BatchNorm1d (synthetic running stats) into (w, b)."""
    k1, k2, k3, k4 = jax.random.split(key, 4)
    d = w.shape[1]
    gamma = 1.0 + 0.1 * jax.random.normal(k1, (d,), jnp.float32)
    beta = 0.1 * jax.random.normal(k2, (d,), jnp.float32)
    rm = 0.1 * jax.random.normal(k3, (d,), jnp.float32)
    rv = 1.0 + 0.1 * jnp.abs(jax.random.normal(k4, (d,), jnp.float32))
    s = gamma / jnp.sqrt(rv + eps)
    t = beta - rm * s
    return w * s[None, :], b * s + t


def _wb(w, b):
    """bf16 weights for the MXU, f32 (1, d) bias."""
    return w.astype(jnp.bfloat16), b.reshape(1, -1).astype(jnp.float32)


def _ln(h):
    return jnp.ones((1, h), jnp.float32), jnp.zeros((1, h), jnp.float32)


def _enc_params(key, h, dff):
    ks = jax.random.split(key, 6)
    wq, bq = _dense(ks[0], h, h)
    wk, bk = _dense(ks[1], h, h)
    wv, bv = _dense(ks[2], h, h)
    p = {}
    p["wqkv"], p["bqkv"] = _wb(jnp.concatenate([wq, wk, wv], axis=1),
                               jnp.concatenate([bq, bk, bv]))
    p["wo"], p["bo"] = _wb(*_dense(ks[3], h, h))
    p["ff_w1"], p["ff_b1"] = _wb(*_dense(ks[4], h, dff))
    p["ff_w2"], p["ff_b2"] = _wb(*_dense(ks[5], dff, h))
    p["ln1_g"], p["ln1_b"] = _ln(h)
    p["ln2_g"], p["ln2_b"] = _ln(h)
    return p


def _dec_params(key, h, dff):
    ks = jax.random.split(key, 10)
    p = {}
    wq, bq = _dense(ks[0], h, h)
    wk, bk = _dense(ks[1], h, h)
    wv, bv = _dense(ks[2], h, h)
    p["sa_wqkv"], p["sa_bqkv"] = _wb(jnp.concatenate([wq, wk, wv], axis=1),
                                     jnp.concatenate([bq, bk, bv]))
    p["sa_wo"], p["sa_bo"] = _wb(*_dense(ks[3], h, h))
    p["ca_wq"], p["ca_bq"] = _wb(*_dense(ks[4], h, h))
    wk, bk = _dense(ks[5], h, h)
    wv, bv = _dense(ks[6], h, h)
    p["ca_wkv"], p["ca_bkv"] = _wb(jnp.concatenate([wk, wv], axis=1),
                                   jnp.concatenate([bk, bv]))
    p["ca_wo"], p["ca_bo"] = _wb(*_dense(ks[7], h, h))
    p["ff_w1"], p["ff_b1"] = _wb(*_dense(ks[8], h, dff))
    p["ff_w2"], p["ff_b2"] = _wb(*_dense(ks[9], dff, h))
    p["ln1_g"], p["ln1_b"] = _ln(h)
    p["ln2_g"], p["ln2_b"] = _ln(h)
    p["ln3_g"], p["ln3_b"] = _ln(h)
    return p


def init_params(key, C, H, hidden, depth=4, d_ff=4, max_len=350):
    # TODO(synk): d_ff=4 is used literally as the FFN inner width, matching the
    # constructor argument d_ff=4; adjust if the original layer treats it as a
    # multiplier of hidden.
    in_feat = C * H  # stands in for 2049*2 at small scale
    keys = jax.random.split(key, 10 + 2 * depth)
    p = {}
    # DePreNet_ (BatchNorms folded into the preceding Conv1d k=1 weights)
    p["pre_w_lin"], p["pre_b_lin"] = _wb(*_dense(keys[0], in_feat, hidden))
    w, b = _dense(keys[1], hidden, hidden)
    p["pre_w_c1"], p["pre_b_c1"] = _wb(*_fold_bn(keys[2], w, b))
    w, b = _dense(keys[3], hidden, hidden)
    p["pre_w_c2"], p["pre_b_c2"] = _wb(*_fold_bn(keys[4], w, b))
    # PositionalEncoding buffer (exact sin/cos construction from the module)
    position = jnp.arange(max_len, dtype=jnp.float32)[:, None]
    div_term = jnp.exp(jnp.arange(0, hidden, 2, dtype=jnp.float32) *
                       (-math.log(10000.0) / hidden))
    pe = jnp.zeros((max_len, hidden), jnp.float32)
    pe = pe.at[:, 0::2].set(jnp.sin(position * div_term))
    pe = pe.at[:, 1::2].set(jnp.cos(position * div_term))
    p["pe"] = pe
    # encoder / decoder stacks
    p["enc"] = [_enc_params(keys[5 + i], hidden, d_ff) for i in range(depth)]
    p["dec"] = [_dec_params(keys[5 + depth + i], hidden, d_ff)
                for i in range(depth)]
    # PosNet (first BatchNorm folded into the first Conv1d)
    base = 5 + 2 * depth
    w, b = _dense(keys[base + 0], hidden, hidden)
    p["pos_w_c1"], p["pos_b_c1"] = _wb(*_fold_bn(keys[base + 1], w, b))
    p["pos_w_l1"], p["pos_b_l1"] = _wb(*_dense(keys[base + 2], hidden, hidden))
    p["pos_w_c2"], p["pos_b_c2"] = _wb(*_dense(keys[base + 3], hidden, hidden))
    p["pos_w_l2"], p["pos_b_l2"] = _wb(*_dense(keys[base + 4], hidden, in_feat))
    return p


# ---------------------------------------------------------------------------
# Full forward pass
# ---------------------------------------------------------------------------

def transformer_autoencoder_separator(s, p):
    B, C, H, W = s.shape
    hidden = p["pre_w_lin"].shape[1]
    mix = s

    # --- DePreNet_: permute(0,1,3,2) + 'b c w h -> b w (c h)', then fused
    #     Linear -> Conv1d/BN/SiLU -> Conv1d/BN/SiLU -> +positional encoding ---
    x = jnp.transpose(s, (0, 3, 1, 2)).reshape(B * W, C * H)   # rows = (b, w)
    pe_rows = jnp.tile(p["pe"][:W], (B, 1))
    x = deprenet(x, pe_rows, p)

    # --- encoder stack with skip connections ---
    # TODO(synk): TransformerEncoder(Layer)/Decoder(Layer) sources were not
    # provided; a single-head, post-norm layer with a SiLU FFN matching the
    # constructor signature is assumed.
    x3 = x.reshape(B, W, hidden)
    skips = []
    for lp in p["enc"]:
        x3 = encoder_layer(x3, lp)
        skips.append(x3)

    # --- decoder stack consuming skips in reverse ---
    for lp in p["dec"]:
        mem = skips.pop()
        x3 = decoder_layer(x3, mem, lp)

    # --- PosNet (fused Conv/BN/SiLU -> Linear -> Conv/SiLU -> Linear/ReLU) ---
    y = posnet(x3.reshape(B * W, hidden), p)

    # 'b w (h c) -> b c h w' with c = C
    mask = y.reshape(B, W, H, C).transpose(0, 3, 2, 1)

    # --- final mask multiply on a lane-dense (B*C, H*W) layout ---
    out = elementwise_mul(mix.reshape(B * C, H * W),
                          mask.reshape(B * C, H * W)).reshape(B, C, H, W)
    return out, mask


# ---------------------------------------------------------------------------

if __name__ == "__main__":
    B, C, H, W = 2, 2, 16, 8      # (nb_samples, nb_channels, nb_bins, nb_frames)
    hidden = 32

    key = jax.random.PRNGKey(0)
    k_in, k_par = jax.random.split(key)
    s = jax.random.normal(k_in, (B, C, H, W), jnp.float32)
    params = init_params(k_par, C, H, hidden, depth=4, d_ff=4, max_len=350)

    fwd = jax.jit(transformer_autoencoder_separator)
    out, mask = fwd(s, params)
    jax.block_until_ready((out, mask))

    assert out.shape == (B, C, H, W)
    assert mask.shape == (B, C, H, W)
    assert out.dtype == jnp.float32 and mask.dtype == jnp.float32
    print("KERNEL_OK")
</pallas_src>

<mosaic_0001>
module attributes {stable_mosaic.version = 11 : i64} {
  func.func @_deprenet_kernel(%arg0: i32, %arg1: memref<16x32xf32, #tpu.memory_space<vmem>>, %arg2: memref<16x32xf32, #tpu.memory_space<vmem>>, %arg3: memref<32x32xbf16, #tpu.memory_space<vmem>>, %arg4: memref<1x32xf32, #tpu.memory_space<vmem>>, %arg5: memref<32x32xbf16, #tpu.memory_space<vmem>>, %arg6: memref<1x32xf32, #tpu.memory_space<vmem>>, %arg7: memref<32x32xbf16, #tpu.memory_space<vmem>>, %arg8: memref<1x32xf32, #tpu.memory_space<vmem>>, %arg9: memref<16x32xf32, #tpu.memory_space<vmem>>) attributes {dimension_semantics = [#tpu.dimension_semantics<parallel>], iteration_bounds = array<i64: 1>, scalar_prefetch = 0 : i64, scratch_operands = 0 : i64, tpu.core_type = #tpu.core_type<tc>, window_params = [{transform_indices = @transform_0, window_bounds = array<i64: 16, 32>}, {transform_indices = @transform_1, window_bounds = array<i64: 16, 32>}, {pipeline_mode = #tpu.pipeline_mode<synchronous>, transform_indices = @transform_2, window_bounds = array<i64: 32, 32>}, {pipeline_mode = #tpu.pipeline_mode<synchronous>, transform_indices = @transform_3, window_bounds = array<i64: 1, 32>}, {pipeline_mode = #tpu.pipeline_mode<synchronous>, transform_indices = @transform_4, window_bounds = array<i64: 32, 32>}, {pipeline_mode = #tpu.pipeline_mode<synchronous>, transform_indices = @transform_5, window_bounds = array<i64: 1, 32>}, {pipeline_mode = #tpu.pipeline_mode<synchronous>, transform_indices = @transform_6, window_bounds = array<i64: 32, 32>}, {pipeline_mode = #tpu.pipeline_mode<synchronous>, transform_indices = @transform_7, window_bounds = array<i64: 1, 32>}, {transform_indices = @transform_8, window_bounds = array<i64: 16, 32>}]} {
    %c0 = arith.constant 0 : index
    %c0_0 = arith.constant 0 : index
    %0 = vector.load %arg1[%c0, %c0_0] : memref<16x32xf32, #tpu.memory_space<vmem>>, vector<16x32xf32>
    %1 = arith.truncf %0 : vector<16x32xf32> to vector<16x32xbf16>
    %c0_1 = arith.constant 0 : index
    %c0_2 = arith.constant 0 : index
    %2 = vector.load %arg3[%c0_1, %c0_2] : memref<32x32xbf16, #tpu.memory_space<vmem>>, vector<32x32xbf16>
    %cst = arith.constant dense<0.000000e+00> : vector<16x32xf32>
    %3 = tpu.matmul %1, %2, %cst {dimension_numbers = #tpu.dot_dimension_numbers<[1], [0], [0], [1], [0, 0, 1, 1], [], []>} : vector<16x32xbf16>, vector<32x32xbf16>, vector<16x32xf32> -> vector<16x32xf32>
    %c0_3 = arith.constant 0 : index
    %c0_4 = arith.constant 0 : index
    %4 = vector.load %arg4[%c0_3, %c0_4] : memref<1x32xf32, #tpu.memory_space<vmem>>, vector<1x32xf32>
    %5 = vector.broadcast %4 : vector<1x32xf32> to vector<16x32xf32>
    %6 = arith.addf %3, %5 : vector<16x32xf32>
    %7 = arith.truncf %6 : vector<16x32xf32> to vector<16x32xbf16>
    %c0_5 = arith.constant 0 : index
    %c0_6 = arith.constant 0 : index
    %8 = vector.load %arg5[%c0_5, %c0_6] : memref<32x32xbf16, #tpu.memory_space<vmem>>, vector<32x32xbf16>
    %cst_7 = arith.constant dense<0.000000e+00> : vector<16x32xf32>
    %9 = tpu.matmul %7, %8, %cst_7 {dimension_numbers = #tpu.dot_dimension_numbers<[1], [0], [0], [1], [0, 0, 1, 1], [], []>} : vector<16x32xbf16>, vector<32x32xbf16>, vector<16x32xf32> -> vector<16x32xf32>
    %c0_8 = arith.constant 0 : index
    %c0_9 = arith.constant 0 : index
    %10 = vector.load %arg6[%c0_8, %c0_9] : memref<1x32xf32, #tpu.memory_space<vmem>>, vector<1x32xf32>
    %11 = vector.broadcast %10 : vector<1x32xf32> to vector<16x32xf32>
    %12 = arith.addf %9, %11 : vector<16x32xf32>
    %cst_10 = arith.constant 0.000000e+00 : f32
    %13 = vector.broadcast %cst_10 : f32 to vector<16x32xf32>
    %14 = arith.subf %13, %12 : vector<16x32xf32>
    %15 = math.exp %14 : vector<16x32xf32>
    %cst_11 = arith.constant 1.000000e+00 : f32
    %16 = vector.broadcast %cst_11 : f32 to vector<16x32xf32>
    %17 = arith.addf %16, %15 : vector<16x32xf32>
    %cst_12 = arith.constant 1.000000e+00 : f32
    %18 = vector.broadcast %cst_12 : f32 to vector<16x32xf32>
    %19 = arith.divf %18, %17 : vector<16x32xf32>
    %20 = arith.mulf %12, %19 : vector<16x32xf32>
    %21 = arith.truncf %20 : vector<16x32xf32> to vector<16x32xbf16>
    %c0_13 = arith.constant 0 : index
    %c0_14 = arith.constant 0 : index
    %22 = vector.load %arg7[%c0_13, %c0_14] : memref<32x32xbf16, #tpu.memory_space<vmem>>, vector<32x32xbf16>
    %cst_15 = arith.constant dense<0.000000e+00> : vector<16x32xf32>
    %23 = tpu.matmul %21, %22, %cst_15 {dimension_numbers = #tpu.dot_dimension_numbers<[1], [0], [0], [1], [0, 0, 1, 1], [], []>} : vector<16x32xbf16>, vector<32x32xbf16>, vector<16x32xf32> -> vector<16x32xf32>
    %c0_16 = arith.constant 0 : index
    %c0_17 = arith.constant 0 : index
    %24 = vector.load %arg8[%c0_16, %c0_17] : memref<1x32xf32, #tpu.memory_space<vmem>>, vector<1x32xf32>
    %25 = vector.broadcast %24 : vector<1x32xf32> to vector<16x32xf32>
    %26 = arith.addf %23, %25 : vector<16x32xf32>
    %cst_18 = arith.constant 0.000000e+00 : f32
    %27 = vector.broadcast %cst_18 : f32 to vector<16x32xf32>
    %28 = arith.subf %27, %26 : vector<16x32xf32>
    %29 = math.exp %28 : vector<16x32xf32>
    %cst_19 = arith.constant 1.000000e+00 : f32
    %30 = vector.broadcast %cst_19 : f32 to vector<16x32xf32>
    %31 = arith.addf %30, %29 : vector<16x32xf32>
    %cst_20 = arith.constant 1.000000e+00 : f32
    %32 = vector.broadcast %cst_20 : f32 to vector<16x32xf32>
    %33 = arith.divf %32, %31 : vector<16x32xf32>
    %34 = arith.mulf %26, %33 : vector<16x32xf32>
    %c0_21 = arith.constant 0 : index
    %c0_22 = arith.constant 0 : index
    %35 = vector.load %arg2[%c0_21, %c0_22] : memref<16x32xf32, #tpu.memory_space<vmem>>, vector<16x32xf32>
    %36 = arith.addf %34, %35 : vector<16x32xf32>
    %c0_23 = arith.constant 0 : index
    %c0_24 = arith.constant 0 : index
    %37 = vector.load %arg9[%c0_23, %c0_24] : memref<16x32xf32, #tpu.memory_space<vmem>>, vector<16x32xf32>
    tpu.vector_store %arg9[%c0_23, %c0_24], %36 {strides = array<i32>} : memref<16x32xf32, #tpu.memory_space<vmem>>, vector<16x32xf32>,
    return
  }
  func.func @transform_0(%arg0: i32) -> (i32, i32) {
    %c0_i32 = arith.constant 0 : i32
    %c0_i32_0 = arith.constant 0 : i32
    return %arg0, %c0_i32 : i32, i32
  }
  func.func @transform_1(%arg0: i32) -> (i32, i32) {
    %c0_i32 = arith.constant 0 : i32
    %c0_i32_0 = arith.constant 0 : i32
    return %arg0, %c0_i32 : i32, i32
  }
  func.func @transform_2(%arg0: i32) -> (i32, i32) {
    %c0_i32 = arith.constant 0 : i32
    %c0_i32_0 = arith.constant 0 : i32
    %c0_i32_1 = arith.constant 0 : i32
    return %c0_i32, %c0_i32_0 : i32, i32
  }
  func.func @transform_3(%arg0: i32) -> (i32, i32) {
    %c0_i32 = arith.constant 0 : i32
    %c0_i32_0 = arith.constant 0 : i32
    %c0_i32_1 = arith.constant 0 : i32
    return %c0_i32, %c0_i32_0 : i32, i32
  }
  func.func @transform_4(%arg0: i32) -> (i32, i32) {
    %c0_i32 = arith.constant 0 : i32
    %c0_i32_0 = arith.constant 0 : i32
    %c0_i32_1 = arith.constant 0 : i32
    return %c0_i32, %c0_i32_0 : i32, i32
  }
  func.func @transform_5(%arg0: i32) -> (i32, i32) {
    %c0_i32 = arith.constant 0 : i32
    %c0_i32_0 = arith.constant 0 : i32
    %c0_i32_1 = arith.constant 0 : i32
    return %c0_i32, %c0_i32_0 : i32, i32
  }
  func.func @transform_6(%arg0: i32) -> (i32, i32) {
    %c0_i32 = arith.constant 0 : i32
    %c0_i32_0 = arith.constant 0 : i32
    %c0_i32_1 = arith.constant 0 : i32
    return %c0_i32, %c0_i32_0 : i32, i32
  }
  func.func @transform_7(%arg0: i32) -> (i32, i32) {
    %c0_i32 = arith.constant 0 : i32
    %c0_i32_0 = arith.constant 0 : i32
    %c0_i32_1 = arith.constant 0 : i32
    return %c0_i32, %c0_i32_0 : i32, i32
  }
  func.func @transform_8(%arg0: i32) -> (i32, i32) {
    %c0_i32 = arith.constant 0 : i32
    %c0_i32_0 = arith.constant 0 : i32
    return %arg0, %c0_i32 : i32, i32
  }
}

module attributes {stable_mosaic.version = 11 : i64} {
  func.func @_decoder_layer_kernel(%arg0: i32, %arg1: memref<1x8x32xf32, #tpu.memory_space<vmem>>, %arg2: memref<1x8x32xf32, #tpu.memory_space<vmem>>, %arg3: memref<32x96xbf16, #tpu.memory_space<vmem>>, %arg4: memref<1x96xf32, #tpu.memory_space<vmem>>, %arg5: memref<32x32xbf16, #tpu.memory_space<vmem>>, %arg6: memref<1x32xf32, #tpu.memory_space<vmem>>, %arg7: memref<1x32xf32, #tpu.memory_space<vmem>>, %arg8: memref<1x32xf32, #tpu.memory_space<vmem>>, %arg9: memref<32x32xbf16, #tpu.memory_space<vmem>>, %arg10: memref<1x32xf32, #tpu.memory_space<vmem>>, %arg11: memref<32x64xbf16, #tpu.memory_space<vmem>>, %arg12: memref<1x64xf32, #tpu.memory_space<vmem>>, %arg13: memref<32x32xbf16, #tpu.memory_space<vmem>>, %arg14: memref<1x32xf32, #tpu.memory_space<vmem>>, %arg15: memref<1x32xf32, #tpu.memory_space<vmem>>, %arg16: memref<1x32xf32, #tpu.memory_space<vmem>>, %arg17: memref<32x4xbf16, #tpu.memory_space<vmem>>, %arg18: memref<1x4xf32, #tpu.memory_space<vmem>>, %arg19: memref<4x32xbf16, #tpu.memory_space<vmem>>, %arg20: memref<1x32xf32, #tpu.memory_space<vmem>>, %arg21: memref<1x32xf32, #tpu.memory_space<vmem>>, %arg22: memref<1x32xf32, #tpu.memory_space<vmem>>, %arg23: memref<1x8x32xf32, #tpu.memory_space<vmem>>) attributes {dimension_semantics = [#tpu.dimension_semantics<parallel>], iteration_bounds = array<i64: 2>, scalar_prefetch = 0 : i64, scratch_operands = 0 : i64, tpu.core_type = #tpu.core_type<tc>, window_params = [{transform_indices = @transform_0, window_bounds = array<i64: 1, 8, 32>}, {transform_indices = @transform_1, window_bounds = array<i64: 1, 8, 32>}, {pipeline_mode = #tpu.pipeline_mode<synchronous>, transform_indices = @transform_2, window_bounds = array<i64: 32, 96>}, {pipeline_mode = #tpu.pipeline_mode<synchronous>, transform_indices = @transform_3, window_bounds = array<i64: 1, 96>}, {pipeline_mode = #tpu.pipeline_mode<synchronous>, transform_indices = @transform_4, window_bounds = array<i64: 32, 32>}, {pipeline_mode = #tpu.pipeline_mode<synchronous>, transform_indices = @transform_5, window_bounds = array<i64: 1, 32>}, {pipeline_mode = #tpu.pipeline_mode<synchronous>, transform_indices = @transform_6, window_bounds = array<i64: 1, 32>}, {pipeline_mode = #tpu.pipeline_mode<synchronous>, transform_indices = @transform_7, window_bounds = array<i64: 1, 32>}, {pipeline_mode = #tpu.pipeline_mode<synchronous>, transform_indices = @transform_8, window_bounds = array<i64: 32, 32>}, {pipeline_mode = #tpu.pipeline_mode<synchronous>, transform_indices = @transform_9, window_bounds = array<i64: 1, 32>}, {pipeline_mode = #tpu.pipeline_mode<synchronous>, transform_indices = @transform_10, window_bounds = array<i64: 32, 64>}, {pipeline_mode = #tpu.pipeline_mode<synchronous>, transform_indices = @transform_11, window_bounds = array<i64: 1, 64>}, {pipeline_mode = #tpu.pipeline_mode<synchronous>, transform_indices = @transform_12, window_bounds = array<i64: 32, 32>}, {pipeline_mode = #tpu.pipeline_mode<synchronous>, transform_indices = @transform_13, window_bounds = array<i64: 1, 32>}, {pipeline_mode = #tpu.pipeline_mode<synchronous>, transform_indices = @transform_14, window_bounds = array<i64: 1, 32>}, {pipeline_mode = #tpu.pipeline_mode<synchronous>, transform_indices = @transform_15, window_bounds = array<i64: 1, 32>}, {pipeline_mode = #tpu.pipeline_mode<synchronous>, transform_indices = @transform_16, window_bounds = array<i64: 32, 4>}, {pipeline_mode = #tpu.pipeline_mode<synchronous>, transform_indices = @transform_17, window_bounds = array<i64: 1, 4>}, {pipeline_mode = #tpu.pipeline_mode<synchronous>, transform_indices = @transform_18, window_bounds = array<i64: 4, 32>}, {pipeline_mode = #tpu.pipeline_mode<synchronous>, transform_indices = @transform_19, window_bounds = array<i64: 1, 32>}, {pipeline_mode = #tpu.pipeline_mode<synchronous>, transform_indices = @transform_20, window_bounds = array<i64: 1, 32>}, {pipeline_mode = #tpu.pipeline_mode<synchronous>, transform_indices = @transform_21, window_bounds = array<i64: 1, 32>}, {transform_indices = @transform_22, window_bounds = array<i64: 1, 8, 32>}]} {
    %c0 = arith.constant 0 : index
    %c0_0 = arith.constant 0 : index
    %c0_1 = arith.constant 0 : index
    %0 = vector.load %arg1[%c0, %c0_0, %c0_1] : memref<1x8x32xf32, #tpu.memory_space<vmem>>, vector<1x8x32xf32>
    %1 = vector.shape_cast %0 : vector<1x8x32xf32> to vector<8x32xf32>
    %c0_2 = arith.constant 0 : index
    %c0_3 = arith.constant 0 : index
    %c0_4 = arith.constant 0 : index
    %2 = vector.load %arg2[%c0_2, %c0_3, %c0_4] : memref<1x8x32xf32, #tpu.memory_space<vmem>>, vector<1x8x32xf32>
    %3 = vector.shape_cast %2 : vector<1x8x32xf32> to vector<8x32xf32>
    %4 = arith.truncf %1 : vector<8x32xf32> to vector<8x32xbf16>
    %c0_5 = arith.constant 0 : index
    %c0_6 = arith.constant 0 : index
    %5 = vector.load %arg3[%c0_5, %c0_6] : memref<32x96xbf16, #tpu.memory_space<vmem>>, vector<32x96xbf16>
    %cst = arith.constant dense<0.000000e+00> : vector<8x96xf32>
    %6 = tpu.matmul %4, %5, %cst {dimension_numbers = #tpu.dot_dimension_numbers<[1], [0], [0], [1], [0, 0, 1, 1], [], []>} : vector<8x32xbf16>, vector<32x96xbf16>, vector<8x96xf32> -> vector<8x96xf32>
    %c0_7 = arith.constant 0 : index
    %c0_8 = arith.constant 0 : index
    %7 = vector.load %arg4[%c0_7, %c0_8] : memref<1x96xf32, #tpu.memory_space<vmem>>, vector<1x96xf32>
    %8 = vector.broadcast %7 : vector<1x96xf32> to vector<8x96xf32>
    %9 = arith.addf %6, %8 : vector<8x96xf32>
    %10 = vector.extract_strided_slice %9 {offsets = [0, 0], sizes = [8, 32], strides = [1, 1]} : vector<8x96xf32> to vector<8x32xf32>
    %11 = vector.extract_strided_slice %9 {offsets = [0, 32], sizes = [8, 32], strides = [1, 1]} : vector<8x96xf32> to vector<8x32xf32>
    %12 = vector.extract_strided_slice %9 {offsets = [0, 64], sizes = [8, 32], strides = [1, 1]} : vector<8x96xf32> to vector<8x32xf32>
    %13 = arith.truncf %10 : vector<8x32xf32> to vector<8x32xbf16>
    %14 = arith.truncf %11 : vector<8x32xf32> to vector<8x32xbf16>
    %cst_9 = arith.constant dense<0.000000e+00> : vector<8x8xf32>
    %15 = tpu.matmul %13, %14, %cst_9 {dimension_numbers = #tpu.dot_dimension_numbers<[1], [1], [0], [0], [0, 0, 1, 0], [], []>} : vector<8x32xbf16>, vector<8x32xbf16>, vector<8x8xf32> -> vector<8x8xf32>
    %cst_10 = arith.constant 0.176776692 : f32
    %16 = vector.broadcast %cst_10 : f32 to vector<8x8xf32>
    %17 = arith.mulf %15, %16 : vector<8x8xf32>
    %cst_11 = arith.constant dense<0xFF800000> : vector<8xf32>
    %18 = vector.multi_reduction <maximumf>, %17, %cst_11 [1] : vector<8x8xf32> to vector<8xf32>
    %19 = vector.shape_cast %18 : vector<8xf32> to vector<8x1xf32>
    %20 = vector.broadcast %19 : vector<8x1xf32> to vector<8x8xf32>
    %21 = arith.subf %17, %20 : vector<8x8xf32>
    %22 = math.exp %21 : vector<8x8xf32>
    %cst_12 = arith.constant dense<0.000000e+00> : vector<8xf32>
    %23 = vector.multi_reduction <add>, %22, %cst_12 [1] : vector<8x8xf32> to vector<8xf32>
    %24 = vector.shape_cast %23 : vector<8xf32> to vector<8x1xf32>
    %25 = tpu.reciprocal %24 {approx = true} : vector<8x1xf32> -> vector<8x1xf32>
    %26 = vector.broadcast %25 : vector<8x1xf32> to vector<8x8xf32>
    %27 = arith.mulf %22, %26 : vector<8x8xf32>
    %28 = arith.truncf %27 : vector<8x8xf32> to vector<8x8xbf16>
    %29 = arith.truncf %12 : vector<8x32xf32> to vector<8x32xbf16>
    %cst_13 = arith.constant dense<0.000000e+00> : vector<8x32xf32>
    %30 = tpu.matmul %28, %29, %cst_13 {dimension_numbers = #tpu.dot_dimension_numbers<[1], [0], [0], [1], [0, 0, 1, 1], [], []>} : vector<8x8xbf16>, vector<8x32xbf16>, vector<8x32xf32> -> vector<8x32xf32>
    %31 = arith.truncf %30 : vector<8x32xf32> to vector<8x32xbf16>
    %c0_14 = arith.constant 0 : index
    %c0_15 = arith.constant 0 : index
    %32 = vector.load %arg5[%c0_14, %c0_15] : memref<32x32xbf16, #tpu.memory_space<vmem>>, vector<32x32xbf16>
    %cst_16 = arith.constant dense<0.000000e+00> : vector<8x32xf32>
    %33 = tpu.matmul %31, %32, %cst_16 {dimension_numbers = #tpu.dot_dimension_numbers<[1], [0], [0], [1], [0, 0, 1, 1], [], []>} : vector<8x32xbf16>, vector<32x32xbf16>, vector<8x32xf32> -> vector<8x32xf32>
    %c0_17 = arith.constant 0 : index
    %c0_18 = arith.constant 0 : index
    %34 = vector.load %arg6[%c0_17, %c0_18] : memref<1x32xf32, #tpu.memory_space<vmem>>, vector<1x32xf32>
    %35 = vector.broadcast %34 : vector<1x32xf32> to vector<8x32xf32>
    %36 = arith.addf %33, %35 : vector<8x32xf32>
    %37 = arith.addf %1, %36 : vector<8x32xf32>
    %c0_19 = arith.constant 0 : index
    %c0_20 = arith.constant 0 : index
    %38 = vector.load %arg7[%c0_19, %c0_20] : memref<1x32xf32, #tpu.memory_space<vmem>>, vector<1x32xf32>
    %c0_21 = arith.constant 0 : index
    %c0_22 = arith.constant 0 : index
    %39 = vector.load %arg8[%c0_21, %c0_22] : memref<1x32xf32, #tpu.memory_space<vmem>>, vector<1x32xf32>
    %cst_23 = arith.constant dense<0.000000e+00> : vector<8xf32>
    %40 = vector.multi_reduction <add>, %37, %cst_23 [1] : vector<8x32xf32> to vector<8xf32>
    %41 = vector.shape_cast %40 : vector<8xf32> to vector<8x1xf32>
    %cst_24 = arith.constant 3.200000e+01 : f32
    %42 = vector.broadcast %cst_24 : f32 to vector<8x1xf32>
    %43 = arith.divf %41, %42 : vector<8x1xf32>
    %44 = vector.broadcast %43 : vector<8x1xf32> to vector<8x32xf32>
    %45 = arith.subf %37, %44 : vector<8x32xf32>
    %46 = arith.mulf %45, %45 : vector<8x32xf32>
    %cst_25 = arith.constant dense<0.000000e+00> : vector<8xf32>
    %47 = vector.multi_reduction <add>, %46, %cst_25 [1] : vector<8x32xf32> to vector<8xf32>
    %48 = vector.shape_cast %47 : vector<8xf32> to vector<8x1xf32>
    %cst_26 = arith.constant 3.200000e+01 : f32
    %49 = vector.broadcast %cst_26 : f32 to vector<8x1xf32>
    %50 = arith.divf %48, %49 : vector<8x1xf32>
    %cst_27 = arith.constant 9.99999974E-6 : f32
    %51 = vector.broadcast %cst_27 : f32 to vector<8x1xf32>
    %52 = arith.addf %50, %51 : vector<8x1xf32>
    %53 = math.rsqrt %52 : vector<8x1xf32>
    %54 = vector.broadcast %53 : vector<8x1xf32> to vector<8x32xf32>
    %55 = arith.mulf %45, %54 : vector<8x32xf32>
    %56 = vector.broadcast %38 : vector<1x32xf32> to vector<8x32xf32>
    %57 = arith.mulf %55, %56 : vector<8x32xf32>
    %58 = vector.broadcast %39 : vector<1x32xf32> to vector<8x32xf32>
    %59 = arith.addf %57, %58 : vector<8x32xf32>
    %60 = arith.truncf %59 : vector<8x32xf32> to vector<8x32xbf16>
    %c0_28 = arith.constant 0 : index
    %c0_29 = arith.constant 0 : index
    %61 = vector.load %arg9[%c0_28, %c0_29] : memref<32x32xbf16, #tpu.memory_space<vmem>>, vector<32x32xbf16>
    %cst_30 = arith.constant dense<0.000000e+00> : vector<8x32xf32>
    %62 = tpu.matmul %60, %61, %cst_30 {dimension_numbers = #tpu.dot_dimension_numbers<[1], [0], [0], [1], [0, 0, 1, 1], [], []>} : vector<8x32xbf16>, vector<32x32xbf16>, vector<8x32xf32> -> vector<8x32xf32>
    %c0_31 = arith.constant 0 : index
    %c0_32 = arith.constant 0 : index
    %63 = vector.load %arg10[%c0_31, %c0_32] : memref<1x32xf32, #tpu.memory_space<vmem>>, vector<1x32xf32>
    %64 = vector.broadcast %63 : vector<1x32xf32> to vector<8x32xf32>
    %65 = arith.addf %62, %64 : vector<8x32xf32>
    %66 = arith.truncf %3 : vector<8x32xf32> to vector<8x32xbf16>
    %c0_33 = arith.constant 0 : index
    %c0_34 = arith.constant 0 : index
    %67 = vector.load %arg11[%c0_33, %c0_34] : memref<32x64xbf16, #tpu.memory_space<vmem>>, vector<32x64xbf16>
    %cst_35 = arith.constant dense<0.000000e+00> : vector<8x64xf32>
    %68 = tpu.matmul %66, %67, %cst_35 {dimension_numbers = #tpu.dot_dimension_numbers<[1], [0], [0], [1], [0, 0, 1, 1], [], []>} : vector<8x32xbf16>, vector<32x64xbf16>, vector<8x64xf32> -> vector<8x64xf32>
    %c0_36 = arith.constant 0 : index
    %c0_37 = arith.constant 0 : index
    %69 = vector.load %arg12[%c0_36, %c0_37] : memref<1x64xf32, #tpu.memory_space<vmem>>, vector<1x64xf32>
    %70 = vector.broadcast %69 : vector<1x64xf32> to vector<8x64xf32>
    %71 = arith.addf %68, %70 : vector<8x64xf32>
    %72 = vector.extract_strided_slice %71 {offsets = [0, 0], sizes = [8, 32], strides = [1, 1]} : vector<8x64xf32> to vector<8x32xf32>
    %73 = vector.extract_strided_slice %71 {offsets = [0, 32], sizes = [8, 32], strides = [1, 1]} : vector<8x64xf32> to vector<8x32xf32>
    %74 = arith.truncf %65 : vector<8x32xf32> to vector<8x32xbf16>
    %75 = arith.truncf %72 : vector<8x32xf32> to vector<8x32xbf16>
    %cst_38 = arith.constant dense<0.000000e+00> : vector<8x8xf32>
    %76 = tpu.matmul %74, %75, %cst_38 {dimension_numbers = #tpu.dot_dimension_numbers<[1], [1], [0], [0], [0, 0, 1, 0], [], []>} : vector<8x32xbf16>, vector<8x32xbf16>, vector<8x8xf32> -> vector<8x8xf32>
    %cst_39 = arith.constant 0.176776692 : f32
    %77 = vector.broadcast %cst_39 : f32 to vector<8x8xf32>
    %78 = arith.mulf %76, %77 : vector<8x8xf32>
    %cst_40 = arith.constant dense<0xFF800000> : vector<8xf32>
    %79 = vector.multi_reduction <maximumf>, %78, %cst_40 [1] : vector<8x8xf32> to vector<8xf32>
    %80 = vector.shape_cast %79 : vector<8xf32> to vector<8x1xf32>
    %81 = vector.broadcast %80 : vector<8x1xf32> to vector<8x8xf32>
    %82 = arith.subf %78, %81 : vector<8x8xf32>
    %83 = math.exp %82 : vector<8x8xf32>
    %cst_41 = arith.constant dense<0.000000e+00> : vector<8xf32>
    %84 = vector.multi_reduction <add>, %83, %cst_41 [1] : vector<8x8xf32> to vector<8xf32>
    %85 = vector.shape_cast %84 : vector<8xf32> to vector<8x1xf32>
    %86 = tpu.reciprocal %85 {approx = true} : vector<8x1xf32> -> vector<8x1xf32>
    %87 = vector.broadcast %86 : vector<8x1xf32> to vector<8x8xf32>
    %88 = arith.mulf %83, %87 : vector<8x8xf32>
    %89 = arith.truncf %88 : vector<8x8xf32> to vector<8x8xbf16>
    %90 = arith.truncf %73 : vector<8x32xf32> to vector<8x32xbf16>
    %cst_42 = arith.constant dense<0.000000e+00> : vector<8x32xf32>
    %91 = tpu.matmul %89, %90, %cst_42 {dimension_numbers = #tpu.dot_dimension_numbers<[1], [0], [0], [1], [0, 0, 1, 1], [], []>} : vector<8x8xbf16>, vector<8x32xbf16>, vector<8x32xf32> -> vector<8x32xf32>
    %92 = arith.truncf %91 : vector<8x32xf32> to vector<8x32xbf16>
    %c0_43 = arith.constant 0 : index
    %c0_44 = arith.constant 0 : index
    %93 = vector.load %arg13[%c0_43, %c0_44] : memref<32x32xbf16, #tpu.memory_space<vmem>>, vector<32x32xbf16>
    %cst_45 = arith.constant dense<0.000000e+00> : vector<8x32xf32>
    %94 = tpu.matmul %92, %93, %cst_45 {dimension_numbers = #tpu.dot_dimension_numbers<[1], [0], [0], [1], [0, 0, 1, 1], [], []>} : vector<8x32xbf16>, vector<32x32xbf16>, vector<8x32xf32> -> vector<8x32xf32>
    %c0_46 = arith.constant 0 : index
    %c0_47 = arith.constant 0 : index
    %95 = vector.load %arg14[%c0_46, %c0_47] : memref<1x32xf32, #tpu.memory_space<vmem>>, vector<1x32xf32>
    %96 = vector.broadcast %95 : vector<1x32xf32> to vector<8x32xf32>
    %97 = arith.addf %94, %96 : vector<8x32xf32>
    %98 = arith.addf %59, %97 : vector<8x32xf32>
    %c0_48 = arith.constant 0 : index
    %c0_49 = arith.constant 0 : index
    %99 = vector.load %arg15[%c0_48, %c0_49] : memref<1x32xf32, #tpu.memory_space<vmem>>, vector<1x32xf32>
    %c0_50 = arith.constant 0 : index
    %c0_51 = arith.constant 0 : index
    %100 = vector.load %arg16[%c0_50, %c0_51] : memref<1x32xf32, #tpu.memory_space<vmem>>, vector<1x32xf32>
    %cst_52 = arith.constant dense<0.000000e+00> : vector<8xf32>
    %101 = vector.multi_reduction <add>, %98, %cst_52 [1] : vector<8x32xf32> to vector<8xf32>
    %102 = vector.shape_cast %101 : vector<8xf32> to vector<8x1xf32>
    %cst_53 = arith.constant 3.200000e+01 : f32
    %103 = vector.broadcast %cst_53 : f32 to vector<8x1xf32>
    %104 = arith.divf %102, %103 : vector<8x1xf32>
    %105 = vector.broadcast %104 : vector<8x1xf32> to vector<8x32xf32>
    %106 = arith.subf %98, %105 : vector<8x32xf32>
    %107 = arith.mulf %106, %106 : vector<8x32xf32>
    %cst_54 = arith.constant dense<0.000000e+00> : vector<8xf32>
    %108 = vector.multi_reduction <add>, %107, %cst_54 [1] : vector<8x32xf32> to vector<8xf32>
    %109 = vector.shape_cast %108 : vector<8xf32> to vector<8x1xf32>
    %cst_55 = arith.constant 3.200000e+01 : f32
    %110 = vector.broadcast %cst_55 : f32 to vector<8x1xf32>
    %111 = arith.divf %109, %110 : vector<8x1xf32>
    %cst_56 = arith.constant 9.99999974E-6 : f32
    %112 = vector.broadcast %cst_56 : f32 to vector<8x1xf32>
    %113 = arith.addf %111, %112 : vector<8x1xf32>
    %114 = math.rsqrt %113 : vector<8x1xf32>
    %115 = vector.broadcast %114 : vector<8x1xf32> to vector<8x32xf32>
    %116 = arith.mulf %106, %115 : vector<8x32xf32>
    %117 = vector.broadcast %99 : vector<1x32xf32> to vector<8x32xf32>
    %118 = arith.mulf %116, %117 : vector<8x32xf32>
    %119 = vector.broadcast %100 : vector<1x32xf32> to vector<8x32xf32>
    %120 = arith.addf %118, %119 : vector<8x32xf32>
    %121 = arith.truncf %120 : vector<8x32xf32> to vector<8x32xbf16>
    %c0_57 = arith.constant 0 : index
    %c0_58 = arith.constant 0 : index
    %122 = vector.load %arg17[%c0_57, %c0_58] : memref<32x4xbf16, #tpu.memory_space<vmem>>, vector<32x4xbf16>
    %cst_59 = arith.constant dense<0.000000e+00> : vector<8x4xf32>
    %123 = tpu.matmul %121, %122, %cst_59 {dimension_numbers = #tpu.dot_dimension_numbers<[1], [0], [0], [1], [0, 0, 1, 1], [], []>} : vector<8x32xbf16>, vector<32x4xbf16>, vector<8x4xf32> -> vector<8x4xf32>
    %c0_60 = arith.constant 0 : index
    %c0_61 = arith.constant 0 : index
    %124 = vector.load %arg18[%c0_60, %c0_61] : memref<1x4xf32, #tpu.memory_space<vmem>>, vector<1x4xf32>
    %125 = vector.broadcast %124 : vector<1x4xf32> to vector<8x4xf32>
    %126 = arith.addf %123, %125 : vector<8x4xf32>
    %cst_62 = arith.constant 0.000000e+00 : f32
    %127 = vector.broadcast %cst_62 : f32 to vector<8x4xf32>
    %128 = arith.subf %127, %126 : vector<8x4xf32>
    %129 = math.exp %128 : vector<8x4xf32>
    %cst_63 = arith.constant 1.000000e+00 : f32
    %130 = vector.broadcast %cst_63 : f32 to vector<8x4xf32>
    %131 = arith.addf %130, %129 : vector<8x4xf32>
    %cst_64 = arith.constant 1.000000e+00 : f32
    %132 = vector.broadcast %cst_64 : f32 to vector<8x4xf32>
    %133 = arith.divf %132, %131 : vector<8x4xf32>
    %134 = arith.mulf %126, %133 : vector<8x4xf32>
    %135 = arith.truncf %134 : vector<8x4xf32> to vector<8x4xbf16>
    %c0_65 = arith.constant 0 : index
    %c0_66 = arith.constant 0 : index
    %136 = vector.load %arg19[%c0_65, %c0_66] : memref<4x32xbf16, #tpu.memory_space<vmem>>, vector<4x32xbf16>
    %cst_67 = arith.constant dense<0.000000e+00> : vector<8x32xf32>
    %137 = tpu.matmul %135, %136, %cst_67 {dimension_numbers = #tpu.dot_dimension_numbers<[1], [0], [0], [1], [0, 0, 1, 1], [], []>} : vector<8x4xbf16>, vector<4x32xbf16>, vector<8x32xf32> -> vector<8x32xf32>
    %c0_68 = arith.constant 0 : index
    %c0_69 = arith.constant 0 : index
    %138 = vector.load %arg20[%c0_68, %c0_69] : memref<1x32xf32, #tpu.memory_space<vmem>>, vector<1x32xf32>
    %139 = vector.broadcast %138 : vector<1x32xf32> to vector<8x32xf32>
    %140 = arith.addf %137, %139 : vector<8x32xf32>
    %141 = arith.addf %120, %140 : vector<8x32xf32>
    %c0_70 = arith.constant 0 : index
    %c0_71 = arith.constant 0 : index
    %142 = vector.load %arg21[%c0_70, %c0_71] : memref<1x32xf32, #tpu.memory_space<vmem>>, vector<1x32xf32>
    %c0_72 = arith.constant 0 : index
    %c0_73 = arith.constant 0 : index
    %143 = vector.load %arg22[%c0_72, %c0_73] : memref<1x32xf32, #tpu.memory_space<vmem>>, vector<1x32xf32>
    %cst_74 = arith.constant dense<0.000000e+00> : vector<8xf32>
    %144 = vector.multi_reduction <add>, %141, %cst_74 [1] : vector<8x32xf32> to vector<8xf32>
    %145 = vector.shape_cast %144 : vector<8xf32> to vector<8x1xf32>
    %cst_75 = arith.constant 3.200000e+01 : f32
    %146 = vector.broadcast %cst_75 : f32 to vector<8x1xf32>
    %147 = arith.divf %145, %146 : vector<8x1xf32>
    %148 = vector.broadcast %147 : vector<8x1xf32> to vector<8x32xf32>
    %149 = arith.subf %141, %148 : vector<8x32xf32>
    %150 = arith.mulf %149, %149 : vector<8x32xf32>
    %cst_76 = arith.constant dense<0.000000e+00> : vector<8xf32>
    %151 = vector.multi_reduction <add>, %150, %cst_76 [1] : vector<8x32xf32> to vector<8xf32>
    %152 = vector.shape_cast %151 : vector<8xf32> to vector<8x1xf32>
    %cst_77 = arith.constant 3.200000e+01 : f32
    %153 = vector.broadcast %cst_77 : f32 to vector<8x1xf32>
    %154 = arith.divf %152, %153 : vector<8x1xf32>
    %cst_78 = arith.constant 9.99999974E-6 : f32
    %155 = vector.broadcast %cst_78 : f32 to vector<8x1xf32>
    %156 = arith.addf %154, %155 : vector<8x1xf32>
    %157 = math.rsqrt %156 : vector<8x1xf32>
    %158 = vector.broadcast %157 : vector<8x1xf32> to vector<8x32xf32>
    %159 = arith.mulf %149, %158 : vector<8x32xf32>
    %160 = vector.broadcast %142 : vector<1x32xf32> to vector<8x32xf32>
    %161 = arith.mulf %159, %160 : vector<8x32xf32>
    %162 = vector.broadcast %143 : vector<1x32xf32> to vector<8x32xf32>
    %163 = arith.addf %161, %162 : vector<8x32xf32>
    %c0_79 = arith.constant 0 : index
    %c0_80 = arith.constant 0 : index
    %c0_81 = arith.constant 0 : index
    %164 = vector.load %arg23[%c0_79, %c0_80, %c0_81] : memref<1x8x32xf32, #tpu.memory_space<vmem>>, vector<1x8x32xf32>
    %165 = vector.shape_cast %164 : vector<1x8x32xf32> to vector<8x32xf32>
    %166 = vector.shape_cast %163 : vector<8x32xf32> to vector<1x8x32xf32>
    tpu.vector_store %arg23[%c0_79, %c0_80, %c0_81], %166 {strides = array<i32>} : memref<1x8x32xf32, #tpu.memory_space<vmem>>, vector<1x8x32xf32>,
    return
  }
  func.func @transform_0(%arg0: i32) -> (i32, i32, i32) {
    %c0_i32 = arith.constant 0 : i32
    %c0_i32_0 = arith.constant 0 : i32
    %c0_i32_1 = arith.constant 0 : i32
    return %arg0, %c0_i32, %c0_i32_0 : i32, i32, i32
  }
  func.func @transform_1(%arg0: i32) -> (i32, i32, i32) {
    %c0_i32 = arith.constant 0 : i32
    %c0_i32_0 = arith.constant 0 : i32
    %c0_i32_1 = arith.constant 0 : i32
    return %arg0, %c0_i32, %c0_i32_0 : i32, i32, i32
  }
  func.func @transform_2(%arg0: i32) -> (i32, i32) {
    %c0_i32 = arith.constant 0 : i32
    %c0_i32_0 = arith.constant 0 : i32
    %c0_i32_1 = arith.constant 0 : i32
    return %c0_i32, %c0_i32_0 : i32, i32
  }
  func.func @transform_3(%arg0: i32) -> (i32, i32) {
    %c0_i32 = arith.constant 0 : i32
    %c0_i32_0 = arith.constant 0 : i32
    %c0_i32_1 = arith.constant 0 : i32
    return %c0_i32, %c0_i32_0 : i32, i32
  }
  func.func @transform_4(%arg0: i32) -> (i32, i32) {
    %c0_i32 = arith.constant 0 : i32
    %c0_i32_0 = arith.constant 0 : i32
    %c0_i32_1 = arith.constant 0 : i32
    return %c0_i32, %c0_i32_0 : i32, i32
  }
  func.func @transform_5(%arg0: i32) -> (i32, i32) {
    %c0_i32 = arith.constant 0 : i32
    %c0_i32_0 = arith.constant 0 : i32
    %c0_i32_1 = arith.constant 0 : i32
    return %c0_i32, %c0_i32_0 : i32, i32
  }
  func.func @transform_6(%arg0: i32) -> (i32, i32) {
    %c0_i32 = arith.constant 0 : i32
    %c0_i32_0 = arith.constant 0 : i32
    %c0_i32_1 = arith.constant 0 : i32
    return %c0_i32, %c0_i32_0 : i32, i32
  }
  func.func @transform_7(%arg0: i32) -> (i32, i32) {
    %c0_i32 = arith.constant 0 : i32
    %c0_i32_0 = arith.constant 0 : i32
    %c0_i32_1 = arith.constant 0 : i32
    return %c0_i32, %c0_i32_0 : i32, i32
  }
  func.func @transform_8(%arg0: i32) -> (i32, i32) {
    %c0_i32 = arith.constant 0 : i32
    %c0_i32_0 = arith.constant 0 : i32
    %c0_i32_1 = arith.constant 0 : i32
    return %c0_i32, %c0_i32_0 : i32, i32
  }
  func.func @transform_9(%arg0: i32) -> (i32, i32) {
    %c0_i32 = arith.constant 0 : i32
    %c0_i32_0 = arith.constant 0 : i32
    %c0_i32_1 = arith.constant 0 : i32
    return %c0_i32, %c0_i32_0 : i32, i32
  }
  func.func @transform_10(%arg0: i32) -> (i32, i32) {
    %c0_i32 = arith.constant 0 : i32
    %c0_i32_0 = arith.constant 0 : i32
    %c0_i32_1 = arith.constant 0 : i32
    return %c0_i32, %c0_i32_0 : i32, i32
  }
  func.func @transform_11(%arg0: i32) -> (i32, i32) {
    %c0_i32 = arith.constant 0 : i32
    %c0_i32_0 = arith.constant 0 : i32
    %c0_i32_1 = arith.constant 0 : i32
    return %c0_i32, %c0_i32_0 : i32, i32
  }
  func.func @transform_12(%arg0: i32) -> (i32, i32) {
    %c0_i32 = arith.constant 0 : i32
    %c0_i32_0 = arith.constant 0 : i32
    %c0_i32_1 = arith.constant 0 : i32
    return %c0_i32, %c0_i32_0 : i32, i32
  }
  func.func @transform_13(%arg0: i32) -> (i32, i32) {
    %c0_i32 = arith.constant 0 : i32
    %c0_i32_0 = arith.constant 0 : i32
    %c0_i32_1 = arith.constant 0 : i32
    return %c0_i32, %c0_i32_0 : i32, i32
  }
  func.func @transform_14(%arg0: i32) -> (i32, i32) {
    %c0_i32 = arith.constant 0 : i32
    %c0_i32_0 = arith.constant 0 : i32
    %c0_i32_1 = arith.constant 0 : i32
    return %c0_i32, %c0_i32_0 : i32, i32
  }
  func.func @transform_15(%arg0: i32) -> (i32, i32) {
    %c0_i32 = arith.constant 0 : i32
    %c0_i32_0 = arith.constant 0 : i32
    %c0_i32_1 = arith.constant 0 : i32
    return %c0_i32, %c0_i32_0 : i32, i32
  }
  func.func @transform_16(%arg0: i32) -> (i32, i32) {
    %c0_i32 = arith.constant 0 : i32
    %c0_i32_0 = arith.constant 0 : i32
    %c0_i32_1 = arith.constant 0 : i32
    return %c0_i32, %c0_i32_0 : i32, i32
  }
  func.func @transform_17(%arg0: i32) -> (i32, i32) {
    %c0_i32 = arith.constant 0 : i32
    %c0_i32_0 = arith.constant 0 : i32
    %c0_i32_1 = arith.constant 0 : i32
    return %c0_i32, %c0_i32_0 : i32, i32
  }
  func.func @transform_18(%arg0: i32) -> (i32, i32) {
    %c0_i32 = arith.constant 0 : i32
    %c0_i32_0 = arith.constant 0 : i32
    %c0_i32_1 = arith.constant 0 : i32
    return %c0_i32, %c0_i32_0 : i32, i32
  }
  func.func @transform_19(%arg0: i32) -> (i32, i32) {
    %c0_i32 = arith.constant 0 : i32
    %c0_i32_0 = arith.constant 0 : i32
    %c0_i32_1 = arith.constant 0 : i32
    return %c0_i32, %c0_i32_0 : i32, i32
  }
  func.func @transform_20(%arg0: i32) -> (i32, i32) {
    %c0_i32 = arith.constant 0 : i32
    %c0_i32_0 = arith.constant 0 : i32
    %c0_i32_1 = arith.constant 0 : i32
    return %c0_i32, %c0_i32_0 : i32, i32
  }
  func.func @transform_21(%arg0: i32) -> (i32, i32) {
    %c0_i32 = arith.constant 0 : i32
    %c0_i32_0 = arith.constant 0 : i32
    %c0_i32_1 = arith.constant 0 : i32
    return %c0_i32, %c0_i32_0 : i32, i32
  }
  func.func @transform_22(%arg0: i32) -> (i32, i32, i32) {
    %c0_i32 = arith.constant 0 : i32
    %c0_i32_0 = arith.constant 0 : i32
    %c0_i32_1 = arith.constant 0 : i32
    return %arg0, %c0_i32, %c0_i32_0 : i32, i32, i32
  }
}

module attributes {stable_mosaic.version = 11 : i64} {
  func.func @_encoder_layer_kernel(%arg0: i32, %arg1: memref<1x8x32xf32, #tpu.memory_space<vmem>>, %arg2: memref<32x96xbf16, #tpu.memory_space<vmem>>, %arg3: memref<1x96xf32, #tpu.memory_space<vmem>>, %arg4: memref<32x32xbf16, #tpu.memory_space<vmem>>, %arg5: memref<1x32xf32, #tpu.memory_space<vmem>>, %arg6: memref<1x32xf32, #tpu.memory_space<vmem>>, %arg7: memref<1x32xf32, #tpu.memory_space<vmem>>, %arg8: memref<32x4xbf16, #tpu.memory_space<vmem>>, %arg9: memref<1x4xf32, #tpu.memory_space<vmem>>, %arg10: memref<4x32xbf16, #tpu.memory_space<vmem>>, %arg11: memref<1x32xf32, #tpu.memory_space<vmem>>, %arg12: memref<1x32xf32, #tpu.memory_space<vmem>>, %arg13: memref<1x32xf32, #tpu.memory_space<vmem>>, %arg14: memref<1x8x32xf32, #tpu.memory_space<vmem>>) attributes {dimension_semantics = [#tpu.dimension_semantics<parallel>], iteration_bounds = array<i64: 2>, scalar_prefetch = 0 : i64, scratch_operands = 0 : i64, tpu.core_type = #tpu.core_type<tc>, window_params = [{transform_indices = @transform_0, window_bounds = array<i64: 1, 8, 32>}, {pipeline_mode = #tpu.pipeline_mode<synchronous>, transform_indices = @transform_1, window_bounds = array<i64: 32, 96>}, {pipeline_mode = #tpu.pipeline_mode<synchronous>, transform_indices = @transform_2, window_bounds = array<i64: 1, 96>}, {pipeline_mode = #tpu.pipeline_mode<synchronous>, transform_indices = @transform_3, window_bounds = array<i64: 32, 32>}, {pipeline_mode = #tpu.pipeline_mode<synchronous>, transform_indices = @transform_4, window_bounds = array<i64: 1, 32>}, {pipeline_mode = #tpu.pipeline_mode<synchronous>, transform_indices = @transform_5, window_bounds = array<i64: 1, 32>}, {pipeline_mode = #tpu.pipeline_mode<synchronous>, transform_indices = @transform_6, window_bounds = array<i64: 1, 32>}, {pipeline_mode = #tpu.pipeline_mode<synchronous>, transform_indices = @transform_7, window_bounds = array<i64: 32, 4>}, {pipeline_mode = #tpu.pipeline_mode<synchronous>, transform_indices = @transform_8, window_bounds = array<i64: 1, 4>}, {pipeline_mode = #tpu.pipeline_mode<synchronous>, transform_indices = @transform_9, window_bounds = array<i64: 4, 32>}, {pipeline_mode = #tpu.pipeline_mode<synchronous>, transform_indices = @transform_10, window_bounds = array<i64: 1, 32>}, {pipeline_mode = #tpu.pipeline_mode<synchronous>, transform_indices = @transform_11, window_bounds = array<i64: 1, 32>}, {pipeline_mode = #tpu.pipeline_mode<synchronous>, transform_indices = @transform_12, window_bounds = array<i64: 1, 32>}, {transform_indices = @transform_13, window_bounds = array<i64: 1, 8, 32>}]} {
    %c0 = arith.constant 0 : index
    %c0_0 = arith.constant 0 : index
    %c0_1 = arith.constant 0 : index
    %0 = vector.load %arg1[%c0, %c0_0, %c0_1] : memref<1x8x32xf32, #tpu.memory_space<vmem>>, vector<1x8x32xf32>
    %1 = vector.shape_cast %0 : vector<1x8x32xf32> to vector<8x32xf32>
    %2 = arith.truncf %1 : vector<8x32xf32> to vector<8x32xbf16>
    %c0_2 = arith.constant 0 : index
    %c0_3 = arith.constant 0 : index
    %3 = vector.load %arg2[%c0_2, %c0_3] : memref<32x96xbf16, #tpu.memory_space<vmem>>, vector<32x96xbf16>
    %cst = arith.constant dense<0.000000e+00> : vector<8x96xf32>
    %4 = tpu.matmul %2, %3, %cst {dimension_numbers = #tpu.dot_dimension_numbers<[1], [0], [0], [1], [0, 0, 1, 1], [], []>} : vector<8x32xbf16>, vector<32x96xbf16>, vector<8x96xf32> -> vector<8x96xf32>
    %c0_4 = arith.constant 0 : index
    %c0_5 = arith.constant 0 : index
    %5 = vector.load %arg3[%c0_4, %c0_5] : memref<1x96xf32, #tpu.memory_space<vmem>>, vector<1x96xf32>
    %6 = vector.broadcast %5 : vector<1x96xf32> to vector<8x96xf32>
    %7 = arith.addf %4, %6 : vector<8x96xf32>
    %8 = vector.extract_strided_slice %7 {offsets = [0, 0], sizes = [8, 32], strides = [1, 1]} : vector<8x96xf32> to vector<8x32xf32>
    %9 = vector.extract_strided_slice %7 {offsets = [0, 32], sizes = [8, 32], strides = [1, 1]} : vector<8x96xf32> to vector<8x32xf32>
    %10 = vector.extract_strided_slice %7 {offsets = [0, 64], sizes = [8, 32], strides = [1, 1]} : vector<8x96xf32> to vector<8x32xf32>
    %11 = arith.truncf %8 : vector<8x32xf32> to vector<8x32xbf16>
    %12 = arith.truncf %9 : vector<8x32xf32> to vector<8x32xbf16>
    %cst_6 = arith.constant dense<0.000000e+00> : vector<8x8xf32>
    %13 = tpu.matmul %11, %12, %cst_6 {dimension_numbers = #tpu.dot_dimension_numbers<[1], [1], [0], [0], [0, 0, 1, 0], [], []>} : vector<8x32xbf16>, vector<8x32xbf16>, vector<8x8xf32> -> vector<8x8xf32>
    %cst_7 = arith.constant 0.176776692 : f32
    %14 = vector.broadcast %cst_7 : f32 to vector<8x8xf32>
    %15 = arith.mulf %13, %14 : vector<8x8xf32>
    %cst_8 = arith.constant dense<0xFF800000> : vector<8xf32>
    %16 = vector.multi_reduction <maximumf>, %15, %cst_8 [1] : vector<8x8xf32> to vector<8xf32>
    %17 = vector.shape_cast %16 : vector<8xf32> to vector<8x1xf32>
    %18 = vector.broadcast %17 : vector<8x1xf32> to vector<8x8xf32>
    %19 = arith.subf %15, %18 : vector<8x8xf32>
    %20 = math.exp %19 : vector<8x8xf32>
    %cst_9 = arith.constant dense<0.000000e+00> : vector<8xf32>
    %21 = vector.multi_reduction <add>, %20, %cst_9 [1] : vector<8x8xf32> to vector<8xf32>
    %22 = vector.shape_cast %21 : vector<8xf32> to vector<8x1xf32>
    %23 = tpu.reciprocal %22 {approx = true} : vector<8x1xf32> -> vector<8x1xf32>
    %24 = vector.broadcast %23 : vector<8x1xf32> to vector<8x8xf32>
    %25 = arith.mulf %20, %24 : vector<8x8xf32>
    %26 = arith.truncf %25 : vector<8x8xf32> to vector<8x8xbf16>
    %27 = arith.truncf %10 : vector<8x32xf32> to vector<8x32xbf16>
    %cst_10 = arith.constant dense<0.000000e+00> : vector<8x32xf32>
    %28 = tpu.matmul %26, %27, %cst_10 {dimension_numbers = #tpu.dot_dimension_numbers<[1], [0], [0], [1], [0, 0, 1, 1], [], []>} : vector<8x8xbf16>, vector<8x32xbf16>, vector<8x32xf32> -> vector<8x32xf32>
    %29 = arith.truncf %28 : vector<8x32xf32> to vector<8x32xbf16>
    %c0_11 = arith.constant 0 : index
    %c0_12 = arith.constant 0 : index
    %30 = vector.load %arg4[%c0_11, %c0_12] : memref<32x32xbf16, #tpu.memory_space<vmem>>, vector<32x32xbf16>
    %cst_13 = arith.constant dense<0.000000e+00> : vector<8x32xf32>
    %31 = tpu.matmul %29, %30, %cst_13 {dimension_numbers = #tpu.dot_dimension_numbers<[1], [0], [0], [1], [0, 0, 1, 1], [], []>} : vector<8x32xbf16>, vector<32x32xbf16>, vector<8x32xf32> -> vector<8x32xf32>
    %c0_14 = arith.constant 0 : index
    %c0_15 = arith.constant 0 : index
    %32 = vector.load %arg5[%c0_14, %c0_15] : memref<1x32xf32, #tpu.memory_space<vmem>>, vector<1x32xf32>
    %33 = vector.broadcast %32 : vector<1x32xf32> to vector<8x32xf32>
    %34 = arith.addf %31, %33 : vector<8x32xf32>
    %35 = arith.addf %1, %34 : vector<8x32xf32>
    %c0_16 = arith.constant 0 : index
    %c0_17 = arith.constant 0 : index
    %36 = vector.load %arg6[%c0_16, %c0_17] : memref<1x32xf32, #tpu.memory_space<vmem>>, vector<1x32xf32>
    %c0_18 = arith.constant 0 : index
    %c0_19 = arith.constant 0 : index
    %37 = vector.load %arg7[%c0_18, %c0_19] : memref<1x32xf32, #tpu.memory_space<vmem>>, vector<1x32xf32>
    %cst_20 = arith.constant dense<0.000000e+00> : vector<8xf32>
    %38 = vector.multi_reduction <add>, %35, %cst_20 [1] : vector<8x32xf32> to vector<8xf32>
    %39 = vector.shape_cast %38 : vector<8xf32> to vector<8x1xf32>
    %cst_21 = arith.constant 3.200000e+01 : f32
    %40 = vector.broadcast %cst_21 : f32 to vector<8x1xf32>
    %41 = arith.divf %39, %40 : vector<8x1xf32>
    %42 = vector.broadcast %41 : vector<8x1xf32> to vector<8x32xf32>
    %43 = arith.subf %35, %42 : vector<8x32xf32>
    %44 = arith.mulf %43, %43 : vector<8x32xf32>
    %cst_22 = arith.constant dense<0.000000e+00> : vector<8xf32>
    %45 = vector.multi_reduction <add>, %44, %cst_22 [1] : vector<8x32xf32> to vector<8xf32>
    %46 = vector.shape_cast %45 : vector<8xf32> to vector<8x1xf32>
    %cst_23 = arith.constant 3.200000e+01 : f32
    %47 = vector.broadcast %cst_23 : f32 to vector<8x1xf32>
    %48 = arith.divf %46, %47 : vector<8x1xf32>
    %cst_24 = arith.constant 9.99999974E-6 : f32
    %49 = vector.broadcast %cst_24 : f32 to vector<8x1xf32>
    %50 = arith.addf %48, %49 : vector<8x1xf32>
    %51 = math.rsqrt %50 : vector<8x1xf32>
    %52 = vector.broadcast %51 : vector<8x1xf32> to vector<8x32xf32>
    %53 = arith.mulf %43, %52 : vector<8x32xf32>
    %54 = vector.broadcast %36 : vector<1x32xf32> to vector<8x32xf32>
    %55 = arith.mulf %53, %54 : vector<8x32xf32>
    %56 = vector.broadcast %37 : vector<1x32xf32> to vector<8x32xf32>
    %57 = arith.addf %55, %56 : vector<8x32xf32>
    %58 = arith.truncf %57 : vector<8x32xf32> to vector<8x32xbf16>
    %c0_25 = arith.constant 0 : index
    %c0_26 = arith.constant 0 : index
    %59 = vector.load %arg8[%c0_25, %c0_26] : memref<32x4xbf16, #tpu.memory_space<vmem>>, vector<32x4xbf16>
    %cst_27 = arith.constant dense<0.000000e+00> : vector<8x4xf32>
    %60 = tpu.matmul %58, %59, %cst_27 {dimension_numbers = #tpu.dot_dimension_numbers<[1], [0], [0], [1], [0, 0, 1, 1], [], []>} : vector<8x32xbf16>, vector<32x4xbf16>, vector<8x4xf32> -> vector<8x4xf32>
    %c0_28 = arith.constant 0 : index
    %c0_29 = arith.constant 0 : index
    %61 = vector.load %arg9[%c0_28, %c0_29] : memref<1x4xf32, #tpu.memory_space<vmem>>, vector<1x4xf32>
    %62 = vector.broadcast %61 : vector<1x4xf32> to vector<8x4xf32>
    %63 = arith.addf %60, %62 : vector<8x4xf32>
    %cst_30 = arith.constant 0.000000e+00 : f32
    %64 = vector.broadcast %cst_30 : f32 to vector<8x4xf32>
    %65 = arith.subf %64, %63 : vector<8x4xf32>
    %66 = math.exp %65 : vector<8x4xf32>
    %cst_31 = arith.constant 1.000000e+00 : f32
    %67 = vector.broadcast %cst_31 : f32 to vector<8x4xf32>
    %68 = arith.addf %67, %66 : vector<8x4xf32>
    %cst_32 = arith.constant 1.000000e+00 : f32
    %69 = vector.broadcast %cst_32 : f32 to vector<8x4xf32>
    %70 = arith.divf %69, %68 : vector<8x4xf32>
    %71 = arith.mulf %63, %70 : vector<8x4xf32>
    %72 = arith.truncf %71 : vector<8x4xf32> to vector<8x4xbf16>
    %c0_33 = arith.constant 0 : index
    %c0_34 = arith.constant 0 : index
    %73 = vector.load %arg10[%c0_33, %c0_34] : memref<4x32xbf16, #tpu.memory_space<vmem>>, vector<4x32xbf16>
    %cst_35 = arith.constant dense<0.000000e+00> : vector<8x32xf32>
    %74 = tpu.matmul %72, %73, %cst_35 {dimension_numbers = #tpu.dot_dimension_numbers<[1], [0], [0], [1], [0, 0, 1, 1], [], []>} : vector<8x4xbf16>, vector<4x32xbf16>, vector<8x32xf32> -> vector<8x32xf32>
    %c0_36 = arith.constant 0 : index
    %c0_37 = arith.constant 0 : index
    %75 = vector.load %arg11[%c0_36, %c0_37] : memref<1x32xf32, #tpu.memory_space<vmem>>, vector<1x32xf32>
    %76 = vector.broadcast %75 : vector<1x32xf32> to vector<8x32xf32>
    %77 = arith.addf %74, %76 : vector<8x32xf32>
    %78 = arith.addf %57, %77 : vector<8x32xf32>
    %c0_38 = arith.constant 0 : index
    %c0_39 = arith.constant 0 : index
    %79 = vector.load %arg12[%c0_38, %c0_39] : memref<1x32xf32, #tpu.memory_space<vmem>>, vector<1x32xf32>
    %c0_40 = arith.constant 0 : index
    %c0_41 = arith.constant 0 : index
    %80 = vector.load %arg13[%c0_40, %c0_41] : memref<1x32xf32, #tpu.memory_space<vmem>>, vector<1x32xf32>
    %cst_42 = arith.constant dense<0.000000e+00> : vector<8xf32>
    %81 = vector.multi_reduction <add>, %78, %cst_42 [1] : vector<8x32xf32> to vector<8xf32>
    %82 = vector.shape_cast %81 : vector<8xf32> to vector<8x1xf32>
    %cst_43 = arith.constant 3.200000e+01 : f32
    %83 = vector.broadcast %cst_43 : f32 to vector<8x1xf32>
    %84 = arith.divf %82, %83 : vector<8x1xf32>
    %85 = vector.broadcast %84 : vector<8x1xf32> to vector<8x32xf32>
    %86 = arith.subf %78, %85 : vector<8x32xf32>
    %87 = arith.mulf %86, %86 : vector<8x32xf32>
    %cst_44 = arith.constant dense<0.000000e+00> : vector<8xf32>
    %88 = vector.multi_reduction <add>, %87, %cst_44 [1] : vector<8x32xf32> to vector<8xf32>
    %89 = vector.shape_cast %88 : vector<8xf32> to vector<8x1xf32>
    %cst_45 = arith.constant 3.200000e+01 : f32
    %90 = vector.broadcast %cst_45 : f32 to vector<8x1xf32>
    %91 = arith.divf %89, %90 : vector<8x1xf32>
    %cst_46 = arith.constant 9.99999974E-6 : f32
    %92 = vector.broadcast %cst_46 : f32 to vector<8x1xf32>
    %93 = arith.addf %91, %92 : vector<8x1xf32>
    %94 = math.rsqrt %93 : vector<8x1xf32>
    %95 = vector.broadcast %94 : vector<8x1xf32> to vector<8x32xf32>
    %96 = arith.mulf %86, %95 : vector<8x32xf32>
    %97 = vector.broadcast %79 : vector<1x32xf32> to vector<8x32xf32>
    %98 = arith.mulf %96, %97 : vector<8x32xf32>
    %99 = vector.broadcast %80 : vector<1x32xf32> to vector<8x32xf32>
    %100 = arith.addf %98, %99 : vector<8x32xf32>
    %c0_47 = arith.constant 0 : index
    %c0_48 = arith.constant 0 : index
    %c0_49 = arith.constant 0 : index
    %101 = vector.load %arg14[%c0_47, %c0_48, %c0_49] : memref<1x8x32xf32, #tpu.memory_space<vmem>>, vector<1x8x32xf32>
    %102 = vector.shape_cast %101 : vector<1x8x32xf32> to vector<8x32xf32>
    %103 = vector.shape_cast %100 : vector<8x32xf32> to vector<1x8x32xf32>
    tpu.vector_store %arg14[%c0_47, %c0_48, %c0_49], %103 {strides = array<i32>} : memref<1x8x32xf32, #tpu.memory_space<vmem>>, vector<1x8x32xf32>,
    return
  }
  func.func @transform_0(%arg0: i32) -> (i32, i32, i32) {
    %c0_i32 = arith.constant 0 : i32
    %c0_i32_0 = arith.constant 0 : i32
    %c0_i32_1 = arith.constant 0 : i32
    return %arg0, %c0_i32, %c0_i32_0 : i32, i32, i32
  }
  func.func @transform_1(%arg0: i32) -> (i32, i32) {
    %c0_i32 = arith.constant 0 : i32
    %c0_i32_0 = arith.constant 0 : i32
    %c0_i32_1 = arith.constant 0 : i32
    return %c0_i32, %c0_i32_0 : i32, i32
  }
  func.func @transform_2(%arg0: i32) -> (i32, i32) {
    %c0_i32 = arith.constant 0 : i32
    %c0_i32_0 = arith.constant 0 : i32
    %c0_i32_1 = arith.constant 0 : i32
    return %c0_i32, %c0_i32_0 : i32, i32
  }
  func.func @transform_3(%arg0: i32) -> (i32, i32) {
    %c0_i32 = arith.constant 0 : i32
    %c0_i32_0 = arith.constant 0 : i32
    %c0_i32_1 = arith.constant 0 : i32
    return %c0_i32, %c0_i32_0 : i32, i32
  }
  func.func @transform_4(%arg0: i32) -> (i32, i32) {
    %c0_i32 = arith.constant 0 : i32
    %c0_i32_0 = arith.constant 0 : i32
    %c0_i32_1 = arith.constant 0 : i32
    return %c0_i32, %c0_i32_0 : i32, i32
  }
  func.func @transform_5(%arg0: i32) -> (i32, i32) {
    %c0_i32 = arith.constant 0 : i32
    %c0_i32_0 = arith.constant 0 : i32
    %c0_i32_1 = arith.constant 0 : i32
    return %c0_i32, %c0_i32_0 : i32, i32
  }
  func.func @transform_6(%arg0: i32) -> (i32, i32) {
    %c0_i32 = arith.constant 0 : i32
    %c0_i32_0 = arith.constant 0 : i32
    %c0_i32_1 = arith.constant 0 : i32
    return %c0_i32, %c0_i32_0 : i32, i32
  }
  func.func @transform_7(%arg0: i32) -> (i32, i32) {
    %c0_i32 = arith.constant 0 : i32
    %c0_i32_0 = arith.constant 0 : i32
    %c0_i32_1 = arith.constant 0 : i32
    return %c0_i32, %c0_i32_0 : i32, i32
  }
  func.func @transform_8(%arg0: i32) -> (i32, i32) {
    %c0_i32 = arith.constant 0 : i32
    %c0_i32_0 = arith.constant 0 : i32
    %c0_i32_1 = arith.constant 0 : i32
    return %c0_i32, %c0_i32_0 : i32, i32
  }
  func.func @transform_9(%arg0: i32) -> (i32, i32) {
    %c0_i32 = arith.constant 0 : i32
    %c0_i32_0 = arith.constant 0 : i32
    %c0_i32_1 = arith.constant 0 : i32
    return %c0_i32, %c0_i32_0 : i32, i32
  }
  func.func @transform_10(%arg0: i32) -> (i32, i32) {
    %c0_i32 = arith.constant 0 : i32
    %c0_i32_0 = arith.constant 0 : i32
    %c0_i32_1 = arith.constant 0 : i32
    return %c0_i32, %c0_i32_0 : i32, i32
  }
  func.func @transform_11(%arg0: i32) -> (i32, i32) {
    %c0_i32 = arith.constant 0 : i32
    %c0_i32_0 = arith.constant 0 : i32
    %c0_i32_1 = arith.constant 0 : i32
    return %c0_i32, %c0_i32_0 : i32, i32
  }
  func.func @transform_12(%arg0: i32) -> (i32, i32) {
    %c0_i32 = arith.constant 0 : i32
    %c0_i32_0 = arith.constant 0 : i32
    %c0_i32_1 = arith.constant 0 : i32
    return %c0_i32, %c0_i32_0 : i32, i32
  }
  func.func @transform_13(%arg0: i32) -> (i32, i32, i32) {
    %c0_i32 = arith.constant 0 : i32
    %c0_i32_0 = arith.constant 0 : i32
    %c0_i32_1 = arith.constant 0 : i32
    return %arg0, %c0_i32, %c0_i32_0 : i32, i32, i32
  }
}

module attributes {stable_mosaic.version = 11 : i64} {
  func.func @_decoder_layer_kernel(%arg0: i32, %arg1: memref<1x8x32xf32, #tpu.memory_space<vmem>>, %arg2: memref<1x8x32xf32, #tpu.memory_space<vmem>>, %arg3: memref<32x96xbf16, #tpu.memory_space<vmem>>, %arg4: memref<1x96xf32, #tpu.memory_space<vmem>>, %arg5: memref<32x32xbf16, #tpu.memory_space<vmem>>, %arg6: memref<1x32xf32, #tpu.memory_space<vmem>>, %arg7: memref<1x32xf32, #tpu.memory_space<vmem>>, %arg8: memref<1x32xf32, #tpu.memory_space<vmem>>, %arg9: memref<32x32xbf16, #tpu.memory_space<vmem>>, %arg10: memref<1x32xf32, #tpu.memory_space<vmem>>, %arg11: memref<32x64xbf16, #tpu.memory_space<vmem>>, %arg12: memref<1x64xf32, #tpu.memory_space<vmem>>, %arg13: memref<32x32xbf16, #tpu.memory_space<vmem>>, %arg14: memref<1x32xf32, #tpu.memory_space<vmem>>, %arg15: memref<1x32xf32, #tpu.memory_space<vmem>>, %arg16: memref<1x32xf32, #tpu.memory_space<vmem>>, %arg17: memref<32x4xbf16, #tpu.memory_space<vmem>>, %arg18: memref<1x4xf32, #tpu.memory_space<vmem>>, %arg19: memref<4x32xbf16, #tpu.memory_space<vmem>>, %arg20: memref<1x32xf32, #tpu.memory_space<vmem>>, %arg21: memref<1x32xf32, #tpu.memory_space<vmem>>, %arg22: memref<1x32xf32, #tpu.memory_space<vmem>>, %arg23: memref<1x8x32xf32, #tpu.memory_space<vmem>>) attributes {dimension_semantics = [#tpu.dimension_semantics<parallel>], iteration_bounds = array<i64: 2>, scalar_prefetch = 0 : i64, scratch_operands = 0 : i64, tpu.core_type = #tpu.core_type<tc>, window_params = [{transform_indices = @transform_0, window_bounds = array<i64: 1, 8, 32>}, {transform_indices = @transform_1, window_bounds = array<i64: 1, 8, 32>}, {pipeline_mode = #tpu.pipeline_mode<synchronous>, transform_indices = @transform_2, window_bounds = array<i64: 32, 96>}, {pipeline_mode = #tpu.pipeline_mode<synchronous>, transform_indices = @transform_3, window_bounds = array<i64: 1, 96>}, {pipeline_mode = #tpu.pipeline_mode<synchronous>, transform_indices = @transform_4, window_bounds = array<i64: 32, 32>}, {pipeline_mode = #tpu.pipeline_mode<synchronous>, transform_indices = @transform_5, window_bounds = array<i64: 1, 32>}, {pipeline_mode = #tpu.pipeline_mode<synchronous>, transform_indices = @transform_6, window_bounds = array<i64: 1, 32>}, {pipeline_mode = #tpu.pipeline_mode<synchronous>, transform_indices = @transform_7, window_bounds = array<i64: 1, 32>}, {pipeline_mode = #tpu.pipeline_mode<synchronous>, transform_indices = @transform_8, window_bounds = array<i64: 32, 32>}, {pipeline_mode = #tpu.pipeline_mode<synchronous>, transform_indices = @transform_9, window_bounds = array<i64: 1, 32>}, {pipeline_mode = #tpu.pipeline_mode<synchronous>, transform_indices = @transform_10, window_bounds = array<i64: 32, 64>}, {pipeline_mode = #tpu.pipeline_mode<synchronous>, transform_indices = @transform_11, window_bounds = array<i64: 1, 64>}, {pipeline_mode = #tpu.pipeline_mode<synchronous>, transform_indices = @transform_12, window_bounds = array<i64: 32, 32>}, {pipeline_mode = #tpu.pipeline_mode<synchronous>, transform_indices = @transform_13, window_bounds = array<i64: 1, 32>}, {pipeline_mode = #tpu.pipeline_mode<synchronous>, transform_indices = @transform_14, window_bounds = array<i64: 1, 32>}, {pipeline_mode = #tpu.pipeline_mode<synchronous>, transform_indices = @transform_15, window_bounds = array<i64: 1, 32>}, {pipeline_mode = #tpu.pipeline_mode<synchronous>, transform_indices = @transform_16, window_bounds = array<i64: 32, 4>}, {pipeline_mode = #tpu.pipeline_mode<synchronous>, transform_indices = @transform_17, window_bounds = array<i64: 1, 4>}, {pipeline_mode = #tpu.pipeline_mode<synchronous>, transform_indices = @transform_18, window_bounds = array<i64: 4, 32>}, {pipeline_mode = #tpu.pipeline_mode<synchronous>, transform_indices = @transform_19, window_bounds = array<i64: 1, 32>}, {pipeline_mode = #tpu.pipeline_mode<synchronous>, transform_indices = @transform_20, window_bounds = array<i64: 1, 32>}, {pipeline_mode = #tpu.pipeline_mode<synchronous>, transform_indices = @transform_21, window_bounds = array<i64: 1, 32>}, {transform_indices = @transform_22, window_bounds = array<i64: 1, 8, 32>}]} {
    %c0 = arith.constant 0 : index
    %c0_0 = arith.constant 0 : index
    %c0_1 = arith.constant 0 : index
    %0 = vector.load %arg1[%c0, %c0_0, %c0_1] : memref<1x8x32xf32, #tpu.memory_space<vmem>>, vector<1x8x32xf32>
    %1 = vector.shape_cast %0 : vector<1x8x32xf32> to vector<8x32xf32>
    %c0_2 = arith.constant 0 : index
    %c0_3 = arith.constant 0 : index
    %c0_4 = arith.constant 0 : index
    %2 = vector.load %arg2[%c0_2, %c0_3, %c0_4] : memref<1x8x32xf32, #tpu.memory_space<vmem>>, vector<1x8x32xf32>
    %3 = vector.shape_cast %2 : vector<1x8x32xf32> to vector<8x32xf32>
    %4 = arith.truncf %1 : vector<8x32xf32> to vector<8x32xbf16>
    %c0_5 = arith.constant 0 : index
    %c0_6 = arith.constant 0 : index
    %5 = vector.load %arg3[%c0_5, %c0_6] : memref<32x96xbf16, #tpu.memory_space<vmem>>, vector<32x96xbf16>
    %cst = arith.constant dense<0.000000e+00> : vector<8x96xf32>
    %6 = tpu.matmul %4, %5, %cst {dimension_numbers = #tpu.dot_dimension_numbers<[1], [0], [0], [1], [0, 0, 1, 1], [], []>} : vector<8x32xbf16>, vector<32x96xbf16>, vector<8x96xf32> -> vector<8x96xf32>
    %c0_7 = arith.constant 0 : index
    %c0_8 = arith.constant 0 : index
    %7 = vector.load %arg4[%c0_7, %c0_8] : memref<1x96xf32, #tpu.memory_space<vmem>>, vector<1x96xf32>
    %8 = vector.broadcast %7 : vector<1x96xf32> to vector<8x96xf32>
    %9 = arith.addf %6, %8 : vector<8x96xf32>
    %10 = vector.extract_strided_slice %9 {offsets = [0, 0], sizes = [8, 32], strides = [1, 1]} : vector<8x96xf32> to vector<8x32xf32>
    %11 = vector.extract_strided_slice %9 {offsets = [0, 32], sizes = [8, 32], strides = [1, 1]} : vector<8x96xf32> to vector<8x32xf32>
    %12 = vector.extract_strided_slice %9 {offsets = [0, 64], sizes = [8, 32], strides = [1, 1]} : vector<8x96xf32> to vector<8x32xf32>
    %13 = arith.truncf %10 : vector<8x32xf32> to vector<8x32xbf16>
    %14 = arith.truncf %11 : vector<8x32xf32> to vector<8x32xbf16>
    %cst_9 = arith.constant dense<0.000000e+00> : vector<8x8xf32>
    %15 = tpu.matmul %13, %14, %cst_9 {dimension_numbers = #tpu.dot_dimension_numbers<[1], [1], [0], [0], [0, 0, 1, 0], [], []>} : vector<8x32xbf16>, vector<8x32xbf16>, vector<8x8xf32> -> vector<8x8xf32>
    %cst_10 = arith.constant 0.176776692 : f32
    %16 = vector.broadcast %cst_10 : f32 to vector<8x8xf32>
    %17 = arith.mulf %15, %16 : vector<8x8xf32>
    %cst_11 = arith.constant dense<0xFF800000> : vector<8xf32>
    %18 = vector.multi_reduction <maximumf>, %17, %cst_11 [1] : vector<8x8xf32> to vector<8xf32>
    %19 = vector.shape_cast %18 : vector<8xf32> to vector<8x1xf32>
    %20 = vector.broadcast %19 : vector<8x1xf32> to vector<8x8xf32>
    %21 = arith.subf %17, %20 : vector<8x8xf32>
    %22 = math.exp %21 : vector<8x8xf32>
    %cst_12 = arith.constant dense<0.000000e+00> : vector<8xf32>
    %23 = vector.multi_reduction <add>, %22, %cst_12 [1] : vector<8x8xf32> to vector<8xf32>
    %24 = vector.shape_cast %23 : vector<8xf32> to vector<8x1xf32>
    %25 = tpu.reciprocal %24 {approx = true} : vector<8x1xf32> -> vector<8x1xf32>
    %26 = vector.broadcast %25 : vector<8x1xf32> to vector<8x8xf32>
    %27 = arith.mulf %22, %26 : vector<8x8xf32>
    %28 = arith.truncf %27 : vector<8x8xf32> to vector<8x8xbf16>
    %29 = arith.truncf %12 : vector<8x32xf32> to vector<8x32xbf16>
    %cst_13 = arith.constant dense<0.000000e+00> : vector<8x32xf32>
    %30 = tpu.matmul %28, %29, %cst_13 {dimension_numbers = #tpu.dot_dimension_numbers<[1], [0], [0], [1], [0, 0, 1, 1], [], []>} : vector<8x8xbf16>, vector<8x32xbf16>, vector<8x32xf32> -> vector<8x32xf32>
    %31 = arith.truncf %30 : vector<8x32xf32> to vector<8x32xbf16>
    %c0_14 = arith.constant 0 : index
    %c0_15 = arith.constant 0 : index
    %32 = vector.load %arg5[%c0_14, %c0_15] : memref<32x32xbf16, #tpu.memory_space<vmem>>, vector<32x32xbf16>
    %cst_16 = arith.constant dense<0.000000e+00> : vector<8x32xf32>
    %33 = tpu.matmul %31, %32, %cst_16 {dimension_numbers = #tpu.dot_dimension_numbers<[1], [0], [0], [1], [0, 0, 1, 1], [], []>} : vector<8x32xbf16>, vector<32x32xbf16>, vector<8x32xf32> -> vector<8x32xf32>
    %c0_17 = arith.constant 0 : index
    %c0_18 = arith.constant 0 : index
    %34 = vector.load %arg6[%c0_17, %c0_18] : memref<1x32xf32, #tpu.memory_space<vmem>>, vector<1x32xf32>
    %35 = vector.broadcast %34 : vector<1x32xf32> to vector<8x32xf32>
    %36 = arith.addf %33, %35 : vector<8x32xf32>
    %37 = arith.addf %1, %36 : vector<8x32xf32>
    %c0_19 = arith.constant 0 : index
    %c0_20 = arith.constant 0 : index
    %38 = vector.load %arg7[%c0_19, %c0_20] : memref<1x32xf32, #tpu.memory_space<vmem>>, vector<1x32xf32>
    %c0_21 = arith.constant 0 : index
    %c0_22 = arith.constant 0 : index
    %39 = vector.load %arg8[%c0_21, %c0_22] : memref<1x32xf32, #tpu.memory_space<vmem>>, vector<1x32xf32>
    %cst_23 = arith.constant dense<0.000000e+00> : vector<8xf32>
    %40 = vector.multi_reduction <add>, %37, %cst_23 [1] : vector<8x32xf32> to vector<8xf32>
    %41 = vector.shape_cast %40 : vector<8xf32> to vector<8x1xf32>
    %cst_24 = arith.constant 3.200000e+01 : f32
    %42 = vector.broadcast %cst_24 : f32 to vector<8x1xf32>
    %43 = arith.divf %41, %42 : vector<8x1xf32>
    %44 = vector.broadcast %43 : vector<8x1xf32> to vector<8x32xf32>
    %45 = arith.subf %37, %44 : vector<8x32xf32>
    %46 = arith.mulf %45, %45 : vector<8x32xf32>
    %cst_25 = arith.constant dense<0.000000e+00> : vector<8xf32>
    %47 = vector.multi_reduction <add>, %46, %cst_25 [1] : vector<8x32xf32> to vector<8xf32>
    %48 = vector.shape_cast %47 : vector<8xf32> to vector<8x1xf32>
    %cst_26 = arith.constant 3.200000e+01 : f32
    %49 = vector.broadcast %cst_26 : f32 to vector<8x1xf32>
    %50 = arith.divf %48, %49 : vector<8x1xf32>
    %cst_27 = arith.constant 9.99999974E-6 : f32
    %51 = vector.broadcast %cst_27 : f32 to vector<8x1xf32>
    %52 = arith.addf %50, %51 : vector<8x1xf32>
    %53 = math.rsqrt %52 : vector<8x1xf32>
    %54 = vector.broadcast %53 : vector<8x1xf32> to vector<8x32xf32>
    %55 = arith.mulf %45, %54 : vector<8x32xf32>
    %56 = vector.broadcast %38 : vector<1x32xf32> to vector<8x32xf32>
    %57 = arith.mulf %55, %56 : vector<8x32xf32>
    %58 = vector.broadcast %39 : vector<1x32xf32> to vector<8x32xf32>
    %59 = arith.addf %57, %58 : vector<8x32xf32>
    %60 = arith.truncf %59 : vector<8x32xf32> to vector<8x32xbf16>
    %c0_28 = arith.constant 0 : index
    %c0_29 = arith.constant 0 : index
    %61 = vector.load %arg9[%c0_28, %c0_29] : memref<32x32xbf16, #tpu.memory_space<vmem>>, vector<32x32xbf16>
    %cst_30 = arith.constant dense<0.000000e+00> : vector<8x32xf32>
    %62 = tpu.matmul %60, %61, %cst_30 {dimension_numbers = #tpu.dot_dimension_numbers<[1], [0], [0], [1], [0, 0, 1, 1], [], []>} : vector<8x32xbf16>, vector<32x32xbf16>, vector<8x32xf32> -> vector<8x32xf32>
    %c0_31 = arith.constant 0 : index
    %c0_32 = arith.constant 0 : index
    %63 = vector.load %arg10[%c0_31, %c0_32] : memref<1x32xf32, #tpu.memory_space<vmem>>, vector<1x32xf32>
    %64 = vector.broadcast %63 : vector<1x32xf32> to vector<8x32xf32>
    %65 = arith.addf %62, %64 : vector<8x32xf32>
    %66 = arith.truncf %3 : vector<8x32xf32> to vector<8x32xbf16>
    %c0_33 = arith.constant 0 : index
    %c0_34 = arith.constant 0 : index
    %67 = vector.load %arg11[%c0_33, %c0_34] : memref<32x64xbf16, #tpu.memory_space<vmem>>, vector<32x64xbf16>
    %cst_35 = arith.constant dense<0.000000e+00> : vector<8x64xf32>
    %68 = tpu.matmul %66, %67, %cst_35 {dimension_numbers = #tpu.dot_dimension_numbers<[1], [0], [0], [1], [0, 0, 1, 1], [], []>} : vector<8x32xbf16>, vector<32x64xbf16>, vector<8x64xf32> -> vector<8x64xf32>
    %c0_36 = arith.constant 0 : index
    %c0_37 = arith.constant 0 : index
    %69 = vector.load %arg12[%c0_36, %c0_37] : memref<1x64xf32, #tpu.memory_space<vmem>>, vector<1x64xf32>
    %70 = vector.broadcast %69 : vector<1x64xf32> to vector<8x64xf32>
    %71 = arith.addf %68, %70 : vector<8x64xf32>
    %72 = vector.extract_strided_slice %71 {offsets = [0, 0], sizes = [8, 32], strides = [1, 1]} : vector<8x64xf32> to vector<8x32xf32>
    %73 = vector.extract_strided_slice %71 {offsets = [0, 32], sizes = [8, 32], strides = [1, 1]} : vector<8x64xf32> to vector<8x32xf32>
    %74 = arith.truncf %65 : vector<8x32xf32> to vector<8x32xbf16>
    %75 = arith.truncf %72 : vector<8x32xf32> to vector<8x32xbf16>
    %cst_38 = arith.constant dense<0.000000e+00> : vector<8x8xf32>
    %76 = tpu.matmul %74, %75, %cst_38 {dimension_numbers = #tpu.dot_dimension_numbers<[1], [1], [0], [0], [0, 0, 1, 0], [], []>} : vector<8x32xbf16>, vector<8x32xbf16>, vector<8x8xf32> -> vector<8x8xf32>
    %cst_39 = arith.constant 0.176776692 : f32
    %77 = vector.broadcast %cst_39 : f32 to vector<8x8xf32>
    %78 = arith.mulf %76, %77 : vector<8x8xf32>
    %cst_40 = arith.constant dense<0xFF800000> : vector<8xf32>
    %79 = vector.multi_reduction <maximumf>, %78, %cst_40 [1] : vector<8x8xf32> to vector<8xf32>
    %80 = vector.shape_cast %79 : vector<8xf32> to vector<8x1xf32>
    %81 = vector.broadcast %80 : vector<8x1xf32> to vector<8x8xf32>
    %82 = arith.subf %78, %81 : vector<8x8xf32>
    %83 = math.exp %82 : vector<8x8xf32>
    %cst_41 = arith.constant dense<0.000000e+00> : vector<8xf32>
    %84 = vector.multi_reduction <add>, %83, %cst_41 [1] : vector<8x8xf32> to vector<8xf32>
    %85 = vector.shape_cast %84 : vector<8xf32> to vector<8x1xf32>
    %86 = tpu.reciprocal %85 {approx = true} : vector<8x1xf32> -> vector<8x1xf32>
    %87 = vector.broadcast %86 : vector<8x1xf32> to vector<8x8xf32>
    %88 = arith.mulf %83, %87 : vector<8x8xf32>
    %89 = arith.truncf %88 : vector<8x8xf32> to vector<8x8xbf16>
    %90 = arith.truncf %73 : vector<8x32xf32> to vector<8x32xbf16>
    %cst_42 = arith.constant dense<0.000000e+00> : vector<8x32xf32>
    %91 = tpu.matmul %89, %90, %cst_42 {dimension_numbers = #tpu.dot_dimension_numbers<[1], [0], [0], [1], [0, 0, 1, 1], [], []>} : vector<8x8xbf16>, vector<8x32xbf16>, vector<8x32xf32> -> vector<8x32xf32>
    %92 = arith.truncf %91 : vector<8x32xf32> to vector<8x32xbf16>
    %c0_43 = arith.constant 0 : index
    %c0_44 = arith.constant 0 : index
    %93 = vector.load %arg13[%c0_43, %c0_44] : memref<32x32xbf16, #tpu.memory_space<vmem>>, vector<32x32xbf16>
    %cst_45 = arith.constant dense<0.000000e+00> : vector<8x32xf32>
    %94 = tpu.matmul %92, %93, %cst_45 {dimension_numbers = #tpu.dot_dimension_numbers<[1], [0], [0], [1], [0, 0, 1, 1], [], []>} : vector<8x32xbf16>, vector<32x32xbf16>, vector<8x32xf32> -> vector<8x32xf32>
    %c0_46 = arith.constant 0 : index
    %c0_47 = arith.constant 0 : index
    %95 = vector.load %arg14[%c0_46, %c0_47] : memref<1x32xf32, #tpu.memory_space<vmem>>, vector<1x32xf32>
    %96 = vector.broadcast %95 : vector<1x32xf32> to vector<8x32xf32>
    %97 = arith.addf %94, %96 : vector<8x32xf32>
    %98 = arith.addf %59, %97 : vector<8x32xf32>
    %c0_48 = arith.constant 0 : index
    %c0_49 = arith.constant 0 : index
    %99 = vector.load %arg15[%c0_48, %c0_49] : memref<1x32xf32, #tpu.memory_space<vmem>>, vector<1x32xf32>
    %c0_50 = arith.constant 0 : index
    %c0_51 = arith.constant 0 : index
    %100 = vector.load %arg16[%c0_50, %c0_51] : memref<1x32xf32, #tpu.memory_space<vmem>>, vector<1x32xf32>
    %cst_52 = arith.constant dense<0.000000e+00> : vector<8xf32>
    %101 = vector.multi_reduction <add>, %98, %cst_52 [1] : vector<8x32xf32> to vector<8xf32>
    %102 = vector.shape_cast %101 : vector<8xf32> to vector<8x1xf32>
    %cst_53 = arith.constant 3.200000e+01 : f32
    %103 = vector.broadcast %cst_53 : f32 to vector<8x1xf32>
    %104 = arith.divf %102, %103 : vector<8x1xf32>
    %105 = vector.broadcast %104 : vector<8x1xf32> to vector<8x32xf32>
    %106 = arith.subf %98, %105 : vector<8x32xf32>
    %107 = arith.mulf %106, %106 : vector<8x32xf32>
    %cst_54 = arith.constant dense<0.000000e+00> : vector<8xf32>
    %108 = vector.multi_reduction <add>, %107, %cst_54 [1] : vector<8x32xf32> to vector<8xf32>
    %109 = vector.shape_cast %108 : vector<8xf32> to vector<8x1xf32>
    %cst_55 = arith.constant 3.200000e+01 : f32
    %110 = vector.broadcast %cst_55 : f32 to vector<8x1xf32>
    %111 = arith.divf %109, %110 : vector<8x1xf32>
    %cst_56 = arith.constant 9.99999974E-6 : f32
    %112 = vector.broadcast %cst_56 : f32 to vector<8x1xf32>
    %113 = arith.addf %111, %112 : vector<8x1xf32>
    %114 = math.rsqrt %113 : vector<8x1xf32>
    %115 = vector.broadcast %114 : vector<8x1xf32> to vector<8x32xf32>
    %116 = arith.mulf %106, %115 : vector<8x32xf32>
    %117 = vector.broadcast %99 : vector<1x32xf32> to vector<8x32xf32>
    %118 = arith.mulf %116, %117 : vector<8x32xf32>
    %119 = vector.broadcast %100 : vector<1x32xf32> to vector<8x32xf32>
    %120 = arith.addf %118, %119 : vector<8x32xf32>
    %121 = arith.truncf %120 : vector<8x32xf32> to vector<8x32xbf16>
    %c0_57 = arith.constant 0 : index
    %c0_58 = arith.constant 0 : index
    %122 = vector.load %arg17[%c0_57, %c0_58] : memref<32x4xbf16, #tpu.memory_space<vmem>>, vector<32x4xbf16>
    %cst_59 = arith.constant dense<0.000000e+00> : vector<8x4xf32>
    %123 = tpu.matmul %121, %122, %cst_59 {dimension_numbers = #tpu.dot_dimension_numbers<[1], [0], [0], [1], [0, 0, 1, 1], [], []>} : vector<8x32xbf16>, vector<32x4xbf16>, vector<8x4xf32> -> vector<8x4xf32>
    %c0_60 = arith.constant 0 : index
    %c0_61 = arith.constant 0 : index
    %124 = vector.load %arg18[%c0_60, %c0_61] : memref<1x4xf32, #tpu.memory_space<vmem>>, vector<1x4xf32>
    %125 = vector.broadcast %124 : vector<1x4xf32> to vector<8x4xf32>
    %126 = arith.addf %123, %125 : vector<8x4xf32>
    %cst_62 = arith.constant 0.000000e+00 : f32
    %127 = vector.broadcast %cst_62 : f32 to vector<8x4xf32>
    %128 = arith.subf %127, %126 : vector<8x4xf32>
    %129 = math.exp %128 : vector<8x4xf32>
    %cst_63 = arith.constant 1.000000e+00 : f32
    %130 = vector.broadcast %cst_63 : f32 to vector<8x4xf32>
    %131 = arith.addf %130, %129 : vector<8x4xf32>
    %cst_64 = arith.constant 1.000000e+00 : f32
    %132 = vector.broadcast %cst_64 : f32 to vector<8x4xf32>
    %133 = arith.divf %132, %131 : vector<8x4xf32>
    %134 = arith.mulf %126, %133 : vector<8x4xf32>
    %135 = arith.truncf %134 : vector<8x4xf32> to vector<8x4xbf16>
    %c0_65 = arith.constant 0 : index
    %c0_66 = arith.constant 0 : index
    %136 = vector.load %arg19[%c0_65, %c0_66] : memref<4x32xbf16, #tpu.memory_space<vmem>>, vector<4x32xbf16>
    %cst_67 = arith.constant dense<0.000000e+00> : vector<8x32xf32>
    %137 = tpu.matmul %135, %136, %cst_67 {dimension_numbers = #tpu.dot_dimension_numbers<[1], [0], [0], [1], [0, 0, 1, 1], [], []>} : vector<8x4xbf16>, vector<4x32xbf16>, vector<8x32xf32> -> vector<8x32xf32>
    %c0_68 = arith.constant 0 : index
    %c0_69 = arith.constant 0 : index
    %138 = vector.load %arg20[%c0_68, %c0_69] : memref<1x32xf32, #tpu.memory_space<vmem>>, vector<1x32xf32>
    %139 = vector.broadcast %138 : vector<1x32xf32> to vector<8x32xf32>
    %140 = arith.addf %137, %139 : vector<8x32xf32>
    %141 = arith.addf %120, %140 : vector<8x32xf32>
    %c0_70 = arith.constant 0 : index
    %c0_71 = arith.constant 0 : index
    %142 = vector.load %arg21[%c0_70, %c0_71] : memref<1x32xf32, #tpu.memory_space<vmem>>, vector<1x32xf32>
    %c0_72 = arith.constant 0 : index
    %c0_73 = arith.constant 0 : index
    %143 = vector.load %arg22[%c0_72, %c0_73] : memref<1x32xf32, #tpu.memory_space<vmem>>, vector<1x32xf32>
    %cst_74 = arith.constant dense<0.000000e+00> : vector<8xf32>
    %144 = vector.multi_reduction <add>, %141, %cst_74 [1] : vector<8x32xf32> to vector<8xf32>
    %145 = vector.shape_cast %144 : vector<8xf32> to vector<8x1xf32>
    %cst_75 = arith.constant 3.200000e+01 : f32
    %146 = vector.broadcast %cst_75 : f32 to vector<8x1xf32>
    %147 = arith.divf %145, %146 : vector<8x1xf32>
    %148 = vector.broadcast %147 : vector<8x1xf32> to vector<8x32xf32>
    %149 = arith.subf %141, %148 : vector<8x32xf32>
    %150 = arith.mulf %149, %149 : vector<8x32xf32>
    %cst_76 = arith.constant dense<0.000000e+00> : vector<8xf32>
    %151 = vector.multi_reduction <add>, %150, %cst_76 [1] : vector<8x32xf32> to vector<8xf32>
    %152 = vector.shape_cast %151 : vector<8xf32> to vector<8x1xf32>
    %cst_77 = arith.constant 3.200000e+01 : f32
    %153 = vector.broadcast %cst_77 : f32 to vector<8x1xf32>
    %154 = arith.divf %152, %153 : vector<8x1xf32>
    %cst_78 = arith.constant 9.99999974E-6 : f32
    %155 = vector.broadcast %cst_78 : f32 to vector<8x1xf32>
    %156 = arith.addf %154, %155 : vector<8x1xf32>
    %157 = math.rsqrt %156 : vector<8x1xf32>
    %158 = vector.broadcast %157 : vector<8x1xf32> to vector<8x32xf32>
    %159 = arith.mulf %149, %158 : vector<8x32xf32>
    %160 = vector.broadcast %142 : vector<1x32xf32> to vector<8x32xf32>
    %161 = arith.mulf %159, %160 : vector<8x32xf32>
    %162 = vector.broadcast %143 : vector<1x32xf32> to vector<8x32xf32>
    %163 = arith.addf %161, %162 : vector<8x32xf32>
    %c0_79 = arith.constant 0 : index
    %c0_80 = arith.constant 0 : index
    %c0_81 = arith.constant 0 : index
    %164 = vector.load %arg23[%c0_79, %c0_80, %c0_81] : memref<1x8x32xf32, #tpu.memory_space<vmem>>, vector<1x8x32xf32>
    %165 = vector.shape_cast %164 : vector<1x8x32xf32> to vector<8x32xf32>
    %166 = vector.shape_cast %163 : vector<8x32xf32> to vector<1x8x32xf32>
    tpu.vector_store %arg23[%c0_79, %c0_80, %c0_81], %166 {strides = array<i32>} : memref<1x8x32xf32, #tpu.memory_space<vmem>>, vector<1x8x32xf32>,
    return
  }
  func.func @transform_0(%arg0: i32) -> (i32, i32, i32) {
    %c0_i32 = arith.constant 0 : i32
    %c0_i32_0 = arith.constant 0 : i32
    %c0_i32_1 = arith.constant 0 : i32
    return %arg0, %c0_i32, %c0_i32_0 : i32, i32, i32
  }
  func.func @transform_1(%arg0: i32) -> (i32, i32, i32) {
    %c0_i32 = arith.constant 0 : i32
    %c0_i32_0 = arith.constant 0 : i32
    %c0_i32_1 = arith.constant 0 : i32
    return %arg0, %c0_i32, %c0_i32_0 : i32, i32, i32
  }
  func.func @transform_2(%arg0: i32) -> (i32, i32) {
    %c0_i32 = arith.constant 0 : i32
    %c0_i32_0 = arith.constant 0 : i32
    %c0_i32_1 = arith.constant 0 : i32
    return %c0_i32, %c0_i32_0 : i32, i32
  }
  func.func @transform_3(%arg0: i32) -> (i32, i32) {
    %c0_i32 = arith.constant 0 : i32
    %c0_i32_0 = arith.constant 0 : i32
    %c0_i32_1 = arith.constant 0 : i32
    return %c0_i32, %c0_i32_0 : i32, i32
  }
  func.func @transform_4(%arg0: i32) -> (i32, i32) {
    %c0_i32 = arith.constant 0 : i32
    %c0_i32_0 = arith.constant 0 : i32
    %c0_i32_1 = arith.constant 0 : i32
    return %c0_i32, %c0_i32_0 : i32, i32
  }
  func.func @transform_5(%arg0: i32) -> (i32, i32) {
    %c0_i32 = arith.constant 0 : i32
    %c0_i32_0 = arith.constant 0 : i32
    %c0_i32_1 = arith.constant 0 : i32
    return %c0_i32, %c0_i32_0 : i32, i32
  }
  func.func @transform_6(%arg0: i32) -> (i32, i32) {
    %c0_i32 = arith.constant 0 : i32
    %c0_i32_0 = arith.constant 0 : i32
    %c0_i32_1 = arith.constant 0 : i32
    return %c0_i32, %c0_i32_0 : i32, i32
  }
  func.func @transform_7(%arg0: i32) -> (i32, i32) {
    %c0_i32 = arith.constant 0 : i32
    %c0_i32_0 = arith.constant 0 : i32
    %c0_i32_1 = arith.constant 0 : i32
    return %c0_i32, %c0_i32_0 : i32, i32
  }
  func.func @transform_8(%arg0: i32) -> (i32, i32) {
    %c0_i32 = arith.constant 0 : i32
    %c0_i32_0 = arith.constant 0 : i32
    %c0_i32_1 = arith.constant 0 : i32
    return %c0_i32, %c0_i32_0 : i32, i32
  }
  func.func @transform_9(%arg0: i32) -> (i32, i32) {
    %c0_i32 = arith.constant 0 : i32
    %c0_i32_0 = arith.constant 0 : i32
    %c0_i32_1 = arith.constant 0 : i32
    return %c0_i32, %c0_i32_0 : i32, i32
  }
  func.func @transform_10(%arg0: i32) -> (i32, i32) {
    %c0_i32 = arith.constant 0 : i32
    %c0_i32_0 = arith.constant 0 : i32
    %c0_i32_1 = arith.constant 0 : i32
    return %c0_i32, %c0_i32_0 : i32, i32
  }
  func.func @transform_11(%arg0: i32) -> (i32, i32) {
    %c0_i32 = arith.constant 0 : i32
    %c0_i32_0 = arith.constant 0 : i32
    %c0_i32_1 = arith.constant 0 : i32
    return %c0_i32, %c0_i32_0 : i32, i32
  }
  func.func @transform_12(%arg0: i32) -> (i32, i32) {
    %c0_i32 = arith.constant 0 : i32
    %c0_i32_0 = arith.constant 0 : i32
    %c0_i32_1 = arith.constant 0 : i32
    return %c0_i32, %c0_i32_0 : i32, i32
  }
  func.func @transform_13(%arg0: i32) -> (i32, i32) {
    %c0_i32 = arith.constant 0 : i32
    %c0_i32_0 = arith.constant 0 : i32
    %c0_i32_1 = arith.constant 0 : i32
    return %c0_i32, %c0_i32_0 : i32, i32
  }
  func.func @transform_14(%arg0: i32) -> (i32, i32) {
    %c0_i32 = arith.constant 0 : i32
    %c0_i32_0 = arith.constant 0 : i32
    %c0_i32_1 = arith.constant 0 : i32
    return %c0_i32, %c0_i32_0 : i32, i32
  }
  func.func @transform_15(%arg0: i32) -> (i32, i32) {
    %c0_i32 = arith.constant 0 : i32
    %c0_i32_0 = arith.constant 0 : i32
    %c0_i32_1 = arith.constant 0 : i32
    return %c0_i32, %c0_i32_0 : i32, i32
  }
  func.func @transform_16(%arg0: i32) -> (i32, i32) {
    %c0_i32 = arith.constant 0 : i32
    %c0_i32_0 = arith.constant 0 : i32
    %c0_i32_1 = arith.constant 0 : i32
    return %c0_i32, %c0_i32_0 : i32, i32
  }
  func.func @transform_17(%arg0: i32) -> (i32, i32) {
    %c0_i32 = arith.constant 0 : i32
    %c0_i32_0 = arith.constant 0 : i32
    %c0_i32_1 = arith.constant 0 : i32
    return %c0_i32, %c0_i32_0 : i32, i32
  }
  func.func @transform_18(%arg0: i32) -> (i32, i32) {
    %c0_i32 = arith.constant 0 : i32
    %c0_i32_0 = arith.constant 0 : i32
    %c0_i32_1 = arith.constant 0 : i32
    return %c0_i32, %c0_i32_0 : i32, i32
  }
  func.func @transform_19(%arg0: i32) -> (i32, i32) {
    %c0_i32 = arith.constant 0 : i32
    %c0_i32_0 = arith.constant 0 : i32
    %c0_i32_1 = arith.constant 0 : i32
    return %c0_i32, %c0_i32_0 : i32, i32
  }
  func.func @transform_20(%arg0: i32) -> (i32, i32) {
    %c0_i32 = arith.constant 0 : i32
    %c0_i32_0 = arith.constant 0 : i32
    %c0_i32_1 = arith.constant 0 : i32
    return %c0_i32, %c0_i32_0 : i32, i32
  }
  func.func @transform_21(%arg0: i32) -> (i32, i32) {
    %c0_i32 = arith.constant 0 : i32
    %c0_i32_0 = arith.constant 0 : i32
    %c0_i32_1 = arith.constant 0 : i32
    return %c0_i32, %c0_i32_0 : i32, i32
  }
  func.func @transform_22(%arg0: i32) -> (i32, i32, i32) {
    %c0_i32 = arith.constant 0 : i32
    %c0_i32_0 = arith.constant 0 : i32
    %c0_i32_1 = arith.constant 0 : i32
    return %arg0, %c0_i32, %c0_i32_0 : i32, i32, i32
  }
}

module attributes {stable_mosaic.version = 11 : i64} {
  func.func @_decoder_layer_kernel(%arg0: i32, %arg1: memref<1x8x32xf32, #tpu.memory_space<vmem>>, %arg2: memref<1x8x32xf32, #tpu.memory_space<vmem>>, %arg3: memref<32x96xbf16, #tpu.memory_space<vmem>>, %arg4: memref<1x96xf32, #tpu.memory_space<vmem>>, %arg5: memref<32x32xbf16, #tpu.memory_space<vmem>>, %arg6: memref<1x32xf32, #tpu.memory_space<vmem>>, %arg7: memref<1x32xf32, #tpu.memory_space<vmem>>, %arg8: memref<1x32xf32, #tpu.memory_space<vmem>>, %arg9: memref<32x32xbf16, #tpu.memory_space<vmem>>, %arg10: memref<1x32xf32, #tpu.memory_space<vmem>>, %arg11: memref<32x64xbf16, #tpu.memory_space<vmem>>, %arg12: memref<1x64xf32, #tpu.memory_space<vmem>>, %arg13: memref<32x32xbf16, #tpu.memory_space<vmem>>, %arg14: memref<1x32xf32, #tpu.memory_space<vmem>>, %arg15: memref<1x32xf32, #tpu.memory_space<vmem>>, %arg16: memref<1x32xf32, #tpu.memory_space<vmem>>, %arg17: memref<32x4xbf16, #tpu.memory_space<vmem>>, %arg18: memref<1x4xf32, #tpu.memory_space<vmem>>, %arg19: memref<4x32xbf16, #tpu.memory_space<vmem>>, %arg20: memref<1x32xf32, #tpu.memory_space<vmem>>, %arg21: memref<1x32xf32, #tpu.memory_space<vmem>>, %arg22: memref<1x32xf32, #tpu.memory_space<vmem>>, %arg23: memref<1x8x32xf32, #tpu.memory_space<vmem>>) attributes {dimension_semantics = [#tpu.dimension_semantics<parallel>], iteration_bounds = array<i64: 2>, scalar_prefetch = 0 : i64, scratch_operands = 0 : i64, tpu.core_type = #tpu.core_type<tc>, window_params = [{transform_indices = @transform_0, window_bounds = array<i64: 1, 8, 32>}, {transform_indices = @transform_1, window_bounds = array<i64: 1, 8, 32>}, {pipeline_mode = #tpu.pipeline_mode<synchronous>, transform_indices = @transform_2, window_bounds = array<i64: 32, 96>}, {pipeline_mode = #tpu.pipeline_mode<synchronous>, transform_indices = @transform_3, window_bounds = array<i64: 1, 96>}, {pipeline_mode = #tpu.pipeline_mode<synchronous>, transform_indices = @transform_4, window_bounds = array<i64: 32, 32>}, {pipeline_mode = #tpu.pipeline_mode<synchronous>, transform_indices = @transform_5, window_bounds = array<i64: 1, 32>}, {pipeline_mode = #tpu.pipeline_mode<synchronous>, transform_indices = @transform_6, window_bounds = array<i64: 1, 32>}, {pipeline_mode = #tpu.pipeline_mode<synchronous>, transform_indices = @transform_7, window_bounds = array<i64: 1, 32>}, {pipeline_mode = #tpu.pipeline_mode<synchronous>, transform_indices = @transform_8, window_bounds = array<i64: 32, 32>}, {pipeline_mode = #tpu.pipeline_mode<synchronous>, transform_indices = @transform_9, window_bounds = array<i64: 1, 32>}, {pipeline_mode = #tpu.pipeline_mode<synchronous>, transform_indices = @transform_10, window_bounds = array<i64: 32, 64>}, {pipeline_mode = #tpu.pipeline_mode<synchronous>, transform_indices = @transform_11, window_bounds = array<i64: 1, 64>}, {pipeline_mode = #tpu.pipeline_mode<synchronous>, transform_indices = @transform_12, window_bounds = array<i64: 32, 32>}, {pipeline_mode = #tpu.pipeline_mode<synchronous>, transform_indices = @transform_13, window_bounds = array<i64: 1, 32>}, {pipeline_mode = #tpu.pipeline_mode<synchronous>, transform_indices = @transform_14, window_bounds = array<i64: 1, 32>}, {pipeline_mode = #tpu.pipeline_mode<synchronous>, transform_indices = @transform_15, window_bounds = array<i64: 1, 32>}, {pipeline_mode = #tpu.pipeline_mode<synchronous>, transform_indices = @transform_16, window_bounds = array<i64: 32, 4>}, {pipeline_mode = #tpu.pipeline_mode<synchronous>, transform_indices = @transform_17, window_bounds = array<i64: 1, 4>}, {pipeline_mode = #tpu.pipeline_mode<synchronous>, transform_indices = @transform_18, window_bounds = array<i64: 4, 32>}, {pipeline_mode = #tpu.pipeline_mode<synchronous>, transform_indices = @transform_19, window_bounds = array<i64: 1, 32>}, {pipeline_mode = #tpu.pipeline_mode<synchronous>, transform_indices = @transform_20, window_bounds = array<i64: 1, 32>}, {pipeline_mode = #tpu.pipeline_mode<synchronous>, transform_indices = @transform_21, window_bounds = array<i64: 1, 32>}, {transform_indices = @transform_22, window_bounds = array<i64: 1, 8, 32>}]} {
    %c0 = arith.constant 0 : index
    %c0_0 = arith.constant 0 : index
    %c0_1 = arith.constant 0 : index
    %0 = vector.load %arg1[%c0, %c0_0, %c0_1] : memref<1x8x32xf32, #tpu.memory_space<vmem>>, vector<1x8x32xf32>
    %1 = vector.shape_cast %0 : vector<1x8x32xf32> to vector<8x32xf32>
    %c0_2 = arith.constant 0 : index
    %c0_3 = arith.constant 0 : index
    %c0_4 = arith.constant 0 : index
    %2 = vector.load %arg2[%c0_2, %c0_3, %c0_4] : memref<1x8x32xf32, #tpu.memory_space<vmem>>, vector<1x8x32xf32>
    %3 = vector.shape_cast %2 : vector<1x8x32xf32> to vector<8x32xf32>
    %4 = arith.truncf %1 : vector<8x32xf32> to vector<8x32xbf16>
    %c0_5 = arith.constant 0 : index
    %c0_6 = arith.constant 0 : index
    %5 = vector.load %arg3[%c0_5, %c0_6] : memref<32x96xbf16, #tpu.memory_space<vmem>>, vector<32x96xbf16>
    %cst = arith.constant dense<0.000000e+00> : vector<8x96xf32>
    %6 = tpu.matmul %4, %5, %cst {dimension_numbers = #tpu.dot_dimension_numbers<[1], [0], [0], [1], [0, 0, 1, 1], [], []>} : vector<8x32xbf16>, vector<32x96xbf16>, vector<8x96xf32> -> vector<8x96xf32>
    %c0_7 = arith.constant 0 : index
    %c0_8 = arith.constant 0 : index
    %7 = vector.load %arg4[%c0_7, %c0_8] : memref<1x96xf32, #tpu.memory_space<vmem>>, vector<1x96xf32>
    %8 = vector.broadcast %7 : vector<1x96xf32> to vector<8x96xf32>
    %9 = arith.addf %6, %8 : vector<8x96xf32>
    %10 = vector.extract_strided_slice %9 {offsets = [0, 0], sizes = [8, 32], strides = [1, 1]} : vector<8x96xf32> to vector<8x32xf32>
    %11 = vector.extract_strided_slice %9 {offsets = [0, 32], sizes = [8, 32], strides = [1, 1]} : vector<8x96xf32> to vector<8x32xf32>
    %12 = vector.extract_strided_slice %9 {offsets = [0, 64], sizes = [8, 32], strides = [1, 1]} : vector<8x96xf32> to vector<8x32xf32>
    %13 = arith.truncf %10 : vector<8x32xf32> to vector<8x32xbf16>
    %14 = arith.truncf %11 : vector<8x32xf32> to vector<8x32xbf16>
    %cst_9 = arith.constant dense<0.000000e+00> : vector<8x8xf32>
    %15 = tpu.matmul %13, %14, %cst_9 {dimension_numbers = #tpu.dot_dimension_numbers<[1], [1], [0], [0], [0, 0, 1, 0], [], []>} : vector<8x32xbf16>, vector<8x32xbf16>, vector<8x8xf32> -> vector<8x8xf32>
    %cst_10 = arith.constant 0.176776692 : f32
    %16 = vector.broadcast %cst_10 : f32 to vector<8x8xf32>
    %17 = arith.mulf %15, %16 : vector<8x8xf32>
    %cst_11 = arith.constant dense<0xFF800000> : vector<8xf32>
    %18 = vector.multi_reduction <maximumf>, %17, %cst_11 [1] : vector<8x8xf32> to vector<8xf32>
    %19 = vector.shape_cast %18 : vector<8xf32> to vector<8x1xf32>
    %20 = vector.broadcast %19 : vector<8x1xf32> to vector<8x8xf32>
    %21 = arith.subf %17, %20 : vector<8x8xf32>
    %22 = math.exp %21 : vector<8x8xf32>
    %cst_12 = arith.constant dense<0.000000e+00> : vector<8xf32>
    %23 = vector.multi_reduction <add>, %22, %cst_12 [1] : vector<8x8xf32> to vector<8xf32>
    %24 = vector.shape_cast %23 : vector<8xf32> to vector<8x1xf32>
    %25 = tpu.reciprocal %24 {approx = true} : vector<8x1xf32> -> vector<8x1xf32>
    %26 = vector.broadcast %25 : vector<8x1xf32> to vector<8x8xf32>
    %27 = arith.mulf %22, %26 : vector<8x8xf32>
    %28 = arith.truncf %27 : vector<8x8xf32> to vector<8x8xbf16>
    %29 = arith.truncf %12 : vector<8x32xf32> to vector<8x32xbf16>
    %cst_13 = arith.constant dense<0.000000e+00> : vector<8x32xf32>
    %30 = tpu.matmul %28, %29, %cst_13 {dimension_numbers = #tpu.dot_dimension_numbers<[1], [0], [0], [1], [0, 0, 1, 1], [], []>} : vector<8x8xbf16>, vector<8x32xbf16>, vector<8x32xf32> -> vector<8x32xf32>
    %31 = arith.truncf %30 : vector<8x32xf32> to vector<8x32xbf16>
    %c0_14 = arith.constant 0 : index
    %c0_15 = arith.constant 0 : index
    %32 = vector.load %arg5[%c0_14, %c0_15] : memref<32x32xbf16, #tpu.memory_space<vmem>>, vector<32x32xbf16>
    %cst_16 = arith.constant dense<0.000000e+00> : vector<8x32xf32>
    %33 = tpu.matmul %31, %32, %cst_16 {dimension_numbers = #tpu.dot_dimension_numbers<[1], [0], [0], [1], [0, 0, 1, 1], [], []>} : vector<8x32xbf16>, vector<32x32xbf16>, vector<8x32xf32> -> vector<8x32xf32>
    %c0_17 = arith.constant 0 : index
    %c0_18 = arith.constant 0 : index
    %34 = vector.load %arg6[%c0_17, %c0_18] : memref<1x32xf32, #tpu.memory_space<vmem>>, vector<1x32xf32>
    %35 = vector.broadcast %34 : vector<1x32xf32> to vector<8x32xf32>
    %36 = arith.addf %33, %35 : vector<8x32xf32>
    %37 = arith.addf %1, %36 : vector<8x32xf32>
    %c0_19 = arith.constant 0 : index
    %c0_20 = arith.constant 0 : index
    %38 = vector.load %arg7[%c0_19, %c0_20] : memref<1x32xf32, #tpu.memory_space<vmem>>, vector<1x32xf32>
    %c0_21 = arith.constant 0 : index
    %c0_22 = arith.constant 0 : index
    %39 = vector.load %arg8[%c0_21, %c0_22] : memref<1x32xf32, #tpu.memory_space<vmem>>, vector<1x32xf32>
    %cst_23 = arith.constant dense<0.000000e+00> : vector<8xf32>
    %40 = vector.multi_reduction <add>, %37, %cst_23 [1] : vector<8x32xf32> to vector<8xf32>
    %41 = vector.shape_cast %40 : vector<8xf32> to vector<8x1xf32>
    %cst_24 = arith.constant 3.200000e+01 : f32
    %42 = vector.broadcast %cst_24 : f32 to vector<8x1xf32>
    %43 = arith.divf %41, %42 : vector<8x1xf32>
    %44 = vector.broadcast %43 : vector<8x1xf32> to vector<8x32xf32>
    %45 = arith.subf %37, %44 : vector<8x32xf32>
    %46 = arith.mulf %45, %45 : vector<8x32xf32>
    %cst_25 = arith.constant dense<0.000000e+00> : vector<8xf32>
    %47 = vector.multi_reduction <add>, %46, %cst_25 [1] : vector<8x32xf32> to vector<8xf32>
    %48 = vector.shape_cast %47 : vector<8xf32> to vector<8x1xf32>
    %cst_26 = arith.constant 3.200000e+01 : f32
    %49 = vector.broadcast %cst_26 : f32 to vector<8x1xf32>
    %50 = arith.divf %48, %49 : vector<8x1xf32>
    %cst_27 = arith.constant 9.99999974E-6 : f32
    %51 = vector.broadcast %cst_27 : f32 to vector<8x1xf32>
    %52 = arith.addf %50, %51 : vector<8x1xf32>
    %53 = math.rsqrt %52 : vector<8x1xf32>
    %54 = vector.broadcast %53 : vector<8x1xf32> to vector<8x32xf32>
    %55 = arith.mulf %45, %54 : vector<8x32xf32>
    %56 = vector.broadcast %38 : vector<1x32xf32> to vector<8x32xf32>
    %57 = arith.mulf %55, %56 : vector<8x32xf32>
    %58 = vector.broadcast %39 : vector<1x32xf32> to vector<8x32xf32>
    %59 = arith.addf %57, %58 : vector<8x32xf32>
    %60 = arith.truncf %59 : vector<8x32xf32> to vector<8x32xbf16>
    %c0_28 = arith.constant 0 : index
    %c0_29 = arith.constant 0 : index
    %61 = vector.load %arg9[%c0_28, %c0_29] : memref<32x32xbf16, #tpu.memory_space<vmem>>, vector<32x32xbf16>
    %cst_30 = arith.constant dense<0.000000e+00> : vector<8x32xf32>
    %62 = tpu.matmul %60, %61, %cst_30 {dimension_numbers = #tpu.dot_dimension_numbers<[1], [0], [0], [1], [0, 0, 1, 1], [], []>} : vector<8x32xbf16>, vector<32x32xbf16>, vector<8x32xf32> -> vector<8x32xf32>
    %c0_31 = arith.constant 0 : index
    %c0_32 = arith.constant 0 : index
    %63 = vector.load %arg10[%c0_31, %c0_32] : memref<1x32xf32, #tpu.memory_space<vmem>>, vector<1x32xf32>
    %64 = vector.broadcast %63 : vector<1x32xf32> to vector<8x32xf32>
    %65 = arith.addf %62, %64 : vector<8x32xf32>
    %66 = arith.truncf %3 : vector<8x32xf32> to vector<8x32xbf16>
    %c0_33 = arith.constant 0 : index
    %c0_34 = arith.constant 0 : index
    %67 = vector.load %arg11[%c0_33, %c0_34] : memref<32x64xbf16, #tpu.memory_space<vmem>>, vector<32x64xbf16>
    %cst_35 = arith.constant dense<0.000000e+00> : vector<8x64xf32>
    %68 = tpu.matmul %66, %67, %cst_35 {dimension_numbers = #tpu.dot_dimension_numbers<[1], [0], [0], [1], [0, 0, 1, 1], [], []>} : vector<8x32xbf16>, vector<32x64xbf16>, vector<8x64xf32> -> vector<8x64xf32>
    %c0_36 = arith.constant 0 : index
    %c0_37 = arith.constant 0 : index
    %69 = vector.load %arg12[%c0_36, %c0_37] : memref<1x64xf32, #tpu.memory_space<vmem>>, vector<1x64xf32>
    %70 = vector.broadcast %69 : vector<1x64xf32> to vector<8x64xf32>
    %71 = arith.addf %68, %70 : vector<8x64xf32>
    %72 = vector.extract_strided_slice %71 {offsets = [0, 0], sizes = [8, 32], strides = [1, 1]} : vector<8x64xf32> to vector<8x32xf32>
    %73 = vector.extract_strided_slice %71 {offsets = [0, 32], sizes = [8, 32], strides = [1, 1]} : vector<8x64xf32> to vector<8x32xf32>
    %74 = arith.truncf %65 : vector<8x32xf32> to vector<8x32xbf16>
    %75 = arith.truncf %72 : vector<8x32xf32> to vector<8x32xbf16>
    %cst_38 = arith.constant dense<0.000000e+00> : vector<8x8xf32>
    %76 = tpu.matmul %74, %75, %cst_38 {dimension_numbers = #tpu.dot_dimension_numbers<[1], [1], [0], [0], [0, 0, 1, 0], [], []>} : vector<8x32xbf16>, vector<8x32xbf16>, vector<8x8xf32> -> vector<8x8xf32>
    %cst_39 = arith.constant 0.176776692 : f32
    %77 = vector.broadcast %cst_39 : f32 to vector<8x8xf32>
    %78 = arith.mulf %76, %77 : vector<8x8xf32>
    %cst_40 = arith.constant dense<0xFF800000> : vector<8xf32>
    %79 = vector.multi_reduction <maximumf>, %78, %cst_40 [1] : vector<8x8xf32> to vector<8xf32>
    %80 = vector.shape_cast %79 : vector<8xf32> to vector<8x1xf32>
    %81 = vector.broadcast %80 : vector<8x1xf32> to vector<8x8xf32>
    %82 = arith.subf %78, %81 : vector<8x8xf32>
    %83 = math.exp %82 : vector<8x8xf32>
    %cst_41 = arith.constant dense<0.000000e+00> : vector<8xf32>
    %84 = vector.multi_reduction <add>, %83, %cst_41 [1] : vector<8x8xf32> to vector<8xf32>
    %85 = vector.shape_cast %84 : vector<8xf32> to vector<8x1xf32>
    %86 = tpu.reciprocal %85 {approx = true} : vector<8x1xf32> -> vector<8x1xf32>
    %87 = vector.broadcast %86 : vector<8x1xf32> to vector<8x8xf32>
    %88 = arith.mulf %83, %87 : vector<8x8xf32>
    %89 = arith.truncf %88 : vector<8x8xf32> to vector<8x8xbf16>
    %90 = arith.truncf %73 : vector<8x32xf32> to vector<8x32xbf16>
    %cst_42 = arith.constant dense<0.000000e+00> : vector<8x32xf32>
    %91 = tpu.matmul %89, %90, %cst_42 {dimension_numbers = #tpu.dot_dimension_numbers<[1], [0], [0], [1], [0, 0, 1, 1], [], []>} : vector<8x8xbf16>, vector<8x32xbf16>, vector<8x32xf32> -> vector<8x32xf32>
    %92 = arith.truncf %91 : vector<8x32xf32> to vector<8x32xbf16>
    %c0_43 = arith.constant 0 : index
    %c0_44 = arith.constant 0 : index
    %93 = vector.load %arg13[%c0_43, %c0_44] : memref<32x32xbf16, #tpu.memory_space<vmem>>, vector<32x32xbf16>
    %cst_45 = arith.constant dense<0.000000e+00> : vector<8x32xf32>
    %94 = tpu.matmul %92, %93, %cst_45 {dimension_numbers = #tpu.dot_dimension_numbers<[1], [0], [0], [1], [0, 0, 1, 1], [], []>} : vector<8x32xbf16>, vector<32x32xbf16>, vector<8x32xf32> -> vector<8x32xf32>
    %c0_46 = arith.constant 0 : index
    %c0_47 = arith.constant 0 : index
    %95 = vector.load %arg14[%c0_46, %c0_47] : memref<1x32xf32, #tpu.memory_space<vmem>>, vector<1x32xf32>
    %96 = vector.broadcast %95 : vector<1x32xf32> to vector<8x32xf32>
    %97 = arith.addf %94, %96 : vector<8x32xf32>
    %98 = arith.addf %59, %97 : vector<8x32xf32>
    %c0_48 = arith.constant 0 : index
    %c0_49 = arith.constant 0 : index
    %99 = vector.load %arg15[%c0_48, %c0_49] : memref<1x32xf32, #tpu.memory_space<vmem>>, vector<1x32xf32>
    %c0_50 = arith.constant 0 : index
    %c0_51 = arith.constant 0 : index
    %100 = vector.load %arg16[%c0_50, %c0_51] : memref<1x32xf32, #tpu.memory_space<vmem>>, vector<1x32xf32>
    %cst_52 = arith.constant dense<0.000000e+00> : vector<8xf32>
    %101 = vector.multi_reduction <add>, %98, %cst_52 [1] : vector<8x32xf32> to vector<8xf32>
    %102 = vector.shape_cast %101 : vector<8xf32> to vector<8x1xf32>
    %cst_53 = arith.constant 3.200000e+01 : f32
    %103 = vector.broadcast %cst_53 : f32 to vector<8x1xf32>
    %104 = arith.divf %102, %103 : vector<8x1xf32>
    %105 = vector.broadcast %104 : vector<8x1xf32> to vector<8x32xf32>
    %106 = arith.subf %98, %105 : vector<8x32xf32>
    %107 = arith.mulf %106, %106 : vector<8x32xf32>
    %cst_54 = arith.constant dense<0.000000e+00> : vector<8xf32>
    %108 = vector.multi_reduction <add>, %107, %cst_54 [1] : vector<8x32xf32> to vector<8xf32>
    %109 = vector.shape_cast %108 : vector<8xf32> to vector<8x1xf32>
    %cst_55 = arith.constant 3.200000e+01 : f32
    %110 = vector.broadcast %cst_55 : f32 to vector<8x1xf32>
    %111 = arith.divf %109, %110 : vector<8x1xf32>
    %cst_56 = arith.constant 9.99999974E-6 : f32
    %112 = vector.broadcast %cst_56 : f32 to vector<8x1xf32>
    %113 = arith.addf %111, %112 : vector<8x1xf32>
    %114 = math.rsqrt %113 : vector<8x1xf32>
    %115 = vector.broadcast %114 : vector<8x1xf32> to vector<8x32xf32>
    %116 = arith.mulf %106, %115 : vector<8x32xf32>
    %117 = vector.broadcast %99 : vector<1x32xf32> to vector<8x32xf32>
    %118 = arith.mulf %116, %117 : vector<8x32xf32>
    %119 = vector.broadcast %100 : vector<1x32xf32> to vector<8x32xf32>
    %120 = arith.addf %118, %119 : vector<8x32xf32>
    %121 = arith.truncf %120 : vector<8x32xf32> to vector<8x32xbf16>
    %c0_57 = arith.constant 0 : index
    %c0_58 = arith.constant 0 : index
    %122 = vector.load %arg17[%c0_57, %c0_58] : memref<32x4xbf16, #tpu.memory_space<vmem>>, vector<32x4xbf16>
    %cst_59 = arith.constant dense<0.000000e+00> : vector<8x4xf32>
    %123 = tpu.matmul %121, %122, %cst_59 {dimension_numbers = #tpu.dot_dimension_numbers<[1], [0], [0], [1], [0, 0, 1, 1], [], []>} : vector<8x32xbf16>, vector<32x4xbf16>, vector<8x4xf32> -> vector<8x4xf32>
    %c0_60 = arith.constant 0 : index
    %c0_61 = arith.constant 0 : index
    %124 = vector.load %arg18[%c0_60, %c0_61] : memref<1x4xf32, #tpu.memory_space<vmem>>, vector<1x4xf32>
    %125 = vector.broadcast %124 : vector<1x4xf32> to vector<8x4xf32>
    %126 = arith.addf %123, %125 : vector<8x4xf32>
    %cst_62 = arith.constant 0.000000e+00 : f32
    %127 = vector.broadcast %cst_62 : f32 to vector<8x4xf32>
    %128 = arith.subf %127, %126 : vector<8x4xf32>
    %129 = math.exp %128 : vector<8x4xf32>
    %cst_63 = arith.constant 1.000000e+00 : f32
    %130 = vector.broadcast %cst_63 : f32 to vector<8x4xf32>
    %131 = arith.addf %130, %129 : vector<8x4xf32>
    %cst_64 = arith.constant 1.000000e+00 : f32
    %132 = vector.broadcast %cst_64 : f32 to vector<8x4xf32>
    %133 = arith.divf %132, %131 : vector<8x4xf32>
    %134 = arith.mulf %126, %133 : vector<8x4xf32>
    %135 = arith.truncf %134 : vector<8x4xf32> to vector<8x4xbf16>
    %c0_65 = arith.constant 0 : index
    %c0_66 = arith.constant 0 : index
    %136 = vector.load %arg19[%c0_65, %c0_66] : memref<4x32xbf16, #tpu.memory_space<vmem>>, vector<4x32xbf16>
    %cst_67 = arith.constant dense<0.000000e+00> : vector<8x32xf32>
    %137 = tpu.matmul %135, %136, %cst_67 {dimension_numbers = #tpu.dot_dimension_numbers<[1], [0], [0], [1], [0, 0, 1, 1], [], []>} : vector<8x4xbf16>, vector<4x32xbf16>, vector<8x32xf32> -> vector<8x32xf32>
    %c0_68 = arith.constant 0 : index
    %c0_69 = arith.constant 0 : index
    %138 = vector.load %arg20[%c0_68, %c0_69] : memref<1x32xf32, #tpu.memory_space<vmem>>, vector<1x32xf32>
    %139 = vector.broadcast %138 : vector<1x32xf32> to vector<8x32xf32>
    %140 = arith.addf %137, %139 : vector<8x32xf32>
    %141 = arith.addf %120, %140 : vector<8x32xf32>
    %c0_70 = arith.constant 0 : index
    %c0_71 = arith.constant 0 : index
    %142 = vector.load %arg21[%c0_70, %c0_71] : memref<1x32xf32, #tpu.memory_space<vmem>>, vector<1x32xf32>
    %c0_72 = arith.constant 0 : index
    %c0_73 = arith.constant 0 : index
    %143 = vector.load %arg22[%c0_72, %c0_73] : memref<1x32xf32, #tpu.memory_space<vmem>>, vector<1x32xf32>
    %cst_74 = arith.constant dense<0.000000e+00> : vector<8xf32>
    %144 = vector.multi_reduction <add>, %141, %cst_74 [1] : vector<8x32xf32> to vector<8xf32>
    %145 = vector.shape_cast %144 : vector<8xf32> to vector<8x1xf32>
    %cst_75 = arith.constant 3.200000e+01 : f32
    %146 = vector.broadcast %cst_75 : f32 to vector<8x1xf32>
    %147 = arith.divf %145, %146 : vector<8x1xf32>
    %148 = vector.broadcast %147 : vector<8x1xf32> to vector<8x32xf32>
    %149 = arith.subf %141, %148 : vector<8x32xf32>
    %150 = arith.mulf %149, %149 : vector<8x32xf32>
    %cst_76 = arith.constant dense<0.000000e+00> : vector<8xf32>
    %151 = vector.multi_reduction <add>, %150, %cst_76 [1] : vector<8x32xf32> to vector<8xf32>
    %152 = vector.shape_cast %151 : vector<8xf32> to vector<8x1xf32>
    %cst_77 = arith.constant 3.200000e+01 : f32
    %153 = vector.broadcast %cst_77 : f32 to vector<8x1xf32>
    %154 = arith.divf %152, %153 : vector<8x1xf32>
    %cst_78 = arith.constant 9.99999974E-6 : f32
    %155 = vector.broadcast %cst_78 : f32 to vector<8x1xf32>
    %156 = arith.addf %154, %155 : vector<8x1xf32>
    %157 = math.rsqrt %156 : vector<8x1xf32>
    %158 = vector.broadcast %157 : vector<8x1xf32> to vector<8x32xf32>
    %159 = arith.mulf %149, %158 : vector<8x32xf32>
    %160 = vector.broadcast %142 : vector<1x32xf32> to vector<8x32xf32>
    %161 = arith.mulf %159, %160 : vector<8x32xf32>
    %162 = vector.broadcast %143 : vector<1x32xf32> to vector<8x32xf32>
    %163 = arith.addf %161, %162 : vector<8x32xf32>
    %c0_79 = arith.constant 0 : index
    %c0_80 = arith.constant 0 : index
    %c0_81 = arith.constant 0 : index
    %164 = vector.load %arg23[%c0_79, %c0_80, %c0_81] : memref<1x8x32xf32, #tpu.memory_space<vmem>>, vector<1x8x32xf32>
    %165 = vector.shape_cast %164 : vector<1x8x32xf32> to vector<8x32xf32>
    %166 = vector.shape_cast %163 : vector<8x32xf32> to vector<1x8x32xf32>
    tpu.vector_store %arg23[%c0_79, %c0_80, %c0_81], %166 {strides = array<i32>} : memref<1x8x32xf32, #tpu.memory_space<vmem>>, vector<1x8x32xf32>,
    return
  }
  func.func @transform_0(%arg0: i32) -> (i32, i32, i32) {
    %c0_i32 = arith.constant 0 : i32
    %c0_i32_0 = arith.constant 0 : i32
    %c0_i32_1 = arith.constant 0 : i32
    return %arg0, %c0_i32, %c0_i32_0 : i32, i32, i32
  }
  func.func @transform_1(%arg0: i32) -> (i32, i32, i32) {
    %c0_i32 = arith.constant 0 : i32
    %c0_i32_0 = arith.constant 0 : i32
    %c0_i32_1 = arith.constant 0 : i32
    return %arg0, %c0_i32, %c0_i32_0 : i32, i32, i32
  }
  func.func @transform_2(%arg0: i32) -> (i32, i32) {
    %c0_i32 = arith.constant 0 : i32
    %c0_i32_0 = arith.constant 0 : i32
    %c0_i32_1 = arith.constant 0 : i32
    return %c0_i32, %c0_i32_0 : i32, i32
  }
  func.func @transform_3(%arg0: i32) -> (i32, i32) {
    %c0_i32 = arith.constant 0 : i32
    %c0_i32_0 = arith.constant 0 : i32
    %c0_i32_1 = arith.constant 0 : i32
    return %c0_i32, %c0_i32_0 : i32, i32
  }
  func.func @transform_4(%arg0: i32) -> (i32, i32) {
    %c0_i32 = arith.constant 0 : i32
    %c0_i32_0 = arith.constant 0 : i32
    %c0_i32_1 = arith.constant 0 : i32
    return %c0_i32, %c0_i32_0 : i32, i32
  }
  func.func @transform_5(%arg0: i32) -> (i32, i32) {
    %c0_i32 = arith.constant 0 : i32
    %c0_i32_0 = arith.constant 0 : i32
    %c0_i32_1 = arith.constant 0 : i32
    return %c0_i32, %c0_i32_0 : i32, i32
  }
  func.func @transform_6(%arg0: i32) -> (i32, i32) {
    %c0_i32 = arith.constant 0 : i32
    %c0_i32_0 = arith.constant 0 : i32
    %c0_i32_1 = arith.constant 0 : i32
    return %c0_i32, %c0_i32_0 : i32, i32
  }
  func.func @transform_7(%arg0: i32) -> (i32, i32) {
    %c0_i32 = arith.constant 0 : i32
    %c0_i32_0 = arith.constant 0 : i32
    %c0_i32_1 = arith.constant 0 : i32
    return %c0_i32, %c0_i32_0 : i32, i32
  }
  func.func @transform_8(%arg0: i32) -> (i32, i32) {
    %c0_i32 = arith.constant 0 : i32
    %c0_i32_0 = arith.constant 0 : i32
    %c0_i32_1 = arith.constant 0 : i32
    return %c0_i32, %c0_i32_0 : i32, i32
  }
  func.func @transform_9(%arg0: i32) -> (i32, i32) {
    %c0_i32 = arith.constant 0 : i32
    %c0_i32_0 = arith.constant 0 : i32
    %c0_i32_1 = arith.constant 0 : i32
    return %c0_i32, %c0_i32_0 : i32, i32
  }
  func.func @transform_10(%arg0: i32) -> (i32, i32) {
    %c0_i32 = arith.constant 0 : i32
    %c0_i32_0 = arith.constant 0 : i32
    %c0_i32_1 = arith.constant 0 : i32
    return %c0_i32, %c0_i32_0 : i32, i32
  }
  func.func @transform_11(%arg0: i32) -> (i32, i32) {
    %c0_i32 = arith.constant 0 : i32
    %c0_i32_0 = arith.constant 0 : i32
    %c0_i32_1 = arith.constant 0 : i32
    return %c0_i32, %c0_i32_0 : i32, i32
  }
  func.func @transform_12(%arg0: i32) -> (i32, i32) {
    %c0_i32 = arith.constant 0 : i32
    %c0_i32_0 = arith.constant 0 : i32
    %c0_i32_1 = arith.constant 0 : i32
    return %c0_i32, %c0_i32_0 : i32, i32
  }
  func.func @transform_13(%arg0: i32) -> (i32, i32) {
    %c0_i32 = arith.constant 0 : i32
    %c0_i32_0 = arith.constant 0 : i32
    %c0_i32_1 = arith.constant 0 : i32
    return %c0_i32, %c0_i32_0 : i32, i32
  }
  func.func @transform_14(%arg0: i32) -> (i32, i32) {
    %c0_i32 = arith.constant 0 : i32
    %c0_i32_0 = arith.constant 0 : i32
    %c0_i32_1 = arith.constant 0 : i32
    return %c0_i32, %c0_i32_0 : i32, i32
  }
  func.func @transform_15(%arg0: i32) -> (i32, i32) {
    %c0_i32 = arith.constant 0 : i32
    %c0_i32_0 = arith.constant 0 : i32
    %c0_i32_1 = arith.constant 0 : i32
    return %c0_i32, %c0_i32_0 : i32, i32
  }
  func.func @transform_16(%arg0: i32) -> (i32, i32) {
    %c0_i32 = arith.constant 0 : i32
    %c0_i32_0 = arith.constant 0 : i32
    %c0_i32_1 = arith.constant 0 : i32
    return %c0_i32, %c0_i32_0 : i32, i32
  }
  func.func @transform_17(%arg0: i32) -> (i32, i32) {
    %c0_i32 = arith.constant 0 : i32
    %c0_i32_0 = arith.constant 0 : i32
    %c0_i32_1 = arith.constant 0 : i32
    return %c0_i32, %c0_i32_0 : i32, i32
  }
  func.func @transform_18(%arg0: i32) -> (i32, i32) {
    %c0_i32 = arith.constant 0 : i32
    %c0_i32_0 = arith.constant 0 : i32
    %c0_i32_1 = arith.constant 0 : i32
    return %c0_i32, %c0_i32_0 : i32, i32
  }
  func.func @transform_19(%arg0: i32) -> (i32, i32) {
    %c0_i32 = arith.constant 0 : i32
    %c0_i32_0 = arith.constant 0 : i32
    %c0_i32_1 = arith.constant 0 : i32
    return %c0_i32, %c0_i32_0 : i32, i32
  }
  func.func @transform_20(%arg0: i32) -> (i32, i32) {
    %c0_i32 = arith.constant 0 : i32
    %c0_i32_0 = arith.constant 0 : i32
    %c0_i32_1 = arith.constant 0 : i32
    return %c0_i32, %c0_i32_0 : i32, i32
  }
  func.func @transform_21(%arg0: i32) -> (i32, i32) {
    %c0_i32 = arith.constant 0 : i32
    %c0_i32_0 = arith.constant 0 : i32
    %c0_i32_1 = arith.constant 0 : i32
    return %c0_i32, %c0_i32_0 : i32, i32
  }
  func.func @transform_22(%arg0: i32) -> (i32, i32, i32) {
    %c0_i32 = arith.constant 0 : i32
    %c0_i32_0 = arith.constant 0 : i32
    %c0_i32_1 = arith.constant 0 : i32
    return %arg0, %c0_i32, %c0_i32_0 : i32, i32, i32
  }
}

module attributes {stable_mosaic.version = 11 : i64} {
  func.func @_posnet_kernel(%arg0: i32, %arg1: memref<16x32xf32, #tpu.memory_space<vmem>>, %arg2: memref<32x32xbf16, #tpu.memory_space<vmem>>, %arg3: memref<1x32xf32, #tpu.memory_space<vmem>>, %arg4: memref<32x32xbf16, #tpu.memory_space<vmem>>, %arg5: memref<1x32xf32, #tpu.memory_space<vmem>>, %arg6: memref<32x32xbf16, #tpu.memory_space<vmem>>, %arg7: memref<1x32xf32, #tpu.memory_space<vmem>>, %arg8: memref<32x32xbf16, #tpu.memory_space<vmem>>, %arg9: memref<1x32xf32, #tpu.memory_space<vmem>>, %arg10: memref<16x32xf32, #tpu.memory_space<vmem>>) attributes {dimension_semantics = [#tpu.dimension_semantics<parallel>], iteration_bounds = array<i64: 1>, scalar_prefetch = 0 : i64, scratch_operands = 0 : i64, tpu.core_type = #tpu.core_type<tc>, window_params = [{transform_indices = @transform_0, window_bounds = array<i64: 16, 32>}, {pipeline_mode = #tpu.pipeline_mode<synchronous>, transform_indices = @transform_1, window_bounds = array<i64: 32, 32>}, {pipeline_mode = #tpu.pipeline_mode<synchronous>, transform_indices = @transform_2, window_bounds = array<i64: 1, 32>}, {pipeline_mode = #tpu.pipeline_mode<synchronous>, transform_indices = @transform_3, window_bounds = array<i64: 32, 32>}, {pipeline_mode = #tpu.pipeline_mode<synchronous>, transform_indices = @transform_4, window_bounds = array<i64: 1, 32>}, {pipeline_mode = #tpu.pipeline_mode<synchronous>, transform_indices = @transform_5, window_bounds = array<i64: 32, 32>}, {pipeline_mode = #tpu.pipeline_mode<synchronous>, transform_indices = @transform_6, window_bounds = array<i64: 1, 32>}, {pipeline_mode = #tpu.pipeline_mode<synchronous>, transform_indices = @transform_7, window_bounds = array<i64: 32, 32>}, {pipeline_mode = #tpu.pipeline_mode<synchronous>, transform_indices = @transform_8, window_bounds = array<i64: 1, 32>}, {transform_indices = @transform_9, window_bounds = array<i64: 16, 32>}]} {
    %c0 = arith.constant 0 : index
    %c0_0 = arith.constant 0 : index
    %0 = vector.load %arg1[%c0, %c0_0] : memref<16x32xf32, #tpu.memory_space<vmem>>, vector<16x32xf32>
    %1 = arith.truncf %0 : vector<16x32xf32> to vector<16x32xbf16>
    %c0_1 = arith.constant 0 : index
    %c0_2 = arith.constant 0 : index
    %2 = vector.load %arg2[%c0_1, %c0_2] : memref<32x32xbf16, #tpu.memory_space<vmem>>, vector<32x32xbf16>
    %cst = arith.constant dense<0.000000e+00> : vector<16x32xf32>
    %3 = tpu.matmul %1, %2, %cst {dimension_numbers = #tpu.dot_dimension_numbers<[1], [0], [0], [1], [0, 0, 1, 1], [], []>} : vector<16x32xbf16>, vector<32x32xbf16>, vector<16x32xf32> -> vector<16x32xf32>
    %c0_3 = arith.constant 0 : index
    %c0_4 = arith.constant 0 : index
    %4 = vector.load %arg3[%c0_3, %c0_4] : memref<1x32xf32, #tpu.memory_space<vmem>>, vector<1x32xf32>
    %5 = vector.broadcast %4 : vector<1x32xf32> to vector<16x32xf32>
    %6 = arith.addf %3, %5 : vector<16x32xf32>
    %cst_5 = arith.constant 0.000000e+00 : f32
    %7 = vector.broadcast %cst_5 : f32 to vector<16x32xf32>
    %8 = arith.subf %7, %6 : vector<16x32xf32>
    %9 = math.exp %8 : vector<16x32xf32>
    %cst_6 = arith.constant 1.000000e+00 : f32
    %10 = vector.broadcast %cst_6 : f32 to vector<16x32xf32>
    %11 = arith.addf %10, %9 : vector<16x32xf32>
    %cst_7 = arith.constant 1.000000e+00 : f32
    %12 = vector.broadcast %cst_7 : f32 to vector<16x32xf32>
    %13 = arith.divf %12, %11 : vector<16x32xf32>
    %14 = arith.mulf %6, %13 : vector<16x32xf32>
    %15 = arith.truncf %14 : vector<16x32xf32> to vector<16x32xbf16>
    %c0_8 = arith.constant 0 : index
    %c0_9 = arith.constant 0 : index
    %16 = vector.load %arg4[%c0_8, %c0_9] : memref<32x32xbf16, #tpu.memory_space<vmem>>, vector<32x32xbf16>
    %cst_10 = arith.constant dense<0.000000e+00> : vector<16x32xf32>
    %17 = tpu.matmul %15, %16, %cst_10 {dimension_numbers = #tpu.dot_dimension_numbers<[1], [0], [0], [1], [0, 0, 1, 1], [], []>} : vector<16x32xbf16>, vector<32x32xbf16>, vector<16x32xf32> -> vector<16x32xf32>
    %c0_11 = arith.constant 0 : index
    %c0_12 = arith.constant 0 : index
    %18 = vector.load %arg5[%c0_11, %c0_12] : memref<1x32xf32, #tpu.memory_space<vmem>>, vector<1x32xf32>
    %19 = vector.broadcast %18 : vector<1x32xf32> to vector<16x32xf32>
    %20 = arith.addf %17, %19 : vector<16x32xf32>
    %21 = arith.truncf %20 : vector<16x32xf32> to vector<16x32xbf16>
    %c0_13 = arith.constant 0 : index
    %c0_14 = arith.constant 0 : index
    %22 = vector.load %arg6[%c0_13, %c0_14] : memref<32x32xbf16, #tpu.memory_space<vmem>>, vector<32x32xbf16>
    %cst_15 = arith.constant dense<0.000000e+00> : vector<16x32xf32>
    %23 = tpu.matmul %21, %22, %cst_15 {dimension_numbers = #tpu.dot_dimension_numbers<[1], [0], [0], [1], [0, 0, 1, 1], [], []>} : vector<16x32xbf16>, vector<32x32xbf16>, vector<16x32xf32> -> vector<16x32xf32>
    %c0_16 = arith.constant 0 : index
    %c0_17 = arith.constant 0 : index
    %24 = vector.load %arg7[%c0_16, %c0_17] : memref<1x32xf32, #tpu.memory_space<vmem>>, vector<1x32xf32>
    %25 = vector.broadcast %24 : vector<1x32xf32> to vector<16x32xf32>
    %26 = arith.addf %23, %25 : vector<16x32xf32>
    %cst_18 = arith.constant 0.000000e+00 : f32
    %27 = vector.broadcast %cst_18 : f32 to vector<16x32xf32>
    %28 = arith.subf %27, %26 : vector<16x32xf32>
    %29 = math.exp %28 : vector<16x32xf32>
    %cst_19 = arith.constant 1.000000e+00 : f32
    %30 = vector.broadcast %cst_19 : f32 to vector<16x32xf32>
    %31 = arith.addf %30, %29 : vector<16x32xf32>
    %cst_20 = arith.constant 1.000000e+00 : f32
    %32 = vector.broadcast %cst_20 : f32 to vector<16x32xf32>
    %33 = arith.divf %32, %31 : vector<16x32xf32>
    %34 = arith.mulf %26, %33 : vector<16x32xf32>
    %35 = arith.truncf %34 : vector<16x32xf32> to vector<16x32xbf16>
    %c0_21 = arith.constant 0 : index
    %c0_22 = arith.constant 0 : index
    %36 = vector.load %arg8[%c0_21, %c0_22] : memref<32x32xbf16, #tpu.memory_space<vmem>>, vector<32x32xbf16>
    %cst_23 = arith.constant dense<0.000000e+00> : vector<16x32xf32>
    %37 = tpu.matmul %35, %36, %cst_23 {dimension_numbers = #tpu.dot_dimension_numbers<[1], [0], [0], [1], [0, 0, 1, 1], [], []>} : vector<16x32xbf16>, vector<32x32xbf16>, vector<16x32xf32> -> vector<16x32xf32>
    %c0_24 = arith.constant 0 : index
    %c0_25 = arith.constant 0 : index
    %38 = vector.load %arg9[%c0_24, %c0_25] : memref<1x32xf32, #tpu.memory_space<vmem>>, vector<1x32xf32>
    %39 = vector.broadcast %38 : vector<1x32xf32> to vector<16x32xf32>
    %40 = arith.addf %37, %39 : vector<16x32xf32>
    %cst_26 = arith.constant 0.000000e+00 : f32
    %41 = vector.broadcast %cst_26 : f32 to vector<16x32xf32>
    %42 = arith.maximumf %40, %41 : vector<16x32xf32>
    %c0_27 = arith.constant 0 : index
    %c0_28 = arith.constant 0 : index
    %43 = vector.load %arg10[%c0_27, %c0_28] : memref<16x32xf32, #tpu.memory_space<vmem>>, vector<16x32xf32>
    tpu.vector_store %arg10[%c0_27, %c0_28], %42 {strides = array<i32>} : memref<16x32xf32, #tpu.memory_space<vmem>>, vector<16x32xf32>,
    return
  }
  func.func @transform_0(%arg0: i32) -> (i32, i32) {
    %c0_i32 = arith.constant 0 : i32
    %c0_i32_0 = arith.constant 0 : i32
    return %arg0, %c0_i32 : i32, i32
  }
  func.func @transform_1(%arg0: i32) -> (i32, i32) {
    %c0_i32 = arith.constant 0 : i32
    %c0_i32_0 = arith.constant 0 : i32
    %c0_i32_1 = arith.constant 0 : i32
    return %c0_i32, %c0_i32_0 : i32, i32
  }
  func.func @transform_2(%arg0: i32) -> (i32, i32) {
    %c0_i32 = arith.constant 0 : i32
    %c0_i32_0 = arith.constant 0 : i32
    %c0_i32_1 = arith.constant 0 : i32
    return %c0_i32, %c0_i32_0 : i32, i32
  }
  func.func @transform_3(%arg0: i32) -> (i32, i32) {
    %c0_i32 = arith.constant 0 : i32
    %c0_i32_0 = arith.constant 0 : i32
    %c0_i32_1 = arith.constant 0 : i32
    return %c0_i32, %c0_i32_0 : i32, i32
  }
  func.func @transform_4(%arg0: i32) -> (i32, i32) {
    %c0_i32 = arith.constant 0 : i32
    %c0_i32_0 = arith.constant 0 : i32
    %c0_i32_1 = arith.constant 0 : i32
    return %c0_i32, %c0_i32_0 : i32, i32
  }
  func.func @transform_5(%arg0: i32) -> (i32, i32) {
    %c0_i32 = arith.constant 0 : i32
    %c0_i32_0 = arith.constant 0 : i32
    %c0_i32_1 = arith.constant 0 : i32
    return %c0_i32, %c0_i32_0 : i32, i32
  }
  func.func @transform_6(%arg0: i32) -> (i32, i32) {
    %c0_i32 = arith.constant 0 : i32
    %c0_i32_0 = arith.constant 0 : i32
    %c0_i32_1 = arith.constant 0 : i32
    return %c0_i32, %c0_i32_0 : i32, i32
  }
  func.func @transform_7(%arg0: i32) -> (i32, i32) {
    %c0_i32 = arith.constant 0 : i32
    %c0_i32_0 = arith.constant 0 : i32
    %c0_i32_1 = arith.constant 0 : i32
    return %c0_i32, %c0_i32_0 : i32, i32
  }
  func.func @transform_8(%arg0: i32) -> (i32, i32) {
    %c0_i32 = arith.constant 0 : i32
    %c0_i32_0 = arith.constant 0 : i32
    %c0_i32_1 = arith.constant 0 : i32
    return %c0_i32, %c0_i32_0 : i32, i32
  }
  func.func @transform_9(%arg0: i32) -> (i32, i32) {
    %c0_i32 = arith.constant 0 : i32
    %c0_i32_0 = arith.constant 0 : i32
    return %arg0, %c0_i32 : i32, i32
  }
}

module attributes {stable_mosaic.version = 11 : i64} {
  func.func @_mul_kernel(%arg0: i32, %arg1: memref<4x128xf32, #tpu.memory_space<vmem>>, %arg2: memref<4x128xf32, #tpu.memory_space<vmem>>, %arg3: memref<4x128xf32, #tpu.memory_space<vmem>>) attributes {dimension_semantics = [#tpu.dimension_semantics<parallel>], iteration_bounds = array<i64: 1>, scalar_prefetch = 0 : i64, scratch_operands = 0 : i64, tpu.core_type = #tpu.core_type<tc>, window_params = [{transform_indices = @transform_0, window_bounds = array<i64: 4, 128>}, {transform_indices = @transform_1, window_bounds = array<i64: 4, 128>}, {transform_indices = @transform_2, window_bounds = array<i64: 4, 128>}]} {
    %c0 = arith.constant 0 : index
    %c0_0 = arith.constant 0 : index
    %0 = vector.load %arg1[%c0, %c0_0] : memref<4x128xf32, #tpu.memory_space<vmem>>, vector<4x128xf32>
    %c0_1 = arith.constant 0 : index
    %c0_2 = arith.constant 0 : index
    %1 = vector.load %arg2[%c0_1, %c0_2] : memref<4x128xf32, #tpu.memory_space<vmem>>, vector<4x128xf32>
    %2 = arith.mulf %0, %1 : vector<4x128xf32>
    %c0_3 = arith.constant 0 : index
    %c0_4 = arith.constant 0 : index
    %3 = vector.load %arg3[%c0_3, %c0_4] : memref<4x128xf32, #tpu.memory_space<vmem>>, vector<4x128xf32>
    tpu.vector_store %arg3[%c0_3, %c0_4], %2 {strides = array<i32>} : memref<4x128xf32, #tpu.memory_space<vmem>>, vector<4x128xf32>,
    return
  }
  func.func @transform_0(%arg0: i32) -> (i32, i32) {
    %c0_i32 = arith.constant 0 : i32
    %c0_i32_0 = arith.constant 0 : i32
    return %arg0, %c0_i32 : i32, i32
  }
  func.func @transform_1(%arg0: i32) -> (i32, i32) {
    %c0_i32 = arith.constant 0 : i32
    %c0_i32_0 = arith.constant 0 : i32
    return %arg0, %c0_i32 : i32, i32
  }
  func.func @transform_2(%arg0: i32) -> (i32, i32) {
    %c0_i32 = arith.constant 0 : i32
    %c0_i32_0 = arith.constant 0 : i32
    return %arg0, %c0_i32 : i32, i32
  }
}

</mosaic_0001>

<llo_original>
// kernel: transformer_autoencoder_separator.11
$region0: #{transformer_autoencoder_separator.11}
  #allocation0 [shape = 'u32[]', space=smem, size = 0x4, offset = 0x4, fixed_abs, tag = 'smem constant byte address 0x4 - core index']
  #allocation1 [shape = 'u32[144,128]{1,0:T(1,128)}', space=vmem, size = 0x12000, scoped, tag = 'internal scratch']
  %s0 = inlined_call_operand.vmem [shape: f32[16,32], index: 0, kind: input, shape index: {}]
  %s1 = inlined_call_operand.vmem [shape: f32[16,32], index: 1, kind: input, shape index: {}]
  %s2 = inlined_call_operand.vmem [shape: bf16[32,32], index: 2, kind: input, shape index: {}]
  %s3 = inlined_call_operand.vmem [shape: f32[1,32], index: 3, kind: input, shape index: {}]
  %s4 = inlined_call_operand.vmem [shape: bf16[32,32], index: 4, kind: input, shape index: {}]
  %s5 = inlined_call_operand.vmem [shape: f32[1,32], index: 5, kind: input, shape index: {}]
  %s6 = inlined_call_operand.vmem [shape: bf16[32,32], index: 6, kind: input, shape index: {}]
  %s7 = inlined_call_operand.vmem [shape: f32[1,32], index: 7, kind: input, shape index: {}]
  %s8 = inlined_call_operand.vmem [shape: f32[16,32], index: 8, kind: output, shape index: {}]
  %s9 = sld [smem:[#allocation0]]
  $region42: #{transformer_autoencoder_separator.11} parent=0
    _
  %s11 = ssub.s32 1, %s9
  %s12 = scalar_select 0, %s11, %s9
  // Predicated region
  $region2: #{transformer_autoencoder_separator.11} parent=0 // pred_check
    _
  $region3: #{transformer_autoencoder_separator.11} parent=0 // pred_check_branch
    %14 = sbr.rel (0) target = $region5
  $region4: #{transformer_autoencoder_separator.11} parent=0 // pred_region
    _
  $region5: #{transformer_autoencoder_separator.11} parent=0 // pred_fallthru
    _
  // Predicated region
  $region6: #{transformer_autoencoder_separator.11} parent=0 // pred_check
    _
  $region7: #{transformer_autoencoder_separator.11} parent=0 // pred_check_branch
    %16 = sbr.rel (0) target = $region9
  $region8: #{transformer_autoencoder_separator.11} parent=0 // pred_region
    _
  $region9: #{transformer_autoencoder_separator.11} parent=0 // pred_fallthru
    _
  // Predicated region
  $region10: #{transformer_autoencoder_separator.11} parent=0 // pred_check
    _
  $region11: #{transformer_autoencoder_separator.11} parent=0 // pred_check_branch
    %18 = sbr.rel (0) target = $region13
  $region12: #{transformer_autoencoder_separator.11} parent=0 // pred_region
    _
  $region13: #{transformer_autoencoder_separator.11} parent=0 // pred_fallthru
    _
  // Predicated region
  $region14: #{transformer_autoencoder_separator.11} parent=0 // pred_check
    _
  $region15: #{transformer_autoencoder_separator.11} parent=0 // pred_check_branch
    %20 = sbr.rel (0) target = $region17
  $region16: #{transformer_autoencoder_separator.11} parent=0 // pred_region
    _
  $region17: #{transformer_autoencoder_separator.11} parent=0 // pred_fallthru
    _
  // Predicated region
  $region18: #{transformer_autoencoder_separator.11} parent=0 // pred_check
    _
  $region19: #{transformer_autoencoder_separator.11} parent=0 // pred_check_branch
    %22 = sbr.rel (0) target = $region21
  $region20: #{transformer_autoencoder_separator.11} parent=0 // pred_region
    _
  $region21: #{transformer_autoencoder_separator.11} parent=0 // pred_fallthru
    _
  // Predicated region
  $region22: #{transformer_autoencoder_separator.11} parent=0 // pred_check
    _
  $region23: #{transformer_autoencoder_separator.11} parent=0 // pred_check_branch
    %24 = sbr.rel (0) target = $region25
  $region24: #{transformer_autoencoder_separator.11} parent=0 // pred_region
    _
  $region25: #{transformer_autoencoder_separator.11} parent=0 // pred_fallthru
    _
  // Predicated region
  $region26: #{transformer_autoencoder_separator.11} parent=0 // pred_check
    _
  $region27: #{transformer_autoencoder_separator.11} parent=0 // pred_check_branch
    %26 = sbr.rel (0) target = $region29
  $region28: #{transformer_autoencoder_separator.11} parent=0 // pred_region
    _
  $region29: #{transformer_autoencoder_separator.11} parent=0 // pred_fallthru
    _
  // Predicated region
  $region30: #{transformer_autoencoder_separator.11} parent=0 // pred_check
    _
  $region31: #{transformer_autoencoder_separator.11} parent=0 // pred_check_branch
    %28 = sbr.rel (0) target = $region33
  $region32: #{transformer_autoencoder_separator.11} parent=0 // pred_region
    _
  $region33: #{transformer_autoencoder_separator.11} parent=0 // pred_fallthru
    _
  %v30 = vld [vmem:[%s0] sm:$0xff]
  %v31 = vld [vmem:[%s0 + $0x8] sm:$0xff]
  %v32 = vpack.c.bf16 %v31, %v30
  %v33 = vld [vmem:[%s2] sm:$0xf]
  %v34 = vld [vmem:[%s2 + $0x4] sm:$0xf]
  %v35 = vld [vmem:[%s2 + $0x8] sm:$0xf]
  %v36 = vld [vmem:[%s2 + $0xc] sm:$0xf]
  %v37 = vld [vmem:[%s3] sm:$0x1]
  %v39 = vlaneseq
  %v40 = vshrl.u32 %v39, 7
  %v41 = vsub.s32 0, %v40
  %v42 = vrot.slane %v37, %v41
  %v48 = vunpack.c.l.b16 %v33
  %v49 = vunpack.c.l.b16 %v34
  %v50 = vunpack.c.l.b16 %v35
  %v51 = vunpack.c.l.b16 %v36
  %v52 = vpack.c.b16 %v49, %v48
  %v53 = vpack.c.b16 %v51, %v50
  %vm56 = vcmask 261120
  %v58 = vsel %vm56, %v32, 0
  %60 = vmatprep.subr.bf16.mxu0 0
  %61 = vmatpush1.bf16.msra.mxu0 %v52
  %62 = vmatprep.subr.bf16.mxu0 0
  %63 = vmatpush1.bf16.msra.mxu0 %v53
  %64 = vmatprep.subr.bf16.mxu0 0
  %65 = vmatpush1.bf16.msra.mxu0 0
  %66 = vmatprep.subr.bf16.mxu0 0
  %67 = vmatpush1.bf16.msra.mxu0 0
  %68 = vmatprep.subr.bf16.mxu0 0
  %69 = vmatpush1.bf16.msra.mxu0 0
  %70 = vmatprep.subr.bf16.mxu0 0
  %71 = vmatpush1.bf16.msra.mxu0 0
  %72 = vmatprep.subr.bf16.mxu0 0
  %73 = vmatpush1.bf16.msra.mxu0 0
  %74 = vmatprep.subr.bf16.mxu0 0
  %75 = vmatpush1.bf16.msra.mxu0 0
  %76 = vmatprep.subr.bf16.mxu0 0
  %77 = vmatpush1.bf16.msra.mxu0 0
  %78 = vmatprep.subr.bf16.mxu0 0
  %79 = vmatpush1.bf16.msra.mxu0 0
  %80 = vmatprep.subr.bf16.mxu0 0
  %81 = vmatpush1.bf16.msra.mxu0 0
  %82 = vmatprep.subr.bf16.mxu0 0
  %83 = vmatpush1.bf16.msra.mxu0 0
  %84 = vmatprep.subr.bf16.mxu0 0
  %85 = vmatpush1.bf16.msra.mxu0 0
  %86 = vmatprep.subr.bf16.mxu0 0
  %87 = vmatpush1.bf16.msra.mxu0 0
  %88 = vmatprep.subr.bf16.mxu0 0
  %89 = vmatpush1.bf16.msra.mxu0 0
  %90 = vmatprep.subr.bf16.mxu0 0
  %91 = vmatpush1.bf16.msra.mxu0 0
  %92 = vmatprep.mubr.bf16.mxu0 0
  %93 = vmatmul.mubr.bf16.gmra.mrb[0].mxu0 %v58
  %v94 = vpop.f32.mrb[0].mxu0
  %v95 = vadd.f32 %v42, %v94
  %v96 = vpop.f32.mrb[0].mxu0
  %v97 = vpop.f32.mrb[0].mxu0
  %v98 = vadd.f32 %v42, %v97
  %v99 = vpop.f32.mrb[0].mxu0
  %100 = vdwg.mxu0
  %v101 = vpack.c.bf16 %v98, %v95
  %v102 = vld [vmem:[%s4] sm:$0xf]
  %v103 = vld [vmem:[%s4 + $0x4] sm:$0xf]
  %v104 = vld [vmem:[%s4 + $0x8] sm:$0xf]
  %v105 = vld [vmem:[%s4 + $0xc] sm:$0xf]
  %v106 = vld [vmem:[%s5] sm:$0x1]
  %v108 = vlaneseq
  %v109 = vshrl.u32 %v108, 7
  %v110 = vsub.s32 0, %v109
  %v111 = vrot.slane %v106, %v110
  %v117 = vunpack.c.l.b16 %v102
  %v118 = vunpack.c.l.b16 %v103
  %v119 = vunpack.c.l.b16 %v104
  %v120 = vunpack.c.l.b16 %v105
  %v121 = vpack.c.b16 %v118, %v117
  %v122 = vpack.c.b16 %v120, %v119
  %v126 = vsel %vm56, %v101, 0
  %128 = vmatprep.subr.bf16.mxu0 0
  %129 = vmatpush1.bf16.msra.mxu0 %v121
  %130 = vmatprep.subr.bf16.mxu0 0
  %131 = vmatpush1.bf16.msra.mxu0 %v122
  %132 = vmatprep.subr.bf16.mxu0 0
  %133 = vmatpush1.bf16.msra.mxu0 0
  %134 = vmatprep.subr.bf16.mxu0 0
  %135 = vmatpush1.bf16.msra.mxu0 0
  %136 = vmatprep.subr.bf16.mxu0 0
  %137 = vmatpush1.bf16.msra.mxu0 0
  %138 = vmatprep.subr.bf16.mxu0 0
  %139 = vmatpush1.bf16.msra.mxu0 0
  %140 = vmatprep.subr.bf16.mxu0 0
  %141 = vmatpush1.bf16.msra.mxu0 0
  %142 = vmatprep.subr.bf16.mxu0 0
  %143 = vmatpush1.bf16.msra.mxu0 0
  %144 = vmatprep.subr.bf16.mxu0 0
  %145 = vmatpush1.bf16.msra.mxu0 0
  %146 = vmatprep.subr.bf16.mxu0 0
  %147 = vmatpush1.bf16.msra.mxu0 0
  %148 = vmatprep.subr.bf16.mxu0 0
  %149 = vmatpush1.bf16.msra.mxu0 0
  %150 = vmatprep.subr.bf16.mxu0 0
  %151 = vmatpush1.bf16.msra.mxu0 0
  %152 = vmatprep.subr.bf16.mxu0 0
  %153 = vmatpush1.bf16.msra.mxu0 0
  %154 = vmatprep.subr.bf16.mxu0 0
  %155 = vmatpush1.bf16.msra.mxu0 0
  %156 = vmatprep.subr.bf16.mxu0 0
  %157 = vmatpush1.bf16.msra.mxu0 0
  %158 = vmatprep.subr.bf16.mxu0 0
  %159 = vmatpush1.bf16.msra.mxu0 0
  %160 = vmatprep.mubr.bf16.mxu0 0
  %161 = vmatmul.mubr.bf16.gmra.mrb[0].mxu0 %v126
  %v162 = vpop.f32.mrb[0].mxu0
  %v163 = vadd.f32 %v111, %v162
  %v164 = vpop.f32.mrb[0].mxu0
  %v165 = vpop.f32.mrb[0].mxu0
  %v166 = vadd.f32 %v111, %v165
  %v167 = vpop.f32.mrb[0].mxu0
  %168 = vdwg.mxu0
  %v169 = vsub.f32 0.0, %v163
  %v170 = vsub.f32 0.0, %v166
  %v171 = vmul.f32 %v169, 1.442695
  %v172 = vpow.pop %v171
  %v173 = vmul.f32 %v170, 1.442695
  %v174 = vpow.pop %v173
  %v175 = vadd.f32 %v172, 1.0
  %v176 = vadd.f32 %v174, 1.0
  %v177 = vrcp.pop %v175
  %v178 = vmul.f32 1.0, %v177
  %v179 = vrcp.pop %v176
  %v180 = vmul.f32 1.0, %v179
  %v181 = vmul.f32 %v163, %v178
  %v182 = vmul.f32 %v166, %v180
  %v183 = vpack.c.bf16 %v182, %v181
  %v184 = vld [vmem:[%s6] sm:$0xf]
  %v185 = vld [vmem:[%s6 + $0x4] sm:$0xf]
  %v186 = vld [vmem:[%s6 + $0x8] sm:$0xf]
  %v187 = vld [vmem:[%s6 + $0xc] sm:$0xf]
  %v188 = vld [vmem:[%s7] sm:$0x1]
  %v190 = vlaneseq
  %v191 = vshrl.u32 %v190, 7
  %v192 = vsub.s32 0, %v191
  %v193 = vrot.slane %v188, %v192
  %v199 = vunpack.c.l.b16 %v184
  %v200 = vunpack.c.l.b16 %v185
  %v201 = vunpack.c.l.b16 %v186
  %v202 = vunpack.c.l.b16 %v187
  %v203 = vpack.c.b16 %v200, %v199
  %v204 = vpack.c.b16 %v202, %v201
  %v208 = vsel %vm56, %v183, 0
  %210 = vmatprep.subr.bf16.mxu0 0
  %211 = vmatpush1.bf16.msra.mxu0 %v203
  %212 = vmatprep.subr.bf16.mxu0 0
  %213 = vmatpush1.bf16.msra.mxu0 %v204
  %214 = vmatprep.subr.bf16.mxu0 0
  %215 = vmatpush1.bf16.msra.mxu0 0
  %216 = vmatprep.subr.bf16.mxu0 0
  %217 = vmatpush1.bf16.msra.mxu0 0
  %218 = vmatprep.subr.bf16.mxu0 0
  %219 = vmatpush1.bf16.msra.mxu0 0
  %220 = vmatprep.subr.bf16.mxu0 0
  %221 = vmatpush1.bf16.msra.mxu0 0
  %222 = vmatprep.subr.bf16.mxu0 0
  %223 = vmatpush1.bf16.msra.mxu0 0
  %224 = vmatprep.subr.bf16.mxu0 0
  %225 = vmatpush1.bf16.msra.mxu0 0
  %226 = vmatprep.subr.bf16.mxu0 0
  %227 = vmatpush1.bf16.msra.mxu0 0
  %228 = vmatprep.subr.bf16.mxu0 0
  %229 = vmatpush1.bf16.msra.mxu0 0
  %230 = vmatprep.subr.bf16.mxu0 0
  %231 = vmatpush1.bf16.msra.mxu0 0
  %232 = vmatprep.subr.bf16.mxu0 0
  %233 = vmatpush1.bf16.msra.mxu0 0
  %234 = vmatprep.subr.bf16.mxu0 0
  %235 = vmatpush1.bf16.msra.mxu0 0
  %236 = vmatprep.subr.bf16.mxu0 0
  %237 = vmatpush1.bf16.msra.mxu0 0
  %238 = vmatprep.subr.bf16.mxu0 0
  %239 = vmatpush1.bf16.msra.mxu0 0
  %240 = vmatprep.subr.bf16.mxu0 0
  %241 = vmatpush1.bf16.msra.mxu0 0
  %242 = vmatprep.mubr.bf16.mxu0 0
  %243 = vmatmul.mubr.bf16.gmra.mrb[0].mxu0 %v208
  %v244 = vpop.f32.mrb[0].mxu0
  %v245 = vadd.f32 %v193, %v244
  %v246 = vpop.f32.mrb[0].mxu0
  %v247 = vpop.f32.mrb[0].mxu0
  %v248 = vadd.f32 %v193, %v247
  %v249 = vpop.f32.mrb[0].mxu0
  %250 = vdwg.mxu0
  %v251 = vsub.f32 0.0, %v245
  %v252 = vsub.f32 0.0, %v248
  %v253 = vmul.f32 %v251, 1.442695
  %v254 = vpow.pop %v253
  %v255 = vmul.f32 %v252, 1.442695
  %v256 = vpow.pop %v255
  %v257 = vadd.f32 %v254, 1.0
  %v258 = vadd.f32 %v256, 1.0
  %v259 = vrcp.pop %v257
  %v260 = vmul.f32 1.0, %v259
  %v261 = vrcp.pop %v258
  %v262 = vmul.f32 1.0, %v261
  %v263 = vmul.f32 %v245, %v260
  %v264 = vmul.f32 %v248, %v262
  %v265 = vld [vmem:[%s1] sm:$0xff]
  %v266 = vld [vmem:[%s1 + $0x8] sm:$0xff]
  %v267 = vadd.f32 %v263, %v265
  %v268 = vadd.f32 %v264, %v266
  %269 = vst.msk [vmem:[%s8] sm:$0xff] %vm56, %v267
  %270 = vst.msk [vmem:[%s8 + $0x8] sm:$0xff] %vm56, %v268
  // Predicated region
  $region34: #{transformer_autoencoder_separator.11} parent=0 // pred_check
    _
  $region35: #{transformer_autoencoder_separator.11} parent=0 // pred_check_branch
    %272 = sbr.rel (0) target = $region37
  $region36: #{transformer_autoencoder_separator.11} parent=0 // pred_region
    _
  $region37: #{transformer_autoencoder_separator.11} parent=0 // pred_fallthru
    _
  // Predicated region
  $region38: #{transformer_autoencoder_separator.11} parent=0 // pred_check
    _
  $region39: #{transformer_autoencoder_separator.11} parent=0 // pred_check_branch
    %274 = sbr.rel (0) target = $region41
  $region40: #{transformer_autoencoder_separator.11} parent=0 // pred_region
    _
  $region41: #{transformer_autoencoder_separator.11} parent=0 // pred_fallthru
    _

// kernel: transformer_autoencoder_separator.12
$region0: #{transformer_autoencoder_separator.12}
  #allocation0 [shape = 'u32[]', space=smem, size = 0x4, offset = 0x4, fixed_abs, tag = 'smem constant byte address 0x4 - core index']
  #allocation1 [shape = 'u32[144,128]{1,0:T(1,128)}', space=vmem, size = 0x12000, scoped, tag = 'internal scratch']
  %s0 = inlined_call_operand.vmem [shape: f32[2,8,32], index: 0, kind: input, shape index: {}]
  %s1 = inlined_call_operand.vmem [shape: bf16[32,96], index: 1, kind: input, shape index: {}]
  %s2 = inlined_call_operand.vmem [shape: f32[1,96], index: 2, kind: input, shape index: {}]
  %s3 = inlined_call_operand.vmem [shape: bf16[32,32], index: 3, kind: input, shape index: {}]
  %s4 = inlined_call_operand.vmem [shape: f32[1,32], index: 4, kind: input, shape index: {}]
  %s5 = inlined_call_operand.vmem [shape: f32[1,32], index: 5, kind: input, shape index: {}]
  %s6 = inlined_call_operand.vmem [shape: f32[1,32], index: 6, kind: input, shape index: {}]
  %s7 = inlined_call_operand.vmem [shape: bf16[32,4], index: 7, kind: input, shape index: {}]
  %s8 = inlined_call_operand.vmem [shape: f32[1,4], index: 8, kind: input, shape index: {}]
  %s9 = inlined_call_operand.vmem [shape: bf16[4,32], index: 9, kind: input, shape index: {}]
  %s10 = inlined_call_operand.vmem [shape: f32[1,32], index: 10, kind: input, shape index: {}]
  %s11 = inlined_call_operand.vmem [shape: f32[1,32], index: 11, kind: input, shape index: {}]
  %s12 = inlined_call_operand.vmem [shape: f32[1,32], index: 12, kind: input, shape index: {}]
  %s13 = inlined_call_operand.vmem [shape: f32[2,8,32], index: 13, kind: output, shape index: {}]
  %s14 = sld [smem:[#allocation0]]
  $region85: #{transformer_autoencoder_separator.12} parent=0
    _
  %s16 = ssub.s32 1, %s14
  %s17 = scalar_select 0, %s16, %s14
  loop: start=0, step=1, limit=4
  $region2: #{transformer_autoencoder_separator.12} parent=0 // loop_pre_header
    _
  $region3: #{transformer_autoencoder_separator.12} parent=0 // loop_header
    %s19 = sphi 0, %s23
    %p20 = scmp.ge.s32.totalorder %s19, 4
    %s29 = sphi 0, %s31
    %s32 = sphi 0, %s29
    %s33 = sphi 0, %s32
    %s49 = sphi 0, %s33
    %s53 = sphi 0, %s53
    %s55 = sphi 0, %s53
    %s56 = sphi 0, %s55
    %s70 = sphi 0, %s56
    %s74 = sphi 0, %s74
    %s76 = sphi 0, %s74
    %s77 = sphi 0, %s76
    %s91 = sphi 0, %s77
    %s95 = sphi 0, %s95
    %s97 = sphi 0, %s95
    %s98 = sphi 0, %s97
    %s112 = sphi 0, %s98
    %s116 = sphi 0, %s116
    %s118 = sphi 0, %s116
    %s119 = sphi 0, %s118
    %s133 = sphi 0, %s119
    %s137 = sphi 0, %s137
    %s139 = sphi 0, %s137
    %s140 = sphi 0, %s139
    %s154 = sphi 0, %s140
    %s158 = sphi 0, %s158
    %s160 = sphi 0, %s158
    %s161 = sphi 0, %s160
    %s175 = sphi 0, %s161
    %s179 = sphi 0, %s179
    %s181 = sphi 0, %s179
    %s182 = sphi 0, %s181
    %s196 = sphi 0, %s182
    %s200 = sphi 0, %s200
    %s202 = sphi 0, %s200
    %s203 = sphi 0, %s202
    %s217 = sphi 0, %s203
    %s221 = sphi 0, %s221
    %s223 = sphi 0, %s221
    %s224 = sphi 0, %s223
    %s238 = sphi 0, %s224
    %s242 = sphi 0, %s242
    %s244 = sphi 0, %s242
    %s245 = sphi 0, %s244
    %s259 = sphi 0, %s245
    %s263 = sphi 0, %s263
    %s265 = sphi 0, %s263
    %s266 = sphi 0, %s265
    %s280 = sphi 0, %s266
    %s284 = sphi 0, %s284
    %s286 = sphi 0, %s284
    %s287 = sphi 0, %s286
    %s301 = sphi 0, %s287
    %s307 = sphi 0, %s309
    %s310 = sphi 0, %s307
    %s311 = sphi 0, %s310
    %s327 = sphi 0, %s311
  $region4: #{transformer_autoencoder_separator.12} parent=0 // loop_header_branch
    %22 = sbr.rel (%p20) target = $region8
  $region5: #{transformer_autoencoder_separator.12} parent=0 // loop_body
    %s24 = ssub.s32 %s19, 1
    %s25 = ssub.s32 %s19, 2
    %s26 = sadd.s32 %s19, 1
    %s27 = ssub.s32 %s19, %s26
    %p28 = scmp.eq.s32.totalorder %s27, 0
    %s30 = sadd.s32 %s29, 1
    %s31 = scalar_select %p28, %s29, %s30
    %p34 = pneg %p28
    %p35 = scmp.eq.s32.totalorder %s19, 1
    %p36 = por %p34, %p35
    %p37 = scmp.ne.s32.totalorder %s29, %s32
    %p38 = scmp.eq.s32.totalorder %s19, 0
    %p39 = por %p37, %p38
    %p40 = scmp.ne.s32.totalorder %s29, %s32
    %p41 = scmp.eq.s32.totalorder %s24, 1
    %p42 = por %p40, %p41
    %p43 = scmp.ne.s32.totalorder %s32, %s33
    %p44 = scmp.eq.s32.totalorder %s24, 0
    %p45 = por %p43, %p44
    %p46 = scmp.ne.s32.totalorder %s32, %s33
    %p47 = scmp.eq.s32.totalorder %s25, 1
    %p48 = por %p46, %p47
    %p50 = scmp.ne.s32.totalorder %s33, %s49
    %p51 = scmp.eq.s32.totalorder %s25, 0
    %p52 = por %p50, %p51
    %s54 = sadd.s32 %s53, 1
    %p57 = scmp.eq.s32.totalorder %s19, 1
    %p58 = scmp.ne.s32.totalorder %s53, %s55
    %p59 = scmp.eq.s32.totalorder %s19, 0
    %p60 = por %p58, %p59
    %p61 = scmp.ne.s32.totalorder %s53, %s55
    %p62 = scmp.eq.s32.totalorder %s24, 1
    %p63 = por %p61, %p62
    %p64 = scmp.ne.s32.totalorder %s55, %s56
    %p65 = scmp.eq.s32.totalorder %s24, 0
    %p66 = por %p64, %p65
    %p67 = scmp.ne.s32.totalorder %s55, %s56
    %p68 = scmp.eq.s32.totalorder %s25, 1
    %p69 = por %p67, %p68
    %p71 = scmp.ne.s32.totalorder %s56, %s70
    %p72 = scmp.eq.s32.totalorder %s25, 0
    %p73 = por %p71, %p72
    %s75 = sadd.s32 %s74, 1
    %p78 = scmp.eq.s32.totalorder %s19, 1
    %p79 = scmp.ne.s32.totalorder %s74, %s76
    %p80 = scmp.eq.s32.totalorder %s19, 0
    %p81 = por %p79, %p80
    %p82 = scmp.ne.s32.totalorder %s74, %s76
    %p83 = scmp.eq.s32.totalorder %s24, 1
    %p84 = por %p82, %p83
    %p85 = scmp.ne.s32.totalorder %s76, %s77
    %p86 = scmp.eq.s32.totalorder %s24, 0
    %p87 = por %p85, %p86
    %p88 = scmp.ne.s32.totalorder %s76, %s77
    %p89 = scmp.eq.s32.totalorder %s25, 1
    %p90 = por %p88, %p89
    %p92 = scmp.ne.s32.totalorder %s77, %s91
    %p93 = scmp.eq.s32.totalorder %s25, 0
    %p94 = por %p92, %p93
    %s96 = sadd.s32 %s95, 1
    %p99 = scmp.eq.s32.totalorder %s19, 1
    %p100 = scmp.ne.s32.totalorder %s95, %s97
    %p101 = scmp.eq.s32.totalorder %s19, 0
    %p102 = por %p100, %p101
    %p103 = scmp.ne.s32.totalorder %s95, %s97
    %p104 = scmp.eq.s32.totalorder %s24, 1
    %p105 = por %p103, %p104
    %p106 = scmp.ne.s32.totalorder %s97, %s98
    %p107 = scmp.eq.s32.totalorder %s24, 0
    %p108 = por %p106, %p107
    %p109 = scmp.ne.s32.totalorder %s97, %s98
    %p110 = scmp.eq.s32.totalorder %s25, 1
    %p111 = por %p109, %p110
    %p113 = scmp.ne.s32.totalorder %s98, %s112
    %p114 = scmp.eq.s32.totalorder %s25, 0
    %p115 = por %p113, %p114
    %s117 = sadd.s32 %s116, 1
    %p120 = scmp.eq.s32.totalorder %s19, 1
    %p121 = scmp.ne.s32.totalorder %s116, %s118
    %p122 = scmp.eq.s32.totalorder %s19, 0
    %p123 = por %p121, %p122
    %p124 = scmp.ne.s32.totalorder %s116, %s118
    %p125 = scmp.eq.s32.totalorder %s24, 1
    %p126 = por %p124, %p125
    %p127 = scmp.ne.s32.totalorder %s118, %s119
    %p128 = scmp.eq.s32.totalorder %s24, 0
    %p129 = por %p127, %p128
    %p130 = scmp.ne.s32.totalorder %s118, %s119
    %p131 = scmp.eq.s32.totalorder %s25, 1
    %p132 = por %p130, %p131
    %p134 = scmp.ne.s32.totalorder %s119, %s133
    %p135 = scmp.eq.s32.totalorder %s25, 0
    %p136 = por %p134, %p135
    %s138 = sadd.s32 %s137, 1
    %p141 = scmp.eq.s32.totalorder %s19, 1
    %p142 = scmp.ne.s32.totalorder %s137, %s139
    %p143 = scmp.eq.s32.totalorder %s19, 0
    %p144 = por %p142, %p143
    %p145 = scmp.ne.s32.totalorder %s137, %s139
    %p146 = scmp.eq.s32.totalorder %s24, 1
    %p147 = por %p145, %p146
    %p148 = scmp.ne.s32.totalorder %s139, %s140
    %p149 = scmp.eq.s32.totalorder %s24, 0
    %p150 = por %p148, %p149
    %p151 = scmp.ne.s32.totalorder %s139, %s140
    %p152 = scmp.eq.s32.totalorder %s25, 1
    %p153 = por %p151, %p152
    %p155 = scmp.ne.s32.totalorder %s140, %s154
    %p156 = scmp.eq.s32.totalorder %s25, 0
    %p157 = por %p155, %p156
    %s159 = sadd.s32 %s158, 1
    %p162 = scmp.eq.s32.totalorder %s19, 1
    %p163 = scmp.ne.s32.totalorder %s158, %s160
    %p164 = scmp.eq.s32.totalorder %s19, 0
    %p165 = por %p163, %p164
    %p166 = scmp.ne.s32.totalorder %s158, %s160
    %p167 = scmp.eq.s32.totalorder %s24, 1
    %p168 = por %p166, %p167
    %p169 = scmp.ne.s32.totalorder %s160, %s161
    %p170 = scmp.eq.s32.totalorder %s24, 0
    %p171 = por %p169, %p170
    %p172 = scmp.ne.s32.totalorder %s160, %s161
    %p173 = scmp.eq.s32.totalorder %s25, 1
    %p174 = por %p172, %p173
    %p176 = scmp.ne.s32.totalorder %s161, %s175
    %p177 = scmp.eq.s32.totalorder %s25, 0
    %p178 = por %p176, %p177
    %s180 = sadd.s32 %s179, 1
    %p183 = scmp.eq.s32.totalorder %s19, 1
    %p184 = scmp.ne.s32.totalorder %s179, %s181
    %p185 = scmp.eq.s32.totalorder %s19, 0
    %p186 = por %p184, %p185
    %p187 = scmp.ne.s32.totalorder %s179, %s181
    %p188 = scmp.eq.s32.totalorder %s24, 1
    %p189 = por %p187, %p188
    %p190 = scmp.ne.s32.totalorder %s181, %s182
    %p191 = scmp.eq.s32.totalorder %s24, 0
    %p192 = por %p190, %p191
    %p193 = scmp.ne.s32.totalorder %s181, %s182
    %p194 = scmp.eq.s32.totalorder %s25, 1
    %p195 = por %p193, %p194
    %p197 = scmp.ne.s32.totalorder %s182, %s196
    %p198 = scmp.eq.s32.totalorder %s25, 0
    %p199 = por %p197, %p198
    %s201 = sadd.s32 %s200, 1
    %p204 = scmp.eq.s32.totalorder %s19, 1
    %p205 = scmp.ne.s32.totalorder %s200, %s202
    %p206 = scmp.eq.s32.totalorder %s19, 0
    %p207 = por %p205, %p206
    %p208 = scmp.ne.s32.totalorder %s200, %s202
    %p209 = scmp.eq.s32.totalorder %s24, 1
    %p210 = por %p208, %p209
    %p211 = scmp.ne.s32.totalorder %s202, %s203
    %p212 = scmp.eq.s32.totalorder %s24, 0
    %p213 = por %p211, %p212
    %p214 = scmp.ne.s32.totalorder %s202, %s203
    %p215 = scmp.eq.s32.totalorder %s25, 1
    %p216 = por %p214, %p215
    %p218 = scmp.ne.s32.totalorder %s203, %s217
    %p219 = scmp.eq.s32.totalorder %s25, 0
    %p220 = por %p218, %p219
    %s222 = sadd.s32 %s221, 1
    %p225 = scmp.eq.s32.totalorder %s19, 1
    %p226 = scmp.ne.s32.totalorder %s221, %s223
    %p227 = scmp.eq.s32.totalorder %s19, 0
    %p228 = por %p226, %p227
    %p229 = scmp.ne.s32.totalorder %s221, %s223
    %p230 = scmp.eq.s32.totalorder %s24, 1
    %p231 = por %p229, %p230
    %p232 = scmp.ne.s32.totalorder %s223, %s224
    %p233 = scmp.eq.s32.totalorder %s24, 0
    %p234 = por %p232, %p233
    %p235 = scmp.ne.s32.totalorder %s223, %s224
    %p236 = scmp.eq.s32.totalorder %s25, 1
    %p237 = por %p235, %p236
    %p239 = scmp.ne.s32.totalorder %s224, %s238
    %p240 = scmp.eq.s32.totalorder %s25, 0
    %p241 = por %p239, %p240
    %s243 = sadd.s32 %s242, 1
    %p246 = scmp.eq.s32.totalorder %s19, 1
    %p247 = scmp.ne.s32.totalorder %s242, %s244
    %p248 = scmp.eq.s32.totalorder %s19, 0
    %p249 = por %p247, %p248
    %p250 = scmp.ne.s32.totalorder %s242, %s244
    %p251 = scmp.eq.s32.totalorder %s24, 1
    %p252 = por %p250, %p251
    %p253 = scmp.ne.s32.totalorder %s244, %s245
    %p254 = scmp.eq.s32.totalorder %s24, 0
    %p255 = por %p253, %p254
    %p256 = scmp.ne.s32.totalorder %s244, %s245
    %p257 = scmp.eq.s32.totalorder %s25, 1
    %p258 = por %p256, %p257
    %p260 = scmp.ne.s32.totalorder %s245, %s259
    %p261 = scmp.eq.s32.totalorder %s25, 0
    %p262 = por %p260, %p261
    %s264 = sadd.s32 %s263, 1
    %p267 = scmp.eq.s32.totalorder %s19, 1
    %p268 = scmp.ne.s32.totalorder %s263, %s265
    %p269 = scmp.eq.s32.totalorder %s19, 0
    %p270 = por %p268, %p269
    %p271 = scmp.ne.s32.totalorder %s263, %s265
    %p272 = scmp.eq.s32.totalorder %s24, 1
    %p273 = por %p271, %p272
    %p274 = scmp.ne.s32.totalorder %s265, %s266
    %p275 = scmp.eq.s32.totalorder %s24, 0
    %p276 = por %p274, %p275
    %p277 = scmp.ne.s32.totalorder %s265, %s266
    %p278 = scmp.eq.s32.totalorder %s25, 1
    %p279 = por %p277, %p278
    %p281 = scmp.ne.s32.totalorder %s266, %s280
    %p282 = scmp.eq.s32.totalorder %s25, 0
    %p283 = por %p281, %p282
    %s285 = sadd.s32 %s284, 1
    %p288 = scmp.eq.s32.totalorder %s19, 1
    %p289 = scmp.ne.s32.totalorder %s284, %s286
    %p290 = scmp.eq.s32.totalorder %s19, 0
    %p291 = por %p289, %p290
    %p292 = scmp.ne.s32.totalorder %s284, %s286
    %p293 = scmp.eq.s32.totalorder %s24, 1
    %p294 = por %p292, %p293
    %p295 = scmp.ne.s32.totalorder %s286, %s287
    %p296 = scmp.eq.s32.totalorder %s24, 0
    %p297 = por %p295, %p296
    %p298 = scmp.ne.s32.totalorder %s286, %s287
    %p299 = scmp.eq.s32.totalorder %s25, 1
    %p300 = por %p298, %p299
    %p302 = scmp.ne.s32.totalorder %s287, %s301
    %p303 = scmp.eq.s32.totalorder %s25, 0
    %p304 = por %p302, %p303
    %s305 = ssub.s32 %s19, %s26
    %p306 = scmp.eq.s32.totalorder %s305, 0
    %s308 = sadd.s32 %s307, 1
    %s309 = scalar_select %p306, %s307, %s308
    %p312 = pneg %p306
    %p313 = scmp.eq.s32.totalorder %s19, 1
    %p314 = por %p312, %p313
    %p315 = scmp.ne.s32.totalorder %s307, %s310
    %p316 = scmp.eq.s32.totalorder %s19, 0
    %p317 = por %p315, %p316
    %p318 = scmp.ne.s32.totalorder %s307, %s310
    %p319 = scmp.eq.s32.totalorder %s24, 1
    %p320 = por %p318, %p319
    %p321 = scmp.ne.s32.totalorder %s310, %s311
    %p322 = scmp.eq.s32.totalorder %s24, 0
    %p323 = por %p321, %p322
    %p324 = scmp.ne.s32.totalorder %s310, %s311
    %p325 = scmp.eq.s32.totalorder %s25, 1
    %p326 = por %p324, %p325
    %p328 = scmp.ne.s32.totalorder %s311, %s327
    %p329 = scmp.eq.s32.totalorder %s25, 0
    %p330 = por %p328, %p329
    %p331 = scmp.le.s32.totalorder 1, %s19
    %p332 = scmp.lt.s32.totalorder %s19, 3
    %p333 = pnand %p331, %p332
    %p334 = pneg %p333
    // Predicated region
    $region9: #{transformer_autoencoder_separator.12} parent=5 // pred_check
      _
    $region10: #{transformer_autoencoder_separator.12} parent=5 // pred_check_branch
      %336 = sbr.rel (%p333) target = $region12
    $region11: #{transformer_autoencoder_separator.12} parent=5 // pred_region
      %s337 = ssub.s32 %s19, 1
      // Predicated region
      $region13: #{transformer_autoencoder_separator.12} parent=11 // pred_check
        %p338 = pneg %p66
      $region14: #{transformer_autoencoder_separator.12} parent=11 // pred_check_branch
        %340 = sbr.rel (%p338) target = $region16
      $region15: #{transformer_autoencoder_separator.12} parent=11 // pred_region
        _
      $region16: #{transformer_autoencoder_separator.12} parent=11 // pred_fallthru
        _
      // Predicated region
      $region17: #{transformer_autoencoder_separator.12} parent=11 // pred_check
        %p341 = pneg %p87
      $region18: #{transformer_autoencoder_separator.12} parent=11 // pred_check_branch
        %343 = sbr.rel (%p341) target = $region20
      $region19: #{transformer_autoencoder_separator.12} parent=11 // pred_region
        _
      $region20: #{transformer_autoencoder_separator.12} parent=11 // pred_fallthru
        _
      // Predicated region
      $region21: #{transformer_autoencoder_separator.12} parent=11 // pred_check
        %p344 = pneg %p108
      $region22: #{transformer_autoencoder_separator.12} parent=11 // pred_check_branch
        %346 = sbr.rel (%p344) target = $region24
      $region23: #{transformer_autoencoder_separator.12} parent=11 // pred_region
        _
      $region24: #{transformer_autoencoder_separator.12} parent=11 // pred_fallthru
        _
      // Predicated region
      $region25: #{transformer_autoencoder_separator.12} parent=11 // pred_check
        %p347 = pneg %p129
      $region26: #{transformer_autoencoder_separator.12} parent=11 // pred_check_branch
        %349 = sbr.rel (%p347) target = $region28
      $region27: #{transformer_autoencoder_separator.12} parent=11 // pred_region
        _
      $region28: #{transformer_autoencoder_separator.12} parent=11 // pred_fallthru
        _
      // Predicated region
      $region29: #{transformer_autoencoder_separator.12} parent=11 // pred_check
        %p350 = pneg %p150
      $region30: #{transformer_autoencoder_separator.12} parent=11 // pred_check_branch
        %352 = sbr.rel (%p350) target = $region32
      $region31: #{transformer_autoencoder_separator.12} parent=11 // pred_region
        _
      $region32: #{transformer_autoencoder_separator.12} parent=11 // pred_fallthru
        _
      // Predicated region
      $region33: #{transformer_autoencoder_separator.12} parent=11 // pred_check
        %p353 = pneg %p171
      $region34: #{transformer_autoencoder_separator.12} parent=11 // pred_check_branch
        %355 = sbr.rel (%p353) target = $region36
      $region35: #{transformer_autoencoder_separator.12} parent=11 // pred_region
        _
      $region36: #{transformer_autoencoder_separator.12} parent=11 // pred_fallthru
        _
      // Predicated region
      $region37: #{transformer_autoencoder_separator.12} parent=11 // pred_check
        %p356 = pneg %p192
      $region38: #{transformer_autoencoder_separator.12} parent=11 // pred_check_branch
        %358 = sbr.rel (%p356) target = $region40
      $region39: #{transformer_autoencoder_separator.12} parent=11 // pred_region
        _
      $region40: #{transformer_autoencoder_separator.12} parent=11 // pred_fallthru
        _
      // Predicated region
      $region41: #{transformer_autoencoder_separator.12} parent=11 // pred_check
        %p359 = pneg %p213
      $region42: #{transformer_autoencoder_separator.12} parent=11 // pred_check_branch
        %361 = sbr.rel (%p359) target = $region44
      $region43: #{transformer_autoencoder_separator.12} parent=11 // pred_region
        _
      $region44: #{transformer_autoencoder_separator.12} parent=11 // pred_fallthru
        _
      // Predicated region
      $region45: #{transformer_autoencoder_separator.12} parent=11 // pred_check
        %p362 = pneg %p234
      $region46: #{transformer_autoencoder_separator.12} parent=11 // pred_check_branch
        %364 = sbr.rel (%p362) target = $region48
      $region47: #{transformer_autoencoder_separator.12} parent=11 // pred_region
        _
      $region48: #{transformer_autoencoder_separator.12} parent=11 // pred_fallthru
        _
      // Predicated region
      $region49: #{transformer_autoencoder_separator.12} parent=11 // pred_check
        %p365 = pneg %p255
      $region50: #{transformer_autoencoder_separator.12} parent=11 // pred_check_branch
        %367 = sbr.rel (%p365) target = $region52
      $region51: #{transformer_autoencoder_separator.12} parent=11 // pred_region
        _
      $region52: #{transformer_autoencoder_separator.12} parent=11 // pred_fallthru
        _
      // Predicated region
      $region53: #{transformer_autoencoder_separator.12} parent=11 // pred_check
        %p368 = pneg %p276
      $region54: #{transformer_autoencoder_separator.12} parent=11 // pred_check_branch
        %370 = sbr.rel (%p368) target = $region56
      $region55: #{transformer_autoencoder_separator.12} parent=11 // pred_region
        _
      $region56: #{transformer_autoencoder_separator.12} parent=11 // pred_fallthru
        _
      // Predicated region
      $region57: #{transformer_autoencoder_separator.12} parent=11 // pred_check
        %p371 = pneg %p297
      $region58: #{transformer_autoencoder_separator.12} parent=11 // pred_check_branch
        %373 = sbr.rel (%p371) target = $region60
      $region59: #{transformer_autoencoder_separator.12} parent=11 // pred_region
        _
      $region60: #{transformer_autoencoder_separator.12} parent=11 // pred_fallthru
        _
    $region12: #{transformer_autoencoder_separator.12} parent=5 // pred_fallthru
      _
    %p374 = scmp.lt.s32.totalorder %s19, 2
    // Predicated region
    $region61: #{transformer_autoencoder_separator.12} parent=5 // pred_check
      %p375 = pneg %p374
    $region62: #{transformer_autoencoder_separator.12} parent=5 // pred_check_branch
      %377 = sbr.rel (%p375) target = $region64
    $region63: #{transformer_autoencoder_separator.12} parent=5 // pred_region
      // Predicated region
      $region65: #{transformer_autoencoder_separator.12} parent=63 // pred_check
        %p378 = pneg %p39
      $region66: #{transformer_autoencoder_separator.12} parent=63 // pred_check_branch
        %380 = sbr.rel (%p378) target = $region68
      $region67: #{transformer_autoencoder_separator.12} parent=63 // pred_region
        %p381 = scmp.lt.s32.totalorder %s19, 1
        %s382 = scalar_select %p381, %s19, 1
        %s383 = smul.addr %s382, 8
        %s384 = scalar_lea.vmem %s0, %s383
      $region68: #{transformer_autoencoder_separator.12} parent=63 // pred_fallthru
        _
    $region64: #{transformer_autoencoder_separator.12} parent=5 // pred_fallthru
      _
    %p385 = scmp.le.s32.totalorder 1, %s19
    %p386 = scmp.lt.s32.totalorder %s19, 3
    %p387 = pnand %p385, %p386
    %p388 = pneg %p387
    // Predicated region
    $region69: #{transformer_autoencoder_separator.12} parent=5 // pred_check
      _
    $region70: #{transformer_autoencoder_separator.12} parent=5 // pred_check_branch
      %390 = sbr.rel (%p387) target = $region72
    $region71: #{transformer_autoencoder_separator.12} parent=5 // pred_region
      %s391 = ssub.s32 %s19, 1
      %p392 = scmp.lt.s32.totalorder %s24, 1
      %s393 = scalar_select %p392, %s24, 1
      %s394 = smul.addr %s393, 8
      %s395 = scalar_lea.vmem %s0, %s394
      %p396 = pneg %p45
      %p397 = pneg %p42
      %p398 = pneg %p66
      %p399 = pneg %p63
      %p400 = pneg %p87
      %p401 = pneg %p84
      %p402 = pneg %p108
      %p403 = pneg %p105
      %p404 = pneg %p129
      %p405 = pneg %p126
      %p406 = pneg %p150
      %p407 = pneg %p147
      %p408 = pneg %p171
      %p409 = pneg %p168
      %p410 = pneg %p192
      %p411 = pneg %p189
      %p412 = pneg %p213
      %p413 = pneg %p210
      %p414 = pneg %p234
      %p415 = pneg %p231
      %p416 = pneg %p255
      %p417 = pneg %p252
      %p418 = pneg %p276
      %p419 = pneg %p273
      %p420 = pneg %p297
      %p421 = pneg %p294
      %p422 = pneg %p323
      %p423 = pneg %p320
      %p424 = scmp.lt.s32.totalorder %s24, 1
      %s425 = scalar_select %p424, %s24, 1
      %s426 = smul.addr %s425, 8
      %s427 = scalar_lea.vmem %s13, %s426
      %p428 = scmp.lt.s32.totalorder %s24, 1
      %s429 = scalar_select %p428, %s24, 1
      %s430 = smul.addr %s429, 8
      %s431 = scalar_lea.vmem %s0, %s430
      %p432 = scmp.lt.s32.totalorder %s24, 1
      %s433 = scalar_select %p432, %s24, 1
      %s434 = smul.addr %s433, 8
      %s435 = scalar_lea.vmem %s13, %s434
      %v437 = vld [vmem:[%s431] sm:$0xff]
      %v438 = vpack.c.bf16 %v437, %v437
      %v439 = vld [vmem:[%s1] sm:$0xf]
      %v440 = vld [vmem:[%s1 + $0x4] sm:$0xf]
      %v441 = vld [vmem:[%s1 + $0x8] sm:$0xf]
      %v442 = vld [vmem:[%s1 + $0xc] sm:$0xf]
      %v443 = vld [vmem:[%s2] sm:$0x1]
      %v445 = vlaneseq
      %v446 = vshrl.u32 %v445, 7
      %v447 = vsub.s32 0, %v446
      %v448 = vrot.slane %v443, %v447
      %v454 = vunpack.c.l.b16 %v439
      %v455 = vunpack.c.l.b16 %v440
      %v456 = vunpack.c.l.b16 %v441
      %v457 = vunpack.c.l.b16 %v442
      %v458 = vpack.c.b16 %v455, %v454
      %v459 = vpack.c.b16 %v457, %v456
      %vm462 = vcmask 261120
      %v464 = vsel %vm462, %v438, 0
      %466 = vmatprep.subr.bf16.mxu0 0
      %467 = vmatpush1.bf16.msra.mxu0 %v458
      %468 = vmatprep.subr.bf16.mxu0 0
      %469 = vmatpush1.bf16.msra.mxu0 %v459
      %470 = vmatprep.subr.bf16.mxu0 0
      %471 = vmatpush1.bf16.msra.mxu0 0
      %472 = vmatprep.subr.bf16.mxu0 0
      %473 = vmatpush1.bf16.msra.mxu0 0
      %474 = vmatprep.subr.bf16.mxu0 0
      %475 = vmatpush1.bf16.msra.mxu0 0
      %476 = vmatprep.subr.bf16.mxu0 0
      %477 = vmatpush1.bf16.msra.mxu0 0
      %478 = vmatprep.subr.bf16.mxu0 0
      %479 = vmatpush1.bf16.msra.mxu0 0
      %480 = vmatprep.subr.bf16.mxu0 0
      %481 = vmatpush1.bf16.msra.mxu0 0
      %482 = vmatprep.subr.bf16.mxu0 0
      %483 = vmatpush1.bf16.msra.mxu0 0
      %484 = vmatprep.subr.bf16.mxu0 0
      %485 = vmatpush1.bf16.msra.mxu0 0
      %486 = vmatprep.subr.bf16.mxu0 0
      %487 = vmatpush1.bf16.msra.mxu0 0
      %488 = vmatprep.subr.bf16.mxu0 0
      %489 = vmatpush1.bf16.msra.mxu0 0
      %490 = vmatprep.subr.bf16.mxu0 0
      %491 = vmatpush1.bf16.msra.mxu0 0
      %492 = vmatprep.subr.bf16.mxu0 0
      %493 = vmatpush1.bf16.msra.mxu0 0
      %494 = vmatprep.subr.bf16.mxu0 0
      %495 = vmatpush1.bf16.msra.mxu0 0
      %496 = vmatprep.subr.bf16.mxu0 0
      %497 = vmatpush1.bf16.msra.mxu0 0
      %498 = vmatprep.mubr.bf16.mxu0 0
      %499 = vmatmul.mubr.bf16.gmra.mrb[0].mxu0 %v464
      %v500 = vpop.f32.mrb[0].mxu0
      %v501 = vadd.f32 %v448, %v500
      %v502 = vpop.f32.mrb[0].mxu0
      %v503 = vpop.f32.mrb[0].mxu0
      %v504 = vpop.f32.mrb[0].mxu0
      %505 = vdwg.mxu0
      %v506 = vpack.c.bf16 %v501, %v501
      %508 = vrot.lane.b32.xlu0 %v506, 96
      %v509 = vpop.permute.xlu0 %508
      %v511 = vsel %vm462, %v506, 0
      %v514 = vsel %vm462, %v509, 0
      %516 = vmatprep.subr.bf16.mxu0 0
      %517 = vmatpush1.bf16.xpose.msra.mxu0 %v514
      %518 = vmatprep.subr.bf16.mxu0 0
      %519 = vmatpush1.bf16.xpose.msra.mxu0 0
      %520 = vmatprep.subr.bf16.mxu0 0
      %521 = vmatpush1.bf16.xpose.msra.mxu0 0
      %522 = vmatprep.subr.bf16.mxu0 0
      %523 = vmatpush1.bf16.xpose.msra.mxu0 0
      %524 = vmatprep.subr.bf16.mxu0 0
      %525 = vmatpush1.bf16.xpose.msra.mxu0 0
      %526 = vmatprep.subr.bf16.mxu0 0
      %527 = vmatpush1.bf16.xpose.msra.mxu0 0
      %528 = vmatprep.subr.bf16.mxu0 0
      %529 = vmatpush1.bf16.xpose.msra.mxu0 0
      %530 = vmatprep.subr.bf16.mxu0 0
      %531 = vmatpush1.bf16.xpose.msra.mxu0 0
      %532 = vmatprep.subr.bf16.mxu0 0
      %533 = vmatpush1.bf16.xpose.msra.mxu0 0
      %534 = vmatprep.subr.bf16.mxu0 0
      %535 = vmatpush1.bf16.xpose.msra.mxu0 0
      %536 = vmatprep.subr.bf16.mxu0 0
      %537 = vmatpush1.bf16.xpose.msra.mxu0 0
      %538 = vmatprep.subr.bf16.mxu0 0
      %539 = vmatpush1.bf16.xpose.msra.mxu0 0
      %540 = vmatprep.subr.bf16.mxu0 0
      %541 = vmatpush1.bf16.xpose.msra.mxu0 0
      %542 = vmatprep.subr.bf16.mxu0 0
      %543 = vmatpush1.bf16.xpose.msra.mxu0 0
      %544 = vmatprep.subr.bf16.mxu0 0
      %545 = vmatpush1.bf16.xpose.msra.mxu0 0
      %546 = vmatprep.subr.bf16.mxu0 0
      %547 = vmatpush1.bf16.xpose.msra.mxu0 0
      %548 = vmatprep.mubr.bf16.mxu0 0
      %549 = vmatmul.mubr.bf16.gmra.mrb[0].mxu0 %v511
      %v550 = vpop.f32.mrb[0].mxu0
      %v551 = vadd.f32 0.0, %v550
      %v552 = vpop.f32.mrb[0].mxu0
      %v553 = vpop.f32.mrb[0].mxu0
      %v554 = vpop.f32.mrb[0].mxu0
      %555 = vdwg.mxu0
      %v556 = vmul.f32 %v551, 0.17677669
      %vm557 = vcmask 64512
      %v558 = vsel %vm557, %v556, -inf
      %559 = vmax.xlane.f32.xlu0 %v558
      %v560 = vpop.xlane.xlu0 %559
      %v561 = vsub.f32 %v556, %v560
      %v562 = vmul.f32 %v561, 1.442695
      %v563 = vpow.pop %v562
      %v564 = vsel %vm557, %v563, 0.0
      %565 = vadd.xlane.f32.xlu0 %v564
      %v566 = vpop.xlane.xlu0 %565
      %v567 = vrcp.pop %v566
      %v568 = vmul.f32 %v563, %v567
      %v569 = vpack.c.bf16 %v568, %v568
      %570 = vrot.lane.b32.xlu0 %v506, 64
      %v571 = vpop.permute.xlu0 %570
      %v573 = vsel %vm557, %v569, 0
      %vm575 = vcmask 1043456
      %v577 = vsel %vm575, %v571, 0
      %579 = vmatprep.subr.bf16.mxu0 0
      %580 = vmatpush1.bf16.msra.mxu0 %v577
      %581 = vmatprep.subr.bf16.mxu0 0
      %582 = vmatpush1.bf16.msra.mxu0 0
      %583 = vmatprep.subr.bf16.mxu0 0
      %584 = vmatpush1.bf16.msra.mxu0 0
      %585 = vmatprep.subr.bf16.mxu0 0
      %586 = vmatpush1.bf16.msra.mxu0 0
      %587 = vmatprep.subr.bf16.mxu0 0
      %588 = vmatpush1.bf16.msra.mxu0 0
      %589 = vmatprep.subr.bf16.mxu0 0
      %590 = vmatpush1.bf16.msra.mxu0 0
      %591 = vmatprep.subr.bf16.mxu0 0
      %592 = vmatpush1.bf16.msra.mxu0 0
      %593 = vmatprep.subr.bf16.mxu0 0
      %594 = vmatpush1.bf16.msra.mxu0 0
      %595 = vmatprep.subr.bf16.mxu0 0
      %596 = vmatpush1.bf16.msra.mxu0 0
      %597 = vmatprep.subr.bf16.mxu0 0
      %598 = vmatpush1.bf16.msra.mxu0 0
      %599 = vmatprep.subr.bf16.mxu0 0
      %600 = vmatpush1.bf16.msra.mxu0 0
      %601 = vmatprep.subr.bf16.mxu0 0
      %602 = vmatpush1.bf16.msra.mxu0 0
      %603 = vmatprep.subr.bf16.mxu0 0
      %604 = vmatpush1.bf16.msra.mxu0 0
      %605 = vmatprep.subr.bf16.mxu0 0
      %606 = vmatpush1.bf16.msra.mxu0 0
      %607 = vmatprep.subr.bf16.mxu0 0
      %608 = vmatpush1.bf16.msra.mxu0 0
      %609 = vmatprep.subr.bf16.mxu0 0
      %610 = vmatpush1.bf16.msra.mxu0 0
      %611 = vmatprep.mubr.bf16.mxu0 0
      %612 = vmatmul.mubr.bf16.gmra.mrb[0].mxu0 %v573
      %v613 = vpop.f32.mrb[0].mxu0
      %v614 = vadd.f32 0.0, %v613
      %v615 = vpop.f32.mrb[0].mxu0
      %v616 = vpop.f32.mrb[0].mxu0
      %v617 = vpop.f32.mrb[0].mxu0
      %618 = vdwg.mxu0
      %v619 = vpack.c.bf16 %v614, %v614
      %v620 = vld [vmem:[%s3] sm:$0xf]
      %v621 = vld [vmem:[%s3 + $0x4] sm:$0xf]
      %v622 = vld [vmem:[%s3 + $0x8] sm:$0xf]
      %v623 = vld [vmem:[%s3 + $0xc] sm:$0xf]
      %v624 = vld [vmem:[%s4] sm:$0x1]
      %v626 = vlaneseq
      %v627 = vshrl.u32 %v626, 7
      %v628 = vsub.s32 0, %v627
      %v629 = vrot.slane %v624, %v628
      %v635 = vunpack.c.l.b16 %v620
      %v636 = vunpack.c.l.b16 %v621
      %v637 = vunpack.c.l.b16 %v622
      %v638 = vunpack.c.l.b16 %v623
      %v639 = vpack.c.b16 %v636, %v635
      %v640 = vpack.c.b16 %v638, %v637
      %v644 = vsel %vm462, %v619, 0
      %646 = vmatprep.subr.bf16.mxu0 0
      %647 = vmatpush1.bf16.msra.mxu0 %v639
      %648 = vmatprep.subr.bf16.mxu0 0
      %649 = vmatpush1.bf16.msra.mxu0 %v640
      %650 = vmatprep.subr.bf16.mxu0 0
      %651 = vmatpush1.bf16.msra.mxu0 0
      %652 = vmatprep.subr.bf16.mxu0 0
      %653 = vmatpush1.bf16.msra.mxu0 0
      %654 = vmatprep.subr.bf16.mxu0 0
      %655 = vmatpush1.bf16.msra.mxu0 0
      %656 = vmatprep.subr.bf16.mxu0 0
      %657 = vmatpush1.bf16.msra.mxu0 0
      %658 = vmatprep.subr.bf16.mxu0 0
      %659 = vmatpush1.bf16.msra.mxu0 0
      %660 = vmatprep.subr.bf16.mxu0 0
      %661 = vmatpush1.bf16.msra.mxu0 0
      %662 = vmatprep.subr.bf16.mxu0 0
      %663 = vmatpush1.bf16.msra.mxu0 0
      %664 = vmatprep.subr.bf16.mxu0 0
      %665 = vmatpush1.bf16.msra.mxu0 0
      %666 = vmatprep.subr.bf16.mxu0 0
      %667 = vmatpush1.bf16.msra.mxu0 0
      %668 = vmatprep.subr.bf16.mxu0 0
      %669 = vmatpush1.bf16.msra.mxu0 0
      %670 = vmatprep.subr.bf16.mxu0 0
      %671 = vmatpush1.bf16.msra.mxu0 0
      %672 = vmatprep.subr.bf16.mxu0 0
      %673 = vmatpush1.bf16.msra.mxu0 0
      %674 = vmatprep.subr.bf16.mxu0 0
      %675 = vmatpush1.bf16.msra.mxu0 0
      %676 = vmatprep.subr.bf16.mxu0 0
      %677 = vmatpush1.bf16.msra.mxu0 0
      %678 = vmatprep.mubr.bf16.mxu0 0
      %679 = vmatmul.mubr.bf16.gmra.mrb[0].mxu0 %v644
      %v680 = vpop.f32.mrb[0].mxu0
      %v681 = vadd.f32 %v629, %v680
      %v682 = vpop.f32.mrb[0].mxu0
      %v683 = vpop.f32.mrb[0].mxu0
      %v684 = vpop.f32.mrb[0].mxu0
      %685 = vdwg.mxu0
      %v686 = vadd.f32 %v437, %v681
      %v687 = vld [vmem:[%s5] sm:$0x1]
      %v688 = vld [vmem:[%s6] sm:$0x1]
      %v689 = vsel %vm462, %v686, 0.0
      %690 = vadd.xlane.f32.xlu0 %v689
      %v691 = vpop.xlane.xlu0 %690
      %v692 = vrcp.pop 32.0
      %v693 = vmul.f32 %v691, %v692
      %v694 = vsub.f32 %v686, %v693
      %v695 = vmul.f32 %v694, %v694
      %v696 = vsel %vm462, %v695, 0.0
      %697 = vadd.xlane.f32.xlu0 %v696
      %v698 = vpop.xlane.xlu0 %697
      %v699 = vmul.f32 %v698, %v692
      %v700 = vadd.f32 %v699, 1e-05
      %v701 = vrsqrt.pop %v700
      %v702 = vmul.f32 %v694, %v701
      %v704 = vlaneseq
      %v705 = vshrl.u32 %v704, 7
      %v706 = vsub.s32 0, %v705
      %v707 = vrot.slane %v687, %v706
      %v709 = vmul.f32 %v702, %v707
      %v711 = vlaneseq
      %v712 = vshrl.u32 %v711, 7
      %v713 = vsub.s32 0, %v712
      %v714 = vrot.slane %v688, %v713
      %v716 = vadd.f32 %v709, %v714
      %v717 = vpack.c.bf16 %v716, %v716
      %v718 = vld [vmem:[%s7] sm:$0xf]
      %v719 = vld [vmem:[%s7 + $0x4] sm:$0xf]
      %v720 = vld [vmem:[%s7 + $0x8] sm:$0xf]
      %v721 = vld [vmem:[%s7 + $0xc] sm:$0xf]
      %v722 = vld [vmem:[%s8] sm:$0x1]
      %v724 = vlaneseq
      %v725 = vshrl.u32 %v724, 7
      %v726 = vsub.s32 0, %v725
      %v727 = vrot.slane %v722, %v726
      %v733 = vunpack.c.l.b16 %v718
      %v734 = vunpack.c.l.b16 %v719
      %v735 = vunpack.c.l.b16 %v720
      %v736 = vunpack.c.l.b16 %v721
      %v737 = vpack.c.b16 %v734, %v733
      %v738 = vpack.c.b16 %v736, %v735
      %v742 = vsel %vm462, %v717, 0
      %744 = vmatprep.subr.bf16.mxu0 0
      %745 = vmatpush1.bf16.msra.mxu0 %v737
      %746 = vmatprep.subr.bf16.mxu0 0
      %747 = vmatpush1.bf16.msra.mxu0 %v738
      %748 = vmatprep.subr.bf16.mxu0 0
      %749 = vmatpush1.bf16.msra.mxu0 0
      %750 = vmatprep.subr.bf16.mxu0 0
      %751 = vmatpush1.bf16.msra.mxu0 0
      %752 = vmatprep.subr.bf16.mxu0 0
      %753 = vmatpush1.bf16.msra.mxu0 0
      %754 = vmatprep.subr.bf16.mxu0 0
      %755 = vmatpush1.bf16.msra.mxu0 0
      %756 = vmatprep.subr.bf16.mxu0 0
      %757 = vmatpush1.bf16.msra.mxu0 0
      %758 = vmatprep.subr.bf16.mxu0 0
      %759 = vmatpush1.bf16.msra.mxu0 0
      %760 = vmatprep.subr.bf16.mxu0 0
      %761 = vmatpush1.bf16.msra.mxu0 0
      %762 = vmatprep.subr.bf16.mxu0 0
      %763 = vmatpush1.bf16.msra.mxu0 0
      %764 = vmatprep.subr.bf16.mxu0 0
      %765 = vmatpush1.bf16.msra.mxu0 0
      %766 = vmatprep.subr.bf16.mxu0 0
      %767 = vmatpush1.bf16.msra.mxu0 0
      %768 = vmatprep.subr.bf16.mxu0 0
      %769 = vmatpush1.bf16.msra.mxu0 0
      %770 = vmatprep.subr.bf16.mxu0 0
      %771 = vmatpush1.bf16.msra.mxu0 0
      %772 = vmatprep.subr.bf16.mxu0 0
      %773 = vmatpush1.bf16.msra.mxu0 0
      %774 = vmatprep.subr.bf16.mxu0 0
      %775 = vmatpush1.bf16.msra.mxu0 0
      %776 = vmatprep.mubr.bf16.mxu0 0
      %777 = vmatmul.mubr.bf16.gmra.mrb[0].mxu0 %v742
      %v778 = vpop.f32.mrb[0].mxu0
      %v779 = vadd.f32 %v727, %v778
      %v780 = vpop.f32.mrb[0].mxu0
      %v781 = vpop.f32.mrb[0].mxu0
      %v782 = vpop.f32.mrb[0].mxu0
      %783 = vdwg.mxu0
      %v784 = vsub.f32 0.0, %v779
      %v785 = vmul.f32 %v784, 1.442695
      %v786 = vpow.pop %v785
      %v787 = vadd.f32 %v786, 1.0
      %v788 = vrcp.pop %v787
      %v789 = vmul.f32 1.0, %v788
      %v790 = vmul.f32 %v779, %v789
      %v791 = vpack.c.bf16 %v790, %v790
      %v792 = vld [vmem:[%s9] sm:$0x3]
      %v793 = vld [vmem:[%s10] sm:$0x1]
      %v795 = vlaneseq
      %v796 = vshrl.u32 %v795, 7
      %v797 = vsub.s32 0, %v796
      %v798 = vrot.slane %v793, %v797
      %vm800 = vcmask 31744
      %v802 = vsel %vm800, %v791, 0
      %vm804 = vcmask 1041408
      %v806 = vsel %vm804, %v792, 0
      %808 = vmatprep.subr.bf16.mxu0 0
      %809 = vmatpush1.bf16.msra.mxu0 %v806
      %810 = vmatprep.subr.bf16.mxu0 0
      %811 = vmatpush1.bf16.msra.mxu0 0
      %812 = vmatprep.subr.bf16.mxu0 0
      %813 = vmatpush1.bf16.msra.mxu0 0
      %814 = vmatprep.subr.bf16.mxu0 0
      %815 = vmatpush1.bf16.msra.mxu0 0
      %816 = vmatprep.subr.bf16.mxu0 0
      %817 = vmatpush1.bf16.msra.mxu0 0
      %818 = vmatprep.subr.bf16.mxu0 0
      %819 = vmatpush1.bf16.msra.mxu0 0
      %820 = vmatprep.subr.bf16.mxu0 0
      %821 = vmatpush1.bf16.msra.mxu0 0
      %822 = vmatprep.subr.bf16.mxu0 0
      %823 = vmatpush1.bf16.msra.mxu0 0
      %824 = vmatprep.subr.bf16.mxu0 0
      %825 = vmatpush1.bf16.msra.mxu0 0
      %826 = vmatprep.subr.bf16.mxu0 0
      %827 = vmatpush1.bf16.msra.mxu0 0
      %828 = vmatprep.subr.bf16.mxu0 0
      %829 = vmatpush1.bf16.msra.mxu0 0
      %830 = vmatprep.subr.bf16.mxu0 0
      %831 = vmatpush1.bf16.msra.mxu0 0
      %832 = vmatprep.subr.bf16.mxu0 0
      %833 = vmatpush1.bf16.msra.mxu0 0
      %834 = vmatprep.subr.bf16.mxu0 0
      %835 = vmatpush1.bf16.msra.mxu0 0
      %836 = vmatprep.subr.bf16.mxu0 0
      %837 = vmatpush1.bf16.msra.mxu0 0
      %838 = vmatprep.subr.bf16.mxu0 0
      %839 = vmatpush1.bf16.msra.mxu0 0
      %840 = vmatprep.mubr.bf16.mxu0 0
      %841 = vmatmul.mubr.bf16.gmra.mrb[0].mxu0 %v802
      %v842 = vpop.f32.mrb[0].mxu0
      %v843 = vadd.f32 %v798, %v842
      %v844 = vpop.f32.mrb[0].mxu0
      %v845 = vpop.f32.mrb[0].mxu0
      %v846 = vpop.f32.mrb[0].mxu0
      %847 = vdwg.mxu0
      %v848 = vadd.f32 %v716, %v843
      %v849 = vld [vmem:[%s11] sm:$0x1]
      %v850 = vld [vmem:[%s12] sm:$0x1]
      %v851 = vsel %vm462, %v848, 0.0
      %852 = vadd.xlane.f32.xlu0 %v851
      %v853 = vpop.xlane.xlu0 %852
      %v854 = vmul.f32 %v853, %v692
      %v855 = vsub.f32 %v848, %v854
      %v856 = vmul.f32 %v855, %v855
      %v857 = vsel %vm462, %v856, 0.0
      %858 = vadd.xlane.f32.xlu0 %v857
      %v859 = vpop.xlane.xlu0 %858
      %v860 = vmul.f32 %v859, %v692
      %v861 = vadd.f32 %v860, 1e-05
      %v862 = vrsqrt.pop %v861
      %v863 = vmul.f32 %v855, %v862
      %v865 = vlaneseq
      %v866 = vshrl.u32 %v865, 7
      %v867 = vsub.s32 0, %v866
      %v868 = vrot.slane %v849, %v867
      %v870 = vmul.f32 %v863, %v868
      %v872 = vlaneseq
      %v873 = vshrl.u32 %v872, 7
      %v874 = vsub.s32 0, %v873
      %v875 = vrot.slane %v850, %v874
      %v877 = vadd.f32 %v870, %v875
      %878 = vst.msk [vmem:[%s435] sm:$0xff] %vm462, %v877
      %p879 = scmp.lt.s32.totalorder %s24, 1
      %s880 = scalar_select %p879, %s24, 1
      %s881 = smul.addr %s880, 8
      %s882 = scalar_lea.vmem %s13, %s881
      // Predicated region
      $region73: #{transformer_autoencoder_separator.12} parent=71 // pred_check
        %p883 = pneg %p320
      $region74: #{transformer_autoencoder_separator.12} parent=71 // pred_check_branch
        %885 = sbr.rel (%p883) target = $region76
      $region75: #{transformer_autoencoder_separator.12} parent=71 // pred_region
        _
      $region76: #{transformer_autoencoder_separator.12} parent=71 // pred_fallthru
        _
    $region72: #{transformer_autoencoder_separator.12} parent=5 // pred_fallthru
      _
    %p886 = scmp.le.s32.totalorder 2, %s19
    // Predicated region
    $region77: #{transformer_autoencoder_separator.12} parent=5 // pred_check
      %p887 = pneg %p886
    $region78: #{transformer_autoencoder_separator.12} parent=5 // pred_check_branch
      %889 = sbr.rel (%p887) target = $region80
    $region79: #{transformer_autoencoder_separator.12} parent=5 // pred_region
      %s890 = ssub.s32 %s19, 2
      // Predicated region
      $region81: #{transformer_autoencoder_separator.12} parent=79 // pred_check
        %p891 = pneg %p326
      $region82: #{transformer_autoencoder_separator.12} parent=79 // pred_check_branch
        %893 = sbr.rel (%p891) target = $region84
      $region83: #{transformer_autoencoder_separator.12} parent=79 // pred_region
        %p894 = scmp.lt.s32.totalorder %s25, 1
        %s895 = scalar_select %p894, %s25, 1
        %s896 = smul.addr %s895, 8
        %s897 = scalar_lea.vmem %s13, %s896
      $region84: #{transformer_autoencoder_separator.12} parent=79 // pred_fallthru
        _
    $region80: #{transformer_autoencoder_separator.12} parent=5 // pred_fallthru
      _
  $region6: #{transformer_autoencoder_separator.12} parent=0 // loop_footer
    %s23 = sadd.s32 1, %s19
  $region7: #{transformer_autoencoder_separator.12} parent=0 // loop_footer_branch
    %18 = sbr.rel target = $region3
  $region8: #{transformer_autoencoder_separator.12} parent=0 // loop_exit
    _

// kernel: transformer_autoencoder_separator.16
$region0: #{transformer_autoencoder_separator.16}
  #allocation0 [shape = 'u32[]', space=smem, size = 0x4, offset = 0x4, fixed_abs, tag = 'smem constant byte address 0x4 - core index']
  #allocation1 [shape = 'u32[144,128]{1,0:T(1,128)}', space=vmem, size = 0x12000, scoped, tag = 'internal scratch']
  %s0 = inlined_call_operand.vmem [shape: f32[2,8,32], index: 0, kind: input, shape index: {}, may-alias: {0,1}]
  %s1 = inlined_call_operand.vmem [shape: f32[2,8,32], index: 1, kind: input, shape index: {}, may-alias: {0,1}]
  %s2 = inlined_call_operand.vmem [shape: bf16[32,96], index: 2, kind: input, shape index: {}]
  %s3 = inlined_call_operand.vmem [shape: f32[1,96], index: 3, kind: input, shape index: {}]
  %s4 = inlined_call_operand.vmem [shape: bf16[32,32], index: 4, kind: input, shape index: {}]
  %s5 = inlined_call_operand.vmem [shape: f32[1,32], index: 5, kind: input, shape index: {}]
  %s6 = inlined_call_operand.vmem [shape: f32[1,32], index: 6, kind: input, shape index: {}]
  %s7 = inlined_call_operand.vmem [shape: f32[1,32], index: 7, kind: input, shape index: {}]
  %s8 = inlined_call_operand.vmem [shape: bf16[32,32], index: 8, kind: input, shape index: {}]
  %s9 = inlined_call_operand.vmem [shape: f32[1,32], index: 9, kind: input, shape index: {}]
  %s10 = inlined_call_operand.vmem [shape: bf16[32,64], index: 10, kind: input, shape index: {}]
  %s11 = inlined_call_operand.vmem [shape: f32[1,64], index: 11, kind: input, shape index: {}]
  %s12 = inlined_call_operand.vmem [shape: bf16[32,32], index: 12, kind: input, shape index: {}]
  %s13 = inlined_call_operand.vmem [shape: f32[1,32], index: 13, kind: input, shape index: {}]
  %s14 = inlined_call_operand.vmem [shape: f32[1,32], index: 14, kind: input, shape index: {}]
  %s15 = inlined_call_operand.vmem [shape: f32[1,32], index: 15, kind: input, shape index: {}]
  %s16 = inlined_call_operand.vmem [shape: bf16[32,4], index: 16, kind: input, shape index: {}]
  %s17 = inlined_call_operand.vmem [shape: f32[1,4], index: 17, kind: input, shape index: {}]
  %s18 = inlined_call_operand.vmem [shape: bf16[4,32], index: 18, kind: input, shape index: {}]
  %s19 = inlined_call_operand.vmem [shape: f32[1,32], index: 19, kind: input, shape index: {}]
  %s20 = inlined_call_operand.vmem [shape: f32[1,32], index: 20, kind: input, shape index: {}]
  %s21 = inlined_call_operand.vmem [shape: f32[1,32], index: 21, kind: input, shape index: {}]
  %s22 = inlined_call_operand.vmem [shape: f32[2,8,32], index: 22, kind: output, shape index: {}]
  %s23 = sld [smem:[#allocation0]]
  $region121: #{transformer_autoencoder_separator.16} parent=0
    _
  %s25 = ssub.s32 1, %s23
  %s26 = scalar_select 0, %s25, %s23
  loop: start=0, step=1, limit=4
  $region2: #{transformer_autoencoder_separator.16} parent=0 // loop_pre_header
    _
  $region3: #{transformer_autoencoder_separator.16} parent=0 // loop_header
    %s28 = sphi 0, %s32
    %p29 = scmp.ge.s32.totalorder %s28, 4
    %s38 = sphi 0, %s40
    %s41 = sphi 0, %s38
    %s42 = sphi 0, %s41
    %s58 = sphi 0, %s42
    %s64 = sphi 0, %s66
    %s67 = sphi 0, %s64
    %s68 = sphi 0, %s67
    %s84 = sphi 0, %s68
    %s88 = sphi 0, %s88
    %s90 = sphi 0, %s88
    %s91 = sphi 0, %s90
    %s105 = sphi 0, %s91
    %s109 = sphi 0, %s109
    %s111 = sphi 0, %s109
    %s112 = sphi 0, %s111
    %s126 = sphi 0, %s112
    %s130 = sphi 0, %s130
    %s132 = sphi 0, %s130
    %s133 = sphi 0, %s132
    %s147 = sphi 0, %s133
    %s151 = sphi 0, %s151
    %s153 = sphi 0, %s151
    %s154 = sphi 0, %s153
    %s168 = sphi 0, %s154
    %s172 = sphi 0, %s172
    %s174 = sphi 0, %s172
    %s175 = sphi 0, %s174
    %s189 = sphi 0, %s175
    %s193 = sphi 0, %s193
    %s195 = sphi 0, %s193
    %s196 = sphi 0, %s195
    %s210 = sphi 0, %s196
    %s214 = sphi 0, %s214
    %s216 = sphi 0, %s214
    %s217 = sphi 0, %s216
    %s231 = sphi 0, %s217
    %s235 = sphi 0, %s235
    %s237 = sphi 0, %s235
    %s238 = sphi 0, %s237
    %s252 = sphi 0, %s238
    %s256 = sphi 0, %s256
    %s258 = sphi 0, %s256
    %s259 = sphi 0, %s258
    %s273 = sphi 0, %s259
    %s277 = sphi 0, %s277
    %s279 = sphi 0, %s277
    %s280 = sphi 0, %s279
    %s294 = sphi 0, %s280
    %s298 = sphi 0, %s298
    %s300 = sphi 0, %s298
    %s301 = sphi 0, %s300
    %s315 = sphi 0, %s301
    %s319 = sphi 0, %s319
    %s321 = sphi 0, %s319
    %s322 = sphi 0, %s321
    %s336 = sphi 0, %s322
    %s340 = sphi 0, %s340
    %s342 = sphi 0, %s340
    %s343 = sphi 0, %s342
    %s357 = sphi 0, %s343
    %s361 = sphi 0, %s361
    %s363 = sphi 0, %s361
    %s364 = sphi 0, %s363
    %s378 = sphi 0, %s364
    %s382 = sphi 0, %s382
    %s384 = sphi 0, %s382
    %s385 = sphi 0, %s384
    %s399 = sphi 0, %s385
    %s403 = sphi 0, %s403
    %s405 = sphi 0, %s403
    %s406 = sphi 0, %s405
    %s420 = sphi 0, %s406
    %s424 = sphi 0, %s424
    %s426 = sphi 0, %s424
    %s427 = sphi 0, %s426
    %s441 = sphi 0, %s427
    %s445 = sphi 0, %s445
    %s447 = sphi 0, %s445
    %s448 = sphi 0, %s447
    %s462 = sphi 0, %s448
    %s466 = sphi 0, %s466
    %s468 = sphi 0, %s466
    %s469 = sphi 0, %s468
    %s483 = sphi 0, %s469
    %s487 = sphi 0, %s487
    %s489 = sphi 0, %s487
    %s490 = sphi 0, %s489
    %s504 = sphi 0, %s490
    %s510 = sphi 0, %s512
    %s513 = sphi 0, %s510
    %s514 = sphi 0, %s513
    %s530 = sphi 0, %s514
  $region4: #{transformer_autoencoder_separator.16} parent=0 // loop_header_branch
    %31 = sbr.rel (%p29) target = $region8
  $region5: #{transformer_autoencoder_separator.16} parent=0 // loop_body
    %s33 = ssub.s32 %s28, 1
    %s34 = ssub.s32 %s28, 2
    %s35 = sadd.s32 %s28, 1
    %s36 = ssub.s32 %s28, %s35
    %p37 = scmp.eq.s32.totalorder %s36, 0
    %s39 = sadd.s32 %s38, 1
    %s40 = scalar_select %p37, %s38, %s39
    %p43 = pneg %p37
    %p44 = scmp.eq.s32.totalorder %s28, 1
    %p45 = por %p43, %p44
    %p46 = scmp.ne.s32.totalorder %s38, %s41
    %p47 = scmp.eq.s32.totalorder %s28, 0
    %p48 = por %p46, %p47
    %p49 = scmp.ne.s32.totalorder %s38, %s41
    %p50 = scmp.eq.s32.totalorder %s33, 1
    %p51 = por %p49, %p50
    %p52 = scmp.ne.s32.totalorder %s41, %s42
    %p53 = scmp.eq.s32.totalorder %s33, 0
    %p54 = por %p52, %p53
    %p55 = scmp.ne.s32.totalorder %s41, %s42
    %p56 = scmp.eq.s32.totalorder %s34, 1
    %p57 = por %p55, %p56
    %p59 = scmp.ne.s32.totalorder %s42, %s58
    %p60 = scmp.eq.s32.totalorder %s34, 0
    %p61 = por %p59, %p60
    %s62 = ssub.s32 %s28, %s35
    %p63 = scmp.eq.s32.totalorder %s62, 0
    %s65 = sadd.s32 %s64, 1
    %s66 = scalar_select %p63, %s64, %s65
    %p69 = pneg %p63
    %p70 = scmp.eq.s32.totalorder %s28, 1
    %p71 = por %p69, %p70
    %p72 = scmp.ne.s32.totalorder %s64, %s67
    %p73 = scmp.eq.s32.totalorder %s28, 0
    %p74 = por %p72, %p73
    %p75 = scmp.ne.s32.totalorder %s64, %s67
    %p76 = scmp.eq.s32.totalorder %s33, 1
    %p77 = por %p75, %p76
    %p78 = scmp.ne.s32.totalorder %s67, %s68
    %p79 = scmp.eq.s32.totalorder %s33, 0
    %p80 = por %p78, %p79
    %p81 = scmp.ne.s32.totalorder %s67, %s68
    %p82 = scmp.eq.s32.totalorder %s34, 1
    %p83 = por %p81, %p82
    %p85 = scmp.ne.s32.totalorder %s68, %s84
    %p86 = scmp.eq.s32.totalorder %s34, 0
    %p87 = por %p85, %p86
    %s89 = sadd.s32 %s88, 1
    %p92 = scmp.eq.s32.totalorder %s28, 1
    %p93 = scmp.ne.s32.totalorder %s88, %s90
    %p94 = scmp.eq.s32.totalorder %s28, 0
    %p95 = por %p93, %p94
    %p96 = scmp.ne.s32.totalorder %s88, %s90
    %p97 = scmp.eq.s32.totalorder %s33, 1
    %p98 = por %p96, %p97
    %p99 = scmp.ne.s32.totalorder %s90, %s91
    %p100 = scmp.eq.s32.totalorder %s33, 0
    %p101 = por %p99, %p100
    %p102 = scmp.ne.s32.totalorder %s90, %s91
    %p103 = scmp.eq.s32.totalorder %s34, 1
    %p104 = por %p102, %p103
    %p106 = scmp.ne.s32.totalorder %s91, %s105
    %p107 = scmp.eq.s32.totalorder %s34, 0
    %p108 = por %p106, %p107
    %s110 = sadd.s32 %s109, 1
    %p113 = scmp.eq.s32.totalorder %s28, 1
    %p114 = scmp.ne.s32.totalorder %s109, %s111
    %p115 = scmp.eq.s32.totalorder %s28, 0
    %p116 = por %p114, %p115
    %p117 = scmp.ne.s32.totalorder %s109, %s111
    %p118 = scmp.eq.s32.totalorder %s33, 1
    %p119 = por %p117, %p118
    %p120 = scmp.ne.s32.totalorder %s111, %s112
    %p121 = scmp.eq.s32.totalorder %s33, 0
    %p122 = por %p120, %p121
    %p123 = scmp.ne.s32.totalorder %s111, %s112
    %p124 = scmp.eq.s32.totalorder %s34, 1
    %p125 = por %p123, %p124
    %p127 = scmp.ne.s32.totalorder %s112, %s126
    %p128 = scmp.eq.s32.totalorder %s34, 0
    %p129 = por %p127, %p128
    %s131 = sadd.s32 %s130, 1
    %p134 = scmp.eq.s32.totalorder %s28, 1
    %p135 = scmp.ne.s32.totalorder %s130, %s132
    %p136 = scmp.eq.s32.totalorder %s28, 0
    %p137 = por %p135, %p136
    %p138 = scmp.ne.s32.totalorder %s130, %s132
    %p139 = scmp.eq.s32.totalorder %s33, 1
    %p140 = por %p138, %p139
    %p141 = scmp.ne.s32.totalorder %s132, %s133
    %p142 = scmp.eq.s32.totalorder %s33, 0
    %p143 = por %p141, %p142
    %p144 = scmp.ne.s32.totalorder %s132, %s133
    %p145 = scmp.eq.s32.totalorder %s34, 1
    %p146 = por %p144, %p145
    %p148 = scmp.ne.s32.totalorder %s133, %s147
    %p149 = scmp.eq.s32.totalorder %s34, 0
    %p150 = por %p148, %p149
    %s152 = sadd.s32 %s151, 1
    %p155 = scmp.eq.s32.totalorder %s28, 1
    %p156 = scmp.ne.s32.totalorder %s151, %s153
    %p157 = scmp.eq.s32.totalorder %s28, 0
    %p158 = por %p156, %p157
    %p159 = scmp.ne.s32.totalorder %s151, %s153
    %p160 = scmp.eq.s32.totalorder %s33, 1
    %p161 = por %p159, %p160
    %p162 = scmp.ne.s32.totalorder %s153, %s154
    %p163 = scmp.eq.s32.totalorder %s33, 0
    %p164 = por %p162, %p163
    %p165 = scmp.ne.s32.totalorder %s153, %s154
    %p166 = scmp.eq.s32.totalorder %s34, 1
    %p167 = por %p165, %p166
    %p169 = scmp.ne.s32.totalorder %s154, %s168
    %p170 = scmp.eq.s32.totalorder %s34, 0
    %p171 = por %p169, %p170
    %s173 = sadd.s32 %s172, 1
    %p176 = scmp.eq.s32.totalorder %s28, 1
    %p177 = scmp.ne.s32.totalorder %s172, %s174
    %p178 = scmp.eq.s32.totalorder %s28, 0
    %p179 = por %p177, %p178
    %p180 = scmp.ne.s32.totalorder %s172, %s174
    %p181 = scmp.eq.s32.totalorder %s33, 1
    %p182 = por %p180, %p181
    %p183 = scmp.ne.s32.totalorder %s174, %s175
    %p184 = scmp.eq.s32.totalorder %s33, 0
    %p185 = por %p183, %p184
    %p186 = scmp.ne.s32.totalorder %s174, %s175
    %p187 = scmp.eq.s32.totalorder %s34, 1
    %p188 = por %p186, %p187
    %p190 = scmp.ne.s32.totalorder %s175, %s189
    %p191 = scmp.eq.s32.totalorder %s34, 0
    %p192 = por %p190, %p191
    %s194 = sadd.s32 %s193, 1
    %p197 = scmp.eq.s32.totalorder %s28, 1
    %p198 = scmp.ne.s32.totalorder %s193, %s195
    %p199 = scmp.eq.s32.totalorder %s28, 0
    %p200 = por %p198, %p199
    %p201 = scmp.ne.s32.totalorder %s193, %s195
    %p202 = scmp.eq.s32.totalorder %s33, 1
    %p203 = por %p201, %p202
    %p204 = scmp.ne.s32.totalorder %s195, %s196
    %p205 = scmp.eq.s32.totalorder %s33, 0
    %p206 = por %p204, %p205
    %p207 = scmp.ne.s32.totalorder %s195, %s196
    %p208 = scmp.eq.s32.totalorder %s34, 1
    %p209 = por %p207, %p208
    %p211 = scmp.ne.s32.totalorder %s196, %s210
    %p212 = scmp.eq.s32.totalorder %s34, 0
    %p213 = por %p211, %p212
    %s215 = sadd.s32 %s214, 1
    %p218 = scmp.eq.s32.totalorder %s28, 1
    %p219 = scmp.ne.s32.totalorder %s214, %s216
    %p220 = scmp.eq.s32.totalorder %s28, 0
    %p221 = por %p219, %p220
    %p222 = scmp.ne.s32.totalorder %s214, %s216
    %p223 = scmp.eq.s32.totalorder %s33, 1
    %p224 = por %p222, %p223
    %p225 = scmp.ne.s32.totalorder %s216, %s217
    %p226 = scmp.eq.s32.totalorder %s33, 0
    %p227 = por %p225, %p226
    %p228 = scmp.ne.s32.totalorder %s216, %s217
    %p229 = scmp.eq.s32.totalorder %s34, 1
    %p230 = por %p228, %p229
    %p232 = scmp.ne.s32.totalorder %s217, %s231
    %p233 = scmp.eq.s32.totalorder %s34, 0
    %p234 = por %p232, %p233
    %s236 = sadd.s32 %s235, 1
    %p239 = scmp.eq.s32.totalorder %s28, 1
    %p240 = scmp.ne.s32.totalorder %s235, %s237
    %p241 = scmp.eq.s32.totalorder %s28, 0
    %p242 = por %p240, %p241
    %p243 = scmp.ne.s32.totalorder %s235, %s237
    %p244 = scmp.eq.s32.totalorder %s33, 1
    %p245 = por %p243, %p244
    %p246 = scmp.ne.s32.totalorder %s237, %s238
    %p247 = scmp.eq.s32.totalorder %s33, 0
    %p248 = por %p246, %p247
    %p249 = scmp.ne.s32.totalorder %s237, %s238
    %p250 = scmp.eq.s32.totalorder %s34, 1
    %p251 = por %p249, %p250
    %p253 = scmp.ne.s32.totalorder %s238, %s252
    %p254 = scmp.eq.s32.totalorder %s34, 0
    %p255 = por %p253, %p254
    %s257 = sadd.s32 %s256, 1
    %p260 = scmp.eq.s32.totalorder %s28, 1
    %p261 = scmp.ne.s32.totalorder %s256, %s258
    %p262 = scmp.eq.s32.totalorder %s28, 0
    %p263 = por %p261, %p262
    %p264 = scmp.ne.s32.totalorder %s256, %s258
    %p265 = scmp.eq.s32.totalorder %s33, 1
    %p266 = por %p264, %p265
    %p267 = scmp.ne.s32.totalorder %s258, %s259
    %p268 = scmp.eq.s32.totalorder %s33, 0
    %p269 = por %p267, %p268
    %p270 = scmp.ne.s32.totalorder %s258, %s259
    %p271 = scmp.eq.s32.totalorder %s34, 1
    %p272 = por %p270, %p271
    %p274 = scmp.ne.s32.totalorder %s259, %s273
    %p275 = scmp.eq.s32.totalorder %s34, 0
    %p276 = por %p274, %p275
    %s278 = sadd.s32 %s277, 1
    %p281 = scmp.eq.s32.totalorder %s28, 1
    %p282 = scmp.ne.s32.totalorder %s277, %s279
    %p283 = scmp.eq.s32.totalorder %s28, 0
    %p284 = por %p282, %p283
    %p285 = scmp.ne.s32.totalorder %s277, %s279
    %p286 = scmp.eq.s32.totalorder %s33, 1
    %p287 = por %p285, %p286
    %p288 = scmp.ne.s32.totalorder %s279, %s280
    %p289 = scmp.eq.s32.totalorder %s33, 0
    %p290 = por %p288, %p289
    %p291 = scmp.ne.s32.totalorder %s279, %s280
    %p292 = scmp.eq.s32.totalorder %s34, 1
    %p293 = por %p291, %p292
    %p295 = scmp.ne.s32.totalorder %s280, %s294
    %p296 = scmp.eq.s32.totalorder %s34, 0
    %p297 = por %p295, %p296
    %s299 = sadd.s32 %s298, 1
    %p302 = scmp.eq.s32.totalorder %s28, 1
    %p303 = scmp.ne.s32.totalorder %s298, %s300
    %p304 = scmp.eq.s32.totalorder %s28, 0
    %p305 = por %p303, %p304
    %p306 = scmp.ne.s32.totalorder %s298, %s300
    %p307 = scmp.eq.s32.totalorder %s33, 1
    %p308 = por %p306, %p307
    %p309 = scmp.ne.s32.totalorder %s300, %s301
    %p310 = scmp.eq.s32.totalorder %s33, 0
    %p311 = por %p309, %p310
    %p312 = scmp.ne.s32.totalorder %s300, %s301
    %p313 = scmp.eq.s32.totalorder %s34, 1
    %p314 = por %p312, %p313
    %p316 = scmp.ne.s32.totalorder %s301, %s315
    %p317 = scmp.eq.s32.totalorder %s34, 0
    %p318 = por %p316, %p317
    %s320 = sadd.s32 %s319, 1
    %p323 = scmp.eq.s32.totalorder %s28, 1
    %p324 = scmp.ne.s32.totalorder %s319, %s321
    %p325 = scmp.eq.s32.totalorder %s28, 0
    %p326 = por %p324, %p325
    %p327 = scmp.ne.s32.totalorder %s319, %s321
    %p328 = scmp.eq.s32.totalorder %s33, 1
    %p329 = por %p327, %p328
    %p330 = scmp.ne.s32.totalorder %s321, %s322
    %p331 = scmp.eq.s32.totalorder %s33, 0
    %p332 = por %p330, %p331
    %p333 = scmp.ne.s32.totalorder %s321, %s322
    %p334 = scmp.eq.s32.totalorder %s34, 1
    %p335 = por %p333, %p334
    %p337 = scmp.ne.s32.totalorder %s322, %s336
    %p338 = scmp.eq.s32.totalorder %s34, 0
    %p339 = por %p337, %p338
    %s341 = sadd.s32 %s340, 1
    %p344 = scmp.eq.s32.totalorder %s28, 1
    %p345 = scmp.ne.s32.totalorder %s340, %s342
    %p346 = scmp.eq.s32.totalorder %s28, 0
    %p347 = por %p345, %p346
    %p348 = scmp.ne.s32.totalorder %s340, %s342
    %p349 = scmp.eq.s32.totalorder %s33, 1
    %p350 = por %p348, %p349
    %p351 = scmp.ne.s32.totalorder %s342, %s343
    %p352 = scmp.eq.s32.totalorder %s33, 0
    %p353 = por %p351, %p352
    %p354 = scmp.ne.s32.totalorder %s342, %s343
    %p355 = scmp.eq.s32.totalorder %s34, 1
    %p356 = por %p354, %p355
    %p358 = scmp.ne.s32.totalorder %s343, %s357
    %p359 = scmp.eq.s32.totalorder %s34, 0
    %p360 = por %p358, %p359
    %s362 = sadd.s32 %s361, 1
    %p365 = scmp.eq.s32.totalorder %s28, 1
    %p366 = scmp.ne.s32.totalorder %s361, %s363
    %p367 = scmp.eq.s32.totalorder %s28, 0
    %p368 = por %p366, %p367
    %p369 = scmp.ne.s32.totalorder %s361, %s363
    %p370 = scmp.eq.s32.totalorder %s33, 1
    %p371 = por %p369, %p370
    %p372 = scmp.ne.s32.totalorder %s363, %s364
    %p373 = scmp.eq.s32.totalorder %s33, 0
    %p374 = por %p372, %p373
    %p375 = scmp.ne.s32.totalorder %s363, %s364
    %p376 = scmp.eq.s32.totalorder %s34, 1
    %p377 = por %p375, %p376
    %p379 = scmp.ne.s32.totalorder %s364, %s378
    %p380 = scmp.eq.s32.totalorder %s34, 0
    %p381 = por %p379, %p380
    %s383 = sadd.s32 %s382, 1
    %p386 = scmp.eq.s32.totalorder %s28, 1
    %p387 = scmp.ne.s32.totalorder %s382, %s384
    %p388 = scmp.eq.s32.totalorder %s28, 0
    %p389 = por %p387, %p388
    %p390 = scmp.ne.s32.totalorder %s382, %s384
    %p391 = scmp.eq.s32.totalorder %s33, 1
    %p392 = por %p390, %p391
    %p393 = scmp.ne.s32.totalorder %s384, %s385
    %p394 = scmp.eq.s32.totalorder %s33, 0
    %p395 = por %p393, %p394
    %p396 = scmp.ne.s32.totalorder %s384, %s385
    %p397 = scmp.eq.s32.totalorder %s34, 1
    %p398 = por %p396, %p397
    %p400 = scmp.ne.s32.totalorder %s385, %s399
    %p401 = scmp.eq.s32.totalorder %s34, 0
    %p402 = por %p400, %p401
    %s404 = sadd.s32 %s403, 1
    %p407 = scmp.eq.s32.totalorder %s28, 1
    %p408 = scmp.ne.s32.totalorder %s403, %s405
    %p409 = scmp.eq.s32.totalorder %s28, 0
    %p410 = por %p408, %p409
    %p411 = scmp.ne.s32.totalorder %s403, %s405
    %p412 = scmp.eq.s32.totalorder %s33, 1
    %p413 = por %p411, %p412
    %p414 = scmp.ne.s32.totalorder %s405, %s406
    %p415 = scmp.eq.s32.totalorder %s33, 0
    %p416 = por %p414, %p415
    %p417 = scmp.ne.s32.totalorder %s405, %s406
    %p418 = scmp.eq.s32.totalorder %s34, 1
    %p419 = por %p417, %p418
    %p421 = scmp.ne.s32.totalorder %s406, %s420
    %p422 = scmp.eq.s32.totalorder %s34, 0
    %p423 = por %p421, %p422
    %s425 = sadd.s32 %s424, 1
    %p428 = scmp.eq.s32.totalorder %s28, 1
    %p429 = scmp.ne.s32.totalorder %s424, %s426
    %p430 = scmp.eq.s32.totalorder %s28, 0
    %p431 = por %p429, %p430
    %p432 = scmp.ne.s32.totalorder %s424, %s426
    %p433 = scmp.eq.s32.totalorder %s33, 1
    %p434 = por %p432, %p433
    %p435 = scmp.ne.s32.totalorder %s426, %s427
    %p436 = scmp.eq.s32.totalorder %s33, 0
    %p437 = por %p435, %p436
    %p438 = scmp.ne.s32.totalorder %s426, %s427
    %p439 = scmp.eq.s32.totalorder %s34, 1
    %p440 = por %p438, %p439
    %p442 = scmp.ne.s32.totalorder %s427, %s441
    %p443 = scmp.eq.s32.totalorder %s34, 0
    %p444 = por %p442, %p443
    %s446 = sadd.s32 %s445, 1
    %p449 = scmp.eq.s32.totalorder %s28, 1
    %p450 = scmp.ne.s32.totalorder %s445, %s447
    %p451 = scmp.eq.s32.totalorder %s28, 0
    %p452 = por %p450, %p451
    %p453 = scmp.ne.s32.totalorder %s445, %s447
    %p454 = scmp.eq.s32.totalorder %s33, 1
    %p455 = por %p453, %p454
    %p456 = scmp.ne.s32.totalorder %s447, %s448
    %p457 = scmp.eq.s32.totalorder %s33, 0
    %p458 = por %p456, %p457
    %p459 = scmp.ne.s32.totalorder %s447, %s448
    %p460 = scmp.eq.s32.totalorder %s34, 1
    %p461 = por %p459, %p460
    %p463 = scmp.ne.s32.totalorder %s448, %s462
    %p464 = scmp.eq.s32.totalorder %s34, 0
    %p465 = por %p463, %p464
    %s467 = sadd.s32 %s466, 1
    %p470 = scmp.eq.s32.totalorder %s28, 1
    %p471 = scmp.ne.s32.totalorder %s466, %s468
    %p472 = scmp.eq.s32.totalorder %s28, 0
    %p473 = por %p471, %p472
    %p474 = scmp.ne.s32.totalorder %s466, %s468
    %p475 = scmp.eq.s32.totalorder %s33, 1
    %p476 = por %p474, %p475
    %p477 = scmp.ne.s32.totalorder %s468, %s469
    %p478 = scmp.eq.s32.totalorder %s33, 0
    %p479 = por %p477, %p478
    %p480 = scmp.ne.s32.totalorder %s468, %s469
    %p481 = scmp.eq.s32.totalorder %s34, 1
    %p482 = por %p480, %p481
    %p484 = scmp.ne.s32.totalorder %s469, %s483
    %p485 = scmp.eq.s32.totalorder %s34, 0
    %p486 = por %p484, %p485
    %s488 = sadd.s32 %s487, 1
    %p491 = scmp.eq.s32.totalorder %s28, 1
    %p492 = scmp.ne.s32.totalorder %s487, %s489
    %p493 = scmp.eq.s32.totalorder %s28, 0
    %p494 = por %p492, %p493
    %p495 = scmp.ne.s32.totalorder %s487, %s489
    %p496 = scmp.eq.s32.totalorder %s33, 1
    %p497 = por %p495, %p496
    %p498 = scmp.ne.s32.totalorder %s489, %s490
    %p499 = scmp.eq.s32.totalorder %s33, 0
    %p500 = por %p498, %p499
    %p501 = scmp.ne.s32.totalorder %s489, %s490
    %p502 = scmp.eq.s32.totalorder %s34, 1
    %p503 = por %p501, %p502
    %p505 = scmp.ne.s32.totalorder %s490, %s504
    %p506 = scmp.eq.s32.totalorder %s34, 0
    %p507 = por %p505, %p506
    %s508 = ssub.s32 %s28, %s35
    %p509 = scmp.eq.s32.totalorder %s508, 0
    %s511 = sadd.s32 %s510, 1
    %s512 = scalar_select %p509, %s510, %s511
    %p515 = pneg %p509
    %p516 = scmp.eq.s32.totalorder %s28, 1
    %p517 = por %p515, %p516
    %p518 = scmp.ne.s32.totalorder %s510, %s513
    %p519 = scmp.eq.s32.totalorder %s28, 0
    %p520 = por %p518, %p519
    %p521 = scmp.ne.s32.totalorder %s510, %s513
    %p522 = scmp.eq.s32.totalorder %s33, 1
    %p523 = por %p521, %p522
    %p524 = scmp.ne.s32.totalorder %s513, %s514
    %p525 = scmp.eq.s32.totalorder %s33, 0
    %p526 = por %p524, %p525
    %p527 = scmp.ne.s32.totalorder %s513, %s514
    %p528 = scmp.eq.s32.totalorder %s34, 1
    %p529 = por %p527, %p528
    %p531 = scmp.ne.s32.totalorder %s514, %s530
    %p532 = scmp.eq.s32.totalorder %s34, 0
    %p533 = por %p531, %p532
    %p534 = scmp.le.s32.totalorder 1, %s28
    %p535 = scmp.lt.s32.totalorder %s28, 3
    %p536 = pnand %p534, %p535
    %p537 = pneg %p536
    // Predicated region
    $region9: #{transformer_autoencoder_separator.16} parent=5 // pred_check
      _
    $region10: #{transformer_autoencoder_separator.16} parent=5 // pred_check_branch
      %539 = sbr.rel (%p536) target = $region12
    $region11: #{transformer_autoencoder_separator.16} parent=5 // pred_region
      %s540 = ssub.s32 %s28, 1
      // Predicated region
      $region13: #{transformer_autoencoder_separator.16} parent=11 // pred_check
        %p541 = pneg %p101
      $region14: #{transformer_autoencoder_separator.16} parent=11 // pred_check_branch
        %543 = sbr.rel (%p541) target = $region16
      $region15: #{transformer_autoencoder_separator.16} parent=11 // pred_region
        _
      $region16: #{transformer_autoencoder_separator.16} parent=11 // pred_fallthru
        _
      // Predicated region
      $region17: #{transformer_autoencoder_separator.16} parent=11 // pred_check
        %p544 = pneg %p122
      $region18: #{transformer_autoencoder_separator.16} parent=11 // pred_check_branch
        %546 = sbr.rel (%p544) target = $region20
      $region19: #{transformer_autoencoder_separator.16} parent=11 // pred_region
        _
      $region20: #{transformer_autoencoder_separator.16} parent=11 // pred_fallthru
        _
      // Predicated region
      $region21: #{transformer_autoencoder_separator.16} parent=11 // pred_check
        %p547 = pneg %p143
      $region22: #{transformer_autoencoder_separator.16} parent=11 // pred_check_branch
        %549 = sbr.rel (%p547) target = $region24
      $region23: #{transformer_autoencoder_separator.16} parent=11 // pred_region
        _
      $region24: #{transformer_autoencoder_separator.16} parent=11 // pred_fallthru
        _
      // Predicated region
      $region25: #{transformer_autoencoder_separator.16} parent=11 // pred_check
        %p550 = pneg %p164
      $region26: #{transformer_autoencoder_separator.16} parent=11 // pred_check_branch
        %552 = sbr.rel (%p550) target = $region28
      $region27: #{transformer_autoencoder_separator.16} parent=11 // pred_region
        _
      $region28: #{transformer_autoencoder_separator.16} parent=11 // pred_fallthru
        _
      // Predicated region
      $region29: #{transformer_autoencoder_separator.16} parent=11 // pred_check
        %p553 = pneg %p185
      $region30: #{transformer_autoencoder_separator.16} parent=11 // pred_check_branch
        %555 = sbr.rel (%p553) target = $region32
      $region31: #{transformer_autoencoder_separator.16} parent=11 // pred_region
        _
      $region32: #{transformer_autoencoder_separator.16} parent=11 // pred_fallthru
        _
      // Predicated region
      $region33: #{transformer_autoencoder_separator.16} parent=11 // pred_check
        %p556 = pneg %p206
      $region34: #{transformer_autoencoder_separator.16} parent=11 // pred_check_branch
        %558 = sbr.rel (%p556) target = $region36
      $region35: #{transformer_autoencoder_separator.16} parent=11 // pred_region
        _
      $region36: #{transformer_autoencoder_separator.16} parent=11 // pred_fallthru
        _
      // Predicated region
      $region37: #{transformer_autoencoder_separator.16} parent=11 // pred_check
        %p559 = pneg %p227
      $region38: #{transformer_autoencoder_separator.16} parent=11 // pred_check_branch
        %561 = sbr.rel (%p559) target = $region40
      $region39: #{transformer_autoencoder_separator.16} parent=11 // pred_region
        _
      $region40: #{transformer_autoencoder_separator.16} parent=11 // pred_fallthru
        _
      // Predicated region
      $region41: #{transformer_autoencoder_separator.16} parent=11 // pred_check
        %p562 = pneg %p248
      $region42: #{transformer_autoencoder_separator.16} parent=11 // pred_check_branch
        %564 = sbr.rel (%p562) target = $region44
      $region43: #{transformer_autoencoder_separator.16} parent=11 // pred_region
        _
      $region44: #{transformer_autoencoder_separator.16} parent=11 // pred_fallthru
        _
      // Predicated region
      $region45: #{transformer_autoencoder_separator.16} parent=11 // pred_check
        %p565 = pneg %p269
      $region46: #{transformer_autoencoder_separator.16} parent=11 // pred_check_branch
        %567 = sbr.rel (%p565) target = $region48
      $region47: #{transformer_autoencoder_separator.16} parent=11 // pred_region
        _
      $region48: #{transformer_autoencoder_separator.16} parent=11 // pred_fallthru
        _
      // Predicated region
      $region49: #{transformer_autoencoder_separator.16} parent=11 // pred_check
        %p568 = pneg %p290
      $region50: #{transformer_autoencoder_separator.16} parent=11 // pred_check_branch
        %570 = sbr.rel (%p568) target = $region52
      $region51: #{transformer_autoencoder_separator.16} parent=11 // pred_region
        _
      $region52: #{transformer_autoencoder_separator.16} parent=11 // pred_fallthru
        _
      // Predicated region
      $region53: #{transformer_autoencoder_separator.16} parent=11 // pred_check
        %p571 = pneg %p311
      $region54: #{transformer_autoencoder_separator.16} parent=11 // pred_check_branch
        %573 = sbr.rel (%p571) target = $region56
      $region55: #{transformer_autoencoder_separator.16} parent=11 // pred_region
        _
      $region56: #{transformer_autoencoder_separator.16} parent=11 // pred_fallthru
        _
      // Predicated region
      $region57: #{transformer_autoencoder_separator.16} parent=11 // pred_check
        %p574 = pneg %p332
      $region58: #{transformer_autoencoder_separator.16} parent=11 // pred_check_branch
        %576 = sbr.rel (%p574) target = $region60
      $region59: #{transformer_autoencoder_separator.16} parent=11 // pred_region
        _
      $region60: #{transformer_autoencoder_separator.16} parent=11 // pred_fallthru
        _
      // Predicated region
      $region61: #{transformer_autoencoder_separator.16} parent=11 // pred_check
        %p577 = pneg %p353
      $region62: #{transformer_autoencoder_separator.16} parent=11 // pred_check_branch
        %579 = sbr.rel (%p577) target = $region64
      $region63: #{transformer_autoencoder_separator.16} parent=11 // pred_region
        _
      $region64: #{transformer_autoencoder_separator.16} parent=11 // pred_fallthru
        _
      // Predicated region
      $region65: #{transformer_autoencoder_separator.16} parent=11 // pred_check
        %p580 = pneg %p374
      $region66: #{transformer_autoencoder_separator.16} parent=11 // pred_check_branch
        %582 = sbr.rel (%p580) target = $region68
      $region67: #{transformer_autoencoder_separator.16} parent=11 // pred_region
        _
      $region68: #{transformer_autoencoder_separator.16} parent=11 // pred_fallthru
        _
      // Predicated region
      $region69: #{transformer_autoencoder_separator.16} parent=11 // pred_check
        %p583 = pneg %p395
      $region70: #{transformer_autoencoder_separator.16} parent=11 // pred_check_branch
        %585 = sbr.rel (%p583) target = $region72
      $region71: #{transformer_autoencoder_separator.16} parent=11 // pred_region
        _
      $region72: #{transformer_autoencoder_separator.16} parent=11 // pred_fallthru
        _
      // Predicated region
      $region73: #{transformer_autoencoder_separator.16} parent=11 // pred_check
        %p586 = pneg %p416
      $region74: #{transformer_autoencoder_separator.16} parent=11 // pred_check_branch
        %588 = sbr.rel (%p586) target = $region76
      $region75: #{transformer_autoencoder_separator.16} parent=11 // pred_region
        _
      $region76: #{transformer_autoencoder_separator.16} parent=11 // pred_fallthru
        _
      // Predicated region
      $region77: #{transformer_autoencoder_separator.16} parent=11 // pred_check
        %p589 = pneg %p437
      $region78: #{transformer_autoencoder_separator.16} parent=11 // pred_check_branch
        %591 = sbr.rel (%p589) target = $region80
      $region79: #{transformer_autoencoder_separator.16} parent=11 // pred_region
        _
      $region80: #{transformer_autoencoder_separator.16} parent=11 // pred_fallthru
        _
      // Predicated region
      $region81: #{transformer_autoencoder_separator.16} parent=11 // pred_check
        %p592 = pneg %p458
      $region82: #{transformer_autoencoder_separator.16} parent=11 // pred_check_branch
        %594 = sbr.rel (%p592) target = $region84
      $region83: #{transformer_autoencoder_separator.16} parent=11 // pred_region
        _
      $region84: #{transformer_autoencoder_separator.16} parent=11 // pred_fallthru
        _
      // Predicated region
      $region85: #{transformer_autoencoder_separator.16} parent=11 // pred_check
        %p595 = pneg %p479
      $region86: #{transformer_autoencoder_separator.16} parent=11 // pred_check_branch
        %597 = sbr.rel (%p595) target = $region88
      $region87: #{transformer_autoencoder_separator.16} parent=11 // pred_region
        _
      $region88: #{transformer_autoencoder_separator.16} parent=11 // pred_fallthru
        _
      // Predicated region
      $region89: #{transformer_autoencoder_separator.16} parent=11 // pred_check
        %p598 = pneg %p500
      $region90: #{transformer_autoencoder_separator.16} parent=11 // pred_check_branch
        %600 = sbr.rel (%p598) target = $region92
      $region91: #{transformer_autoencoder_separator.16} parent=11 // pred_region
        _
      $region92: #{transformer_autoencoder_separator.16} parent=11 // pred_fallthru
        _
    $region12: #{transformer_autoencoder_separator.16} parent=5 // pred_fallthru
      _
    %p601 = scmp.lt.s32.totalorder %s28, 2
    // Predicated region
    $region93: #{transformer_autoencoder_separator.16} parent=5 // pred_check
      %p602 = pneg %p601
    $region94: #{transformer_autoencoder_separator.16} parent=5 // pred_check_branch
      %604 = sbr.rel (%p602) target = $region96
    $region95: #{transformer_autoencoder_separator.16} parent=5 // pred_region
      // Predicated region
      $region97: #{transformer_autoencoder_separator.16} parent=95 // pred_check
        %p605 = pneg %p48
      $region98: #{transformer_autoencoder_separator.16} parent=95 // pred_check_branch
        %607 = sbr.rel (%p605) target = $region100
      $region99: #{transformer_autoencoder_separator.16} parent=95 // pred_region
        %p608 = scmp.lt.s32.totalorder %s28, 1
        %s609 = scalar_select %p608, %s28, 1
        %s610 = smul.addr %s609, 8
        %s611 = scalar_lea.vmem %s0, %s610
      $region100: #{transformer_autoencoder_separator.16} parent=95 // pred_fallthru
        _
      // Predicated region
      $region101: #{transformer_autoencoder_separator.16} parent=95 // pred_check
        %p612 = pneg %p74
      $region102: #{transformer_autoencoder_separator.16} parent=95 // pred_check_branch
        %614 = sbr.rel (%p612) target = $region104
      $region103: #{transformer_autoencoder_separator.16} parent=95 // pred_region
        %p615 = scmp.lt.s32.totalorder %s28, 1
        %s616 = scalar_select %p615, %s28, 1
        %s617 = smul.addr %s616, 8
        %s618 = scalar_lea.vmem %s1, %s617
      $region104: #{transformer_autoencoder_separator.16} parent=95 // pred_fallthru
        _
    $region96: #{transformer_autoencoder_separator.16} parent=5 // pred_fallthru
      _
    %p619 = scmp.le.s32.totalorder 1, %s28
    %p620 = scmp.lt.s32.totalorder %s28, 3
    %p621 = pnand %p619, %p620
    %p622 = pneg %p621
    // Predicated region
    $region105: #{transformer_autoencoder_separator.16} parent=5 // pred_check
      _
    $region106: #{transformer_autoencoder_separator.16} parent=5 // pred_check_branch
      %624 = sbr.rel (%p621) target = $region108
    $region107: #{transformer_autoencoder_separator.16} parent=5 // pred_region
      %s625 = ssub.s32 %s28, 1
      %p626 = scmp.lt.s32.totalorder %s33, 1
      %s627 = scalar_select %p626, %s33, 1
      %s628 = smul.addr %s627, 8
      %s629 = scalar_lea.vmem %s0, %s628
      %p630 = pneg %p54
      %p631 = pneg %p51
      %p632 = scmp.lt.s32.totalorder %s33, 1
      %s633 = scalar_select %p632, %s33, 1
      %s634 = smul.addr %s633, 8
      %s635 = scalar_lea.vmem %s1, %s634
      %p636 = pneg %p80
      %p637 = pneg %p77
      %p638 = pneg %p101
      %p639 = pneg %p98
      %p640 = pneg %p122
      %p641 = pneg %p119
      %p642 = pneg %p143
      %p643 = pneg %p140
      %p644 = pneg %p164
      %p645 = pneg %p161
      %p646 = pneg %p185
      %p647 = pneg %p182
      %p648 = pneg %p206
      %p649 = pneg %p203
      %p650 = pneg %p227
      %p651 = pneg %p224
      %p652 = pneg %p248
      %p653 = pneg %p245
      %p654 = pneg %p269
      %p655 = pneg %p266
      %p656 = pneg %p290
      %p657 = pneg %p287
      %p658 = pneg %p311
      %p659 = pneg %p308
      %p660 = pneg %p332
      %p661 = pneg %p329
      %p662 = pneg %p353
      %p663 = pneg %p350
      %p664 = pneg %p374
      %p665 = pneg %p371
      %p666 = pneg %p395
      %p667 = pneg %p392
      %p668 = pneg %p416
      %p669 = pneg %p413
      %p670 = pneg %p437
      %p671 = pneg %p434
      %p672 = pneg %p458
      %p673 = pneg %p455
      %p674 = pneg %p479
      %p675 = pneg %p476
      %p676 = pneg %p500
      %p677 = pneg %p497
      %p678 = pneg %p526
      %p679 = pneg %p523
      %p680 = scmp.lt.s32.totalorder %s33, 1
      %s681 = scalar_select %p680, %s33, 1
      %s682 = smul.addr %s681, 8
      %s683 = scalar_lea.vmem %s22, %s682
      %p684 = scmp.lt.s32.totalorder %s33, 1
      %s685 = scalar_select %p684, %s33, 1
      %s686 = smul.addr %s685, 8
      %s687 = scalar_lea.vmem %s0, %s686
      %p688 = scmp.lt.s32.totalorder %s33, 1
      %s689 = scalar_select %p688, %s33, 1
      %s690 = smul.addr %s689, 8
      %s691 = scalar_lea.vmem %s1, %s690
      %p692 = scmp.lt.s32.totalorder %s33, 1
      %s693 = scalar_select %p692, %s33, 1
      %s694 = smul.addr %s693, 8
      %s695 = scalar_lea.vmem %s22, %s694
      %v697 = vld [vmem:[%s687] sm:$0xff]
      %v698 = vld [vmem:[%s691] sm:$0xff]
      %v699 = vpack.c.bf16 %v697, %v697
      %v700 = vld [vmem:[%s2] sm:$0xf]
      %v701 = vld [vmem:[%s2 + $0x4] sm:$0xf]
      %v702 = vld [vmem:[%s2 + $0x8] sm:$0xf]
      %v703 = vld [vmem:[%s2 + $0xc] sm:$0xf]
      %v704 = vld [vmem:[%s3] sm:$0x1]
      %v706 = vlaneseq
      %v707 = vshrl.u32 %v706, 7
      %v708 = vsub.s32 0, %v707
      %v709 = vrot.slane %v704, %v708
      %v715 = vunpack.c.l.b16 %v700
      %v716 = vunpack.c.l.b16 %v701
      %v717 = vunpack.c.l.b16 %v702
      %v718 = vunpack.c.l.b16 %v703
      %v719 = vpack.c.b16 %v716, %v715
      %v720 = vpack.c.b16 %v718, %v717
      %vm723 = vcmask 261120
      %v725 = vsel %vm723, %v699, 0
      %727 = vmatprep.subr.bf16.mxu0 0
      %728 = vmatpush1.bf16.msra.mxu0 %v719
      %729 = vmatprep.subr.bf16.mxu0 0
      %730 = vmatpush1.bf16.msra.mxu0 %v720
      %731 = vmatprep.subr.bf16.mxu0 0
      %732 = vmatpush1.bf16.msra.mxu0 0
      %733 = vmatprep.subr.bf16.mxu0 0
      %734 = vmatpush1.bf16.msra.mxu0 0
      %735 = vmatprep.subr.bf16.mxu0 0
      %736 = vmatpush1.bf16.msra.mxu0 0
      %737 = vmatprep.subr.bf16.mxu0 0
      %738 = vmatpush1.bf16.msra.mxu0 0
      %739 = vmatprep.subr.bf16.mxu0 0
      %740 = vmatpush1.bf16.msra.mxu0 0
      %741 = vmatprep.subr.bf16.mxu0 0
      %742 = vmatpush1.bf16.msra.mxu0 0
      %743 = vmatprep.subr.bf16.mxu0 0
      %744 = vmatpush1.bf16.msra.mxu0 0
      %745 = vmatprep.subr.bf16.mxu0 0
      %746 = vmatpush1.bf16.msra.mxu0 0
      %747 = vmatprep.subr.bf16.mxu0 0
      %748 = vmatpush1.bf16.msra.mxu0 0
      %749 = vmatprep.subr.bf16.mxu0 0
      %750 = vmatpush1.bf16.msra.mxu0 0
      %751 = vmatprep.subr.bf16.mxu0 0
      %752 = vmatpush1.bf16.msra.mxu0 0
      %753 = vmatprep.subr.bf16.mxu0 0
      %754 = vmatpush1.bf16.msra.mxu0 0
      %755 = vmatprep.subr.bf16.mxu0 0
      %756 = vmatpush1.bf16.msra.mxu0 0
      %757 = vmatprep.subr.bf16.mxu0 0
      %758 = vmatpush1.bf16.msra.mxu0 0
      %759 = vmatprep.mubr.bf16.mxu0 0
      %760 = vmatmul.mubr.bf16.gmra.mrb[0].mxu0 %v725
      %v761 = vpop.f32.mrb[0].mxu0
      %v762 = vadd.f32 %v709, %v761
      %v763 = vpop.f32.mrb[0].mxu0
      %v764 = vpop.f32.mrb[0].mxu0
      %v765 = vpop.f32.mrb[0].mxu0
      %766 = vdwg.mxu0
      %v767 = vpack.c.bf16 %v762, %v762
      %769 = vrot.lane.b32.xlu0 %v767, 96
      %v770 = vpop.permute.xlu0 %769
      %v772 = vsel %vm723, %v767, 0
      %v775 = vsel %vm723, %v770, 0
      %777 = vmatprep.subr.bf16.mxu0 0
      %778 = vmatpush1.bf16.xpose.msra.mxu0 %v775
      %779 = vmatprep.subr.bf16.mxu0 0
      %780 = vmatpush1.bf16.xpose.msra.mxu0 0
      %781 = vmatprep.subr.bf16.mxu0 0
      %782 = vmatpush1.bf16.xpose.msra.mxu0 0
      %783 = vmatprep.subr.bf16.mxu0 0
      %784 = vmatpush1.bf16.xpose.msra.mxu0 0
      %785 = vmatprep.subr.bf16.mxu0 0
      %786 = vmatpush1.bf16.xpose.msra.mxu0 0
      %787 = vmatprep.subr.bf16.mxu0 0
      %788 = vmatpush1.bf16.xpose.msra.mxu0 0
      %789 = vmatprep.subr.bf16.mxu0 0
      %790 = vmatpush1.bf16.xpose.msra.mxu0 0
      %791 = vmatprep.subr.bf16.mxu0 0
      %792 = vmatpush1.bf16.xpose.msra.mxu0 0
      %793 = vmatprep.subr.bf16.mxu0 0
      %794 = vmatpush1.bf16.xpose.msra.mxu0 0
      %795 = vmatprep.subr.bf16.mxu0 0
      %796 = vmatpush1.bf16.xpose.msra.mxu0 0
      %797 = vmatprep.subr.bf16.mxu0 0
      %798 = vmatpush1.bf16.xpose.msra.mxu0 0
      %799 = vmatprep.subr.bf16.mxu0 0
      %800 = vmatpush1.bf16.xpose.msra.mxu0 0
      %801 = vmatprep.subr.bf16.mxu0 0
      %802 = vmatpush1.bf16.xpose.msra.mxu0 0
      %803 = vmatprep.subr.bf16.mxu0 0
      %804 = vmatpush1.bf16.xpose.msra.mxu0 0
      %805 = vmatprep.subr.bf16.mxu0 0
      %806 = vmatpush1.bf16.xpose.msra.mxu0 0
      %807 = vmatprep.subr.bf16.mxu0 0
      %808 = vmatpush1.bf16.xpose.msra.mxu0 0
      %809 = vmatprep.mubr.bf16.mxu0 0
      %810 = vmatmul.mubr.bf16.gmra.mrb[0].mxu0 %v772
      %v811 = vpop.f32.mrb[0].mxu0
      %v812 = vadd.f32 0.0, %v811
      %v813 = vpop.f32.mrb[0].mxu0
      %v814 = vpop.f32.mrb[0].mxu0
      %v815 = vpop.f32.mrb[0].mxu0
      %816 = vdwg.mxu0
      %v817 = vmul.f32 %v812, 0.17677669
      %vm818 = vcmask 64512
      %v819 = vsel %vm818, %v817, -inf
      %820 = vmax.xlane.f32.xlu0 %v819
      %v821 = vpop.xlane.xlu0 %820
      %v822 = vsub.f32 %v817, %v821
      %v823 = vmul.f32 %v822, 1.442695
      %v824 = vpow.pop %v823
      %v825 = vsel %vm818, %v824, 0.0
      %826 = vadd.xlane.f32.xlu0 %v825
      %v827 = vpop.xlane.xlu0 %826
      %v828 = vrcp.pop %v827
      %v829 = vmul.f32 %v824, %v828
      %v830 = vpack.c.bf16 %v829, %v829
      %831 = vrot.lane.b32.xlu0 %v767, 64
      %v832 = vpop.permute.xlu0 %831
      %v834 = vsel %vm818, %v830, 0
      %vm836 = vcmask 1043456
      %v838 = vsel %vm836, %v832, 0
      %840 = vmatprep.subr.bf16.mxu0 0
      %841 = vmatpush1.bf16.msra.mxu0 %v838
      %842 = vmatprep.subr.bf16.mxu0 0
      %843 = vmatpush1.bf16.msra.mxu0 0
      %844 = vmatprep.subr.bf16.mxu0 0
      %845 = vmatpush1.bf16.msra.mxu0 0
      %846 = vmatprep.subr.bf16.mxu0 0
      %847 = vmatpush1.bf16.msra.mxu0 0
      %848 = vmatprep.subr.bf16.mxu0 0
      %849 = vmatpush1.bf16.msra.mxu0 0
      %850 = vmatprep.subr.bf16.mxu0 0
      %851 = vmatpush1.bf16.msra.mxu0 0
      %852 = vmatprep.subr.bf16.mxu0 0
      %853 = vmatpush1.bf16.msra.mxu0 0
      %854 = vmatprep.subr.bf16.mxu0 0
      %855 = vmatpush1.bf16.msra.mxu0 0
      %856 = vmatprep.subr.bf16.mxu0 0
      %857 = vmatpush1.bf16.msra.mxu0 0
      %858 = vmatprep.subr.bf16.mxu0 0
      %859 = vmatpush1.bf16.msra.mxu0 0
      %860 = vmatprep.subr.bf16.mxu0 0
      %861 = vmatpush1.bf16.msra.mxu0 0
      %862 = vmatprep.subr.bf16.mxu0 0
      %863 = vmatpush1.bf16.msra.mxu0 0
      %864 = vmatprep.subr.bf16.mxu0 0
      %865 = vmatpush1.bf16.msra.mxu0 0
      %866 = vmatprep.subr.bf16.mxu0 0
      %867 = vmatpush1.bf16.msra.mxu0 0
      %868 = vmatprep.subr.bf16.mxu0 0
      %869 = vmatpush1.bf16.msra.mxu0 0
      %870 = vmatprep.subr.bf16.mxu0 0
      %871 = vmatpush1.bf16.msra.mxu0 0
      %872 = vmatprep.mubr.bf16.mxu0 0
      %873 = vmatmul.mubr.bf16.gmra.mrb[0].mxu0 %v834
      %v874 = vpop.f32.mrb[0].mxu0
      %v875 = vadd.f32 0.0, %v874
      %v876 = vpop.f32.mrb[0].mxu0
      %v877 = vpop.f32.mrb[0].mxu0
      %v878 = vpop.f32.mrb[0].mxu0
      %879 = vdwg.mxu0
      %v880 = vpack.c.bf16 %v875, %v875
      %v881 = vld [vmem:[%s4] sm:$0xf]
      %v882 = vld [vmem:[%s4 + $0x4] sm:$0xf]
      %v883 = vld [vmem:[%s4 + $0x8] sm:$0xf]
      %v884 = vld [vmem:[%s4 + $0xc] sm:$0xf]
      %v885 = vld [vmem:[%s5] sm:$0x1]
      %v887 = vlaneseq
      %v888 = vshrl.u32 %v887, 7
      %v889 = vsub.s32 0, %v888
      %v890 = vrot.slane %v885, %v889
      %v896 = vunpack.c.l.b16 %v881
      %v897 = vunpack.c.l.b16 %v882
      %v898 = vunpack.c.l.b16 %v883
      %v899 = vunpack.c.l.b16 %v884
      %v900 = vpack.c.b16 %v897, %v896
      %v901 = vpack.c.b16 %v899, %v898
      %v905 = vsel %vm723, %v880, 0
      %907 = vmatprep.subr.bf16.mxu0 0
      %908 = vmatpush1.bf16.msra.mxu0 %v900
      %909 = vmatprep.subr.bf16.mxu0 0
      %910 = vmatpush1.bf16.msra.mxu0 %v901
      %911 = vmatprep.subr.bf16.mxu0 0
      %912 = vmatpush1.bf16.msra.mxu0 0
      %913 = vmatprep.subr.bf16.mxu0 0
      %914 = vmatpush1.bf16.msra.mxu0 0
      %915 = vmatprep.subr.bf16.mxu0 0
      %916 = vmatpush1.bf16.msra.mxu0 0
      %917 = vmatprep.subr.bf16.mxu0 0
      %918 = vmatpush1.bf16.msra.mxu0 0
      %919 = vmatprep.subr.bf16.mxu0 0
      %920 = vmatpush1.bf16.msra.mxu0 0
      %921 = vmatprep.subr.bf16.mxu0 0
      %922 = vmatpush1.bf16.msra.mxu0 0
      %923 = vmatprep.subr.bf16.mxu0 0
      %924 = vmatpush1.bf16.msra.mxu0 0
      %925 = vmatprep.subr.bf16.mxu0 0
      %926 = vmatpush1.bf16.msra.mxu0 0
      %927 = vmatprep.subr.bf16.mxu0 0
      %928 = vmatpush1.bf16.msra.mxu0 0
      %929 = vmatprep.subr.bf16.mxu0 0
      %930 = vmatpush1.bf16.msra.mxu0 0
      %931 = vmatprep.subr.bf16.mxu0 0
      %932 = vmatpush1.bf16.msra.mxu0 0
      %933 = vmatprep.subr.bf16.mxu0 0
      %934 = vmatpush1.bf16.msra.mxu0 0
      %935 = vmatprep.subr.bf16.mxu0 0
      %936 = vmatpush1.bf16.msra.mxu0 0
      %937 = vmatprep.subr.bf16.mxu0 0
      %938 = vmatpush1.bf16.msra.mxu0 0
      %939 = vmatprep.mubr.bf16.mxu0 0
      %940 = vmatmul.mubr.bf16.gmra.mrb[0].mxu0 %v905
      %v941 = vpop.f32.mrb[0].mxu0
      %v942 = vadd.f32 %v890, %v941
      %v943 = vpop.f32.mrb[0].mxu0
      %v944 = vpop.f32.mrb[0].mxu0
      %v945 = vpop.f32.mrb[0].mxu0
      %946 = vdwg.mxu0
      %v947 = vadd.f32 %v697, %v942
      %v948 = vld [vmem:[%s6] sm:$0x1]
      %v949 = vld [vmem:[%s7] sm:$0x1]
      %v950 = vsel %vm723, %v947, 0.0
      %951 = vadd.xlane.f32.xlu0 %v950
      %v952 = vpop.xlane.xlu0 %951
      %v953 = vrcp.pop 32.0
      %v954 = vmul.f32 %v952, %v953
      %v955 = vsub.f32 %v947, %v954
      %v956 = vmul.f32 %v955, %v955
      %v957 = vsel %vm723, %v956, 0.0
      %958 = vadd.xlane.f32.xlu0 %v957
      %v959 = vpop.xlane.xlu0 %958
      %v960 = vmul.f32 %v959, %v953
      %v961 = vadd.f32 %v960, 1e-05
      %v962 = vrsqrt.pop %v961
      %v963 = vmul.f32 %v955, %v962
      %v965 = vlaneseq
      %v966 = vshrl.u32 %v965, 7
      %v967 = vsub.s32 0, %v966
      %v968 = vrot.slane %v948, %v967
      %v970 = vmul.f32 %v963, %v968
      %v972 = vlaneseq
      %v973 = vshrl.u32 %v972, 7
      %v974 = vsub.s32 0, %v973
      %v975 = vrot.slane %v949, %v974
      %v977 = vadd.f32 %v970, %v975
      %v978 = vpack.c.bf16 %v977, %v977
      %v979 = vld [vmem:[%s8] sm:$0xf]
      %v980 = vld [vmem:[%s8 + $0x4] sm:$0xf]
      %v981 = vld [vmem:[%s8 + $0x8] sm:$0xf]
      %v982 = vld [vmem:[%s8 + $0xc] sm:$0xf]
      %v983 = vld [vmem:[%s9] sm:$0x1]
      %v985 = vlaneseq
      %v986 = vshrl.u32 %v985, 7
      %v987 = vsub.s32 0, %v986
      %v988 = vrot.slane %v983, %v987
      %v994 = vunpack.c.l.b16 %v979
      %v995 = vunpack.c.l.b16 %v980
      %v996 = vunpack.c.l.b16 %v981
      %v997 = vunpack.c.l.b16 %v982
      %v998 = vpack.c.b16 %v995, %v994
      %v999 = vpack.c.b16 %v997, %v996
      %v1003 = vsel %vm723, %v978, 0
      %1005 = vmatprep.subr.bf16.mxu0 0
      %1006 = vmatpush1.bf16.msra.mxu0 %v998
      %1007 = vmatprep.subr.bf16.mxu0 0
      %1008 = vmatpush1.bf16.msra.mxu0 %v999
      %1009 = vmatprep.subr.bf16.mxu0 0
      %1010 = vmatpush1.bf16.msra.mxu0 0
      %1011 = vmatprep.subr.bf16.mxu0 0
      %1012 = vmatpush1.bf16.msra.mxu0 0
      %1013 = vmatprep.subr.bf16.mxu0 0
      %1014 = vmatpush1.bf16.msra.mxu0 0
      %1015 = vmatprep.subr.bf16.mxu0 0
      %1016 = vmatpush1.bf16.msra.mxu0 0
      %1017 = vmatprep.subr.bf16.mxu0 0
      %1018 = vmatpush1.bf16.msra.mxu0 0
      %1019 = vmatprep.subr.bf16.mxu0 0
      %1020 = vmatpush1.bf16.msra.mxu0 0
      %1021 = vmatprep.subr.bf16.mxu0 0
      %1022 = vmatpush1.bf16.msra.mxu0 0
      %1023 = vmatprep.subr.bf16.mxu0 0
      %1024 = vmatpush1.bf16.msra.mxu0 0
      %1025 = vmatprep.subr.bf16.mxu0 0
      %1026 = vmatpush1.bf16.msra.mxu0 0
      %1027 = vmatprep.subr.bf16.mxu0 0
      %1028 = vmatpush1.bf16.msra.mxu0 0
      %1029 = vmatprep.subr.bf16.mxu0 0
      %1030 = vmatpush1.bf16.msra.mxu0 0
      %1031 = vmatprep.subr.bf16.mxu0 0
      %1032 = vmatpush1.bf16.msra.mxu0 0
      %1033 = vmatprep.subr.bf16.mxu0 0
      %1034 = vmatpush1.bf16.msra.mxu0 0
      %1035 = vmatprep.subr.bf16.mxu0 0
      %1036 = vmatpush1.bf16.msra.mxu0 0
      %1037 = vmatprep.mubr.bf16.mxu0 0
      %1038 = vmatmul.mubr.bf16.gmra.mrb[0].mxu0 %v1003
      %v1039 = vpop.f32.mrb[0].mxu0
      %v1040 = vadd.f32 %v988, %v1039
      %v1041 = vpop.f32.mrb[0].mxu0
      %v1042 = vpop.f32.mrb[0].mxu0
      %v1043 = vpop.f32.mrb[0].mxu0
      %1044 = vdwg.mxu0
      %v1045 = vpack.c.bf16 %v698, %v698
      %v1046 = vld [vmem:[%s10] sm:$0xf]
      %v1047 = vld [vmem:[%s10 + $0x4] sm:$0xf]
      %v1048 = vld [vmem:[%s10 + $0x8] sm:$0xf]
      %v1049 = vld [vmem:[%s10 + $0xc] sm:$0xf]
      %v1050 = vld [vmem:[%s11] sm:$0x1]
      %v1052 = vlaneseq
      %v1053 = vshrl.u32 %v1052, 7
      %v1054 = vsub.s32 0, %v1053
      %v1055 = vrot.slane %v1050, %v1054
      %v1061 = vunpack.c.l.b16 %v1046
      %v1062 = vunpack.c.l.b16 %v1047
      %v1063 = vunpack.c.l.b16 %v1048
      %v1064 = vunpack.c.l.b16 %v1049
      %v1065 = vpack.c.b16 %v1062, %v1061
      %v1066 = vpack.c.b16 %v1064, %v1063
      %v1070 = vsel %vm723, %v1045, 0
      %1072 = vmatprep.subr.bf16.mxu0 0
      %1073 = vmatpush1.bf16.msra.mxu0 %v1065
      %1074 = vmatprep.subr.bf16.mxu0 0
      %1075 = vmatpush1.bf16.msra.mxu0 %v1066
      %1076 = vmatprep.subr.bf16.mxu0 0
      %1077 = vmatpush1.bf16.msra.mxu0 0
      %1078 = vmatprep.subr.bf16.mxu0 0
      %1079 = vmatpush1.bf16.msra.mxu0 0
      %1080 = vmatprep.subr.bf16.mxu0 0
      %1081 = vmatpush1.bf16.msra.mxu0 0
      %1082 = vmatprep.subr.bf16.mxu0 0
      %1083 = vmatpush1.bf16.msra.mxu0 0
      %1084 = vmatprep.subr.bf16.mxu0 0
      %1085 = vmatpush1.bf16.msra.mxu0 0
      %1086 = vmatprep.subr.bf16.mxu0 0
      %1087 = vmatpush1.bf16.msra.mxu0 0
      %1088 = vmatprep.subr.bf16.mxu0 0
      %1089 = vmatpush1.bf16.msra.mxu0 0
      %1090 = vmatprep.subr.bf16.mxu0 0
      %1091 = vmatpush1.bf16.msra.mxu0 0
      %1092 = vmatprep.subr.bf16.mxu0 0
      %1093 = vmatpush1.bf16.msra.mxu0 0
      %1094 = vmatprep.subr.bf16.mxu0 0
      %1095 = vmatpush1.bf16.msra.mxu0 0
      %1096 = vmatprep.subr.bf16.mxu0 0
      %1097 = vmatpush1.bf16.msra.mxu0 0
      %1098 = vmatprep.subr.bf16.mxu0 0
      %1099 = vmatpush1.bf16.msra.mxu0 0
      %1100 = vmatprep.subr.bf16.mxu0 0
      %1101 = vmatpush1.bf16.msra.mxu0 0
      %1102 = vmatprep.subr.bf16.mxu0 0
      %1103 = vmatpush1.bf16.msra.mxu0 0
      %1104 = vmatprep.mubr.bf16.mxu0 0
      %1105 = vmatmul.mubr.bf16.gmra.mrb[0].mxu0 %v1070
      %v1106 = vpop.f32.mrb[0].mxu0
      %v1107 = vadd.f32 %v1055, %v1106
      %v1108 = vpop.f32.mrb[0].mxu0
      %v1109 = vpop.f32.mrb[0].mxu0
      %v1110 = vpop.f32.mrb[0].mxu0
      %1111 = vdwg.mxu0
      %v1112 = vpack.c.bf16 %v1040, %v1040
      %v1113 = vpack.c.bf16 %v1107, %v1107
      %v1115 = vsel %vm723, %v1112, 0
      %v1118 = vsel %vm723, %v1113, 0
      %1120 = vmatprep.subr.bf16.mxu0 0
      %1121 = vmatpush1.bf16.xpose.msra.mxu0 %v1118
      %1122 = vmatprep.subr.bf16.mxu0 0
      %1123 = vmatpush1.bf16.xpose.msra.mxu0 0
      %1124 = vmatprep.subr.bf16.mxu0 0
      %1125 = vmatpush1.bf16.xpose.msra.mxu0 0
      %1126 = vmatprep.subr.bf16.mxu0 0
      %1127 = vmatpush1.bf16.xpose.msra.mxu0 0
      %1128 = vmatprep.subr.bf16.mxu0 0
      %1129 = vmatpush1.bf16.xpose.msra.mxu0 0
      %1130 = vmatprep.subr.bf16.mxu0 0
      %1131 = vmatpush1.bf16.xpose.msra.mxu0 0
      %1132 = vmatprep.subr.bf16.mxu0 0
      %1133 = vmatpush1.bf16.xpose.msra.mxu0 0
      %1134 = vmatprep.subr.bf16.mxu0 0
      %1135 = vmatpush1.bf16.xpose.msra.mxu0 0
      %1136 = vmatprep.subr.bf16.mxu0 0
      %1137 = vmatpush1.bf16.xpose.msra.mxu0 0
      %1138 = vmatprep.subr.bf16.mxu0 0
      %1139 = vmatpush1.bf16.xpose.msra.mxu0 0
      %1140 = vmatprep.subr.bf16.mxu0 0
      %1141 = vmatpush1.bf16.xpose.msra.mxu0 0
      %1142 = vmatprep.subr.bf16.mxu0 0
      %1143 = vmatpush1.bf16.xpose.msra.mxu0 0
      %1144 = vmatprep.subr.bf16.mxu0 0
      %1145 = vmatpush1.bf16.xpose.msra.mxu0 0
      %1146 = vmatprep.subr.bf16.mxu0 0
      %1147 = vmatpush1.bf16.xpose.msra.mxu0 0
      %1148 = vmatprep.subr.bf16.mxu0 0
      %1149 = vmatpush1.bf16.xpose.msra.mxu0 0
      %1150 = vmatprep.subr.bf16.mxu0 0
      %1151 = vmatpush1.bf16.xpose.msra.mxu0 0
      %1152 = vmatprep.mubr.bf16.mxu0 0
      %1153 = vmatmul.mubr.bf16.gmra.mrb[0].mxu0 %v1115
      %v1154 = vpop.f32.mrb[0].mxu0
      %v1155 = vadd.f32 0.0, %v1154
      %v1156 = vpop.f32.mrb[0].mxu0
      %v1157 = vpop.f32.mrb[0].mxu0
      %v1158 = vpop.f32.mrb[0].mxu0
      %1159 = vdwg.mxu0
      %v1160 = vmul.f32 %v1155, 0.17677669
      %v1161 = vsel %vm818, %v1160, -inf
      %1162 = vmax.xlane.f32.xlu0 %v1161
      %v1163 = vpop.xlane.xlu0 %1162
      %v1164 = vsub.f32 %v1160, %v1163
      %v1165 = vmul.f32 %v1164, 1.442695
      %v1166 = vpow.pop %v1165
      %v1167 = vsel %vm818, %v1166, 0.0
      %1168 = vadd.xlane.f32.xlu0 %v1167
      %v1169 = vpop.xlane.xlu0 %1168
      %v1170 = vrcp.pop %v1169
      %v1171 = vmul.f32 %v1166, %v1170
      %v1172 = vpack.c.bf16 %v1171, %v1171
      %1174 = vrot.lane.b32.xlu0 %v1113, 96
      %v1175 = vpop.permute.xlu0 %1174
      %v1177 = vsel %vm818, %v1172, 0
      %v1180 = vsel %vm836, %v1175, 0
      %1182 = vmatprep.subr.bf16.mxu0 0
      %1183 = vmatpush1.bf16.msra.mxu0 %v1180
      %1184 = vmatprep.subr.bf16.mxu0 0
      %1185 = vmatpush1.bf16.msra.mxu0 0
      %1186 = vmatprep.subr.bf16.mxu0 0
      %1187 = vmatpush1.bf16.msra.mxu0 0
      %1188 = vmatprep.subr.bf16.mxu0 0
      %1189 = vmatpush1.bf16.msra.mxu0 0
      %1190 = vmatprep.subr.bf16.mxu0 0
      %1191 = vmatpush1.bf16.msra.mxu0 0
      %1192 = vmatprep.subr.bf16.mxu0 0
      %1193 = vmatpush1.bf16.msra.mxu0 0
      %1194 = vmatprep.subr.bf16.mxu0 0
      %1195 = vmatpush1.bf16.msra.mxu0 0
      %1196 = vmatprep.subr.bf16.mxu0 0
      %1197 = vmatpush1.bf16.msra.mxu0 0
      %1198 = vmatprep.subr.bf16.mxu0 0
      %1199 = vmatpush1.bf16.msra.mxu0 0
      %1200 = vmatprep.subr.bf16.mxu0 0
      %1201 = vmatpush1.bf16.msra.mxu0 0
      %1202 = vmatprep.subr.bf16.mxu0 0
      %1203 = vmatpush1.bf16.msra.mxu0 0
      %1204 = vmatprep.subr.bf16.mxu0 0
      %1205 = vmatpush1.bf16.msra.mxu0 0
      %1206 = vmatprep.subr.bf16.mxu0 0
      %1207 = vmatpush1.bf16.msra.mxu0 0
      %1208 = vmatprep.subr.bf16.mxu0 0
      %1209 = vmatpush1.bf16.msra.mxu0 0
      %1210 = vmatprep.subr.bf16.mxu0 0
      %1211 = vmatpush1.bf16.msra.mxu0 0
      %1212 = vmatprep.subr.bf16.mxu0 0
      %1213 = vmatpush1.bf16.msra.mxu0 0
      %1214 = vmatprep.mubr.bf16.mxu0 0
      %1215 = vmatmul.mubr.bf16.gmra.mrb[0].mxu0 %v1177
      %v1216 = vpop.f32.mrb[0].mxu0
      %v1217 = vadd.f32 0.0, %v1216
      %v1218 = vpop.f32.mrb[0].mxu0
      %v1219 = vpop.f32.mrb[0].mxu0
      %v1220 = vpop.f32.mrb[0].mxu0
      %1221 = vdwg.mxu0
      %v1222 = vpack.c.bf16 %v1217, %v1217
      %v1223 = vld [vmem:[%s12] sm:$0xf]
      %v1224 = vld [vmem:[%s12 + $0x4] sm:$0xf]
      %v1225 = vld [vmem:[%s12 + $0x8] sm:$0xf]
      %v1226 = vld [vmem:[%s12 + $0xc] sm:$0xf]
      %v1227 = vld [vmem:[%s13] sm:$0x1]
      %v1229 = vlaneseq
      %v1230 = vshrl.u32 %v1229, 7
      %v1231 = vsub.s32 0, %v1230
      %v1232 = vrot.slane %v1227, %v1231
      %v1238 = vunpack.c.l.b16 %v1223
      %v1239 = vunpack.c.l.b16 %v1224
      %v1240 = vunpack.c.l.b16 %v1225
      %v1241 = vunpack.c.l.b16 %v1226
      %v1242 = vpack.c.b16 %v1239, %v1238
      %v1243 = vpack.c.b16 %v1241, %v1240
      %v1247 = vsel %vm723, %v1222, 0
      %1249 = vmatprep.subr.bf16.mxu0 0
      %1250 = vmatpush1.bf16.msra.mxu0 %v1242
      %1251 = vmatprep.subr.bf16.mxu0 0
      %1252 = vmatpush1.bf16.msra.mxu0 %v1243
      %1253 = vmatprep.subr.bf16.mxu0 0
      %1254 = vmatpush1.bf16.msra.mxu0 0
      %1255 = vmatprep.subr.bf16.mxu0 0
      %1256 = vmatpush1.bf16.msra.mxu0 0
      %1257 = vmatprep.subr.bf16.mxu0 0
      %1258 = vmatpush1.bf16.msra.mxu0 0
      %1259 = vmatprep.subr.bf16.mxu0 0
      %1260 = vmatpush1.bf16.msra.mxu0 0
      %1261 = vmatprep.subr.bf16.mxu0 0
      %1262 = vmatpush1.bf16.msra.mxu0 0
      %1263 = vmatprep.subr.bf16.mxu0 0
      %1264 = vmatpush1.bf16.msra.mxu0 0
      %1265 = vmatprep.subr.bf16.mxu0 0
      %1266 = vmatpush1.bf16.msra.mxu0 0
      %1267 = vmatprep.subr.bf16.mxu0 0
      %1268 = vmatpush1.bf16.msra.mxu0 0
      %1269 = vmatprep.subr.bf16.mxu0 0
      %1270 = vmatpush1.bf16.msra.mxu0 0
      %1271 = vmatprep.subr.bf16.mxu0 0
      %1272 = vmatpush1.bf16.msra.mxu0 0
      %1273 = vmatprep.subr.bf16.mxu0 0
      %1274 = vmatpush1.bf16.msra.mxu0 0
      %1275 = vmatprep.subr.bf16.mxu0 0
      %1276 = vmatpush1.bf16.msra.mxu0 0
      %1277 = vmatprep.subr.bf16.mxu0 0
      %1278 = vmatpush1.bf16.msra.mxu0 0
      %1279 = vmatprep.subr.bf16.mxu0 0
      %1280 = vmatpush1.bf16.msra.mxu0 0
      %1281 = vmatprep.mubr.bf16.mxu0 0
      %1282 = vmatmul.mubr.bf16.gmra.mrb[0].mxu0 %v1247
      %v1283 = vpop.f32.mrb[0].mxu0
      %v1284 = vadd.f32 %v1232, %v1283
      %v1285 = vpop.f32.mrb[0].mxu0
      %v1286 = vpop.f32.mrb[0].mxu0
      %v1287 = vpop.f32.mrb[0].mxu0
      %1288 = vdwg.mxu0
      %v1289 = vadd.f32 %v977, %v1284
      %v1290 = vld [vmem:[%s14] sm:$0x1]
      %v1291 = vld [vmem:[%s15] sm:$0x1]
      %v1292 = vsel %vm723, %v1289, 0.0
      %1293 = vadd.xlane.f32.xlu0 %v1292
      %v1294 = vpop.xlane.xlu0 %1293
      %v1295 = vmul.f32 %v1294, %v953
      %v1296 = vsub.f32 %v1289, %v1295
      %v1297 = vmul.f32 %v1296, %v1296
      %v1298 = vsel %vm723, %v1297, 0.0
      %1299 = vadd.xlane.f32.xlu0 %v1298
      %v1300 = vpop.xlane.xlu0 %1299
      %v1301 = vmul.f32 %v1300, %v953
      %v1302 = vadd.f32 %v1301, 1e-05
      %v1303 = vrsqrt.pop %v1302
      %v1304 = vmul.f32 %v1296, %v1303
      %v1306 = vlaneseq
      %v1307 = vshrl.u32 %v1306, 7
      %v1308 = vsub.s32 0, %v1307
      %v1309 = vrot.slane %v1290, %v1308
      %v1311 = vmul.f32 %v1304, %v1309
      %v1313 = vlaneseq
      %v1314 = vshrl.u32 %v1313, 7
      %v1315 = vsub.s32 0, %v1314
      %v1316 = vrot.slane %v1291, %v1315
      %v1318 = vadd.f32 %v1311, %v1316
      %v1319 = vpack.c.bf16 %v1318, %v1318
      %v1320 = vld [vmem:[%s16] sm:$0xf]
      %v1321 = vld [vmem:[%s16 + $0x4] sm:$0xf]
      %v1322 = vld [vmem:[%s16 + $0x8] sm:$0xf]
      %v1323 = vld [vmem:[%s16 + $0xc] sm:$0xf]
      %v1324 = vld [vmem:[%s17] sm:$0x1]
      %v1326 = vlaneseq
      %v1327 = vshrl.u32 %v1326, 7
      %v1328 = vsub.s32 0, %v1327
      %v1329 = vrot.slane %v1324, %v1328
      %v1335 = vunpack.c.l.b16 %v1320
      %v1336 = vunpack.c.l.b16 %v1321
      %v1337 = vunpack.c.l.b16 %v1322
      %v1338 = vunpack.c.l.b16 %v1323
      %v1339 = vpack.c.b16 %v1336, %v1335
      %v1340 = vpack.c.b16 %v1338, %v1337
      %v1344 = vsel %vm723, %v1319, 0
      %1346 = vmatprep.subr.bf16.mxu0 0
      %1347 = vmatpush1.bf16.msra.mxu0 %v1339
      %1348 = vmatprep.subr.bf16.mxu0 0
      %1349 = vmatpush1.bf16.msra.mxu0 %v1340
      %1350 = vmatprep.subr.bf16.mxu0 0
      %1351 = vmatpush1.bf16.msra.mxu0 0
      %1352 = vmatprep.subr.bf16.mxu0 0
      %1353 = vmatpush1.bf16.msra.mxu0 0
      %1354 = vmatprep.subr.bf16.mxu0 0
      %1355 = vmatpush1.bf16.msra.mxu0 0
      %1356 = vmatprep.subr.bf16.mxu0 0
      %1357 = vmatpush1.bf16.msra.mxu0 0
      %1358 = vmatprep.subr.bf16.mxu0 0
      %1359 = vmatpush1.bf16.msra.mxu0 0
      %1360 = vmatprep.subr.bf16.mxu0 0
      %1361 = vmatpush1.bf16.msra.mxu0 0
      %1362 = vmatprep.subr.bf16.mxu0 0
      %1363 = vmatpush1.bf16.msra.mxu0 0
      %1364 = vmatprep.subr.bf16.mxu0 0
      %1365 = vmatpush1.bf16.msra.mxu0 0
      %1366 = vmatprep.subr.bf16.mxu0 0
      %1367 = vmatpush1.bf16.msra.mxu0 0
      %1368 = vmatprep.subr.bf16.mxu0 0
      %1369 = vmatpush1.bf16.msra.mxu0 0
      %1370 = vmatprep.subr.bf16.mxu0 0
      %1371 = vmatpush1.bf16.msra.mxu0 0
      %1372 = vmatprep.subr.bf16.mxu0 0
      %1373 = vmatpush1.bf16.msra.mxu0 0
      %1374 = vmatprep.subr.bf16.mxu0 0
      %1375 = vmatpush1.bf16.msra.mxu0 0
      %1376 = vmatprep.subr.bf16.mxu0 0
      %1377 = vmatpush1.bf16.msra.mxu0 0
      %1378 = vmatprep.mubr.bf16.mxu0 0
      %1379 = vmatmul.mubr.bf16.gmra.mrb[0].mxu0 %v1344
      %v1380 = vpop.f32.mrb[0].mxu0
      %v1381 = vadd.f32 %v1329, %v1380
      %v1382 = vpop.f32.mrb[0].mxu0
      %v1383 = vpop.f32.mrb[0].mxu0
      %v1384 = vpop.f32.mrb[0].mxu0
      %1385 = vdwg.mxu0
      %v1386 = vsub.f32 0.0, %v1381
      %v1387 = vmul.f32 %v1386, 1.442695
      %v1388 = vpow.pop %v1387
      %v1389 = vadd.f32 %v1388, 1.0
      %v1390 = vrcp.pop %v1389
      %v1391 = vmul.f32 1.0, %v1390
      %v1392 = vmul.f32 %v1381, %v1391
      %v1393 = vpack.c.bf16 %v1392, %v1392
      %v1394 = vld [vmem:[%s18] sm:$0x3]
      %v1395 = vld [vmem:[%s19] sm:$0x1]
      %v1397 = vlaneseq
      %v1398 = vshrl.u32 %v1397, 7
      %v1399 = vsub.s32 0, %v1398
      %v1400 = vrot.slane %v1395, %v1399
      %vm1402 = vcmask 31744
      %v1404 = vsel %vm1402, %v1393, 0
      %vm1406 = vcmask 1041408
      %v1408 = vsel %vm1406, %v1394, 0
      %1410 = vmatprep.subr.bf16.mxu0 0
      %1411 = vmatpush1.bf16.msra.mxu0 %v1408
      %1412 = vmatprep.subr.bf16.mxu0 0
      %1413 = vmatpush1.bf16.msra.mxu0 0
      %1414 = vmatprep.subr.bf16.mxu0 0
      %1415 = vmatpush1.bf16.msra.mxu0 0
      %1416 = vmatprep.subr.bf16.mxu0 0
      %1417 = vmatpush1.bf16.msra.mxu0 0
      %1418 = vmatprep.subr.bf16.mxu0 0
      %1419 = vmatpush1.bf16.msra.mxu0 0
      %1420 = vmatprep.subr.bf16.mxu0 0
      %1421 = vmatpush1.bf16.msra.mxu0 0
      %1422 = vmatprep.subr.bf16.mxu0 0
      %1423 = vmatpush1.bf16.msra.mxu0 0
      %1424 = vmatprep.subr.bf16.mxu0 0
      %1425 = vmatpush1.bf16.msra.mxu0 0
      %1426 = vmatprep.subr.bf16.mxu0 0
      %1427 = vmatpush1.bf16.msra.mxu0 0
      %1428 = vmatprep.subr.bf16.mxu0 0
      %1429 = vmatpush1.bf16.msra.mxu0 0
      %1430 = vmatprep.subr.bf16.mxu0 0
      %1431 = vmatpush1.bf16.msra.mxu0 0
      %1432 = vmatprep.subr.bf16.mxu0 0
      %1433 = vmatpush1.bf16.msra.mxu0 0
      %1434 = vmatprep.subr.bf16.mxu0 0
      %1435 = vmatpush1.bf16.msra.mxu0 0
      %1436 = vmatprep.subr.bf16.mxu0 0
      %1437 = vmatpush1.bf16.msra.mxu0 0
      %1438 = vmatprep.subr.bf16.mxu0 0
      %1439 = vmatpush1.bf16.msra.mxu0 0
      %1440 = vmatprep.subr.bf16.mxu0 0
      %1441 = vmatpush1.bf16.msra.mxu0 0
      %1442 = vmatprep.mubr.bf16.mxu0 0
      %1443 = vmatmul.mubr.bf16.gmra.mrb[0].mxu0 %v1404
      %v1444 = vpop.f32.mrb[0].mxu0
      %v1445 = vadd.f32 %v1400, %v1444
      %v1446 = vpop.f32.mrb[0].mxu0
      %v1447 = vpop.f32.mrb[0].mxu0
      %v1448 = vpop.f32.mrb[0].mxu0
      %1449 = vdwg.mxu0
      %v1450 = vadd.f32 %v1318, %v1445
      %v1451 = vld [vmem:[%s20] sm:$0x1]
      %v1452 = vld [vmem:[%s21] sm:$0x1]
      %v1453 = vsel %vm723, %v1450, 0.0
      %1454 = vadd.xlane.f32.xlu0 %v1453
      %v1455 = vpop.xlane.xlu0 %1454
      %v1456 = vmul.f32 %v1455, %v953
      %v1457 = vsub.f32 %v1450, %v1456
      %v1458 = vmul.f32 %v1457, %v1457
      %v1459 = vsel %vm723, %v1458, 0.0
      %1460 = vadd.xlane.f32.xlu0 %v1459
      %v1461 = vpop.xlane.xlu0 %1460
      %v1462 = vmul.f32 %v1461, %v953
      %v1463 = vadd.f32 %v1462, 1e-05
      %v1464 = vrsqrt.pop %v1463
      %v1465 = vmul.f32 %v1457, %v1464
      %v1467 = vlaneseq
      %v1468 = vshrl.u32 %v1467, 7
      %v1469 = vsub.s32 0, %v1468
      %v1470 = vrot.slane %v1451, %v1469
      %v1472 = vmul.f32 %v1465, %v1470
      %v1474 = vlaneseq
      %v1475 = vshrl.u32 %v1474, 7
      %v1476 = vsub.s32 0, %v1475
      %v1477 = vrot.slane %v1452, %v1476
      %v1479 = vadd.f32 %v1472, %v1477
      %1480 = vst.msk [vmem:[%s695] sm:$0xff] %vm723, %v1479
      %p1481 = scmp.lt.s32.totalorder %s33, 1
      %s1482 = scalar_select %p1481, %s33, 1
      %s1483 = smul.addr %s1482, 8
      %s1484 = scalar_lea.vmem %s22, %s1483
      // Predicated region
      $region109: #{transformer_autoencoder_separator.16} parent=107 // pred_check
        %p1485 = pneg %p523
      $region110: #{transformer_autoencoder_separator.16} parent=107 // pred_check_branch
        %1487 = sbr.rel (%p1485) target = $region112
      $region111: #{transformer_autoencoder_separator.16} parent=107 // pred_region
        _
      $region112: #{transformer_autoencoder_separator.16} parent=107 // pred_fallthru
        _
    $region108: #{transformer_autoencoder_separator.16} parent=5 // pred_fallthru
      _
    %p1488 = scmp.le.s32.totalorder 2, %s28
    // Predicated region
    $region113: #{transformer_autoencoder_separator.16} parent=5 // pred_check
      %p1489 = pneg %p1488
    $region114: #{transformer_autoencoder_separator.16} parent=5 // pred_check_branch
      %1491 = sbr.rel (%p1489) target = $region116
    $region115: #{transformer_autoencoder_separator.16} parent=5 // pred_region
      %s1492 = ssub.s32 %s28, 2
      // Predicated region
      $region117: #{transformer_autoencoder_separator.16} parent=115 // pred_check
        %p1493 = pneg %p529
      $region118: #{transformer_autoencoder_separator.16} parent=115 // pred_check_branch
        %1495 = sbr.rel (%p1493) target = $region120
      $region119: #{transformer_autoencoder_separator.16} parent=115 // pred_region
        %p1496 = scmp.lt.s32.totalorder %s34, 1
        %s1497 = scalar_select %p1496, %s34, 1
        %s1498 = smul.addr %s1497, 8
        %s1499 = scalar_lea.vmem %s22, %s1498
      $region120: #{transformer_autoencoder_separator.16} parent=115 // pred_fallthru
        _
    $region116: #{transformer_autoencoder_separator.16} parent=5 // pred_fallthru
      _
  $region6: #{transformer_autoencoder_separator.16} parent=0 // loop_footer
    %s32 = sadd.s32 1, %s28
  $region7: #{transformer_autoencoder_separator.16} parent=0 // loop_footer_branch
    %27 = sbr.rel target = $region3
  $region8: #{transformer_autoencoder_separator.16} parent=0 // loop_exit
    _

// kernel: transformer_autoencoder_separator.17
$region0: #{transformer_autoencoder_separator.17}
  #allocation0 [shape = 'u32[]', space=smem, size = 0x4, offset = 0x4, fixed_abs, tag = 'smem constant byte address 0x4 - core index']
  #allocation1 [shape = 'u32[144,128]{1,0:T(1,128)}', space=vmem, size = 0x12000, scoped, tag = 'internal scratch']
  %s0 = inlined_call_operand.vmem [shape: f32[2,8,32], index: 0, kind: input, shape index: {}]
  %s1 = inlined_call_operand.vmem [shape: f32[2,8,32], index: 1, kind: input, shape index: {}]
  %s2 = inlined_call_operand.vmem [shape: bf16[32,96], index: 2, kind: input, shape index: {}]
  %s3 = inlined_call_operand.vmem [shape: f32[1,96], index: 3, kind: input, shape index: {}]
  %s4 = inlined_call_operand.vmem [shape: bf16[32,32], index: 4, kind: input, shape index: {}]
  %s5 = inlined_call_operand.vmem [shape: f32[1,32], index: 5, kind: input, shape index: {}]
  %s6 = inlined_call_operand.vmem [shape: f32[1,32], index: 6, kind: input, shape index: {}]
  %s7 = inlined_call_operand.vmem [shape: f32[1,32], index: 7, kind: input, shape index: {}]
  %s8 = inlined_call_operand.vmem [shape: bf16[32,32], index: 8, kind: input, shape index: {}]
  %s9 = inlined_call_operand.vmem [shape: f32[1,32], index: 9, kind: input, shape index: {}]
  %s10 = inlined_call_operand.vmem [shape: bf16[32,64], index: 10, kind: input, shape index: {}]
  %s11 = inlined_call_operand.vmem [shape: f32[1,64], index: 11, kind: input, shape index: {}]
  %s12 = inlined_call_operand.vmem [shape: bf16[32,32], index: 12, kind: input, shape index: {}]
  %s13 = inlined_call_operand.vmem [shape: f32[1,32], index: 13, kind: input, shape index: {}]
  %s14 = inlined_call_operand.vmem [shape: f32[1,32], index: 14, kind: input, shape index: {}]
  %s15 = inlined_call_operand.hbm [shape: f32[1,32], index: 15, kind: input, shape index: {}]
  %s16 = inlined_call_operand.vmem [shape: bf16[32,4], index: 16, kind: input, shape index: {}]
  %s17 = inlined_call_operand.hbm [shape: f32[1,4], index: 17, kind: input, shape index: {}]
  %s18 = inlined_call_operand.vmem [shape: bf16[4,32], index: 18, kind: input, shape index: {}]
  %s19 = inlined_call_operand.hbm [shape: f32[1,32], index: 19, kind: input, shape index: {}]
  %s20 = inlined_call_operand.hbm [shape: f32[1,32], index: 20, kind: input, shape index: {}]
  %s21 = inlined_call_operand.hbm [shape: f32[1,32], index: 21, kind: input, shape index: {}]
  %s22 = inlined_call_operand.vmem [shape: f32[2,8,32], index: 22, kind: output, shape index: {}]
  %s23 = sld [smem:[#allocation0]]
  $region141: #{transformer_autoencoder_separator.17} parent=0
    _
  %s25 = ssub.s32 1, %s23
  %s26 = scalar_select 0, %s25, %s23
  $region1: #{transformer_autoencoder_separator.17} parent=0
    #allocation2 [shape = 'u8[512]{0}', space=vmem, size = 0x400, scoped, tag = 'input window, operand 15, single buffered']
    #allocation3 [shape = 's32[2]{0}', space=sflag, size = 0x8, scoped, tag = 'scoped memory for transformer_autoencoder_separator.17']
    #allocation4 [shape = 'u8[512]{0}', space=vmem, size = 0x400, scoped, tag = 'input window, operand 17, single buffered']
    #allocation5 [shape = 's32[1]{0}', space=sflag, size = 0x4, scoped, tag = 'scoped memory for transformer_autoencoder_separator.17']
    #allocation6 [shape = 'u8[512]{0}', space=vmem, size = 0x400, scoped, tag = 'input window, operand 19, single buffered']
    #allocation7 [shape = 'u8[512]{0}', space=vmem, size = 0x400, scoped, tag = 'input window, operand 20, single buffered']
    #allocation8 [shape = 's32[1]{0}', space=sflag, size = 0x4, scoped, tag = 'scoped memory for transformer_autoencoder_separator.17']
    #allocation9 [shape = 'u8[512]{0}', space=vmem, size = 0x400, scoped, tag = 'input window, operand 21, single buffered']
    %27 = vsyncpa [#allocation3], 0
    %28 = vsyncpa [#allocation5], 0
    %29 = vsyncpa [#allocation8], 0
    loop: start=0, step=1, limit=4
    $region2: #{transformer_autoencoder_separator.17} parent=1 // loop_pre_header
      _
    $region3: #{transformer_autoencoder_separator.17} parent=1 // loop_header
      %s31 = sphi 0, %s35
      %p32 = scmp.ge.s32.totalorder %s31, 4
      %s41 = sphi 0, %s43
      %s44 = sphi 0, %s41
      %s45 = sphi 0, %s44
      %s61 = sphi 0, %s45
      %s67 = sphi 0, %s69
      %s70 = sphi 0, %s67
      %s71 = sphi 0, %s70
      %s87 = sphi 0, %s71
      %s91 = sphi 0, %s91
      %s93 = sphi 0, %s91
      %s94 = sphi 0, %s93
      %s108 = sphi 0, %s94
      %s112 = sphi 0, %s112
      %s114 = sphi 0, %s112
      %s115 = sphi 0, %s114
      %s129 = sphi 0, %s115
      %s133 = sphi 0, %s133
      %s135 = sphi 0, %s133
      %s136 = sphi 0, %s135
      %s150 = sphi 0, %s136
      %s154 = sphi 0, %s154
      %s156 = sphi 0, %s154
      %s157 = sphi 0, %s156
      %s171 = sphi 0, %s157
      %s175 = sphi 0, %s175
      %s177 = sphi 0, %s175
      %s178 = sphi 0, %s177
      %s192 = sphi 0, %s178
      %s196 = sphi 0, %s196
      %s198 = sphi 0, %s196
      %s199 = sphi 0, %s198
      %s213 = sphi 0, %s199
      %s217 = sphi 0, %s217
      %s219 = sphi 0, %s217
      %s220 = sphi 0, %s219
      %s234 = sphi 0, %s220
      %s238 = sphi 0, %s238
      %s240 = sphi 0, %s238
      %s241 = sphi 0, %s240
      %s255 = sphi 0, %s241
      %s259 = sphi 0, %s259
      %s261 = sphi 0, %s259
      %s262 = sphi 0, %s261
      %s276 = sphi 0, %s262
      %s280 = sphi 0, %s280
      %s282 = sphi 0, %s280
      %s283 = sphi 0, %s282
      %s297 = sphi 0, %s283
      %s301 = sphi 0, %s301
      %s303 = sphi 0, %s301
      %s304 = sphi 0, %s303
      %s318 = sphi 0, %s304
      %s322 = sphi 0, %s322
      %s324 = sphi 0, %s322
      %s325 = sphi 0, %s324
      %s339 = sphi 0, %s325
      %s343 = sphi 0, %s343
      %s345 = sphi 0, %s343
      %s346 = sphi 0, %s345
      %s360 = sphi 0, %s346
      %s364 = sphi 0, %s364
      %s366 = sphi 0, %s364
      %s367 = sphi 0, %s366
      %s381 = sphi 0, %s367
      %s385 = sphi 0, %s385
      %s387 = sphi 0, %s385
      %s388 = sphi 0, %s387
      %s402 = sphi 0, %s388
      %s406 = sphi 0, %s406
      %s408 = sphi 0, %s406
      %s409 = sphi 0, %s408
      %s423 = sphi 0, %s409
      %s427 = sphi 0, %s427
      %s429 = sphi 0, %s427
      %s430 = sphi 0, %s429
      %s444 = sphi 0, %s430
      %s448 = sphi 0, %s448
      %s450 = sphi 0, %s448
      %s451 = sphi 0, %s450
      %s465 = sphi 0, %s451
      %s469 = sphi 0, %s469
      %s471 = sphi 0, %s469
      %s472 = sphi 0, %s471
      %s486 = sphi 0, %s472
      %s490 = sphi 0, %s490
      %s492 = sphi 0, %s490
      %s493 = sphi 0, %s492
      %s507 = sphi 0, %s493
      %s513 = sphi 0, %s515
      %s516 = sphi 0, %s513
      %s517 = sphi 0, %s516
      %s533 = sphi 0, %s517
    $region4: #{transformer_autoencoder_separator.17} parent=1 // loop_header_branch
      %34 = sbr.rel (%p32) target = $region8
    $region5: #{transformer_autoencoder_separator.17} parent=1 // loop_body
      %s36 = ssub.s32 %s31, 1
      %s37 = ssub.s32 %s31, 2
      %s38 = sadd.s32 %s31, 1
      %s39 = ssub.s32 %s31, %s38
      %p40 = scmp.eq.s32.totalorder %s39, 0
      %s42 = sadd.s32 %s41, 1
      %s43 = scalar_select %p40, %s41, %s42
      %p46 = pneg %p40
      %p47 = scmp.eq.s32.totalorder %s31, 1
      %p48 = por %p46, %p47
      %p49 = scmp.ne.s32.totalorder %s41, %s44
      %p50 = scmp.eq.s32.totalorder %s31, 0
      %p51 = por %p49, %p50
      %p52 = scmp.ne.s32.totalorder %s41, %s44
      %p53 = scmp.eq.s32.totalorder %s36, 1
      %p54 = por %p52, %p53
      %p55 = scmp.ne.s32.totalorder %s44, %s45
      %p56 = scmp.eq.s32.totalorder %s36, 0
      %p57 = por %p55, %p56
      %p58 = scmp.ne.s32.totalorder %s44, %s45
      %p59 = scmp.eq.s32.totalorder %s37, 1
      %p60 = por %p58, %p59
      %p62 = scmp.ne.s32.totalorder %s45, %s61
      %p63 = scmp.eq.s32.totalorder %s37, 0
      %p64 = por %p62, %p63
      %s65 = ssub.s32 %s31, %s38
      %p66 = scmp.eq.s32.totalorder %s65, 0
      %s68 = sadd.s32 %s67, 1
      %s69 = scalar_select %p66, %s67, %s68
      %p72 = pneg %p66
      %p73 = scmp.eq.s32.totalorder %s31, 1
      %p74 = por %p72, %p73
      %p75 = scmp.ne.s32.totalorder %s67, %s70
      %p76 = scmp.eq.s32.totalorder %s31, 0
      %p77 = por %p75, %p76
      %p78 = scmp.ne.s32.totalorder %s67, %s70
      %p79 = scmp.eq.s32.totalorder %s36, 1
      %p80 = por %p78, %p79
      %p81 = scmp.ne.s32.totalorder %s70, %s71
      %p82 = scmp.eq.s32.totalorder %s36, 0
      %p83 = por %p81, %p82
      %p84 = scmp.ne.s32.totalorder %s70, %s71
      %p85 = scmp.eq.s32.totalorder %s37, 1
      %p86 = por %p84, %p85
      %p88 = scmp.ne.s32.totalorder %s71, %s87
      %p89 = scmp.eq.s32.totalorder %s37, 0
      %p90 = por %p88, %p89
      %s92 = sadd.s32 %s91, 1
      %p95 = scmp.eq.s32.totalorder %s31, 1
      %p96 = scmp.ne.s32.totalorder %s91, %s93
      %p97 = scmp.eq.s32.totalorder %s31, 0
      %p98 = por %p96, %p97
      %p99 = scmp.ne.s32.totalorder %s91, %s93
      %p100 = scmp.eq.s32.totalorder %s36, 1
      %p101 = por %p99, %p100
      %p102 = scmp.ne.s32.totalorder %s93, %s94
      %p103 = scmp.eq.s32.totalorder %s36, 0
      %p104 = por %p102, %p103
      %p105 = scmp.ne.s32.totalorder %s93, %s94
      %p106 = scmp.eq.s32.totalorder %s37, 1
      %p107 = por %p105, %p106
      %p109 = scmp.ne.s32.totalorder %s94, %s108
      %p110 = scmp.eq.s32.totalorder %s37, 0
      %p111 = por %p109, %p110
      %s113 = sadd.s32 %s112, 1
      %p116 = scmp.eq.s32.totalorder %s31, 1
      %p117 = scmp.ne.s32.totalorder %s112, %s114
      %p118 = scmp.eq.s32.totalorder %s31, 0
      %p119 = por %p117, %p118
      %p120 = scmp.ne.s32.totalorder %s112, %s114
      %p121 = scmp.eq.s32.totalorder %s36, 1
      %p122 = por %p120, %p121
      %p123 = scmp.ne.s32.totalorder %s114, %s115
      %p124 = scmp.eq.s32.totalorder %s36, 0
      %p125 = por %p123, %p124
      %p126 = scmp.ne.s32.totalorder %s114, %s115
      %p127 = scmp.eq.s32.totalorder %s37, 1
      %p128 = por %p126, %p127
      %p130 = scmp.ne.s32.totalorder %s115, %s129
      %p131 = scmp.eq.s32.totalorder %s37, 0
      %p132 = por %p130, %p131
      %s134 = sadd.s32 %s133, 1
      %p137 = scmp.eq.s32.totalorder %s31, 1
      %p138 = scmp.ne.s32.totalorder %s133, %s135
      %p139 = scmp.eq.s32.totalorder %s31, 0
      %p140 = por %p138, %p139
      %p141 = scmp.ne.s32.totalorder %s133, %s135
      %p142 = scmp.eq.s32.totalorder %s36, 1
      %p143 = por %p141, %p142
      %p144 = scmp.ne.s32.totalorder %s135, %s136
      %p145 = scmp.eq.s32.totalorder %s36, 0
      %p146 = por %p144, %p145
      %p147 = scmp.ne.s32.totalorder %s135, %s136
      %p148 = scmp.eq.s32.totalorder %s37, 1
      %p149 = por %p147, %p148
      %p151 = scmp.ne.s32.totalorder %s136, %s150
      %p152 = scmp.eq.s32.totalorder %s37, 0
      %p153 = por %p151, %p152
      %s155 = sadd.s32 %s154, 1
      %p158 = scmp.eq.s32.totalorder %s31, 1
      %p159 = scmp.ne.s32.totalorder %s154, %s156
      %p160 = scmp.eq.s32.totalorder %s31, 0
      %p161 = por %p159, %p160
      %p162 = scmp.ne.s32.totalorder %s154, %s156
      %p163 = scmp.eq.s32.totalorder %s36, 1
      %p164 = por %p162, %p163
      %p165 = scmp.ne.s32.totalorder %s156, %s157
      %p166 = scmp.eq.s32.totalorder %s36, 0
      %p167 = por %p165, %p166
      %p168 = scmp.ne.s32.totalorder %s156, %s157
      %p169 = scmp.eq.s32.totalorder %s37, 1
      %p170 = por %p168, %p169
      %p172 = scmp.ne.s32.totalorder %s157, %s171
      %p173 = scmp.eq.s32.totalorder %s37, 0
      %p174 = por %p172, %p173
      %s176 = sadd.s32 %s175, 1
      %p179 = scmp.eq.s32.totalorder %s31, 1
      %p180 = scmp.ne.s32.totalorder %s175, %s177
      %p181 = scmp.eq.s32.totalorder %s31, 0
      %p182 = por %p180, %p181
      %p183 = scmp.ne.s32.totalorder %s175, %s177
      %p184 = scmp.eq.s32.totalorder %s36, 1
      %p185 = por %p183, %p184
      %p186 = scmp.ne.s32.totalorder %s177, %s178
      %p187 = scmp.eq.s32.totalorder %s36, 0
      %p188 = por %p186, %p187
      %p189 = scmp.ne.s32.totalorder %s177, %s178
      %p190 = scmp.eq.s32.totalorder %s37, 1
      %p191 = por %p189, %p190
      %p193 = scmp.ne.s32.totalorder %s178, %s192
      %p194 = scmp.eq.s32.totalorder %s37, 0
      %p195 = por %p193, %p194
      %s197 = sadd.s32 %s196, 1
      %p200 = scmp.eq.s32.totalorder %s31, 1
      %p201 = scmp.ne.s32.totalorder %s196, %s198
      %p202 = scmp.eq.s32.totalorder %s31, 0
      %p203 = por %p201, %p202
      %p204 = scmp.ne.s32.totalorder %s196, %s198
      %p205 = scmp.eq.s32.totalorder %s36, 1
      %p206 = por %p204, %p205
      %p207 = scmp.ne.s32.totalorder %s198, %s199
      %p208 = scmp.eq.s32.totalorder %s36, 0
      %p209 = por %p207, %p208
      %p210 = scmp.ne.s32.totalorder %s198, %s199
      %p211 = scmp.eq.s32.totalorder %s37, 1
      %p212 = por %p210, %p211
      %p214 = scmp.ne.s32.totalorder %s199, %s213
      %p215 = scmp.eq.s32.totalorder %s37, 0
      %p216 = por %p214, %p215
      %s218 = sadd.s32 %s217, 1
      %p221 = scmp.eq.s32.totalorder %s31, 1
      %p222 = scmp.ne.s32.totalorder %s217, %s219
      %p223 = scmp.eq.s32.totalorder %s31, 0
      %p224 = por %p222, %p223
      %p225 = scmp.ne.s32.totalorder %s217, %s219
      %p226 = scmp.eq.s32.totalorder %s36, 1
      %p227 = por %p225, %p226
      %p228 = scmp.ne.s32.totalorder %s219, %s220
      %p229 = scmp.eq.s32.totalorder %s36, 0
      %p230 = por %p228, %p229
      %p231 = scmp.ne.s32.totalorder %s219, %s220
      %p232 = scmp.eq.s32.totalorder %s37, 1
      %p233 = por %p231, %p232
      %p235 = scmp.ne.s32.totalorder %s220, %s234
      %p236 = scmp.eq.s32.totalorder %s37, 0
      %p237 = por %p235, %p236
      %s239 = sadd.s32 %s238, 1
      %p242 = scmp.eq.s32.totalorder %s31, 1
      %p243 = scmp.ne.s32.totalorder %s238, %s240
      %p244 = scmp.eq.s32.totalorder %s31, 0
      %p245 = por %p243, %p244
      %p246 = scmp.ne.s32.totalorder %s238, %s240
      %p247 = scmp.eq.s32.totalorder %s36, 1
      %p248 = por %p246, %p247
      %p249 = scmp.ne.s32.totalorder %s240, %s241
      %p250 = scmp.eq.s32.totalorder %s36, 0
      %p251 = por %p249, %p250
      %p252 = scmp.ne.s32.totalorder %s240, %s241
      %p253 = scmp.eq.s32.totalorder %s37, 1
      %p254 = por %p252, %p253
      %p256 = scmp.ne.s32.totalorder %s241, %s255
      %p257 = scmp.eq.s32.totalorder %s37, 0
      %p258 = por %p256, %p257
      %s260 = sadd.s32 %s259, 1
      %p263 = scmp.eq.s32.totalorder %s31, 1
      %p264 = scmp.ne.s32.totalorder %s259, %s261
      %p265 = scmp.eq.s32.totalorder %s31, 0
      %p266 = por %p264, %p265
      %p267 = scmp.ne.s32.totalorder %s259, %s261
      %p268 = scmp.eq.s32.totalorder %s36, 1
      %p269 = por %p267, %p268
      %p270 = scmp.ne.s32.totalorder %s261, %s262
      %p271 = scmp.eq.s32.totalorder %s36, 0
      %p272 = por %p270, %p271
      %p273 = scmp.ne.s32.totalorder %s261, %s262
      %p274 = scmp.eq.s32.totalorder %s37, 1
      %p275 = por %p273, %p274
      %p277 = scmp.ne.s32.totalorder %s262, %s276
      %p278 = scmp.eq.s32.totalorder %s37, 0
      %p279 = por %p277, %p278
      %s281 = sadd.s32 %s280, 1
      %p284 = scmp.eq.s32.totalorder %s31, 1
      %p285 = scmp.ne.s32.totalorder %s280, %s282
      %p286 = scmp.eq.s32.totalorder %s31, 0
      %p287 = por %p285, %p286
      %p288 = scmp.ne.s32.totalorder %s280, %s282
      %p289 = scmp.eq.s32.totalorder %s36, 1
      %p290 = por %p288, %p289
      %p291 = scmp.ne.s32.totalorder %s282, %s283
      %p292 = scmp.eq.s32.totalorder %s36, 0
      %p293 = por %p291, %p292
      %p294 = scmp.ne.s32.totalorder %s282, %s283
      %p295 = scmp.eq.s32.totalorder %s37, 1
      %p296 = por %p294, %p295
      %p298 = scmp.ne.s32.totalorder %s283, %s297
      %p299 = scmp.eq.s32.totalorder %s37, 0
      %p300 = por %p298, %p299
      %s302 = sadd.s32 %s301, 1
      %p305 = scmp.eq.s32.totalorder %s31, 1
      %p306 = scmp.ne.s32.totalorder %s301, %s303
      %p307 = scmp.eq.s32.totalorder %s31, 0
      %p308 = por %p306, %p307
      %p309 = scmp.ne.s32.totalorder %s301, %s303
      %p310 = scmp.eq.s32.totalorder %s36, 1
      %p311 = por %p309, %p310
      %p312 = scmp.ne.s32.totalorder %s303, %s304
      %p313 = scmp.eq.s32.totalorder %s36, 0
      %p314 = por %p312, %p313
      %p315 = scmp.ne.s32.totalorder %s303, %s304
      %p316 = scmp.eq.s32.totalorder %s37, 1
      %p317 = por %p315, %p316
      %p319 = scmp.ne.s32.totalorder %s304, %s318
      %p320 = scmp.eq.s32.totalorder %s37, 0
      %p321 = por %p319, %p320
      %s323 = sadd.s32 %s322, 1
      %p326 = scmp.eq.s32.totalorder %s31, 1
      %p327 = scmp.ne.s32.totalorder %s322, %s324
      %p328 = scmp.eq.s32.totalorder %s31, 0
      %p329 = por %p327, %p328
      %p330 = scmp.ne.s32.totalorder %s322, %s324
      %p331 = scmp.eq.s32.totalorder %s36, 1
      %p332 = por %p330, %p331
      %p333 = scmp.ne.s32.totalorder %s324, %s325
      %p334 = scmp.eq.s32.totalorder %s36, 0
      %p335 = por %p333, %p334
      %p336 = scmp.ne.s32.totalorder %s324, %s325
      %p337 = scmp.eq.s32.totalorder %s37, 1
      %p338 = por %p336, %p337
      %p340 = scmp.ne.s32.totalorder %s325, %s339
      %p341 = scmp.eq.s32.totalorder %s37, 0
      %p342 = por %p340, %p341
      %s344 = sadd.s32 %s343, 1
      %p347 = scmp.eq.s32.totalorder %s31, 1
      %p348 = scmp.ne.s32.totalorder %s343, %s345
      %p349 = scmp.eq.s32.totalorder %s31, 0
      %p350 = por %p348, %p349
      %p351 = scmp.ne.s32.totalorder %s343, %s345
      %p352 = scmp.eq.s32.totalorder %s36, 1
      %p353 = por %p351, %p352
      %p354 = scmp.ne.s32.totalorder %s345, %s346
      %p355 = scmp.eq.s32.totalorder %s36, 0
      %p356 = por %p354, %p355
      %p357 = scmp.ne.s32.totalorder %s345, %s346
      %p358 = scmp.eq.s32.totalorder %s37, 1
      %p359 = por %p357, %p358
      %p361 = scmp.ne.s32.totalorder %s346, %s360
      %p362 = scmp.eq.s32.totalorder %s37, 0
      %p363 = por %p361, %p362
      %s365 = sadd.s32 %s364, 1
      %p368 = scmp.eq.s32.totalorder %s31, 1
      %p369 = scmp.ne.s32.totalorder %s364, %s366
      %p370 = scmp.eq.s32.totalorder %s31, 0
      %p371 = por %p369, %p370
      %p372 = scmp.ne.s32.totalorder %s364, %s366
      %p373 = scmp.eq.s32.totalorder %s36, 1
      %p374 = por %p372, %p373
      %p375 = scmp.ne.s32.totalorder %s366, %s367
      %p376 = scmp.eq.s32.totalorder %s36, 0
      %p377 = por %p375, %p376
      %p378 = scmp.ne.s32.totalorder %s366, %s367
      %p379 = scmp.eq.s32.totalorder %s37, 1
      %p380 = por %p378, %p379
      %p382 = scmp.ne.s32.totalorder %s367, %s381
      %p383 = scmp.eq.s32.totalorder %s37, 0
      %p384 = por %p382, %p383
      %s386 = sadd.s32 %s385, 1
      %p389 = scmp.eq.s32.totalorder %s31, 1
      %p390 = scmp.ne.s32.totalorder %s385, %s387
      %p391 = scmp.eq.s32.totalorder %s31, 0
      %p392 = por %p390, %p391
      %p393 = scmp.ne.s32.totalorder %s385, %s387
      %p394 = scmp.eq.s32.totalorder %s36, 1
      %p395 = por %p393, %p394
      %p396 = scmp.ne.s32.totalorder %s387, %s388
      %p397 = scmp.eq.s32.totalorder %s36, 0
      %p398 = por %p396, %p397
      %p399 = scmp.ne.s32.totalorder %s387, %s388
      %p400 = scmp.eq.s32.totalorder %s37, 1
      %p401 = por %p399, %p400
      %p403 = scmp.ne.s32.totalorder %s388, %s402
      %p404 = scmp.eq.s32.totalorder %s37, 0
      %p405 = por %p403, %p404
      %s407 = sadd.s32 %s406, 1
      %p410 = scmp.eq.s32.totalorder %s31, 1
      %p411 = scmp.ne.s32.totalorder %s406, %s408
      %p412 = scmp.eq.s32.totalorder %s31, 0
      %p413 = por %p411, %p412
      %p414 = scmp.ne.s32.totalorder %s406, %s408
      %p415 = scmp.eq.s32.totalorder %s36, 1
      %p416 = por %p414, %p415
      %p417 = scmp.ne.s32.totalorder %s408, %s409
      %p418 = scmp.eq.s32.totalorder %s36, 0
      %p419 = por %p417, %p418
      %p420 = scmp.ne.s32.totalorder %s408, %s409
      %p421 = scmp.eq.s32.totalorder %s37, 1
      %p422 = por %p420, %p421
      %p424 = scmp.ne.s32.totalorder %s409, %s423
      %p425 = scmp.eq.s32.totalorder %s37, 0
      %p426 = por %p424, %p425
      %s428 = sadd.s32 %s427, 1
      %p431 = scmp.eq.s32.totalorder %s31, 1
      %p432 = scmp.ne.s32.totalorder %s427, %s429
      %p433 = scmp.eq.s32.totalorder %s31, 0
      %p434 = por %p432, %p433
      %p435 = scmp.ne.s32.totalorder %s427, %s429
      %p436 = scmp.eq.s32.totalorder %s36, 1
      %p437 = por %p435, %p436
      %p438 = scmp.ne.s32.totalorder %s429, %s430
      %p439 = scmp.eq.s32.totalorder %s36, 0
      %p440 = por %p438, %p439
      %p441 = scmp.ne.s32.totalorder %s429, %s430
      %p442 = scmp.eq.s32.totalorder %s37, 1
      %p443 = por %p441, %p442
      %p445 = scmp.ne.s32.totalorder %s430, %s444
      %p446 = scmp.eq.s32.totalorder %s37, 0
      %p447 = por %p445, %p446
      %s449 = sadd.s32 %s448, 1
      %p452 = scmp.eq.s32.totalorder %s31, 1
      %p453 = scmp.ne.s32.totalorder %s448, %s450
      %p454 = scmp.eq.s32.totalorder %s31, 0
      %p455 = por %p453, %p454
      %p456 = scmp.ne.s32.totalorder %s448, %s450
      %p457 = scmp.eq.s32.totalorder %s36, 1
      %p458 = por %p456, %p457
      %p459 = scmp.ne.s32.totalorder %s450, %s451
      %p460 = scmp.eq.s32.totalorder %s36, 0
      %p461 = por %p459, %p460
      %p462 = scmp.ne.s32.totalorder %s450, %s451
      %p463 = scmp.eq.s32.totalorder %s37, 1
      %p464 = por %p462, %p463
      %p466 = scmp.ne.s32.totalorder %s451, %s465
      %p467 = scmp.eq.s32.totalorder %s37, 0
      %p468 = por %p466, %p467
      %s470 = sadd.s32 %s469, 1
      %p473 = scmp.eq.s32.totalorder %s31, 1
      %p474 = scmp.ne.s32.totalorder %s469, %s471
      %p475 = scmp.eq.s32.totalorder %s31, 0
      %p476 = por %p474, %p475
      %p477 = scmp.ne.s32.totalorder %s469, %s471
      %p478 = scmp.eq.s32.totalorder %s36, 1
      %p479 = por %p477, %p478
      %p480 = scmp.ne.s32.totalorder %s471, %s472
      %p481 = scmp.eq.s32.totalorder %s36, 0
      %p482 = por %p480, %p481
      %p483 = scmp.ne.s32.totalorder %s471, %s472
      %p484 = scmp.eq.s32.totalorder %s37, 1
      %p485 = por %p483, %p484
      %p487 = scmp.ne.s32.totalorder %s472, %s486
      %p488 = scmp.eq.s32.totalorder %s37, 0
      %p489 = por %p487, %p488
      %s491 = sadd.s32 %s490, 1
      %p494 = scmp.eq.s32.totalorder %s31, 1
      %p495 = scmp.ne.s32.totalorder %s490, %s492
      %p496 = scmp.eq.s32.totalorder %s31, 0
      %p497 = por %p495, %p496
      %p498 = scmp.ne.s32.totalorder %s490, %s492
      %p499 = scmp.eq.s32.totalorder %s36, 1
      %p500 = por %p498, %p499
      %p501 = scmp.ne.s32.totalorder %s492, %s493
      %p502 = scmp.eq.s32.totalorder %s36, 0
      %p503 = por %p501, %p502
      %p504 = scmp.ne.s32.totalorder %s492, %s493
      %p505 = scmp.eq.s32.totalorder %s37, 1
      %p506 = por %p504, %p505
      %p508 = scmp.ne.s32.totalorder %s493, %s507
      %p509 = scmp.eq.s32.totalorder %s37, 0
      %p510 = por %p508, %p509
      %s511 = ssub.s32 %s31, %s38
      %p512 = scmp.eq.s32.totalorder %s511, 0
      %s514 = sadd.s32 %s513, 1
      %s515 = scalar_select %p512, %s513, %s514
      %p518 = pneg %p512
      %p519 = scmp.eq.s32.totalorder %s31, 1
      %p520 = por %p518, %p519
      %p521 = scmp.ne.s32.totalorder %s513, %s516
      %p522 = scmp.eq.s32.totalorder %s31, 0
      %p523 = por %p521, %p522
      %p524 = scmp.ne.s32.totalorder %s513, %s516
      %p525 = scmp.eq.s32.totalorder %s36, 1
      %p526 = por %p524, %p525
      %p527 = scmp.ne.s32.totalorder %s516, %s517
      %p528 = scmp.eq.s32.totalorder %s36, 0
      %p529 = por %p527, %p528
      %p530 = scmp.ne.s32.totalorder %s516, %s517
      %p531 = scmp.eq.s32.totalorder %s37, 1
      %p532 = por %p530, %p531
      %p534 = scmp.ne.s32.totalorder %s517, %s533
      %p535 = scmp.eq.s32.totalorder %s37, 0
      %p536 = por %p534, %p535
      %p537 = scmp.le.s32.totalorder 1, %s31
      %p538 = scmp.lt.s32.totalorder %s31, 3
      %p539 = pnand %p537, %p538
      %p540 = pneg %p539
      // Predicated region
      $region9: #{transformer_autoencoder_separator.17} parent=5 // pred_check
        _
      $region10: #{transformer_autoencoder_separator.17} parent=5 // pred_check_branch
        %542 = sbr.rel (%p539) target = $region12
      $region11: #{transformer_autoencoder_separator.17} parent=5 // pred_region
        %s543 = ssub.s32 %s31, 1
        // Predicated region
        $region13: #{transformer_autoencoder_separator.17} parent=11 // pred_check
          %p544 = pneg %p104
        $region14: #{transformer_autoencoder_separator.17} parent=11 // pred_check_branch
          %546 = sbr.rel (%p544) target = $region16
        $region15: #{transformer_autoencoder_separator.17} parent=11 // pred_region
          _
        $region16: #{transformer_autoencoder_separator.17} parent=11 // pred_fallthru
          _
        // Predicated region
        $region17: #{transformer_autoencoder_separator.17} parent=11 // pred_check
          %p547 = pneg %p125
        $region18: #{transformer_autoencoder_separator.17} parent=11 // pred_check_branch
          %549 = sbr.rel (%p547) target = $region20
        $region19: #{transformer_autoencoder_separator.17} parent=11 // pred_region
          _
        $region20: #{transformer_autoencoder_separator.17} parent=11 // pred_fallthru
          _
        // Predicated region
        $region21: #{transformer_autoencoder_separator.17} parent=11 // pred_check
          %p550 = pneg %p146
        $region22: #{transformer_autoencoder_separator.17} parent=11 // pred_check_branch
          %552 = sbr.rel (%p550) target = $region24
        $region23: #{transformer_autoencoder_separator.17} parent=11 // pred_region
          _
        $region24: #{transformer_autoencoder_separator.17} parent=11 // pred_fallthru
          _
        // Predicated region
        $region25: #{transformer_autoencoder_separator.17} parent=11 // pred_check
          %p553 = pneg %p167
        $region26: #{transformer_autoencoder_separator.17} parent=11 // pred_check_branch
          %555 = sbr.rel (%p553) target = $region28
        $region27: #{transformer_autoencoder_separator.17} parent=11 // pred_region
          _
        $region28: #{transformer_autoencoder_separator.17} parent=11 // pred_fallthru
          _
        // Predicated region
        $region29: #{transformer_autoencoder_separator.17} parent=11 // pred_check
          %p556 = pneg %p188
        $region30: #{transformer_autoencoder_separator.17} parent=11 // pred_check_branch
          %558 = sbr.rel (%p556) target = $region32
        $region31: #{transformer_autoencoder_separator.17} parent=11 // pred_region
          _
        $region32: #{transformer_autoencoder_separator.17} parent=11 // pred_fallthru
          _
        // Predicated region
        $region33: #{transformer_autoencoder_separator.17} parent=11 // pred_check
          %p559 = pneg %p209
        $region34: #{transformer_autoencoder_separator.17} parent=11 // pred_check_branch
          %561 = sbr.rel (%p559) target = $region36
        $region35: #{transformer_autoencoder_separator.17} parent=11 // pred_region
          _
        $region36: #{transformer_autoencoder_separator.17} parent=11 // pred_fallthru
          _
        // Predicated region
        $region37: #{transformer_autoencoder_separator.17} parent=11 // pred_check
          %p562 = pneg %p230
        $region38: #{transformer_autoencoder_separator.17} parent=11 // pred_check_branch
          %564 = sbr.rel (%p562) target = $region40
        $region39: #{transformer_autoencoder_separator.17} parent=11 // pred_region
          _
        $region40: #{transformer_autoencoder_separator.17} parent=11 // pred_fallthru
          _
        // Predicated region
        $region41: #{transformer_autoencoder_separator.17} parent=11 // pred_check
          %p565 = pneg %p251
        $region42: #{transformer_autoencoder_separator.17} parent=11 // pred_check_branch
          %567 = sbr.rel (%p565) target = $region44
        $region43: #{transformer_autoencoder_separator.17} parent=11 // pred_region
          _
        $region44: #{transformer_autoencoder_separator.17} parent=11 // pred_fallthru
          _
        // Predicated region
        $region45: #{transformer_autoencoder_separator.17} parent=11 // pred_check
          %p568 = pneg %p272
        $region46: #{transformer_autoencoder_separator.17} parent=11 // pred_check_branch
          %570 = sbr.rel (%p568) target = $region48
        $region47: #{transformer_autoencoder_separator.17} parent=11 // pred_region
          _
        $region48: #{transformer_autoencoder_separator.17} parent=11 // pred_fallthru
          _
        // Predicated region
        $region49: #{transformer_autoencoder_separator.17} parent=11 // pred_check
          %p571 = pneg %p293
        $region50: #{transformer_autoencoder_separator.17} parent=11 // pred_check_branch
          %573 = sbr.rel (%p571) target = $region52
        $region51: #{transformer_autoencoder_separator.17} parent=11 // pred_region
          _
        $region52: #{transformer_autoencoder_separator.17} parent=11 // pred_fallthru
          _
        // Predicated region
        $region53: #{transformer_autoencoder_separator.17} parent=11 // pred_check
          %p574 = pneg %p314
        $region54: #{transformer_autoencoder_separator.17} parent=11 // pred_check_branch
          %576 = sbr.rel (%p574) target = $region56
        $region55: #{transformer_autoencoder_separator.17} parent=11 // pred_region
          _
        $region56: #{transformer_autoencoder_separator.17} parent=11 // pred_fallthru
          _
        // Predicated region
        $region57: #{transformer_autoencoder_separator.17} parent=11 // pred_check
          %p577 = pneg %p335
        $region58: #{transformer_autoencoder_separator.17} parent=11 // pred_check_branch
          %579 = sbr.rel (%p577) target = $region60
        $region59: #{transformer_autoencoder_separator.17} parent=11 // pred_region
          _
        $region60: #{transformer_autoencoder_separator.17} parent=11 // pred_fallthru
          _
        // Predicated region
        $region61: #{transformer_autoencoder_separator.17} parent=11 // pred_check
          %p580 = pneg %p356
        $region62: #{transformer_autoencoder_separator.17} parent=11 // pred_check_branch
          %582 = sbr.rel (%p580) target = $region64
        $region63: #{transformer_autoencoder_separator.17} parent=11 // pred_region
          _
        $region64: #{transformer_autoencoder_separator.17} parent=11 // pred_fallthru
          _
        // Predicated region
        $region65: #{transformer_autoencoder_separator.17} parent=11 // pred_check
          %p583 = pneg %p377
        $region66: #{transformer_autoencoder_separator.17} parent=11 // pred_check_branch
          %585 = sbr.rel (%p583) target = $region68
        $region67: #{transformer_autoencoder_separator.17} parent=11 // pred_region
          %s587 = ssub.s32 16, 16
          %588 = vsyncadd [#allocation3], %s587
          %s590 = sshll.u32 [#allocation2], 4
          %s591 = int_to_ptr.vmem [resolvable:$true] %s590
          %593 = dma.hbm_to_vmem [thread:$0]  %s15, 16, %s591, [#allocation3]
        $region68: #{transformer_autoencoder_separator.17} parent=11 // pred_fallthru
          _
        // Predicated region
        $region69: #{transformer_autoencoder_separator.17} parent=11 // pred_check
          %p594 = pneg %p398
        $region70: #{transformer_autoencoder_separator.17} parent=11 // pred_check_branch
          %596 = sbr.rel (%p594) target = $region72
        $region71: #{transformer_autoencoder_separator.17} parent=11 // pred_region
          _
        $region72: #{transformer_autoencoder_separator.17} parent=11 // pred_fallthru
          _
        // Predicated region
        $region73: #{transformer_autoencoder_separator.17} parent=11 // pred_check
          %p597 = pneg %p419
        $region74: #{transformer_autoencoder_separator.17} parent=11 // pred_check_branch
          %599 = sbr.rel (%p597) target = $region76
        $region75: #{transformer_autoencoder_separator.17} parent=11 // pred_region
          %s601 = ssub.s32 16, 16
          %602 = vsyncadd [#allocation5], %s601
          %s604 = sshll.u32 [#allocation4], 4
          %s605 = int_to_ptr.vmem [resolvable:$true] %s604
          %607 = dma.hbm_to_vmem [thread:$0]  %s17, 16, %s605, [#allocation5]
        $region76: #{transformer_autoencoder_separator.17} parent=11 // pred_fallthru
          _
        // Predicated region
        $region77: #{transformer_autoencoder_separator.17} parent=11 // pred_check
          %p608 = pneg %p440
        $region78: #{transformer_autoencoder_separator.17} parent=11 // pred_check_branch
          %610 = sbr.rel (%p608) target = $region80
        $region79: #{transformer_autoencoder_separator.17} parent=11 // pred_region
          _
        $region80: #{transformer_autoencoder_separator.17} parent=11 // pred_fallthru
          _
        // Predicated region
        $region81: #{transformer_autoencoder_separator.17} parent=11 // pred_check
          %p611 = pneg %p461
        $region82: #{transformer_autoencoder_separator.17} parent=11 // pred_check_branch
          %613 = sbr.rel (%p611) target = $region84
        $region83: #{transformer_autoencoder_separator.17} parent=11 // pred_region
          %s615 = ssub.s32 16, 16
          %616 = vsyncadd [#allocation5], %s615
          %s618 = sshll.u32 [#allocation6], 4
          %s619 = int_to_ptr.vmem [resolvable:$true] %s618
          %621 = dma.hbm_to_vmem [thread:$0]  %s19, 16, %s619, [#allocation5]
        $region84: #{transformer_autoencoder_separator.17} parent=11 // pred_fallthru
          _
        // Predicated region
        $region85: #{transformer_autoencoder_separator.17} parent=11 // pred_check
          %p622 = pneg %p482
        $region86: #{transformer_autoencoder_separator.17} parent=11 // pred_check_branch
          %624 = sbr.rel (%p622) target = $region88
        $region87: #{transformer_autoencoder_separator.17} parent=11 // pred_region
          %s626 = ssub.s32 16, 16
          %627 = vsyncadd [#allocation8], %s626
          %s629 = sshll.u32 [#allocation7], 4
          %s630 = int_to_ptr.vmem [resolvable:$true] %s629
          %632 = dma.hbm_to_vmem [thread:$0]  %s20, 16, %s630, [#allocation8]
        $region88: #{transformer_autoencoder_separator.17} parent=11 // pred_fallthru
          _
        // Predicated region
        $region89: #{transformer_autoencoder_separator.17} parent=11 // pred_check
          %p633 = pneg %p503
        $region90: #{transformer_autoencoder_separator.17} parent=11 // pred_check_branch
          %635 = sbr.rel (%p633) target = $region92
        $region91: #{transformer_autoencoder_separator.17} parent=11 // pred_region
          %s637 = ssub.s32 16, 16
          %638 = vsyncadd [#allocation8], %s637
          %s640 = sshll.u32 [#allocation9], 4
          %s641 = int_to_ptr.vmem [resolvable:$true] %s640
          %643 = dma.hbm_to_vmem [thread:$0]  %s21, 16, %s641, [#allocation8]
        $region92: #{transformer_autoencoder_separator.17} parent=11 // pred_fallthru
          _
      $region12: #{transformer_autoencoder_separator.17} parent=5 // pred_fallthru
        _
      %p644 = scmp.lt.s32.totalorder %s31, 2
      // Predicated region
      $region93: #{transformer_autoencoder_separator.17} parent=5 // pred_check
        %p645 = pneg %p644
      $region94: #{transformer_autoencoder_separator.17} parent=5 // pred_check_branch
        %647 = sbr.rel (%p645) target = $region96
      $region95: #{transformer_autoencoder_separator.17} parent=5 // pred_region
        // Predicated region
        $region97: #{transformer_autoencoder_separator.17} parent=95 // pred_check
          %p648 = pneg %p51
        $region98: #{transformer_autoencoder_separator.17} parent=95 // pred_check_branch
          %650 = sbr.rel (%p648) target = $region100
        $region99: #{transformer_autoencoder_separator.17} parent=95 // pred_region
          %p651 = scmp.lt.s32.totalorder %s31, 1
          %s652 = scalar_select %p651, %s31, 1
          %s653 = smul.addr %s652, 8
          %s654 = scalar_lea.vmem %s0, %s653
        $region100: #{transformer_autoencoder_separator.17} parent=95 // pred_fallthru
          _
        // Predicated region
        $region101: #{transformer_autoencoder_separator.17} parent=95 // pred_check
          %p655 = pneg %p77
        $region102: #{transformer_autoencoder_separator.17} parent=95 // pred_check_branch
          %657 = sbr.rel (%p655) target = $region104
        $region103: #{transformer_autoencoder_separator.17} parent=95 // pred_region
          %p658 = scmp.lt.s32.totalorder %s31, 1
          %s659 = scalar_select %p658, %s31, 1
          %s660 = smul.addr %s659, 8
          %s661 = scalar_lea.vmem %s1, %s660
        $region104: #{transformer_autoencoder_separator.17} parent=95 // pred_fallthru
          _
      $region96: #{transformer_autoencoder_separator.17} parent=5 // pred_fallthru
        _
      %p662 = scmp.le.s32.totalorder 1, %s31
      %p663 = scmp.lt.s32.totalorder %s31, 3
      %p664 = pnand %p662, %p663
      %p665 = pneg %p664
      // Predicated region
      $region105: #{transformer_autoencoder_separator.17} parent=5 // pred_check
        _
      $region106: #{transformer_autoencoder_separator.17} parent=5 // pred_check_branch
        %667 = sbr.rel (%p664) target = $region108
      $region107: #{transformer_autoencoder_separator.17} parent=5 // pred_region
        %s668 = ssub.s32 %s31, 1
        // Predicated region
        $region109: #{transformer_autoencoder_separator.17} parent=107 // pred_check
          %p669 = pneg %p377
        $region110: #{transformer_autoencoder_separator.17} parent=107 // pred_check_branch
          %671 = sbr.rel (%p669) target = $region112
        $region111: #{transformer_autoencoder_separator.17} parent=107 // pred_region
          %672 = dma.done [#allocation3], 16
        $region112: #{transformer_autoencoder_separator.17} parent=107 // pred_fallthru
          _
        // Predicated region
        $region113: #{transformer_autoencoder_separator.17} parent=107 // pred_check
          %p673 = pneg %p419
        $region114: #{transformer_autoencoder_separator.17} parent=107 // pred_check_branch
          %675 = sbr.rel (%p673) target = $region116
        $region115: #{transformer_autoencoder_separator.17} parent=107 // pred_region
          %676 = dma.done [#allocation5], 16
        $region116: #{transformer_autoencoder_separator.17} parent=107 // pred_fallthru
          _
        // Predicated region
        $region117: #{transformer_autoencoder_separator.17} parent=107 // pred_check
          %p677 = pneg %p461
        $region118: #{transformer_autoencoder_separator.17} parent=107 // pred_check_branch
          %679 = sbr.rel (%p677) target = $region120
        $region119: #{transformer_autoencoder_separator.17} parent=107 // pred_region
          %680 = dma.done [#allocation5], 16
        $region120: #{transformer_autoencoder_separator.17} parent=107 // pred_fallthru
          _
        // Predicated region
        $region121: #{transformer_autoencoder_separator.17} parent=107 // pred_check
          %p681 = pneg %p482
        $region122: #{transformer_autoencoder_separator.17} parent=107 // pred_check_branch
          %683 = sbr.rel (%p681) target = $region124
        $region123: #{transformer_autoencoder_separator.17} parent=107 // pred_region
          %684 = dma.done [#allocation8], 16
        $region124: #{transformer_autoencoder_separator.17} parent=107 // pred_fallthru
          _
        // Predicated region
        $region125: #{transformer_autoencoder_separator.17} parent=107 // pred_check
          %p685 = pneg %p503
        $region126: #{transformer_autoencoder_separator.17} parent=107 // pred_check_branch
          %687 = sbr.rel (%p685) target = $region128
        $region127: #{transformer_autoencoder_separator.17} parent=107 // pred_region
          %688 = dma.done [#allocation8], 16
        $region128: #{transformer_autoencoder_separator.17} parent=107 // pred_fallthru
          _
        %p689 = scmp.lt.s32.totalorder %s36, 1
        %s690 = scalar_select %p689, %s36, 1
        %s691 = smul.addr %s690, 8
        %s692 = scalar_lea.vmem %s0, %s691
        %p693 = pneg %p57
        %p694 = pneg %p54
        %p695 = scmp.lt.s32.totalorder %s36, 1
        %s696 = scalar_select %p695, %s36, 1
        %s697 = smul.addr %s696, 8
        %s698 = scalar_lea.vmem %s1, %s697
        %p699 = pneg %p83
        %p700 = pneg %p80
        %p701 = pneg %p104
        %p702 = pneg %p101
        %p703 = pneg %p125
        %p704 = pneg %p122
        %p705 = pneg %p146
        %p706 = pneg %p143
        %p707 = pneg %p167
        %p708 = pneg %p164
        %p709 = pneg %p188
        %p710 = pneg %p185
        %p711 = pneg %p209
        %p712 = pneg %p206
        %p713 = pneg %p230
        %p714 = pneg %p227
        %p715 = pneg %p251
        %p716 = pneg %p248
        %p717 = pneg %p272
        %p718 = pneg %p269
        %p719 = pneg %p293
        %p720 = pneg %p290
        %p721 = pneg %p314
        %p722 = pneg %p311
        %p723 = pneg %p335
        %p724 = pneg %p332
        %p725 = pneg %p356
        %p726 = pneg %p353
        %p727 = pneg %p377
        %p728 = pneg %p374
        %p729 = pneg %p398
        %p730 = pneg %p395
        %p731 = pneg %p419
        %p732 = pneg %p416
        %p733 = pneg %p440
        %p734 = pneg %p437
        %p735 = pneg %p461
        %p736 = pneg %p458
        %p737 = pneg %p482
        %p738 = pneg %p479
        %p739 = pneg %p503
        %p740 = pneg %p500
        %p741 = pneg %p529
        %p742 = pneg %p526
        %p743 = scmp.lt.s32.totalorder %s36, 1
        %s744 = scalar_select %p743, %s36, 1
        %s745 = smul.addr %s744, 8
        %s746 = scalar_lea.vmem %s22, %s745
        %p747 = scmp.lt.s32.totalorder %s36, 1
        %s748 = scalar_select %p747, %s36, 1
        %s749 = smul.addr %s748, 8
        %s750 = scalar_lea.vmem %s0, %s749
        %p751 = scmp.lt.s32.totalorder %s36, 1
        %s752 = scalar_select %p751, %s36, 1
        %s753 = smul.addr %s752, 8
        %s754 = scalar_lea.vmem %s1, %s753
        %p755 = scmp.lt.s32.totalorder %s36, 1
        %s756 = scalar_select %p755, %s36, 1
        %s757 = smul.addr %s756, 8
        %s758 = scalar_lea.vmem %s22, %s757
        %v760 = vld [vmem:[%s750] sm:$0xff]
        %v761 = vld [vmem:[%s754] sm:$0xff]
        %v762 = vpack.c.bf16 %v760, %v760
        %v763 = vld [vmem:[%s2] sm:$0xf]
        %v764 = vld [vmem:[%s2 + $0x4] sm:$0xf]
        %v765 = vld [vmem:[%s2 + $0x8] sm:$0xf]
        %v766 = vld [vmem:[%s2 + $0xc] sm:$0xf]
        %v767 = vld [vmem:[%s3] sm:$0x1]
        %v769 = vlaneseq
        %v770 = vshrl.u32 %v769, 7
        %v771 = vsub.s32 0, %v770
        %v772 = vrot.slane %v767, %v771
        %v778 = vunpack.c.l.b16 %v763
        %v779 = vunpack.c.l.b16 %v764
        %v780 = vunpack.c.l.b16 %v765
        %v781 = vunpack.c.l.b16 %v766
        %v782 = vpack.c.b16 %v779, %v778
        %v783 = vpack.c.b16 %v781, %v780
        %vm786 = vcmask 261120
        %v788 = vsel %vm786, %v762, 0
        %790 = vmatprep.subr.bf16.mxu0 0
        %791 = vmatpush1.bf16.msra.mxu0 %v782
        %792 = vmatprep.subr.bf16.mxu0 0
        %793 = vmatpush1.bf16.msra.mxu0 %v783
        %794 = vmatprep.subr.bf16.mxu0 0
        %795 = vmatpush1.bf16.msra.mxu0 0
        %796 = vmatprep.subr.bf16.mxu0 0
        %797 = vmatpush1.bf16.msra.mxu0 0
        %798 = vmatprep.subr.bf16.mxu0 0
        %799 = vmatpush1.bf16.msra.mxu0 0
        %800 = vmatprep.subr.bf16.mxu0 0
        %801 = vmatpush1.bf16.msra.mxu0 0
        %802 = vmatprep.subr.bf16.mxu0 0
        %803 = vmatpush1.bf16.msra.mxu0 0
        %804 = vmatprep.subr.bf16.mxu0 0
        %805 = vmatpush1.bf16.msra.mxu0 0
        %806 = vmatprep.subr.bf16.mxu0 0
        %807 = vmatpush1.bf16.msra.mxu0 0
        %808 = vmatprep.subr.bf16.mxu0 0
        %809 = vmatpush1.bf16.msra.mxu0 0
        %810 = vmatprep.subr.bf16.mxu0 0
        %811 = vmatpush1.bf16.msra.mxu0 0
        %812 = vmatprep.subr.bf16.mxu0 0
        %813 = vmatpush1.bf16.msra.mxu0 0
        %814 = vmatprep.subr.bf16.mxu0 0
        %815 = vmatpush1.bf16.msra.mxu0 0
        %816 = vmatprep.subr.bf16.mxu0 0
        %817 = vmatpush1.bf16.msra.mxu0 0
        %818 = vmatprep.subr.bf16.mxu0 0
        %819 = vmatpush1.bf16.msra.mxu0 0
        %820 = vmatprep.subr.bf16.mxu0 0
        %821 = vmatpush1.bf16.msra.mxu0 0
        %822 = vmatprep.mubr.bf16.mxu0 0
        %823 = vmatmul.mubr.bf16.gmra.mrb[0].mxu0 %v788
        %v824 = vpop.f32.mrb[0].mxu0
        %v825 = vadd.f32 %v772, %v824
        %v826 = vpop.f32.mrb[0].mxu0
        %v827 = vpop.f32.mrb[0].mxu0
        %v828 = vpop.f32.mrb[0].mxu0
        %829 = vdwg.mxu0
        %v830 = vpack.c.bf16 %v825, %v825
        %832 = vrot.lane.b32.xlu0 %v830, 96
        %v833 = vpop.permute.xlu0 %832
        %v835 = vsel %vm786, %v830, 0
        %v838 = vsel %vm786, %v833, 0
        %840 = vmatprep.subr.bf16.mxu0 0
        %841 = vmatpush1.bf16.xpose.msra.mxu0 %v838
        %842 = vmatprep.subr.bf16.mxu0 0
        %843 = vmatpush1.bf16.xpose.msra.mxu0 0
        %844 = vmatprep.subr.bf16.mxu0 0
        %845 = vmatpush1.bf16.xpose.msra.mxu0 0
        %846 = vmatprep.subr.bf16.mxu0 0
        %847 = vmatpush1.bf16.xpose.msra.mxu0 0
        %848 = vmatprep.subr.bf16.mxu0 0
        %849 = vmatpush1.bf16.xpose.msra.mxu0 0
        %850 = vmatprep.subr.bf16.mxu0 0
        %851 = vmatpush1.bf16.xpose.msra.mxu0 0
        %852 = vmatprep.subr.bf16.mxu0 0
        %853 = vmatpush1.bf16.xpose.msra.mxu0 0
        %854 = vmatprep.subr.bf16.mxu0 0
        %855 = vmatpush1.bf16.xpose.msra.mxu0 0
        %856 = vmatprep.subr.bf16.mxu0 0
        %857 = vmatpush1.bf16.xpose.msra.mxu0 0
        %858 = vmatprep.subr.bf16.mxu0 0
        %859 = vmatpush1.bf16.xpose.msra.mxu0 0
        %860 = vmatprep.subr.bf16.mxu0 0
        %861 = vmatpush1.bf16.xpose.msra.mxu0 0
        %862 = vmatprep.subr.bf16.mxu0 0
        %863 = vmatpush1.bf16.xpose.msra.mxu0 0
        %864 = vmatprep.subr.bf16.mxu0 0
        %865 = vmatpush1.bf16.xpose.msra.mxu0 0
        %866 = vmatprep.subr.bf16.mxu0 0
        %867 = vmatpush1.bf16.xpose.msra.mxu0 0
        %868 = vmatprep.subr.bf16.mxu0 0
        %869 = vmatpush1.bf16.xpose.msra.mxu0 0
        %870 = vmatprep.subr.bf16.mxu0 0
        %871 = vmatpush1.bf16.xpose.msra.mxu0 0
        %872 = vmatprep.mubr.bf16.mxu0 0
        %873 = vmatmul.mubr.bf16.gmra.mrb[0].mxu0 %v835
        %v874 = vpop.f32.mrb[0].mxu0
        %v875 = vadd.f32 0.0, %v874
        %v876 = vpop.f32.mrb[0].mxu0
        %v877 = vpop.f32.mrb[0].mxu0
        %v878 = vpop.f32.mrb[0].mxu0
        %879 = vdwg.mxu0
        %v880 = vmul.f32 %v875, 0.17677669
        %vm881 = vcmask 64512
        %v882 = vsel %vm881, %v880, -inf
        %883 = vmax.xlane.f32.xlu0 %v882
        %v884 = vpop.xlane.xlu0 %883
        %v885 = vsub.f32 %v880, %v884
        %v886 = vmul.f32 %v885, 1.442695
        %v887 = vpow.pop %v886
        %v888 = vsel %vm881, %v887, 0.0
        %889 = vadd.xlane.f32.xlu0 %v888
        %v890 = vpop.xlane.xlu0 %889
        %v891 = vrcp.pop %v890
        %v892 = vmul.f32 %v887, %v891
        %v893 = vpack.c.bf16 %v892, %v892
        %894 = vrot.lane.b32.xlu0 %v830, 64
        %v895 = vpop.permute.xlu0 %894
        %v897 = vsel %vm881, %v893, 0
        %vm899 = vcmask 1043456
        %v901 = vsel %vm899, %v895, 0
        %903 = vmatprep.subr.bf16.mxu0 0
        %904 = vmatpush1.bf16.msra.mxu0 %v901
        %905 = vmatprep.subr.bf16.mxu0 0
        %906 = vmatpush1.bf16.msra.mxu0 0
        %907 = vmatprep.subr.bf16.mxu0 0
        %908 = vmatpush1.bf16.msra.mxu0 0
        %909 = vmatprep.subr.bf16.mxu0 0
        %910 = vmatpush1.bf16.msra.mxu0 0
        %911 = vmatprep.subr.bf16.mxu0 0
        %912 = vmatpush1.bf16.msra.mxu0 0
        %913 = vmatprep.subr.bf16.mxu0 0
        %914 = vmatpush1.bf16.msra.mxu0 0
        %915 = vmatprep.subr.bf16.mxu0 0
        %916 = vmatpush1.bf16.msra.mxu0 0
        %917 = vmatprep.subr.bf16.mxu0 0
        %918 = vmatpush1.bf16.msra.mxu0 0
        %919 = vmatprep.subr.bf16.mxu0 0
        %920 = vmatpush1.bf16.msra.mxu0 0
        %921 = vmatprep.subr.bf16.mxu0 0
        %922 = vmatpush1.bf16.msra.mxu0 0
        %923 = vmatprep.subr.bf16.mxu0 0
        %924 = vmatpush1.bf16.msra.mxu0 0
        %925 = vmatprep.subr.bf16.mxu0 0
        %926 = vmatpush1.bf16.msra.mxu0 0
        %927 = vmatprep.subr.bf16.mxu0 0
        %928 = vmatpush1.bf16.msra.mxu0 0
        %929 = vmatprep.subr.bf16.mxu0 0
        %930 = vmatpush1.bf16.msra.mxu0 0
        %931 = vmatprep.subr.bf16.mxu0 0
        %932 = vmatpush1.bf16.msra.mxu0 0
        %933 = vmatprep.subr.bf16.mxu0 0
        %934 = vmatpush1.bf16.msra.mxu0 0
        %935 = vmatprep.mubr.bf16.mxu0 0
        %936 = vmatmul.mubr.bf16.gmra.mrb[0].mxu0 %v897
        %v937 = vpop.f32.mrb[0].mxu0
        %v938 = vadd.f32 0.0, %v937
        %v939 = vpop.f32.mrb[0].mxu0
        %v940 = vpop.f32.mrb[0].mxu0
        %v941 = vpop.f32.mrb[0].mxu0
        %942 = vdwg.mxu0
        %v943 = vpack.c.bf16 %v938, %v938
        %v944 = vld [vmem:[%s4] sm:$0xf]
        %v945 = vld [vmem:[%s4 + $0x4] sm:$0xf]
        %v946 = vld [vmem:[%s4 + $0x8] sm:$0xf]
        %v947 = vld [vmem:[%s4 + $0xc] sm:$0xf]
        %v948 = vld [vmem:[%s5] sm:$0x1]
        %v950 = vlaneseq
        %v951 = vshrl.u32 %v950, 7
        %v952 = vsub.s32 0, %v951
        %v953 = vrot.slane %v948, %v952
        %v959 = vunpack.c.l.b16 %v944
        %v960 = vunpack.c.l.b16 %v945
        %v961 = vunpack.c.l.b16 %v946
        %v962 = vunpack.c.l.b16 %v947
        %v963 = vpack.c.b16 %v960, %v959
        %v964 = vpack.c.b16 %v962, %v961
        %v968 = vsel %vm786, %v943, 0
        %970 = vmatprep.subr.bf16.mxu0 0
        %971 = vmatpush1.bf16.msra.mxu0 %v963
        %972 = vmatprep.subr.bf16.mxu0 0
        %973 = vmatpush1.bf16.msra.mxu0 %v964
        %974 = vmatprep.subr.bf16.mxu0 0
        %975 = vmatpush1.bf16.msra.mxu0 0
        %976 = vmatprep.subr.bf16.mxu0 0
        %977 = vmatpush1.bf16.msra.mxu0 0
        %978 = vmatprep.subr.bf16.mxu0 0
        %979 = vmatpush1.bf16.msra.mxu0 0
        %980 = vmatprep.subr.bf16.mxu0 0
        %981 = vmatpush1.bf16.msra.mxu0 0
        %982 = vmatprep.subr.bf16.mxu0 0
        %983 = vmatpush1.bf16.msra.mxu0 0
        %984 = vmatprep.subr.bf16.mxu0 0
        %985 = vmatpush1.bf16.msra.mxu0 0
        %986 = vmatprep.subr.bf16.mxu0 0
        %987 = vmatpush1.bf16.msra.mxu0 0
        %988 = vmatprep.subr.bf16.mxu0 0
        %989 = vmatpush1.bf16.msra.mxu0 0
        %990 = vmatprep.subr.bf16.mxu0 0
        %991 = vmatpush1.bf16.msra.mxu0 0
        %992 = vmatprep.subr.bf16.mxu0 0
        %993 = vmatpush1.bf16.msra.mxu0 0
        %994 = vmatprep.subr.bf16.mxu0 0
        %995 = vmatpush1.bf16.msra.mxu0 0
        %996 = vmatprep.subr.bf16.mxu0 0
        %997 = vmatpush1.bf16.msra.mxu0 0
        %998 = vmatprep.subr.bf16.mxu0 0
        %999 = vmatpush1.bf16.msra.mxu0 0
        %1000 = vmatprep.subr.bf16.mxu0 0
        %1001 = vmatpush1.bf16.msra.mxu0 0
        %1002 = vmatprep.mubr.bf16.mxu0 0
        %1003 = vmatmul.mubr.bf16.gmra.mrb[0].mxu0 %v968
        %v1004 = vpop.f32.mrb[0].mxu0
        %v1005 = vadd.f32 %v953, %v1004
        %v1006 = vpop.f32.mrb[0].mxu0
        %v1007 = vpop.f32.mrb[0].mxu0
        %v1008 = vpop.f32.mrb[0].mxu0
        %1009 = vdwg.mxu0
        %v1010 = vadd.f32 %v760, %v1005
        %v1011 = vld [vmem:[%s6] sm:$0x1]
        %v1012 = vld [vmem:[%s7] sm:$0x1]
        %v1013 = vsel %vm786, %v1010, 0.0
        %1014 = vadd.xlane.f32.xlu0 %v1013
        %v1015 = vpop.xlane.xlu0 %1014
        %v1016 = vrcp.pop 32.0
        %v1017 = vmul.f32 %v1015, %v1016
        %v1018 = vsub.f32 %v1010, %v1017
        %v1019 = vmul.f32 %v1018, %v1018
        %v1020 = vsel %vm786, %v1019, 0.0
        %1021 = vadd.xlane.f32.xlu0 %v1020
        %v1022 = vpop.xlane.xlu0 %1021
        %v1023 = vmul.f32 %v1022, %v1016
        %v1024 = vadd.f32 %v1023, 1e-05
        %v1025 = vrsqrt.pop %v1024
        %v1026 = vmul.f32 %v1018, %v1025
        %v1028 = vlaneseq
        %v1029 = vshrl.u32 %v1028, 7
        %v1030 = vsub.s32 0, %v1029
        %v1031 = vrot.slane %v1011, %v1030
        %v1033 = vmul.f32 %v1026, %v1031
        %v1035 = vlaneseq
        %v1036 = vshrl.u32 %v1035, 7
        %v1037 = vsub.s32 0, %v1036
        %v1038 = vrot.slane %v1012, %v1037
        %v1040 = vadd.f32 %v1033, %v1038
        %v1041 = vpack.c.bf16 %v1040, %v1040
        %v1042 = vld [vmem:[%s8] sm:$0xf]
        %v1043 = vld [vmem:[%s8 + $0x4] sm:$0xf]
        %v1044 = vld [vmem:[%s8 + $0x8] sm:$0xf]
        %v1045 = vld [vmem:[%s8 + $0xc] sm:$0xf]
        %v1046 = vld [vmem:[%s9] sm:$0x1]
        %v1048 = vlaneseq
        %v1049 = vshrl.u32 %v1048, 7
        %v1050 = vsub.s32 0, %v1049
        %v1051 = vrot.slane %v1046, %v1050
        %v1057 = vunpack.c.l.b16 %v1042
        %v1058 = vunpack.c.l.b16 %v1043
        %v1059 = vunpack.c.l.b16 %v1044
        %v1060 = vunpack.c.l.b16 %v1045
        %v1061 = vpack.c.b16 %v1058, %v1057
        %v1062 = vpack.c.b16 %v1060, %v1059
        %v1066 = vsel %vm786, %v1041, 0
        %1068 = vmatprep.subr.bf16.mxu0 0
        %1069 = vmatpush1.bf16.msra.mxu0 %v1061
        %1070 = vmatprep.subr.bf16.mxu0 0
        %1071 = vmatpush1.bf16.msra.mxu0 %v1062
        %1072 = vmatprep.subr.bf16.mxu0 0
        %1073 = vmatpush1.bf16.msra.mxu0 0
        %1074 = vmatprep.subr.bf16.mxu0 0
        %1075 = vmatpush1.bf16.msra.mxu0 0
        %1076 = vmatprep.subr.bf16.mxu0 0
        %1077 = vmatpush1.bf16.msra.mxu0 0
        %1078 = vmatprep.subr.bf16.mxu0 0
        %1079 = vmatpush1.bf16.msra.mxu0 0
        %1080 = vmatprep.subr.bf16.mxu0 0
        %1081 = vmatpush1.bf16.msra.mxu0 0
        %1082 = vmatprep.subr.bf16.mxu0 0
        %1083 = vmatpush1.bf16.msra.mxu0 0
        %1084 = vmatprep.subr.bf16.mxu0 0
        %1085 = vmatpush1.bf16.msra.mxu0 0
        %1086 = vmatprep.subr.bf16.mxu0 0
        %1087 = vmatpush1.bf16.msra.mxu0 0
        %1088 = vmatprep.subr.bf16.mxu0 0
        %1089 = vmatpush1.bf16.msra.mxu0 0
        %1090 = vmatprep.subr.bf16.mxu0 0
        %1091 = vmatpush1.bf16.msra.mxu0 0
        %1092 = vmatprep.subr.bf16.mxu0 0
        %1093 = vmatpush1.bf16.msra.mxu0 0
        %1094 = vmatprep.subr.bf16.mxu0 0
        %1095 = vmatpush1.bf16.msra.mxu0 0
        %1096 = vmatprep.subr.bf16.mxu0 0
        %1097 = vmatpush1.bf16.msra.mxu0 0
        %1098 = vmatprep.subr.bf16.mxu0 0
        %1099 = vmatpush1.bf16.msra.mxu0 0
        %1100 = vmatprep.mubr.bf16.mxu0 0
        %1101 = vmatmul.mubr.bf16.gmra.mrb[0].mxu0 %v1066
        %v1102 = vpop.f32.mrb[0].mxu0
        %v1103 = vadd.f32 %v1051, %v1102
        %v1104 = vpop.f32.mrb[0].mxu0
        %v1105 = vpop.f32.mrb[0].mxu0
        %v1106 = vpop.f32.mrb[0].mxu0
        %1107 = vdwg.mxu0
        %v1108 = vpack.c.bf16 %v761, %v761
        %v1109 = vld [vmem:[%s10] sm:$0xf]
        %v1110 = vld [vmem:[%s10 + $0x4] sm:$0xf]
        %v1111 = vld [vmem:[%s10 + $0x8] sm:$0xf]
        %v1112 = vld [vmem:[%s10 + $0xc] sm:$0xf]
        %v1113 = vld [vmem:[%s11] sm:$0x1]
        %v1115 = vlaneseq
        %v1116 = vshrl.u32 %v1115, 7
        %v1117 = vsub.s32 0, %v1116
        %v1118 = vrot.slane %v1113, %v1117
        %v1124 = vunpack.c.l.b16 %v1109
        %v1125 = vunpack.c.l.b16 %v1110
        %v1126 = vunpack.c.l.b16 %v1111
        %v1127 = vunpack.c.l.b16 %v1112
        %v1128 = vpack.c.b16 %v1125, %v1124
        %v1129 = vpack.c.b16 %v1127, %v1126
        %v1133 = vsel %vm786, %v1108, 0
        %1135 = vmatprep.subr.bf16.mxu0 0
        %1136 = vmatpush1.bf16.msra.mxu0 %v1128
        %1137 = vmatprep.subr.bf16.mxu0 0
        %1138 = vmatpush1.bf16.msra.mxu0 %v1129
        %1139 = vmatprep.subr.bf16.mxu0 0
        %1140 = vmatpush1.bf16.msra.mxu0 0
        %1141 = vmatprep.subr.bf16.mxu0 0
        %1142 = vmatpush1.bf16.msra.mxu0 0
        %1143 = vmatprep.subr.bf16.mxu0 0
        %1144 = vmatpush1.bf16.msra.mxu0 0
        %1145 = vmatprep.subr.bf16.mxu0 0
        %1146 = vmatpush1.bf16.msra.mxu0 0
        %1147 = vmatprep.subr.bf16.mxu0 0
        %1148 = vmatpush1.bf16.msra.mxu0 0
        %1149 = vmatprep.subr.bf16.mxu0 0
        %1150 = vmatpush1.bf16.msra.mxu0 0
        %1151 = vmatprep.subr.bf16.mxu0 0
        %1152 = vmatpush1.bf16.msra.mxu0 0
        %1153 = vmatprep.subr.bf16.mxu0 0
        %1154 = vmatpush1.bf16.msra.mxu0 0
        %1155 = vmatprep.subr.bf16.mxu0 0
        %1156 = vmatpush1.bf16.msra.mxu0 0
        %1157 = vmatprep.subr.bf16.mxu0 0
        %1158 = vmatpush1.bf16.msra.mxu0 0
        %1159 = vmatprep.subr.bf16.mxu0 0
        %1160 = vmatpush1.bf16.msra.mxu0 0
        %1161 = vmatprep.subr.bf16.mxu0 0
        %1162 = vmatpush1.bf16.msra.mxu0 0
        %1163 = vmatprep.subr.bf16.mxu0 0
        %1164 = vmatpush1.bf16.msra.mxu0 0
        %1165 = vmatprep.subr.bf16.mxu0 0
        %1166 = vmatpush1.bf16.msra.mxu0 0
        %1167 = vmatprep.mubr.bf16.mxu0 0
        %1168 = vmatmul.mubr.bf16.gmra.mrb[0].mxu0 %v1133
        %v1169 = vpop.f32.mrb[0].mxu0
        %v1170 = vadd.f32 %v1118, %v1169
        %v1171 = vpop.f32.mrb[0].mxu0
        %v1172 = vpop.f32.mrb[0].mxu0
        %v1173 = vpop.f32.mrb[0].mxu0
        %1174 = vdwg.mxu0
        %v1175 = vpack.c.bf16 %v1103, %v1103
        %v1176 = vpack.c.bf16 %v1170, %v1170
        %v1178 = vsel %vm786, %v1175, 0
        %v1181 = vsel %vm786, %v1176, 0
        %1183 = vmatprep.subr.bf16.mxu0 0
        %1184 = vmatpush1.bf16.xpose.msra.mxu0 %v1181
        %1185 = vmatprep.subr.bf16.mxu0 0
        %1186 = vmatpush1.bf16.xpose.msra.mxu0 0
        %1187 = vmatprep.subr.bf16.mxu0 0
        %1188 = vmatpush1.bf16.xpose.msra.mxu0 0
        %1189 = vmatprep.subr.bf16.mxu0 0
        %1190 = vmatpush1.bf16.xpose.msra.mxu0 0
        %1191 = vmatprep.subr.bf16.mxu0 0
        %1192 = vmatpush1.bf16.xpose.msra.mxu0 0
        %1193 = vmatprep.subr.bf16.mxu0 0
        %1194 = vmatpush1.bf16.xpose.msra.mxu0 0
        %1195 = vmatprep.subr.bf16.mxu0 0
        %1196 = vmatpush1.bf16.xpose.msra.mxu0 0
        %1197 = vmatprep.subr.bf16.mxu0 0
        %1198 = vmatpush1.bf16.xpose.msra.mxu0 0
        %1199 = vmatprep.subr.bf16.mxu0 0
        %1200 = vmatpush1.bf16.xpose.msra.mxu0 0
        %1201 = vmatprep.subr.bf16.mxu0 0
        %1202 = vmatpush1.bf16.xpose.msra.mxu0 0
        %1203 = vmatprep.subr.bf16.mxu0 0
        %1204 = vmatpush1.bf16.xpose.msra.mxu0 0
        %1205 = vmatprep.subr.bf16.mxu0 0
        %1206 = vmatpush1.bf16.xpose.msra.mxu0 0
        %1207 = vmatprep.subr.bf16.mxu0 0
        %1208 = vmatpush1.bf16.xpose.msra.mxu0 0
        %1209 = vmatprep.subr.bf16.mxu0 0
        %1210 = vmatpush1.bf16.xpose.msra.mxu0 0
        %1211 = vmatprep.subr.bf16.mxu0 0
        %1212 = vmatpush1.bf16.xpose.msra.mxu0 0
        %1213 = vmatprep.subr.bf16.mxu0 0
        %1214 = vmatpush1.bf16.xpose.msra.mxu0 0
        %1215 = vmatprep.mubr.bf16.mxu0 0
        %1216 = vmatmul.mubr.bf16.gmra.mrb[0].mxu0 %v1178
        %v1217 = vpop.f32.mrb[0].mxu0
        %v1218 = vadd.f32 0.0, %v1217
        %v1219 = vpop.f32.mrb[0].mxu0
        %v1220 = vpop.f32.mrb[0].mxu0
        %v1221 = vpop.f32.mrb[0].mxu0
        %1222 = vdwg.mxu0
        %v1223 = vmul.f32 %v1218, 0.17677669
        %v1224 = vsel %vm881, %v1223, -inf
        %1225 = vmax.xlane.f32.xlu0 %v1224
        %v1226 = vpop.xlane.xlu0 %1225
        %v1227 = vsub.f32 %v1223, %v1226
        %v1228 = vmul.f32 %v1227, 1.442695
        %v1229 = vpow.pop %v1228
        %v1230 = vsel %vm881, %v1229, 0.0
        %1231 = vadd.xlane.f32.xlu0 %v1230
        %v1232 = vpop.xlane.xlu0 %1231
        %v1233 = vrcp.pop %v1232
        %v1234 = vmul.f32 %v1229, %v1233
        %v1235 = vpack.c.bf16 %v1234, %v1234
        %1237 = vrot.lane.b32.xlu0 %v1176, 96
        %v1238 = vpop.permute.xlu0 %1237
        %v1240 = vsel %vm881, %v1235, 0
        %v1243 = vsel %vm899, %v1238, 0
        %1245 = vmatprep.subr.bf16.mxu0 0
        %1246 = vmatpush1.bf16.msra.mxu0 %v1243
        %1247 = vmatprep.subr.bf16.mxu0 0
        %1248 = vmatpush1.bf16.msra.mxu0 0
        %1249 = vmatprep.subr.bf16.mxu0 0
        %1250 = vmatpush1.bf16.msra.mxu0 0
        %1251 = vmatprep.subr.bf16.mxu0 0
        %1252 = vmatpush1.bf16.msra.mxu0 0
        %1253 = vmatprep.subr.bf16.mxu0 0
        %1254 = vmatpush1.bf16.msra.mxu0 0
        %1255 = vmatprep.subr.bf16.mxu0 0
        %1256 = vmatpush1.bf16.msra.mxu0 0
        %1257 = vmatprep.subr.bf16.mxu0 0
        %1258 = vmatpush1.bf16.msra.mxu0 0
        %1259 = vmatprep.subr.bf16.mxu0 0
        %1260 = vmatpush1.bf16.msra.mxu0 0
        %1261 = vmatprep.subr.bf16.mxu0 0
        %1262 = vmatpush1.bf16.msra.mxu0 0
        %1263 = vmatprep.subr.bf16.mxu0 0
        %1264 = vmatpush1.bf16.msra.mxu0 0
        %1265 = vmatprep.subr.bf16.mxu0 0
        %1266 = vmatpush1.bf16.msra.mxu0 0
        %1267 = vmatprep.subr.bf16.mxu0 0
        %1268 = vmatpush1.bf16.msra.mxu0 0
        %1269 = vmatprep.subr.bf16.mxu0 0
        %1270 = vmatpush1.bf16.msra.mxu0 0
        %1271 = vmatprep.subr.bf16.mxu0 0
        %1272 = vmatpush1.bf16.msra.mxu0 0
        %1273 = vmatprep.subr.bf16.mxu0 0
        %1274 = vmatpush1.bf16.msra.mxu0 0
        %1275 = vmatprep.subr.bf16.mxu0 0
        %1276 = vmatpush1.bf16.msra.mxu0 0
        %1277 = vmatprep.mubr.bf16.mxu0 0
        %1278 = vmatmul.mubr.bf16.gmra.mrb[0].mxu0 %v1240
        %v1279 = vpop.f32.mrb[0].mxu0
        %v1280 = vadd.f32 0.0, %v1279
        %v1281 = vpop.f32.mrb[0].mxu0
        %v1282 = vpop.f32.mrb[0].mxu0
        %v1283 = vpop.f32.mrb[0].mxu0
        %1284 = vdwg.mxu0
        %v1285 = vpack.c.bf16 %v1280, %v1280
        %v1286 = vld [vmem:[%s12] sm:$0xf]
        %v1287 = vld [vmem:[%s12 + $0x4] sm:$0xf]
        %v1288 = vld [vmem:[%s12 + $0x8] sm:$0xf]
        %v1289 = vld [vmem:[%s12 + $0xc] sm:$0xf]
        %v1290 = vld [vmem:[%s13] sm:$0x1]
        %v1292 = vlaneseq
        %v1293 = vshrl.u32 %v1292, 7
        %v1294 = vsub.s32 0, %v1293
        %v1295 = vrot.slane %v1290, %v1294
        %v1301 = vunpack.c.l.b16 %v1286
        %v1302 = vunpack.c.l.b16 %v1287
        %v1303 = vunpack.c.l.b16 %v1288
        %v1304 = vunpack.c.l.b16 %v1289
        %v1305 = vpack.c.b16 %v1302, %v1301
        %v1306 = vpack.c.b16 %v1304, %v1303
        %v1310 = vsel %vm786, %v1285, 0
        %1312 = vmatprep.subr.bf16.mxu0 0
        %1313 = vmatpush1.bf16.msra.mxu0 %v1305
        %1314 = vmatprep.subr.bf16.mxu0 0
        %1315 = vmatpush1.bf16.msra.mxu0 %v1306
        %1316 = vmatprep.subr.bf16.mxu0 0
        %1317 = vmatpush1.bf16.msra.mxu0 0
        %1318 = vmatprep.subr.bf16.mxu0 0
        %1319 = vmatpush1.bf16.msra.mxu0 0
        %1320 = vmatprep.subr.bf16.mxu0 0
        %1321 = vmatpush1.bf16.msra.mxu0 0
        %1322 = vmatprep.subr.bf16.mxu0 0
        %1323 = vmatpush1.bf16.msra.mxu0 0
        %1324 = vmatprep.subr.bf16.mxu0 0
        %1325 = vmatpush1.bf16.msra.mxu0 0
        %1326 = vmatprep.subr.bf16.mxu0 0
        %1327 = vmatpush1.bf16.msra.mxu0 0
        %1328 = vmatprep.subr.bf16.mxu0 0
        %1329 = vmatpush1.bf16.msra.mxu0 0
        %1330 = vmatprep.subr.bf16.mxu0 0
        %1331 = vmatpush1.bf16.msra.mxu0 0
        %1332 = vmatprep.subr.bf16.mxu0 0
        %1333 = vmatpush1.bf16.msra.mxu0 0
        %1334 = vmatprep.subr.bf16.mxu0 0
        %1335 = vmatpush1.bf16.msra.mxu0 0
        %1336 = vmatprep.subr.bf16.mxu0 0
        %1337 = vmatpush1.bf16.msra.mxu0 0
        %1338 = vmatprep.subr.bf16.mxu0 0
        %1339 = vmatpush1.bf16.msra.mxu0 0
        %1340 = vmatprep.subr.bf16.mxu0 0
        %1341 = vmatpush1.bf16.msra.mxu0 0
        %1342 = vmatprep.subr.bf16.mxu0 0
        %1343 = vmatpush1.bf16.msra.mxu0 0
        %1344 = vmatprep.mubr.bf16.mxu0 0
        %1345 = vmatmul.mubr.bf16.gmra.mrb[0].mxu0 %v1310
        %v1346 = vpop.f32.mrb[0].mxu0
        %v1347 = vadd.f32 %v1295, %v1346
        %v1348 = vpop.f32.mrb[0].mxu0
        %v1349 = vpop.f32.mrb[0].mxu0
        %v1350 = vpop.f32.mrb[0].mxu0
        %1351 = vdwg.mxu0
        %v1352 = vadd.f32 %v1040, %v1347
        %v1353 = vld [vmem:[%s14] sm:$0x1]
        %v1354 = vld [vmem:[#allocation2] sm:$0x1]
        %v1355 = vsel %vm786, %v1352, 0.0
        %1356 = vadd.xlane.f32.xlu0 %v1355
        %v1357 = vpop.xlane.xlu0 %1356
        %v1358 = vmul.f32 %v1357, %v1016
        %v1359 = vsub.f32 %v1352, %v1358
        %v1360 = vmul.f32 %v1359, %v1359
        %v1361 = vsel %vm786, %v1360, 0.0
        %1362 = vadd.xlane.f32.xlu0 %v1361
        %v1363 = vpop.xlane.xlu0 %1362
        %v1364 = vmul.f32 %v1363, %v1016
        %v1365 = vadd.f32 %v1364, 1e-05
        %v1366 = vrsqrt.pop %v1365
        %v1367 = vmul.f32 %v1359, %v1366
        %v1369 = vlaneseq
        %v1370 = vshrl.u32 %v1369, 7
        %v1371 = vsub.s32 0, %v1370
        %v1372 = vrot.slane %v1353, %v1371
        %v1374 = vmul.f32 %v1367, %v1372
        %v1376 = vlaneseq
        %v1377 = vshrl.u32 %v1376, 7
        %v1378 = vsub.s32 0, %v1377
        %v1379 = vrot.slane %v1354, %v1378
        %v1381 = vadd.f32 %v1374, %v1379
        %v1382 = vpack.c.bf16 %v1381, %v1381
        %v1383 = vld [vmem:[%s16] sm:$0xf]
        %v1384 = vld [vmem:[%s16 + $0x4] sm:$0xf]
        %v1385 = vld [vmem:[%s16 + $0x8] sm:$0xf]
        %v1386 = vld [vmem:[%s16 + $0xc] sm:$0xf]
        %v1387 = vld [vmem:[#allocation4] sm:$0x1]
        %v1389 = vlaneseq
        %v1390 = vshrl.u32 %v1389, 7
        %v1391 = vsub.s32 0, %v1390
        %v1392 = vrot.slane %v1387, %v1391
        %v1398 = vunpack.c.l.b16 %v1383
        %v1399 = vunpack.c.l.b16 %v1384
        %v1400 = vunpack.c.l.b16 %v1385
        %v1401 = vunpack.c.l.b16 %v1386
        %v1402 = vpack.c.b16 %v1399, %v1398
        %v1403 = vpack.c.b16 %v1401, %v1400
        %v1407 = vsel %vm786, %v1382, 0
        %1409 = vmatprep.subr.bf16.mxu0 0
        %1410 = vmatpush1.bf16.msra.mxu0 %v1402
        %1411 = vmatprep.subr.bf16.mxu0 0
        %1412 = vmatpush1.bf16.msra.mxu0 %v1403
        %1413 = vmatprep.subr.bf16.mxu0 0
        %1414 = vmatpush1.bf16.msra.mxu0 0
        %1415 = vmatprep.subr.bf16.mxu0 0
        %1416 = vmatpush1.bf16.msra.mxu0 0
        %1417 = vmatprep.subr.bf16.mxu0 0
        %1418 = vmatpush1.bf16.msra.mxu0 0
        %1419 = vmatprep.subr.bf16.mxu0 0
        %1420 = vmatpush1.bf16.msra.mxu0 0
        %1421 = vmatprep.subr.bf16.mxu0 0
        %1422 = vmatpush1.bf16.msra.mxu0 0
        %1423 = vmatprep.subr.bf16.mxu0 0
        %1424 = vmatpush1.bf16.msra.mxu0 0
        %1425 = vmatprep.subr.bf16.mxu0 0
        %1426 = vmatpush1.bf16.msra.mxu0 0
        %1427 = vmatprep.subr.bf16.mxu0 0
        %1428 = vmatpush1.bf16.msra.mxu0 0
        %1429 = vmatprep.subr.bf16.mxu0 0
        %1430 = vmatpush1.bf16.msra.mxu0 0
        %1431 = vmatprep.subr.bf16.mxu0 0
        %1432 = vmatpush1.bf16.msra.mxu0 0
        %1433 = vmatprep.subr.bf16.mxu0 0
        %1434 = vmatpush1.bf16.msra.mxu0 0
        %1435 = vmatprep.subr.bf16.mxu0 0
        %1436 = vmatpush1.bf16.msra.mxu0 0
        %1437 = vmatprep.subr.bf16.mxu0 0
        %1438 = vmatpush1.bf16.msra.mxu0 0
        %1439 = vmatprep.subr.bf16.mxu0 0
        %1440 = vmatpush1.bf16.msra.mxu0 0
        %1441 = vmatprep.mubr.bf16.mxu0 0
        %1442 = vmatmul.mubr.bf16.gmra.mrb[0].mxu0 %v1407
        %v1443 = vpop.f32.mrb[0].mxu0
        %v1444 = vadd.f32 %v1392, %v1443
        %v1445 = vpop.f32.mrb[0].mxu0
        %v1446 = vpop.f32.mrb[0].mxu0
        %v1447 = vpop.f32.mrb[0].mxu0
        %1448 = vdwg.mxu0
        %v1449 = vsub.f32 0.0, %v1444
        %v1450 = vmul.f32 %v1449, 1.442695
        %v1451 = vpow.pop %v1450
        %v1452 = vadd.f32 %v1451, 1.0
        %v1453 = vrcp.pop %v1452
        %v1454 = vmul.f32 1.0, %v1453
        %v1455 = vmul.f32 %v1444, %v1454
        %v1456 = vpack.c.bf16 %v1455, %v1455
        %v1457 = vld [vmem:[%s18] sm:$0x3]
        %v1458 = vld [vmem:[#allocation6] sm:$0x1]
        %v1460 = vlaneseq
        %v1461 = vshrl.u32 %v1460, 7
        %v1462 = vsub.s32 0, %v1461
        %v1463 = vrot.slane %v1458, %v1462
        %vm1465 = vcmask 31744
        %v1467 = vsel %vm1465, %v1456, 0
        %vm1469 = vcmask 1041408
        %v1471 = vsel %vm1469, %v1457, 0
        %1473 = vmatprep.subr.bf16.mxu0 0
        %1474 = vmatpush1.bf16.msra.mxu0 %v1471
        %1475 = vmatprep.subr.bf16.mxu0 0
        %1476 = vmatpush1.bf16.msra.mxu0 0
        %1477 = vmatprep.subr.bf16.mxu0 0
        %1478 = vmatpush1.bf16.msra.mxu0 0
        %1479 = vmatprep.subr.bf16.mxu0 0
        %1480 = vmatpush1.bf16.msra.mxu0 0
        %1481 = vmatprep.subr.bf16.mxu0 0
        %1482 = vmatpush1.bf16.msra.mxu0 0
        %1483 = vmatprep.subr.bf16.mxu0 0
        %1484 = vmatpush1.bf16.msra.mxu0 0
        %1485 = vmatprep.subr.bf16.mxu0 0
        %1486 = vmatpush1.bf16.msra.mxu0 0
        %1487 = vmatprep.subr.bf16.mxu0 0
        %1488 = vmatpush1.bf16.msra.mxu0 0
        %1489 = vmatprep.subr.bf16.mxu0 0
        %1490 = vmatpush1.bf16.msra.mxu0 0
        %1491 = vmatprep.subr.bf16.mxu0 0
        %1492 = vmatpush1.bf16.msra.mxu0 0
        %1493 = vmatprep.subr.bf16.mxu0 0
        %1494 = vmatpush1.bf16.msra.mxu0 0
        %1495 = vmatprep.subr.bf16.mxu0 0
        %1496 = vmatpush1.bf16.msra.mxu0 0
        %1497 = vmatprep.subr.bf16.mxu0 0
        %1498 = vmatpush1.bf16.msra.mxu0 0
        %1499 = vmatprep.subr.bf16.mxu0 0
        %1500 = vmatpush1.bf16.msra.mxu0 0
        %1501 = vmatprep.subr.bf16.mxu0 0
        %1502 = vmatpush1.bf16.msra.mxu0 0
        %1503 = vmatprep.subr.bf16.mxu0 0
        %1504 = vmatpush1.bf16.msra.mxu0 0
        %1505 = vmatprep.mubr.bf16.mxu0 0
        %1506 = vmatmul.mubr.bf16.gmra.mrb[0].mxu0 %v1467
        %v1507 = vpop.f32.mrb[0].mxu0
        %v1508 = vadd.f32 %v1463, %v1507
        %v1509 = vpop.f32.mrb[0].mxu0
        %v1510 = vpop.f32.mrb[0].mxu0
        %v1511 = vpop.f32.mrb[0].mxu0
        %1512 = vdwg.mxu0
        %v1513 = vadd.f32 %v1381, %v1508
        %v1514 = vld [vmem:[#allocation7] sm:$0x1]
        %v1515 = vld [vmem:[#allocation9] sm:$0x1]
        %v1516 = vsel %vm786, %v1513, 0.0
        %1517 = vadd.xlane.f32.xlu0 %v1516
        %v1518 = vpop.xlane.xlu0 %1517
        %v1519 = vmul.f32 %v1518, %v1016
        %v1520 = vsub.f32 %v1513, %v1519
        %v1521 = vmul.f32 %v1520, %v1520
        %v1522 = vsel %vm786, %v1521, 0.0
        %1523 = vadd.xlane.f32.xlu0 %v1522
        %v1524 = vpop.xlane.xlu0 %1523
        %v1525 = vmul.f32 %v1524, %v1016
        %v1526 = vadd.f32 %v1525, 1e-05
        %v1527 = vrsqrt.pop %v1526
        %v1528 = vmul.f32 %v1520, %v1527
        %v1530 = vlaneseq
        %v1531 = vshrl.u32 %v1530, 7
        %v1532 = vsub.s32 0, %v1531
        %v1533 = vrot.slane %v1514, %v1532
        %v1535 = vmul.f32 %v1528, %v1533
        %v1537 = vlaneseq
        %v1538 = vshrl.u32 %v1537, 7
        %v1539 = vsub.s32 0, %v1538
        %v1540 = vrot.slane %v1515, %v1539
        %v1542 = vadd.f32 %v1535, %v1540
        %1543 = vst.msk [vmem:[%s758] sm:$0xff] %vm786, %v1542
        %p1544 = scmp.lt.s32.totalorder %s36, 1
        %s1545 = scalar_select %p1544, %s36, 1
        %s1546 = smul.addr %s1545, 8
        %s1547 = scalar_lea.vmem %s22, %s1546
        // Predicated region
        $region129: #{transformer_autoencoder_separator.17} parent=107 // pred_check
          %p1548 = pneg %p526
        $region130: #{transformer_autoencoder_separator.17} parent=107 // pred_check_branch
          %1550 = sbr.rel (%p1548) target = $region132
        $region131: #{transformer_autoencoder_separator.17} parent=107 // pred_region
          _
        $region132: #{transformer_autoencoder_separator.17} parent=107 // pred_fallthru
          _
      $region108: #{transformer_autoencoder_separator.17} parent=5 // pred_fallthru
        _
      %p1551 = scmp.le.s32.totalorder 2, %s31
      // Predicated region
      $region133: #{transformer_autoencoder_separator.17} parent=5 // pred_check
        %p1552 = pneg %p1551
      $region134: #{transformer_autoencoder_separator.17} parent=5 // pred_check_branch
        %1554 = sbr.rel (%p1552) target = $region136
      $region135: #{transformer_autoencoder_separator.17} parent=5 // pred_region
        %s1555 = ssub.s32 %s31, 2
        // Predicated region
        $region137: #{transformer_autoencoder_separator.17} parent=135 // pred_check
          %p1556 = pneg %p532
        $region138: #{transformer_autoencoder_separator.17} parent=135 // pred_check_branch
          %1558 = sbr.rel (%p1556) target = $region140
        $region139: #{transformer_autoencoder_separator.17} parent=135 // pred_region
          %p1559 = scmp.lt.s32.totalorder %s37, 1
          %s1560 = scalar_select %p1559, %s37, 1
          %s1561 = smul.addr %s1560, 8
          %s1562 = scalar_lea.vmem %s22, %s1561
        $region140: #{transformer_autoencoder_separator.17} parent=135 // pred_fallthru
          _
      $region136: #{transformer_autoencoder_separator.17} parent=5 // pred_fallthru
        _
    $region6: #{transformer_autoencoder_separator.17} parent=1 // loop_footer
      %s35 = sadd.s32 1, %s31
    $region7: #{transformer_autoencoder_separator.17} parent=1 // loop_footer_branch
      %30 = sbr.rel target = $region3
    $region8: #{transformer_autoencoder_separator.17} parent=1 // loop_exit
      _
    %1563 = vsyncpa [#allocation3], 1
    %s1564 = scalar_lea.sflag [#allocation3], 1
    %1565 = vsyncpa %s1564, 1
    %1566 = vsyncpa [#allocation5], 1
    %1567 = vsyncpa [#allocation8], 1

// kernel: transformer_autoencoder_separator.20
$region0: #{transformer_autoencoder_separator.20}
  #allocation0 [shape = 'u32[]', space=smem, size = 0x4, offset = 0x4, fixed_abs, tag = 'smem constant byte address 0x4 - core index']
  #allocation1 [shape = 'u32[144,128]{1,0:T(1,128)}', space=vmem, size = 0x12000, scoped, tag = 'internal scratch']
  %s0 = inlined_call_operand.vmem [shape: f32[16,32], index: 0, kind: input, shape index: {}]
  %s1 = inlined_call_operand.vmem [shape: bf16[32,32], index: 1, kind: input, shape index: {}]
  %s2 = inlined_call_operand.vmem [shape: f32[1,32], index: 2, kind: input, shape index: {}]
  %s3 = inlined_call_operand.vmem [shape: bf16[32,32], index: 3, kind: input, shape index: {}]
  %s4 = inlined_call_operand.vmem [shape: f32[1,32], index: 4, kind: input, shape index: {}]
  %s5 = inlined_call_operand.vmem [shape: bf16[32,32], index: 5, kind: input, shape index: {}]
  %s6 = inlined_call_operand.vmem [shape: f32[1,32], index: 6, kind: input, shape index: {}]
  %s7 = inlined_call_operand.vmem [shape: bf16[32,32], index: 7, kind: input, shape index: {}]
  %s8 = inlined_call_operand.vmem [shape: f32[1,32], index: 8, kind: input, shape index: {}]
  %s9 = inlined_call_operand.vmem [shape: f32[16,32], index: 9, kind: output, shape index: {}]
  %s10 = sld [smem:[#allocation0]]
  $region46: #{transformer_autoencoder_separator.20} parent=0
    _
  %s12 = ssub.s32 1, %s10
  %s13 = scalar_select 0, %s12, %s10
  // Predicated region
  $region2: #{transformer_autoencoder_separator.20} parent=0 // pred_check
    _
  $region3: #{transformer_autoencoder_separator.20} parent=0 // pred_check_branch
    %15 = sbr.rel (0) target = $region5
  $region4: #{transformer_autoencoder_separator.20} parent=0 // pred_region
    _
  $region5: #{transformer_autoencoder_separator.20} parent=0 // pred_fallthru
    _
  // Predicated region
  $region6: #{transformer_autoencoder_separator.20} parent=0 // pred_check
    _
  $region7: #{transformer_autoencoder_separator.20} parent=0 // pred_check_branch
    %17 = sbr.rel (0) target = $region9
  $region8: #{transformer_autoencoder_separator.20} parent=0 // pred_region
    _
  $region9: #{transformer_autoencoder_separator.20} parent=0 // pred_fallthru
    _
  // Predicated region
  $region10: #{transformer_autoencoder_separator.20} parent=0 // pred_check
    _
  $region11: #{transformer_autoencoder_separator.20} parent=0 // pred_check_branch
    %19 = sbr.rel (0) target = $region13
  $region12: #{transformer_autoencoder_separator.20} parent=0 // pred_region
    _
  $region13: #{transformer_autoencoder_separator.20} parent=0 // pred_fallthru
    _
  // Predicated region
  $region14: #{transformer_autoencoder_separator.20} parent=0 // pred_check
    _
  $region15: #{transformer_autoencoder_separator.20} parent=0 // pred_check_branch
    %21 = sbr.rel (0) target = $region17
  $region16: #{transformer_autoencoder_separator.20} parent=0 // pred_region
    _
  $region17: #{transformer_autoencoder_separator.20} parent=0 // pred_fallthru
    _
  // Predicated region
  $region18: #{transformer_autoencoder_separator.20} parent=0 // pred_check
    _
  $region19: #{transformer_autoencoder_separator.20} parent=0 // pred_check_branch
    %23 = sbr.rel (0) target = $region21
  $region20: #{transformer_autoencoder_separator.20} parent=0 // pred_region
    _
  $region21: #{transformer_autoencoder_separator.20} parent=0 // pred_fallthru
    _
  // Predicated region
  $region22: #{transformer_autoencoder_separator.20} parent=0 // pred_check
    _
  $region23: #{transformer_autoencoder_separator.20} parent=0 // pred_check_branch
    %25 = sbr.rel (0) target = $region25
  $region24: #{transformer_autoencoder_separator.20} parent=0 // pred_region
    _
  $region25: #{transformer_autoencoder_separator.20} parent=0 // pred_fallthru
    _
  // Predicated region
  $region26: #{transformer_autoencoder_separator.20} parent=0 // pred_check
    _
  $region27: #{transformer_autoencoder_separator.20} parent=0 // pred_check_branch
    %27 = sbr.rel (0) target = $region29
  $region28: #{transformer_autoencoder_separator.20} parent=0 // pred_region
    _
  $region29: #{transformer_autoencoder_separator.20} parent=0 // pred_fallthru
    _
  // Predicated region
  $region30: #{transformer_autoencoder_separator.20} parent=0 // pred_check
    _
  $region31: #{transformer_autoencoder_separator.20} parent=0 // pred_check_branch
    %29 = sbr.rel (0) target = $region33
  $region32: #{transformer_autoencoder_separator.20} parent=0 // pred_region
    _
  $region33: #{transformer_autoencoder_separator.20} parent=0 // pred_fallthru
    _
  // Predicated region
  $region34: #{transformer_autoencoder_separator.20} parent=0 // pred_check
    _
  $region35: #{transformer_autoencoder_separator.20} parent=0 // pred_check_branch
    %31 = sbr.rel (0) target = $region37
  $region36: #{transformer_autoencoder_separator.20} parent=0 // pred_region
    _
  $region37: #{transformer_autoencoder_separator.20} parent=0 // pred_fallthru
    _
  %v33 = vld [vmem:[%s0] sm:$0xff]
  %v34 = vld [vmem:[%s0 + $0x8] sm:$0xff]
  %v35 = vpack.c.bf16 %v34, %v33
  %v36 = vld [vmem:[%s1] sm:$0xf]
  %v37 = vld [vmem:[%s1 + $0x4] sm:$0xf]
  %v38 = vld [vmem:[%s1 + $0x8] sm:$0xf]
  %v39 = vld [vmem:[%s1 + $0xc] sm:$0xf]
  %v40 = vld [vmem:[%s2] sm:$0x1]
  %v42 = vlaneseq
  %v43 = vshrl.u32 %v42, 7
  %v44 = vsub.s32 0, %v43
  %v45 = vrot.slane %v40, %v44
  %v51 = vunpack.c.l.b16 %v36
  %v52 = vunpack.c.l.b16 %v37
  %v53 = vunpack.c.l.b16 %v38
  %v54 = vunpack.c.l.b16 %v39
  %v55 = vpack.c.b16 %v52, %v51
  %v56 = vpack.c.b16 %v54, %v53
  %vm59 = vcmask 261120
  %v61 = vsel %vm59, %v35, 0
  %63 = vmatprep.subr.bf16.mxu0 0
  %64 = vmatpush1.bf16.msra.mxu0 %v55
  %65 = vmatprep.subr.bf16.mxu0 0
  %66 = vmatpush1.bf16.msra.mxu0 %v56
  %67 = vmatprep.subr.bf16.mxu0 0
  %68 = vmatpush1.bf16.msra.mxu0 0
  %69 = vmatprep.subr.bf16.mxu0 0
  %70 = vmatpush1.bf16.msra.mxu0 0
  %71 = vmatprep.subr.bf16.mxu0 0
  %72 = vmatpush1.bf16.msra.mxu0 0
  %73 = vmatprep.subr.bf16.mxu0 0
  %74 = vmatpush1.bf16.msra.mxu0 0
  %75 = vmatprep.subr.bf16.mxu0 0
  %76 = vmatpush1.bf16.msra.mxu0 0
  %77 = vmatprep.subr.bf16.mxu0 0
  %78 = vmatpush1.bf16.msra.mxu0 0
  %79 = vmatprep.subr.bf16.mxu0 0
  %80 = vmatpush1.bf16.msra.mxu0 0
  %81 = vmatprep.subr.bf16.mxu0 0
  %82 = vmatpush1.bf16.msra.mxu0 0
  %83 = vmatprep.subr.bf16.mxu0 0
  %84 = vmatpush1.bf16.msra.mxu0 0
  %85 = vmatprep.subr.bf16.mxu0 0
  %86 = vmatpush1.bf16.msra.mxu0 0
  %87 = vmatprep.subr.bf16.mxu0 0
  %88 = vmatpush1.bf16.msra.mxu0 0
  %89 = vmatprep.subr.bf16.mxu0 0
  %90 = vmatpush1.bf16.msra.mxu0 0
  %91 = vmatprep.subr.bf16.mxu0 0
  %92 = vmatpush1.bf16.msra.mxu0 0
  %93 = vmatprep.subr.bf16.mxu0 0
  %94 = vmatpush1.bf16.msra.mxu0 0
  %95 = vmatprep.mubr.bf16.mxu0 0
  %96 = vmatmul.mubr.bf16.gmra.mrb[0].mxu0 %v61
  %v97 = vpop.f32.mrb[0].mxu0
  %v98 = vadd.f32 %v45, %v97
  %v99 = vpop.f32.mrb[0].mxu0
  %v100 = vpop.f32.mrb[0].mxu0
  %v101 = vadd.f32 %v45, %v100
  %v102 = vpop.f32.mrb[0].mxu0
  %103 = vdwg.mxu0
  %v104 = vsub.f32 0.0, %v98
  %v105 = vsub.f32 0.0, %v101
  %v106 = vmul.f32 %v104, 1.442695
  %v107 = vpow.pop %v106
  %v108 = vmul.f32 %v105, 1.442695
  %v109 = vpow.pop %v108
  %v110 = vadd.f32 %v107, 1.0
  %v111 = vadd.f32 %v109, 1.0
  %v112 = vrcp.pop %v110
  %v113 = vmul.f32 1.0, %v112
  %v114 = vrcp.pop %v111
  %v115 = vmul.f32 1.0, %v114
  %v116 = vmul.f32 %v98, %v113
  %v117 = vmul.f32 %v101, %v115
  %v118 = vpack.c.bf16 %v117, %v116
  %v119 = vld [vmem:[%s3] sm:$0xf]
  %v120 = vld [vmem:[%s3 + $0x4] sm:$0xf]
  %v121 = vld [vmem:[%s3 + $0x8] sm:$0xf]
  %v122 = vld [vmem:[%s3 + $0xc] sm:$0xf]
  %v123 = vld [vmem:[%s4] sm:$0x1]
  %v125 = vlaneseq
  %v126 = vshrl.u32 %v125, 7
  %v127 = vsub.s32 0, %v126
  %v128 = vrot.slane %v123, %v127
  %v134 = vunpack.c.l.b16 %v119
  %v135 = vunpack.c.l.b16 %v120
  %v136 = vunpack.c.l.b16 %v121
  %v137 = vunpack.c.l.b16 %v122
  %v138 = vpack.c.b16 %v135, %v134
  %v139 = vpack.c.b16 %v137, %v136
  %v143 = vsel %vm59, %v118, 0
  %145 = vmatprep.subr.bf16.mxu0 0
  %146 = vmatpush1.bf16.msra.mxu0 %v138
  %147 = vmatprep.subr.bf16.mxu0 0
  %148 = vmatpush1.bf16.msra.mxu0 %v139
  %149 = vmatprep.subr.bf16.mxu0 0
  %150 = vmatpush1.bf16.msra.mxu0 0
  %151 = vmatprep.subr.bf16.mxu0 0
  %152 = vmatpush1.bf16.msra.mxu0 0
  %153 = vmatprep.subr.bf16.mxu0 0
  %154 = vmatpush1.bf16.msra.mxu0 0
  %155 = vmatprep.subr.bf16.mxu0 0
  %156 = vmatpush1.bf16.msra.mxu0 0
  %157 = vmatprep.subr.bf16.mxu0 0
  %158 = vmatpush1.bf16.msra.mxu0 0
  %159 = vmatprep.subr.bf16.mxu0 0
  %160 = vmatpush1.bf16.msra.mxu0 0
  %161 = vmatprep.subr.bf16.mxu0 0
  %162 = vmatpush1.bf16.msra.mxu0 0
  %163 = vmatprep.subr.bf16.mxu0 0
  %164 = vmatpush1.bf16.msra.mxu0 0
  %165 = vmatprep.subr.bf16.mxu0 0
  %166 = vmatpush1.bf16.msra.mxu0 0
  %167 = vmatprep.subr.bf16.mxu0 0
  %168 = vmatpush1.bf16.msra.mxu0 0
  %169 = vmatprep.subr.bf16.mxu0 0
  %170 = vmatpush1.bf16.msra.mxu0 0
  %171 = vmatprep.subr.bf16.mxu0 0
  %172 = vmatpush1.bf16.msra.mxu0 0
  %173 = vmatprep.subr.bf16.mxu0 0
  %174 = vmatpush1.bf16.msra.mxu0 0
  %175 = vmatprep.subr.bf16.mxu0 0
  %176 = vmatpush1.bf16.msra.mxu0 0
  %177 = vmatprep.mubr.bf16.mxu0 0
  %178 = vmatmul.mubr.bf16.gmra.mrb[0].mxu0 %v143
  %v179 = vpop.f32.mrb[0].mxu0
  %v180 = vadd.f32 %v128, %v179
  %v181 = vpop.f32.mrb[0].mxu0
  %v182 = vpop.f32.mrb[0].mxu0
  %v183 = vadd.f32 %v128, %v182
  %v184 = vpop.f32.mrb[0].mxu0
  %185 = vdwg.mxu0
  %v186 = vpack.c.bf16 %v183, %v180
  %v187 = vld [vmem:[%s5] sm:$0xf]
  %v188 = vld [vmem:[%s5 + $0x4] sm:$0xf]
  %v189 = vld [vmem:[%s5 + $0x8] sm:$0xf]
  %v190 = vld [vmem:[%s5 + $0xc] sm:$0xf]
  %v191 = vld [vmem:[%s6] sm:$0x1]
  %v193 = vlaneseq
  %v194 = vshrl.u32 %v193, 7
  %v195 = vsub.s32 0, %v194
  %v196 = vrot.slane %v191, %v195
  %v202 = vunpack.c.l.b16 %v187
  %v203 = vunpack.c.l.b16 %v188
  %v204 = vunpack.c.l.b16 %v189
  %v205 = vunpack.c.l.b16 %v190
  %v206 = vpack.c.b16 %v203, %v202
  %v207 = vpack.c.b16 %v205, %v204
  %v211 = vsel %vm59, %v186, 0
  %213 = vmatprep.subr.bf16.mxu0 0
  %214 = vmatpush1.bf16.msra.mxu0 %v206
  %215 = vmatprep.subr.bf16.mxu0 0
  %216 = vmatpush1.bf16.msra.mxu0 %v207
  %217 = vmatprep.subr.bf16.mxu0 0
  %218 = vmatpush1.bf16.msra.mxu0 0
  %219 = vmatprep.subr.bf16.mxu0 0
  %220 = vmatpush1.bf16.msra.mxu0 0
  %221 = vmatprep.subr.bf16.mxu0 0
  %222 = vmatpush1.bf16.msra.mxu0 0
  %223 = vmatprep.subr.bf16.mxu0 0
  %224 = vmatpush1.bf16.msra.mxu0 0
  %225 = vmatprep.subr.bf16.mxu0 0
  %226 = vmatpush1.bf16.msra.mxu0 0
  %227 = vmatprep.subr.bf16.mxu0 0
  %228 = vmatpush1.bf16.msra.mxu0 0
  %229 = vmatprep.subr.bf16.mxu0 0
  %230 = vmatpush1.bf16.msra.mxu0 0
  %231 = vmatprep.subr.bf16.mxu0 0
  %232 = vmatpush1.bf16.msra.mxu0 0
  %233 = vmatprep.subr.bf16.mxu0 0
  %234 = vmatpush1.bf16.msra.mxu0 0
  %235 = vmatprep.subr.bf16.mxu0 0
  %236 = vmatpush1.bf16.msra.mxu0 0
  %237 = vmatprep.subr.bf16.mxu0 0
  %238 = vmatpush1.bf16.msra.mxu0 0
  %239 = vmatprep.subr.bf16.mxu0 0
  %240 = vmatpush1.bf16.msra.mxu0 0
  %241 = vmatprep.subr.bf16.mxu0 0
  %242 = vmatpush1.bf16.msra.mxu0 0
  %243 = vmatprep.subr.bf16.mxu0 0
  %244 = vmatpush1.bf16.msra.mxu0 0
  %245 = vmatprep.mubr.bf16.mxu0 0
  %246 = vmatmul.mubr.bf16.gmra.mrb[0].mxu0 %v211
  %v247 = vpop.f32.mrb[0].mxu0
  %v248 = vadd.f32 %v196, %v247
  %v249 = vpop.f32.mrb[0].mxu0
  %v250 = vpop.f32.mrb[0].mxu0
  %v251 = vadd.f32 %v196, %v250
  %v252 = vpop.f32.mrb[0].mxu0
  %253 = vdwg.mxu0
  %v254 = vsub.f32 0.0, %v248
  %v255 = vsub.f32 0.0, %v251
  %v256 = vmul.f32 %v254, 1.442695
  %v257 = vpow.pop %v256
  %v258 = vmul.f32 %v255, 1.442695
  %v259 = vpow.pop %v258
  %v260 = vadd.f32 %v257, 1.0
  %v261 = vadd.f32 %v259, 1.0
  %v262 = vrcp.pop %v260
  %v263 = vmul.f32 1.0, %v262
  %v264 = vrcp.pop %v261
  %v265 = vmul.f32 1.0, %v264
  %v266 = vmul.f32 %v248, %v263
  %v267 = vmul.f32 %v251, %v265
  %v268 = vpack.c.bf16 %v267, %v266
  %v269 = vld [vmem:[%s7] sm:$0xf]
  %v270 = vld [vmem:[%s7 + $0x4] sm:$0xf]
  %v271 = vld [vmem:[%s7 + $0x8] sm:$0xf]
  %v272 = vld [vmem:[%s7 + $0xc] sm:$0xf]
  %v273 = vld [vmem:[%s8] sm:$0x1]
  %v275 = vlaneseq
  %v276 = vshrl.u32 %v275, 7
  %v277 = vsub.s32 0, %v276
  %v278 = vrot.slane %v273, %v277
  %v284 = vunpack.c.l.b16 %v269
  %v285 = vunpack.c.l.b16 %v270
  %v286 = vunpack.c.l.b16 %v271
  %v287 = vunpack.c.l.b16 %v272
  %v288 = vpack.c.b16 %v285, %v284
  %v289 = vpack.c.b16 %v287, %v286
  %v293 = vsel %vm59, %v268, 0
  %295 = vmatprep.subr.bf16.mxu0 0
  %296 = vmatpush1.bf16.msra.mxu0 %v288
  %297 = vmatprep.subr.bf16.mxu0 0
  %298 = vmatpush1.bf16.msra.mxu0 %v289
  %299 = vmatprep.subr.bf16.mxu0 0
  %300 = vmatpush1.bf16.msra.mxu0 0
  %301 = vmatprep.subr.bf16.mxu0 0
  %302 = vmatpush1.bf16.msra.mxu0 0
  %303 = vmatprep.subr.bf16.mxu0 0
  %304 = vmatpush1.bf16.msra.mxu0 0
  %305 = vmatprep.subr.bf16.mxu0 0
  %306 = vmatpush1.bf16.msra.mxu0 0
  %307 = vmatprep.subr.bf16.mxu0 0
  %308 = vmatpush1.bf16.msra.mxu0 0
  %309 = vmatprep.subr.bf16.mxu0 0
  %310 = vmatpush1.bf16.msra.mxu0 0
  %311 = vmatprep.subr.bf16.mxu0 0
  %312 = vmatpush1.bf16.msra.mxu0 0
  %313 = vmatprep.subr.bf16.mxu0 0
  %314 = vmatpush1.bf16.msra.mxu0 0
  %315 = vmatprep.subr.bf16.mxu0 0
  %316 = vmatpush1.bf16.msra.mxu0 0
  %317 = vmatprep.subr.bf16.mxu0 0
  %318 = vmatpush1.bf16.msra.mxu0 0
  %319 = vmatprep.subr.bf16.mxu0 0
  %320 = vmatpush1.bf16.msra.mxu0 0
  %321 = vmatprep.subr.bf16.mxu0 0
  %322 = vmatpush1.bf16.msra.mxu0 0
  %323 = vmatprep.subr.bf16.mxu0 0
  %324 = vmatpush1.bf16.msra.mxu0 0
  %325 = vmatprep.subr.bf16.mxu0 0
  %326 = vmatpush1.bf16.msra.mxu0 0
  %327 = vmatprep.mubr.bf16.mxu0 0
  %328 = vmatmul.mubr.bf16.gmra.mrb[0].mxu0 %v293
  %v329 = vpop.f32.mrb[0].mxu0
  %v330 = vadd.f32 %v278, %v329
  %v331 = vpop.f32.mrb[0].mxu0
  %v332 = vpop.f32.mrb[0].mxu0
  %v333 = vadd.f32 %v278, %v332
  %v334 = vpop.f32.mrb[0].mxu0
  %335 = vdwg.mxu0
  %v336 = vmax.f32 %v330, 0.0
  %v337 = vmax.f32 %v333, 0.0
  %338 = vst.msk [vmem:[%s9] sm:$0xff] %vm59, %v336
  %339 = vst.msk [vmem:[%s9 + $0x8] sm:$0xff] %vm59, %v337
  // Predicated region
  $region38: #{transformer_autoencoder_separator.20} parent=0 // pred_check
    _
  $region39: #{transformer_autoencoder_separator.20} parent=0 // pred_check_branch
    %341 = sbr.rel (0) target = $region41
  $region40: #{transformer_autoencoder_separator.20} parent=0 // pred_region
    _
  $region41: #{transformer_autoencoder_separator.20} parent=0 // pred_fallthru
    _
  // Predicated region
  $region42: #{transformer_autoencoder_separator.20} parent=0 // pred_check
    _
  $region43: #{transformer_autoencoder_separator.20} parent=0 // pred_check_branch
    %343 = sbr.rel (0) target = $region45
  $region44: #{transformer_autoencoder_separator.20} parent=0 // pred_region
    _
  $region45: #{transformer_autoencoder_separator.20} parent=0 // pred_fallthru
    _

// kernel: transformer_autoencoder_separator.21
$region0: #{transformer_autoencoder_separator.21}
  #allocation0 [shape = 'u32[]', space=smem, size = 0x4, offset = 0x4, fixed_abs, tag = 'smem constant byte address 0x4 - core index']
  #allocation1 [shape = 'u32[144,128]{1,0:T(1,128)}', space=vmem, size = 0x12000, scoped, tag = 'internal scratch']
  %s0 = inlined_call_operand.vmem [shape: f32[4,128], index: 0, kind: input, shape index: {}]
  %s1 = inlined_call_operand.vmem [shape: f32[4,128], index: 1, kind: input, shape index: {}]
  %s2 = inlined_call_operand.vmem [shape: f32[4,128], index: 2, kind: output, shape index: {}]
  %s3 = sld [smem:[#allocation0]]
  $region18: #{transformer_autoencoder_separator.21} parent=0
    _
  %s5 = ssub.s32 1, %s3
  %s6 = scalar_select 0, %s5, %s3
  // Predicated region
  $region2: #{transformer_autoencoder_separator.21} parent=0 // pred_check
    _
  $region3: #{transformer_autoencoder_separator.21} parent=0 // pred_check_branch
    %8 = sbr.rel (0) target = $region5
  $region4: #{transformer_autoencoder_separator.21} parent=0 // pred_region
    _
  $region5: #{transformer_autoencoder_separator.21} parent=0 // pred_fallthru
    _
  // Predicated region
  $region6: #{transformer_autoencoder_separator.21} parent=0 // pred_check
    _
  $region7: #{transformer_autoencoder_separator.21} parent=0 // pred_check_branch
    %10 = sbr.rel (0) target = $region9
  $region8: #{transformer_autoencoder_separator.21} parent=0 // pred_region
    _
  $region9: #{transformer_autoencoder_separator.21} parent=0 // pred_fallthru
    _
  %v11 = vld [vmem:[%s0] sm:$0xf]
  %v12 = vld [vmem:[%s1] sm:$0xf]
  %v13 = vmul.f32 %v11, %v12
  %14 = vst [vmem:[%s2] sm:$0xf] %v13
  // Predicated region
  $region10: #{transformer_autoencoder_separator.21} parent=0 // pred_check
    _
  $region11: #{transformer_autoencoder_separator.21} parent=0 // pred_check_branch
    %16 = sbr.rel (0) target = $region13
  $region12: #{transformer_autoencoder_separator.21} parent=0 // pred_region
    _
  $region13: #{transformer_autoencoder_separator.21} parent=0 // pred_fallthru
    _
  // Predicated region
  $region14: #{transformer_autoencoder_separator.21} parent=0 // pred_check
    _
  $region15: #{transformer_autoencoder_separator.21} parent=0 // pred_check_branch
    %18 = sbr.rel (0) target = $region17
  $region16: #{transformer_autoencoder_separator.21} parent=0 // pred_region
    _
  $region17: #{transformer_autoencoder_separator.21} parent=0 // pred_fallthru
    _

// kernel: transformer_autoencoder_separator.19
$region0: #{transformer_autoencoder_separator.19}
  #allocation0 [shape = 'u32[]', space=smem, size = 0x4, offset = 0x4, fixed_abs, tag = 'smem constant byte address 0x4 - core index']
  #allocation1 [shape = 'u32[144,128]{1,0:T(1,128)}', space=vmem, size = 0x12000, scoped, tag = 'internal scratch']
  %s0 = inlined_call_operand.vmem [shape: f32[2,8,32], index: 0, kind: input, shape index: {}]
  %s1 = inlined_call_operand.vmem [shape: f32[2,8,32], index: 1, kind: input, shape index: {}]
  %s2 = inlined_call_operand.vmem [shape: bf16[32,96], index: 2, kind: input, shape index: {}]
  %s3 = inlined_call_operand.vmem [shape: f32[1,96], index: 3, kind: input, shape index: {}]
  %s4 = inlined_call_operand.vmem [shape: bf16[32,32], index: 4, kind: input, shape index: {}]
  %s5 = inlined_call_operand.vmem [shape: f32[1,32], index: 5, kind: input, shape index: {}]
  %s6 = inlined_call_operand.vmem [shape: f32[1,32], index: 6, kind: input, shape index: {}]
  %s7 = inlined_call_operand.vmem [shape: f32[1,32], index: 7, kind: input, shape index: {}]
  %s8 = inlined_call_operand.vmem [shape: bf16[32,32], index: 8, kind: input, shape index: {}]
  %s9 = inlined_call_operand.vmem [shape: f32[1,32], index: 9, kind: input, shape index: {}]
  %s10 = inlined_call_operand.vmem [shape: bf16[32,64], index: 10, kind: input, shape index: {}]
  %s11 = inlined_call_operand.vmem [shape: f32[1,64], index: 11, kind: input, shape index: {}]
  %s12 = inlined_call_operand.vmem [shape: bf16[32,32], index: 12, kind: input, shape index: {}]
  %s13 = inlined_call_operand.vmem [shape: f32[1,32], index: 13, kind: input, shape index: {}]
  %s14 = inlined_call_operand.vmem [shape: f32[1,32], index: 14, kind: input, shape index: {}]
  %s15 = inlined_call_operand.vmem [shape: f32[1,32], index: 15, kind: input, shape index: {}]
  %s16 = inlined_call_operand.vmem [shape: bf16[32,4], index: 16, kind: input, shape index: {}]
  %s17 = inlined_call_operand.hbm [shape: f32[1,4], index: 17, kind: input, shape index: {}]
  %s18 = inlined_call_operand.vmem [shape: bf16[4,32], index: 18, kind: input, shape index: {}]
  %s19 = inlined_call_operand.hbm [shape: f32[1,32], index: 19, kind: input, shape index: {}]
  %s20 = inlined_call_operand.hbm [shape: f32[1,32], index: 20, kind: input, shape index: {}]
  %s21 = inlined_call_operand.hbm [shape: f32[1,32], index: 21, kind: input, shape index: {}]
  %s22 = inlined_call_operand.vmem [shape: f32[2,8,32], index: 22, kind: output, shape index: {}]
  %s23 = sld [smem:[#allocation0]]
  $region137: #{transformer_autoencoder_separator.19} parent=0
    _
  %s25 = ssub.s32 1, %s23
  %s26 = scalar_select 0, %s25, %s23
  $region1: #{transformer_autoencoder_separator.19} parent=0
    #allocation2 [shape = 'u8[512]{0}', space=vmem, size = 0x400, scoped, tag = 'input window, operand 17, single buffered']
    #allocation3 [shape = 's32[2]{0}', space=sflag, size = 0x8, scoped, tag = 'scoped memory for transformer_autoencoder_separator.19']
    #allocation4 [shape = 'u8[512]{0}', space=vmem, size = 0x400, scoped, tag = 'input window, operand 19, single buffered']
    #allocation5 [shape = 's32[1]{0}', space=sflag, size = 0x4, scoped, tag = 'scoped memory for transformer_autoencoder_separator.19']
    #allocation6 [shape = 'u8[512]{0}', space=vmem, size = 0x400, scoped, tag = 'input window, operand 20, single buffered']
    #allocation7 [shape = 'u8[512]{0}', space=vmem, size = 0x400, scoped, tag = 'input window, operand 21, single buffered']
    #allocation8 [shape = 's32[1]{0}', space=sflag, size = 0x4, scoped, tag = 'scoped memory for transformer_autoencoder_separator.19']
    %27 = vsyncpa [#allocation3], 0
    %28 = vsyncpa [#allocation5], 0
    %29 = vsyncpa [#allocation8], 0
    loop: start=0, step=1, limit=4
    $region2: #{transformer_autoencoder_separator.19} parent=1 // loop_pre_header
      _
    $region3: #{transformer_autoencoder_separator.19} parent=1 // loop_header
      %s31 = sphi 0, %s35
      %p32 = scmp.ge.s32.totalorder %s31, 4
      %s41 = sphi 0, %s43
      %s44 = sphi 0, %s41
      %s45 = sphi 0, %s44
      %s61 = sphi 0, %s45
      %s67 = sphi 0, %s69
      %s70 = sphi 0, %s67
      %s71 = sphi 0, %s70
      %s87 = sphi 0, %s71
      %s91 = sphi 0, %s91
      %s93 = sphi 0, %s91
      %s94 = sphi 0, %s93
      %s108 = sphi 0, %s94
      %s112 = sphi 0, %s112
      %s114 = sphi 0, %s112
      %s115 = sphi 0, %s114
      %s129 = sphi 0, %s115
      %s133 = sphi 0, %s133
      %s135 = sphi 0, %s133
      %s136 = sphi 0, %s135
      %s150 = sphi 0, %s136
      %s154 = sphi 0, %s154
      %s156 = sphi 0, %s154
      %s157 = sphi 0, %s156
      %s171 = sphi 0, %s157
      %s175 = sphi 0, %s175
      %s177 = sphi 0, %s175
      %s178 = sphi 0, %s177
      %s192 = sphi 0, %s178
      %s196 = sphi 0, %s196
      %s198 = sphi 0, %s196
      %s199 = sphi 0, %s198
      %s213 = sphi 0, %s199
      %s217 = sphi 0, %s217
      %s219 = sphi 0, %s217
      %s220 = sphi 0, %s219
      %s234 = sphi 0, %s220
      %s238 = sphi 0, %s238
      %s240 = sphi 0, %s238
      %s241 = sphi 0, %s240
      %s255 = sphi 0, %s241
      %s259 = sphi 0, %s259
      %s261 = sphi 0, %s259
      %s262 = sphi 0, %s261
      %s276 = sphi 0, %s262
      %s280 = sphi 0, %s280
      %s282 = sphi 0, %s280
      %s283 = sphi 0, %s282
      %s297 = sphi 0, %s283
      %s301 = sphi 0, %s301
      %s303 = sphi 0, %s301
      %s304 = sphi 0, %s303
      %s318 = sphi 0, %s304
      %s322 = sphi 0, %s322
      %s324 = sphi 0, %s322
      %s325 = sphi 0, %s324
      %s339 = sphi 0, %s325
      %s343 = sphi 0, %s343
      %s345 = sphi 0, %s343
      %s346 = sphi 0, %s345
      %s360 = sphi 0, %s346
      %s364 = sphi 0, %s364
      %s366 = sphi 0, %s364
      %s367 = sphi 0, %s366
      %s381 = sphi 0, %s367
      %s385 = sphi 0, %s385
      %s387 = sphi 0, %s385
      %s388 = sphi 0, %s387
      %s402 = sphi 0, %s388
      %s406 = sphi 0, %s406
      %s408 = sphi 0, %s406
      %s409 = sphi 0, %s408
      %s423 = sphi 0, %s409
      %s427 = sphi 0, %s427
      %s429 = sphi 0, %s427
      %s430 = sphi 0, %s429
      %s444 = sphi 0, %s430
      %s448 = sphi 0, %s448
      %s450 = sphi 0, %s448
      %s451 = sphi 0, %s450
      %s465 = sphi 0, %s451
      %s469 = sphi 0, %s469
      %s471 = sphi 0, %s469
      %s472 = sphi 0, %s471
      %s486 = sphi 0, %s472
      %s490 = sphi 0, %s490
      %s492 = sphi 0, %s490
      %s493 = sphi 0, %s492
      %s507 = sphi 0, %s493
      %s513 = sphi 0, %s515
      %s516 = sphi 0, %s513
      %s517 = sphi 0, %s516
      %s533 = sphi 0, %s517
    $region4: #{transformer_autoencoder_separator.19} parent=1 // loop_header_branch
      %34 = sbr.rel (%p32) target = $region8
    $region5: #{transformer_autoencoder_separator.19} parent=1 // loop_body
      %s36 = ssub.s32 %s31, 1
      %s37 = ssub.s32 %s31, 2
      %s38 = sadd.s32 %s31, 1
      %s39 = ssub.s32 %s31, %s38
      %p40 = scmp.eq.s32.totalorder %s39, 0
      %s42 = sadd.s32 %s41, 1
      %s43 = scalar_select %p40, %s41, %s42
      %p46 = pneg %p40
      %p47 = scmp.eq.s32.totalorder %s31, 1
      %p48 = por %p46, %p47
      %p49 = scmp.ne.s32.totalorder %s41, %s44
      %p50 = scmp.eq.s32.totalorder %s31, 0
      %p51 = por %p49, %p50
      %p52 = scmp.ne.s32.totalorder %s41, %s44
      %p53 = scmp.eq.s32.totalorder %s36, 1
      %p54 = por %p52, %p53
      %p55 = scmp.ne.s32.totalorder %s44, %s45
      %p56 = scmp.eq.s32.totalorder %s36, 0
      %p57 = por %p55, %p56
      %p58 = scmp.ne.s32.totalorder %s44, %s45
      %p59 = scmp.eq.s32.totalorder %s37, 1
      %p60 = por %p58, %p59
      %p62 = scmp.ne.s32.totalorder %s45, %s61
      %p63 = scmp.eq.s32.totalorder %s37, 0
      %p64 = por %p62, %p63
      %s65 = ssub.s32 %s31, %s38
      %p66 = scmp.eq.s32.totalorder %s65, 0
      %s68 = sadd.s32 %s67, 1
      %s69 = scalar_select %p66, %s67, %s68
      %p72 = pneg %p66
      %p73 = scmp.eq.s32.totalorder %s31, 1
      %p74 = por %p72, %p73
      %p75 = scmp.ne.s32.totalorder %s67, %s70
      %p76 = scmp.eq.s32.totalorder %s31, 0
      %p77 = por %p75, %p76
      %p78 = scmp.ne.s32.totalorder %s67, %s70
      %p79 = scmp.eq.s32.totalorder %s36, 1
      %p80 = por %p78, %p79
      %p81 = scmp.ne.s32.totalorder %s70, %s71
      %p82 = scmp.eq.s32.totalorder %s36, 0
      %p83 = por %p81, %p82
      %p84 = scmp.ne.s32.totalorder %s70, %s71
      %p85 = scmp.eq.s32.totalorder %s37, 1
      %p86 = por %p84, %p85
      %p88 = scmp.ne.s32.totalorder %s71, %s87
      %p89 = scmp.eq.s32.totalorder %s37, 0
      %p90 = por %p88, %p89
      %s92 = sadd.s32 %s91, 1
      %p95 = scmp.eq.s32.totalorder %s31, 1
      %p96 = scmp.ne.s32.totalorder %s91, %s93
      %p97 = scmp.eq.s32.totalorder %s31, 0
      %p98 = por %p96, %p97
      %p99 = scmp.ne.s32.totalorder %s91, %s93
      %p100 = scmp.eq.s32.totalorder %s36, 1
      %p101 = por %p99, %p100
      %p102 = scmp.ne.s32.totalorder %s93, %s94
      %p103 = scmp.eq.s32.totalorder %s36, 0
      %p104 = por %p102, %p103
      %p105 = scmp.ne.s32.totalorder %s93, %s94
      %p106 = scmp.eq.s32.totalorder %s37, 1
      %p107 = por %p105, %p106
      %p109 = scmp.ne.s32.totalorder %s94, %s108
      %p110 = scmp.eq.s32.totalorder %s37, 0
      %p111 = por %p109, %p110
      %s113 = sadd.s32 %s112, 1
      %p116 = scmp.eq.s32.totalorder %s31, 1
      %p117 = scmp.ne.s32.totalorder %s112, %s114
      %p118 = scmp.eq.s32.totalorder %s31, 0
      %p119 = por %p117, %p118
      %p120 = scmp.ne.s32.totalorder %s112, %s114
      %p121 = scmp.eq.s32.totalorder %s36, 1
      %p122 = por %p120, %p121
      %p123 = scmp.ne.s32.totalorder %s114, %s115
      %p124 = scmp.eq.s32.totalorder %s36, 0
      %p125 = por %p123, %p124
      %p126 = scmp.ne.s32.totalorder %s114, %s115
      %p127 = scmp.eq.s32.totalorder %s37, 1
      %p128 = por %p126, %p127
      %p130 = scmp.ne.s32.totalorder %s115, %s129
      %p131 = scmp.eq.s32.totalorder %s37, 0
      %p132 = por %p130, %p131
      %s134 = sadd.s32 %s133, 1
      %p137 = scmp.eq.s32.totalorder %s31, 1
      %p138 = scmp.ne.s32.totalorder %s133, %s135
      %p139 = scmp.eq.s32.totalorder %s31, 0
      %p140 = por %p138, %p139
      %p141 = scmp.ne.s32.totalorder %s133, %s135
      %p142 = scmp.eq.s32.totalorder %s36, 1
      %p143 = por %p141, %p142
      %p144 = scmp.ne.s32.totalorder %s135, %s136
      %p145 = scmp.eq.s32.totalorder %s36, 0
      %p146 = por %p144, %p145
      %p147 = scmp.ne.s32.totalorder %s135, %s136
      %p148 = scmp.eq.s32.totalorder %s37, 1
      %p149 = por %p147, %p148
      %p151 = scmp.ne.s32.totalorder %s136, %s150
      %p152 = scmp.eq.s32.totalorder %s37, 0
      %p153 = por %p151, %p152
      %s155 = sadd.s32 %s154, 1
      %p158 = scmp.eq.s32.totalorder %s31, 1
      %p159 = scmp.ne.s32.totalorder %s154, %s156
      %p160 = scmp.eq.s32.totalorder %s31, 0
      %p161 = por %p159, %p160
      %p162 = scmp.ne.s32.totalorder %s154, %s156
      %p163 = scmp.eq.s32.totalorder %s36, 1
      %p164 = por %p162, %p163
      %p165 = scmp.ne.s32.totalorder %s156, %s157
      %p166 = scmp.eq.s32.totalorder %s36, 0
      %p167 = por %p165, %p166
      %p168 = scmp.ne.s32.totalorder %s156, %s157
      %p169 = scmp.eq.s32.totalorder %s37, 1
      %p170 = por %p168, %p169
      %p172 = scmp.ne.s32.totalorder %s157, %s171
      %p173 = scmp.eq.s32.totalorder %s37, 0
      %p174 = por %p172, %p173
      %s176 = sadd.s32 %s175, 1
      %p179 = scmp.eq.s32.totalorder %s31, 1
      %p180 = scmp.ne.s32.totalorder %s175, %s177
      %p181 = scmp.eq.s32.totalorder %s31, 0
      %p182 = por %p180, %p181
      %p183 = scmp.ne.s32.totalorder %s175, %s177
      %p184 = scmp.eq.s32.totalorder %s36, 1
      %p185 = por %p183, %p184
      %p186 = scmp.ne.s32.totalorder %s177, %s178
      %p187 = scmp.eq.s32.totalorder %s36, 0
      %p188 = por %p186, %p187
      %p189 = scmp.ne.s32.totalorder %s177, %s178
      %p190 = scmp.eq.s32.totalorder %s37, 1
      %p191 = por %p189, %p190
      %p193 = scmp.ne.s32.totalorder %s178, %s192
      %p194 = scmp.eq.s32.totalorder %s37, 0
      %p195 = por %p193, %p194
      %s197 = sadd.s32 %s196, 1
      %p200 = scmp.eq.s32.totalorder %s31, 1
      %p201 = scmp.ne.s32.totalorder %s196, %s198
      %p202 = scmp.eq.s32.totalorder %s31, 0
      %p203 = por %p201, %p202
      %p204 = scmp.ne.s32.totalorder %s196, %s198
      %p205 = scmp.eq.s32.totalorder %s36, 1
      %p206 = por %p204, %p205
      %p207 = scmp.ne.s32.totalorder %s198, %s199
      %p208 = scmp.eq.s32.totalorder %s36, 0
      %p209 = por %p207, %p208
      %p210 = scmp.ne.s32.totalorder %s198, %s199
      %p211 = scmp.eq.s32.totalorder %s37, 1
      %p212 = por %p210, %p211
      %p214 = scmp.ne.s32.totalorder %s199, %s213
      %p215 = scmp.eq.s32.totalorder %s37, 0
      %p216 = por %p214, %p215
      %s218 = sadd.s32 %s217, 1
      %p221 = scmp.eq.s32.totalorder %s31, 1
      %p222 = scmp.ne.s32.totalorder %s217, %s219
      %p223 = scmp.eq.s32.totalorder %s31, 0
      %p224 = por %p222, %p223
      %p225 = scmp.ne.s32.totalorder %s217, %s219
      %p226 = scmp.eq.s32.totalorder %s36, 1
      %p227 = por %p225, %p226
      %p228 = scmp.ne.s32.totalorder %s219, %s220
      %p229 = scmp.eq.s32.totalorder %s36, 0
      %p230 = por %p228, %p229
      %p231 = scmp.ne.s32.totalorder %s219, %s220
      %p232 = scmp.eq.s32.totalorder %s37, 1
      %p233 = por %p231, %p232
      %p235 = scmp.ne.s32.totalorder %s220, %s234
      %p236 = scmp.eq.s32.totalorder %s37, 0
      %p237 = por %p235, %p236
      %s239 = sadd.s32 %s238, 1
      %p242 = scmp.eq.s32.totalorder %s31, 1
      %p243 = scmp.ne.s32.totalorder %s238, %s240
      %p244 = scmp.eq.s32.totalorder %s31, 0
      %p245 = por %p243, %p244
      %p246 = scmp.ne.s32.totalorder %s238, %s240
      %p247 = scmp.eq.s32.totalorder %s36, 1
      %p248 = por %p246, %p247
      %p249 = scmp.ne.s32.totalorder %s240, %s241
      %p250 = scmp.eq.s32.totalorder %s36, 0
      %p251 = por %p249, %p250
      %p252 = scmp.ne.s32.totalorder %s240, %s241
      %p253 = scmp.eq.s32.totalorder %s37, 1
      %p254 = por %p252, %p253
      %p256 = scmp.ne.s32.totalorder %s241, %s255
      %p257 = scmp.eq.s32.totalorder %s37, 0
      %p258 = por %p256, %p257
      %s260 = sadd.s32 %s259, 1
      %p263 = scmp.eq.s32.totalorder %s31, 1
      %p264 = scmp.ne.s32.totalorder %s259, %s261
      %p265 = scmp.eq.s32.totalorder %s31, 0
      %p266 = por %p264, %p265
      %p267 = scmp.ne.s32.totalorder %s259, %s261
      %p268 = scmp.eq.s32.totalorder %s36, 1
      %p269 = por %p267, %p268
      %p270 = scmp.ne.s32.totalorder %s261, %s262
      %p271 = scmp.eq.s32.totalorder %s36, 0
      %p272 = por %p270, %p271
      %p273 = scmp.ne.s32.totalorder %s261, %s262
      %p274 = scmp.eq.s32.totalorder %s37, 1
      %p275 = por %p273, %p274
      %p277 = scmp.ne.s32.totalorder %s262, %s276
      %p278 = scmp.eq.s32.totalorder %s37, 0
      %p279 = por %p277, %p278
      %s281 = sadd.s32 %s280, 1
      %p284 = scmp.eq.s32.totalorder %s31, 1
      %p285 = scmp.ne.s32.totalorder %s280, %s282
      %p286 = scmp.eq.s32.totalorder %s31, 0
      %p287 = por %p285, %p286
      %p288 = scmp.ne.s32.totalorder %s280, %s282
      %p289 = scmp.eq.s32.totalorder %s36, 1
      %p290 = por %p288, %p289
      %p291 = scmp.ne.s32.totalorder %s282, %s283
      %p292 = scmp.eq.s32.totalorder %s36, 0
      %p293 = por %p291, %p292
      %p294 = scmp.ne.s32.totalorder %s282, %s283
      %p295 = scmp.eq.s32.totalorder %s37, 1
      %p296 = por %p294, %p295
      %p298 = scmp.ne.s32.totalorder %s283, %s297
      %p299 = scmp.eq.s32.totalorder %s37, 0
      %p300 = por %p298, %p299
      %s302 = sadd.s32 %s301, 1
      %p305 = scmp.eq.s32.totalorder %s31, 1
      %p306 = scmp.ne.s32.totalorder %s301, %s303
      %p307 = scmp.eq.s32.totalorder %s31, 0
      %p308 = por %p306, %p307
      %p309 = scmp.ne.s32.totalorder %s301, %s303
      %p310 = scmp.eq.s32.totalorder %s36, 1
      %p311 = por %p309, %p310
      %p312 = scmp.ne.s32.totalorder %s303, %s304
      %p313 = scmp.eq.s32.totalorder %s36, 0
      %p314 = por %p312, %p313
      %p315 = scmp.ne.s32.totalorder %s303, %s304
      %p316 = scmp.eq.s32.totalorder %s37, 1
      %p317 = por %p315, %p316
      %p319 = scmp.ne.s32.totalorder %s304, %s318
      %p320 = scmp.eq.s32.totalorder %s37, 0
      %p321 = por %p319, %p320
      %s323 = sadd.s32 %s322, 1
      %p326 = scmp.eq.s32.totalorder %s31, 1
      %p327 = scmp.ne.s32.totalorder %s322, %s324
      %p328 = scmp.eq.s32.totalorder %s31, 0
      %p329 = por %p327, %p328
      %p330 = scmp.ne.s32.totalorder %s322, %s324
      %p331 = scmp.eq.s32.totalorder %s36, 1
      %p332 = por %p330, %p331
      %p333 = scmp.ne.s32.totalorder %s324, %s325
      %p334 = scmp.eq.s32.totalorder %s36, 0
      %p335 = por %p333, %p334
      %p336 = scmp.ne.s32.totalorder %s324, %s325
      %p337 = scmp.eq.s32.totalorder %s37, 1
      %p338 = por %p336, %p337
      %p340 = scmp.ne.s32.totalorder %s325, %s339
      %p341 = scmp.eq.s32.totalorder %s37, 0
      %p342 = por %p340, %p341
      %s344 = sadd.s32 %s343, 1
      %p347 = scmp.eq.s32.totalorder %s31, 1
      %p348 = scmp.ne.s32.totalorder %s343, %s345
      %p349 = scmp.eq.s32.totalorder %s31, 0
      %p350 = por %p348, %p349
      %p351 = scmp.ne.s32.totalorder %s343, %s345
      %p352 = scmp.eq.s32.totalorder %s36, 1
      %p353 = por %p351, %p352
      %p354 = scmp.ne.s32.totalorder %s345, %s346
      %p355 = scmp.eq.s32.totalorder %s36, 0
      %p356 = por %p354, %p355
      %p357 = scmp.ne.s32.totalorder %s345, %s346
      %p358 = scmp.eq.s32.totalorder %s37, 1
      %p359 = por %p357, %p358
      %p361 = scmp.ne.s32.totalorder %s346, %s360
      %p362 = scmp.eq.s32.totalorder %s37, 0
      %p363 = por %p361, %p362
      %s365 = sadd.s32 %s364, 1
      %p368 = scmp.eq.s32.totalorder %s31, 1
      %p369 = scmp.ne.s32.totalorder %s364, %s366
      %p370 = scmp.eq.s32.totalorder %s31, 0
      %p371 = por %p369, %p370
      %p372 = scmp.ne.s32.totalorder %s364, %s366
      %p373 = scmp.eq.s32.totalorder %s36, 1
      %p374 = por %p372, %p373
      %p375 = scmp.ne.s32.totalorder %s366, %s367
      %p376 = scmp.eq.s32.totalorder %s36, 0
      %p377 = por %p375, %p376
      %p378 = scmp.ne.s32.totalorder %s366, %s367
      %p379 = scmp.eq.s32.totalorder %s37, 1
      %p380 = por %p378, %p379
      %p382 = scmp.ne.s32.totalorder %s367, %s381
      %p383 = scmp.eq.s32.totalorder %s37, 0
      %p384 = por %p382, %p383
      %s386 = sadd.s32 %s385, 1
      %p389 = scmp.eq.s32.totalorder %s31, 1
      %p390 = scmp.ne.s32.totalorder %s385, %s387
      %p391 = scmp.eq.s32.totalorder %s31, 0
      %p392 = por %p390, %p391
      %p393 = scmp.ne.s32.totalorder %s385, %s387
      %p394 = scmp.eq.s32.totalorder %s36, 1
      %p395 = por %p393, %p394
      %p396 = scmp.ne.s32.totalorder %s387, %s388
      %p397 = scmp.eq.s32.totalorder %s36, 0
      %p398 = por %p396, %p397
      %p399 = scmp.ne.s32.totalorder %s387, %s388
      %p400 = scmp.eq.s32.totalorder %s37, 1
      %p401 = por %p399, %p400
      %p403 = scmp.ne.s32.totalorder %s388, %s402
      %p404 = scmp.eq.s32.totalorder %s37, 0
      %p405 = por %p403, %p404
      %s407 = sadd.s32 %s406, 1
      %p410 = scmp.eq.s32.totalorder %s31, 1
      %p411 = scmp.ne.s32.totalorder %s406, %s408
      %p412 = scmp.eq.s32.totalorder %s31, 0
      %p413 = por %p411, %p412
      %p414 = scmp.ne.s32.totalorder %s406, %s408
      %p415 = scmp.eq.s32.totalorder %s36, 1
      %p416 = por %p414, %p415
      %p417 = scmp.ne.s32.totalorder %s408, %s409
      %p418 = scmp.eq.s32.totalorder %s36, 0
      %p419 = por %p417, %p418
      %p420 = scmp.ne.s32.totalorder %s408, %s409
      %p421 = scmp.eq.s32.totalorder %s37, 1
      %p422 = por %p420, %p421
      %p424 = scmp.ne.s32.totalorder %s409, %s423
      %p425 = scmp.eq.s32.totalorder %s37, 0
      %p426 = por %p424, %p425
      %s428 = sadd.s32 %s427, 1
      %p431 = scmp.eq.s32.totalorder %s31, 1
      %p432 = scmp.ne.s32.totalorder %s427, %s429
      %p433 = scmp.eq.s32.totalorder %s31, 0
      %p434 = por %p432, %p433
      %p435 = scmp.ne.s32.totalorder %s427, %s429
      %p436 = scmp.eq.s32.totalorder %s36, 1
      %p437 = por %p435, %p436
      %p438 = scmp.ne.s32.totalorder %s429, %s430
      %p439 = scmp.eq.s32.totalorder %s36, 0
      %p440 = por %p438, %p439
      %p441 = scmp.ne.s32.totalorder %s429, %s430
      %p442 = scmp.eq.s32.totalorder %s37, 1
      %p443 = por %p441, %p442
      %p445 = scmp.ne.s32.totalorder %s430, %s444
      %p446 = scmp.eq.s32.totalorder %s37, 0
      %p447 = por %p445, %p446
      %s449 = sadd.s32 %s448, 1
      %p452 = scmp.eq.s32.totalorder %s31, 1
      %p453 = scmp.ne.s32.totalorder %s448, %s450
      %p454 = scmp.eq.s32.totalorder %s31, 0
      %p455 = por %p453, %p454
      %p456 = scmp.ne.s32.totalorder %s448, %s450
      %p457 = scmp.eq.s32.totalorder %s36, 1
      %p458 = por %p456, %p457
      %p459 = scmp.ne.s32.totalorder %s450, %s451
      %p460 = scmp.eq.s32.totalorder %s36, 0
      %p461 = por %p459, %p460
      %p462 = scmp.ne.s32.totalorder %s450, %s451
      %p463 = scmp.eq.s32.totalorder %s37, 1
      %p464 = por %p462, %p463
      %p466 = scmp.ne.s32.totalorder %s451, %s465
      %p467 = scmp.eq.s32.totalorder %s37, 0
      %p468 = por %p466, %p467
      %s470 = sadd.s32 %s469, 1
      %p473 = scmp.eq.s32.totalorder %s31, 1
      %p474 = scmp.ne.s32.totalorder %s469, %s471
      %p475 = scmp.eq.s32.totalorder %s31, 0
      %p476 = por %p474, %p475
      %p477 = scmp.ne.s32.totalorder %s469, %s471
      %p478 = scmp.eq.s32.totalorder %s36, 1
      %p479 = por %p477, %p478
      %p480 = scmp.ne.s32.totalorder %s471, %s472
      %p481 = scmp.eq.s32.totalorder %s36, 0
      %p482 = por %p480, %p481
      %p483 = scmp.ne.s32.totalorder %s471, %s472
      %p484 = scmp.eq.s32.totalorder %s37, 1
      %p485 = por %p483, %p484
      %p487 = scmp.ne.s32.totalorder %s472, %s486
      %p488 = scmp.eq.s32.totalorder %s37, 0
      %p489 = por %p487, %p488
      %s491 = sadd.s32 %s490, 1
      %p494 = scmp.eq.s32.totalorder %s31, 1
      %p495 = scmp.ne.s32.totalorder %s490, %s492
      %p496 = scmp.eq.s32.totalorder %s31, 0
      %p497 = por %p495, %p496
      %p498 = scmp.ne.s32.totalorder %s490, %s492
      %p499 = scmp.eq.s32.totalorder %s36, 1
      %p500 = por %p498, %p499
      %p501 = scmp.ne.s32.totalorder %s492, %s493
      %p502 = scmp.eq.s32.totalorder %s36, 0
      %p503 = por %p501, %p502
      %p504 = scmp.ne.s32.totalorder %s492, %s493
      %p505 = scmp.eq.s32.totalorder %s37, 1
      %p506 = por %p504, %p505
      %p508 = scmp.ne.s32.totalorder %s493, %s507
      %p509 = scmp.eq.s32.totalorder %s37, 0
      %p510 = por %p508, %p509
      %s511 = ssub.s32 %s31, %s38
      %p512 = scmp.eq.s32.totalorder %s511, 0
      %s514 = sadd.s32 %s513, 1
      %s515 = scalar_select %p512, %s513, %s514
      %p518 = pneg %p512
      %p519 = scmp.eq.s32.totalorder %s31, 1
      %p520 = por %p518, %p519
      %p521 = scmp.ne.s32.totalorder %s513, %s516
      %p522 = scmp.eq.s32.totalorder %s31, 0
      %p523 = por %p521, %p522
      %p524 = scmp.ne.s32.totalorder %s513, %s516
      %p525 = scmp.eq.s32.totalorder %s36, 1
      %p526 = por %p524, %p525
      %p527 = scmp.ne.s32.totalorder %s516, %s517
      %p528 = scmp.eq.s32.totalorder %s36, 0
      %p529 = por %p527, %p528
      %p530 = scmp.ne.s32.totalorder %s516, %s517
      %p531 = scmp.eq.s32.totalorder %s37, 1
      %p532 = por %p530, %p531
      %p534 = scmp.ne.s32.totalorder %s517, %s533
      %p535 = scmp.eq.s32.totalorder %s37, 0
      %p536 = por %p534, %p535
      %p537 = scmp.le.s32.totalorder 1, %s31
      %p538 = scmp.lt.s32.totalorder %s31, 3
      %p539 = pnand %p537, %p538
      %p540 = pneg %p539
      // Predicated region
      $region9: #{transformer_autoencoder_separator.19} parent=5 // pred_check
        _
      $region10: #{transformer_autoencoder_separator.19} parent=5 // pred_check_branch
        %542 = sbr.rel (%p539) target = $region12
      $region11: #{transformer_autoencoder_separator.19} parent=5 // pred_region
        %s543 = ssub.s32 %s31, 1
        // Predicated region
        $region13: #{transformer_autoencoder_separator.19} parent=11 // pred_check
          %p544 = pneg %p104
        $region14: #{transformer_autoencoder_separator.19} parent=11 // pred_check_branch
          %546 = sbr.rel (%p544) target = $region16
        $region15: #{transformer_autoencoder_separator.19} parent=11 // pred_region
          _
        $region16: #{transformer_autoencoder_separator.19} parent=11 // pred_fallthru
          _
        // Predicated region
        $region17: #{transformer_autoencoder_separator.19} parent=11 // pred_check
          %p547 = pneg %p125
        $region18: #{transformer_autoencoder_separator.19} parent=11 // pred_check_branch
          %549 = sbr.rel (%p547) target = $region20
        $region19: #{transformer_autoencoder_separator.19} parent=11 // pred_region
          _
        $region20: #{transformer_autoencoder_separator.19} parent=11 // pred_fallthru
          _
        // Predicated region
        $region21: #{transformer_autoencoder_separator.19} parent=11 // pred_check
          %p550 = pneg %p146
        $region22: #{transformer_autoencoder_separator.19} parent=11 // pred_check_branch
          %552 = sbr.rel (%p550) target = $region24
        $region23: #{transformer_autoencoder_separator.19} parent=11 // pred_region
          _
        $region24: #{transformer_autoencoder_separator.19} parent=11 // pred_fallthru
          _
        // Predicated region
        $region25: #{transformer_autoencoder_separator.19} parent=11 // pred_check
          %p553 = pneg %p167
        $region26: #{transformer_autoencoder_separator.19} parent=11 // pred_check_branch
          %555 = sbr.rel (%p553) target = $region28
        $region27: #{transformer_autoencoder_separator.19} parent=11 // pred_region
          _
        $region28: #{transformer_autoencoder_separator.19} parent=11 // pred_fallthru
          _
        // Predicated region
        $region29: #{transformer_autoencoder_separator.19} parent=11 // pred_check
          %p556 = pneg %p188
        $region30: #{transformer_autoencoder_separator.19} parent=11 // pred_check_branch
          %558 = sbr.rel (%p556) target = $region32
        $region31: #{transformer_autoencoder_separator.19} parent=11 // pred_region
          _
        $region32: #{transformer_autoencoder_separator.19} parent=11 // pred_fallthru
          _
        // Predicated region
        $region33: #{transformer_autoencoder_separator.19} parent=11 // pred_check
          %p559 = pneg %p209
        $region34: #{transformer_autoencoder_separator.19} parent=11 // pred_check_branch
          %561 = sbr.rel (%p559) target = $region36
        $region35: #{transformer_autoencoder_separator.19} parent=11 // pred_region
          _
        $region36: #{transformer_autoencoder_separator.19} parent=11 // pred_fallthru
          _
        // Predicated region
        $region37: #{transformer_autoencoder_separator.19} parent=11 // pred_check
          %p562 = pneg %p230
        $region38: #{transformer_autoencoder_separator.19} parent=11 // pred_check_branch
          %564 = sbr.rel (%p562) target = $region40
        $region39: #{transformer_autoencoder_separator.19} parent=11 // pred_region
          _
        $region40: #{transformer_autoencoder_separator.19} parent=11 // pred_fallthru
          _
        // Predicated region
        $region41: #{transformer_autoencoder_separator.19} parent=11 // pred_check
          %p565 = pneg %p251
        $region42: #{transformer_autoencoder_separator.19} parent=11 // pred_check_branch
          %567 = sbr.rel (%p565) target = $region44
        $region43: #{transformer_autoencoder_separator.19} parent=11 // pred_region
          _
        $region44: #{transformer_autoencoder_separator.19} parent=11 // pred_fallthru
          _
        // Predicated region
        $region45: #{transformer_autoencoder_separator.19} parent=11 // pred_check
          %p568 = pneg %p272
        $region46: #{transformer_autoencoder_separator.19} parent=11 // pred_check_branch
          %570 = sbr.rel (%p568) target = $region48
        $region47: #{transformer_autoencoder_separator.19} parent=11 // pred_region
          _
        $region48: #{transformer_autoencoder_separator.19} parent=11 // pred_fallthru
          _
        // Predicated region
        $region49: #{transformer_autoencoder_separator.19} parent=11 // pred_check
          %p571 = pneg %p293
        $region50: #{transformer_autoencoder_separator.19} parent=11 // pred_check_branch
          %573 = sbr.rel (%p571) target = $region52
        $region51: #{transformer_autoencoder_separator.19} parent=11 // pred_region
          _
        $region52: #{transformer_autoencoder_separator.19} parent=11 // pred_fallthru
          _
        // Predicated region
        $region53: #{transformer_autoencoder_separator.19} parent=11 // pred_check
          %p574 = pneg %p314
        $region54: #{transformer_autoencoder_separator.19} parent=11 // pred_check_branch
          %576 = sbr.rel (%p574) target = $region56
        $region55: #{transformer_autoencoder_separator.19} parent=11 // pred_region
          _
        $region56: #{transformer_autoencoder_separator.19} parent=11 // pred_fallthru
          _
        // Predicated region
        $region57: #{transformer_autoencoder_separator.19} parent=11 // pred_check
          %p577 = pneg %p335
        $region58: #{transformer_autoencoder_separator.19} parent=11 // pred_check_branch
          %579 = sbr.rel (%p577) target = $region60
        $region59: #{transformer_autoencoder_separator.19} parent=11 // pred_region
          _
        $region60: #{transformer_autoencoder_separator.19} parent=11 // pred_fallthru
          _
        // Predicated region
        $region61: #{transformer_autoencoder_separator.19} parent=11 // pred_check
          %p580 = pneg %p356
        $region62: #{transformer_autoencoder_separator.19} parent=11 // pred_check_branch
          %582 = sbr.rel (%p580) target = $region64
        $region63: #{transformer_autoencoder_separator.19} parent=11 // pred_region
          _
        $region64: #{transformer_autoencoder_separator.19} parent=11 // pred_fallthru
          _
        // Predicated region
        $region65: #{transformer_autoencoder_separator.19} parent=11 // pred_check
          %p583 = pneg %p377
        $region66: #{transformer_autoencoder_separator.19} parent=11 // pred_check_branch
          %585 = sbr.rel (%p583) target = $region68
        $region67: #{transformer_autoencoder_separator.19} parent=11 // pred_region
          _
        $region68: #{transformer_autoencoder_separator.19} parent=11 // pred_fallthru
          _
        // Predicated region
        $region69: #{transformer_autoencoder_separator.19} parent=11 // pred_check
          %p586 = pneg %p398
        $region70: #{transformer_autoencoder_separator.19} parent=11 // pred_check_branch
          %588 = sbr.rel (%p586) target = $region72
        $region71: #{transformer_autoencoder_separator.19} parent=11 // pred_region
          _
        $region72: #{transformer_autoencoder_separator.19} parent=11 // pred_fallthru
          _
        // Predicated region
        $region73: #{transformer_autoencoder_separator.19} parent=11 // pred_check
          %p589 = pneg %p419
        $region74: #{transformer_autoencoder_separator.19} parent=11 // pred_check_branch
          %591 = sbr.rel (%p589) target = $region76
        $region75: #{transformer_autoencoder_separator.19} parent=11 // pred_region
          %s593 = ssub.s32 16, 16
          %594 = vsyncadd [#allocation3], %s593
          %s596 = sshll.u32 [#allocation2], 4
          %s597 = int_to_ptr.vmem [resolvable:$true] %s596
          %599 = dma.hbm_to_vmem [thread:$0]  %s17, 16, %s597, [#allocation3]
        $region76: #{transformer_autoencoder_separator.19} parent=11 // pred_fallthru
          _
        // Predicated region
        $region77: #{transformer_autoencoder_separator.19} parent=11 // pred_check
          %p600 = pneg %p440
        $region78: #{transformer_autoencoder_separator.19} parent=11 // pred_check_branch
          %602 = sbr.rel (%p600) target = $region80
        $region79: #{transformer_autoencoder_separator.19} parent=11 // pred_region
          _
        $region80: #{transformer_autoencoder_separator.19} parent=11 // pred_fallthru
          _
        // Predicated region
        $region81: #{transformer_autoencoder_separator.19} parent=11 // pred_check
          %p603 = pneg %p461
        $region82: #{transformer_autoencoder_separator.19} parent=11 // pred_check_branch
          %605 = sbr.rel (%p603) target = $region84
        $region83: #{transformer_autoencoder_separator.19} parent=11 // pred_region
          %s607 = ssub.s32 16, 16
          %608 = vsyncadd [#allocation5], %s607
          %s610 = sshll.u32 [#allocation4], 4
          %s611 = int_to_ptr.vmem [resolvable:$true] %s610
          %613 = dma.hbm_to_vmem [thread:$0]  %s19, 16, %s611, [#allocation5]
        $region84: #{transformer_autoencoder_separator.19} parent=11 // pred_fallthru
          _
        // Predicated region
        $region85: #{transformer_autoencoder_separator.19} parent=11 // pred_check
          %p614 = pneg %p482
        $region86: #{transformer_autoencoder_separator.19} parent=11 // pred_check_branch
          %616 = sbr.rel (%p614) target = $region88
        $region87: #{transformer_autoencoder_separator.19} parent=11 // pred_region
          %s618 = ssub.s32 16, 16
          %619 = vsyncadd [#allocation5], %s618
          %s621 = sshll.u32 [#allocation6], 4
          %s622 = int_to_ptr.vmem [resolvable:$true] %s621
          %624 = dma.hbm_to_vmem [thread:$0]  %s20, 16, %s622, [#allocation5]
        $region88: #{transformer_autoencoder_separator.19} parent=11 // pred_fallthru
          _
        // Predicated region
        $region89: #{transformer_autoencoder_separator.19} parent=11 // pred_check
          %p625 = pneg %p503
        $region90: #{transformer_autoencoder_separator.19} parent=11 // pred_check_branch
          %627 = sbr.rel (%p625) target = $region92
        $region91: #{transformer_autoencoder_separator.19} parent=11 // pred_region
          %s629 = ssub.s32 16, 16
          %630 = vsyncadd [#allocation8], %s629
          %s632 = sshll.u32 [#allocation7], 4
          %s633 = int_to_ptr.vmem [resolvable:$true] %s632
          %635 = dma.hbm_to_vmem [thread:$0]  %s21, 16, %s633, [#allocation8]
        $region92: #{transformer_autoencoder_separator.19} parent=11 // pred_fallthru
          _
      $region12: #{transformer_autoencoder_separator.19} parent=5 // pred_fallthru
        _
      %p636 = scmp.lt.s32.totalorder %s31, 2
      // Predicated region
      $region93: #{transformer_autoencoder_separator.19} parent=5 // pred_check
        %p637 = pneg %p636
      $region94: #{transformer_autoencoder_separator.19} parent=5 // pred_check_branch
        %639 = sbr.rel (%p637) target = $region96
      $region95: #{transformer_autoencoder_separator.19} parent=5 // pred_region
        // Predicated region
        $region97: #{transformer_autoencoder_separator.19} parent=95 // pred_check
          %p640 = pneg %p51
        $region98: #{transformer_autoencoder_separator.19} parent=95 // pred_check_branch
          %642 = sbr.rel (%p640) target = $region100
        $region99: #{transformer_autoencoder_separator.19} parent=95 // pred_region
          %p643 = scmp.lt.s32.totalorder %s31, 1
          %s644 = scalar_select %p643, %s31, 1
          %s645 = smul.addr %s644, 8
          %s646 = scalar_lea.vmem %s0, %s645
        $region100: #{transformer_autoencoder_separator.19} parent=95 // pred_fallthru
          _
        // Predicated region
        $region101: #{transformer_autoencoder_separator.19} parent=95 // pred_check
          %p647 = pneg %p77
        $region102: #{transformer_autoencoder_separator.19} parent=95 // pred_check_branch
          %649 = sbr.rel (%p647) target = $region104
        $region103: #{transformer_autoencoder_separator.19} parent=95 // pred_region
          %p650 = scmp.lt.s32.totalorder %s31, 1
          %s651 = scalar_select %p650, %s31, 1
          %s652 = smul.addr %s651, 8
          %s653 = scalar_lea.vmem %s1, %s652
        $region104: #{transformer_autoencoder_separator.19} parent=95 // pred_fallthru
          _
      $region96: #{transformer_autoencoder_separator.19} parent=5 // pred_fallthru
        _
      %p654 = scmp.le.s32.totalorder 1, %s31
      %p655 = scmp.lt.s32.totalorder %s31, 3
      %p656 = pnand %p654, %p655
      %p657 = pneg %p656
      // Predicated region
      $region105: #{transformer_autoencoder_separator.19} parent=5 // pred_check
        _
      $region106: #{transformer_autoencoder_separator.19} parent=5 // pred_check_branch
        %659 = sbr.rel (%p656) target = $region108
      $region107: #{transformer_autoencoder_separator.19} parent=5 // pred_region
        %s660 = ssub.s32 %s31, 1
        // Predicated region
        $region109: #{transformer_autoencoder_separator.19} parent=107 // pred_check
          %p661 = pneg %p419
        $region110: #{transformer_autoencoder_separator.19} parent=107 // pred_check_branch
          %663 = sbr.rel (%p661) target = $region112
        $region111: #{transformer_autoencoder_separator.19} parent=107 // pred_region
          %664 = dma.done [#allocation3], 16
        $region112: #{transformer_autoencoder_separator.19} parent=107 // pred_fallthru
          _
        // Predicated region
        $region113: #{transformer_autoencoder_separator.19} parent=107 // pred_check
          %p665 = pneg %p461
        $region114: #{transformer_autoencoder_separator.19} parent=107 // pred_check_branch
          %667 = sbr.rel (%p665) target = $region116
        $region115: #{transformer_autoencoder_separator.19} parent=107 // pred_region
          %668 = dma.done [#allocation5], 16
        $region116: #{transformer_autoencoder_separator.19} parent=107 // pred_fallthru
          _
        // Predicated region
        $region117: #{transformer_autoencoder_separator.19} parent=107 // pred_check
          %p669 = pneg %p482
        $region118: #{transformer_autoencoder_separator.19} parent=107 // pred_check_branch
          %671 = sbr.rel (%p669) target = $region120
        $region119: #{transformer_autoencoder_separator.19} parent=107 // pred_region
          %672 = dma.done [#allocation5], 16
        $region120: #{transformer_autoencoder_separator.19} parent=107 // pred_fallthru
          _
        // Predicated region
        $region121: #{transformer_autoencoder_separator.19} parent=107 // pred_check
          %p673 = pneg %p503
        $region122: #{transformer_autoencoder_separator.19} parent=107 // pred_check_branch
          %675 = sbr.rel (%p673) target = $region124
        $region123: #{transformer_autoencoder_separator.19} parent=107 // pred_region
          %676 = dma.done [#allocation8], 16
        $region124: #{transformer_autoencoder_separator.19} parent=107 // pred_fallthru
          _
        %p677 = scmp.lt.s32.totalorder %s36, 1
        %s678 = scalar_select %p677, %s36, 1
        %s679 = smul.addr %s678, 8
        %s680 = scalar_lea.vmem %s0, %s679
        %p681 = pneg %p57
        %p682 = pneg %p54
        %p683 = scmp.lt.s32.totalorder %s36, 1
        %s684 = scalar_select %p683, %s36, 1
        %s685 = smul.addr %s684, 8
        %s686 = scalar_lea.vmem %s1, %s685
        %p687 = pneg %p83
        %p688 = pneg %p80
        %p689 = pneg %p104
        %p690 = pneg %p101
        %p691 = pneg %p125
        %p692 = pneg %p122
        %p693 = pneg %p146
        %p694 = pneg %p143
        %p695 = pneg %p167
        %p696 = pneg %p164
        %p697 = pneg %p188
        %p698 = pneg %p185
        %p699 = pneg %p209
        %p700 = pneg %p206
        %p701 = pneg %p230
        %p702 = pneg %p227
        %p703 = pneg %p251
        %p704 = pneg %p248
        %p705 = pneg %p272
        %p706 = pneg %p269
        %p707 = pneg %p293
        %p708 = pneg %p290
        %p709 = pneg %p314
        %p710 = pneg %p311
        %p711 = pneg %p335
        %p712 = pneg %p332
        %p713 = pneg %p356
        %p714 = pneg %p353
        %p715 = pneg %p377
        %p716 = pneg %p374
        %p717 = pneg %p398
        %p718 = pneg %p395
        %p719 = pneg %p419
        %p720 = pneg %p416
        %p721 = pneg %p440
        %p722 = pneg %p437
        %p723 = pneg %p461
        %p724 = pneg %p458
        %p725 = pneg %p482
        %p726 = pneg %p479
        %p727 = pneg %p503
        %p728 = pneg %p500
        %p729 = pneg %p529
        %p730 = pneg %p526
        %p731 = scmp.lt.s32.totalorder %s36, 1
        %s732 = scalar_select %p731, %s36, 1
        %s733 = smul.addr %s732, 8
        %s734 = scalar_lea.vmem %s22, %s733
        %p735 = scmp.lt.s32.totalorder %s36, 1
        %s736 = scalar_select %p735, %s36, 1
        %s737 = smul.addr %s736, 8
        %s738 = scalar_lea.vmem %s0, %s737
        %p739 = scmp.lt.s32.totalorder %s36, 1
        %s740 = scalar_select %p739, %s36, 1
        %s741 = smul.addr %s740, 8
        %s742 = scalar_lea.vmem %s1, %s741
        %p743 = scmp.lt.s32.totalorder %s36, 1
        %s744 = scalar_select %p743, %s36, 1
        %s745 = smul.addr %s744, 8
        %s746 = scalar_lea.vmem %s22, %s745
        %v748 = vld [vmem:[%s738] sm:$0xff]
        %v749 = vld [vmem:[%s742] sm:$0xff]
        %v750 = vpack.c.bf16 %v748, %v748
        %v751 = vld [vmem:[%s2] sm:$0xf]
        %v752 = vld [vmem:[%s2 + $0x4] sm:$0xf]
        %v753 = vld [vmem:[%s2 + $0x8] sm:$0xf]
        %v754 = vld [vmem:[%s2 + $0xc] sm:$0xf]
        %v755 = vld [vmem:[%s3] sm:$0x1]
        %v757 = vlaneseq
        %v758 = vshrl.u32 %v757, 7
        %v759 = vsub.s32 0, %v758
        %v760 = vrot.slane %v755, %v759
        %v766 = vunpack.c.l.b16 %v751
        %v767 = vunpack.c.l.b16 %v752
        %v768 = vunpack.c.l.b16 %v753
        %v769 = vunpack.c.l.b16 %v754
        %v770 = vpack.c.b16 %v767, %v766
        %v771 = vpack.c.b16 %v769, %v768
        %vm774 = vcmask 261120
        %v776 = vsel %vm774, %v750, 0
        %778 = vmatprep.subr.bf16.mxu0 0
        %779 = vmatpush1.bf16.msra.mxu0 %v770
        %780 = vmatprep.subr.bf16.mxu0 0
        %781 = vmatpush1.bf16.msra.mxu0 %v771
        %782 = vmatprep.subr.bf16.mxu0 0
        %783 = vmatpush1.bf16.msra.mxu0 0
        %784 = vmatprep.subr.bf16.mxu0 0
        %785 = vmatpush1.bf16.msra.mxu0 0
        %786 = vmatprep.subr.bf16.mxu0 0
        %787 = vmatpush1.bf16.msra.mxu0 0
        %788 = vmatprep.subr.bf16.mxu0 0
        %789 = vmatpush1.bf16.msra.mxu0 0
        %790 = vmatprep.subr.bf16.mxu0 0
        %791 = vmatpush1.bf16.msra.mxu0 0
        %792 = vmatprep.subr.bf16.mxu0 0
        %793 = vmatpush1.bf16.msra.mxu0 0
        %794 = vmatprep.subr.bf16.mxu0 0
        %795 = vmatpush1.bf16.msra.mxu0 0
        %796 = vmatprep.subr.bf16.mxu0 0
        %797 = vmatpush1.bf16.msra.mxu0 0
        %798 = vmatprep.subr.bf16.mxu0 0
        %799 = vmatpush1.bf16.msra.mxu0 0
        %800 = vmatprep.subr.bf16.mxu0 0
        %801 = vmatpush1.bf16.msra.mxu0 0
        %802 = vmatprep.subr.bf16.mxu0 0
        %803 = vmatpush1.bf16.msra.mxu0 0
        %804 = vmatprep.subr.bf16.mxu0 0
        %805 = vmatpush1.bf16.msra.mxu0 0
        %806 = vmatprep.subr.bf16.mxu0 0
        %807 = vmatpush1.bf16.msra.mxu0 0
        %808 = vmatprep.subr.bf16.mxu0 0
        %809 = vmatpush1.bf16.msra.mxu0 0
        %810 = vmatprep.mubr.bf16.mxu0 0
        %811 = vmatmul.mubr.bf16.gmra.mrb[0].mxu0 %v776
        %v812 = vpop.f32.mrb[0].mxu0
        %v813 = vadd.f32 %v760, %v812
        %v814 = vpop.f32.mrb[0].mxu0
        %v815 = vpop.f32.mrb[0].mxu0
        %v816 = vpop.f32.mrb[0].mxu0
        %817 = vdwg.mxu0
        %v818 = vpack.c.bf16 %v813, %v813
        %820 = vrot.lane.b32.xlu0 %v818, 96
        %v821 = vpop.permute.xlu0 %820
        %v823 = vsel %vm774, %v818, 0
        %v826 = vsel %vm774, %v821, 0
        %828 = vmatprep.subr.bf16.mxu0 0
        %829 = vmatpush1.bf16.xpose.msra.mxu0 %v826
        %830 = vmatprep.subr.bf16.mxu0 0
        %831 = vmatpush1.bf16.xpose.msra.mxu0 0
        %832 = vmatprep.subr.bf16.mxu0 0
        %833 = vmatpush1.bf16.xpose.msra.mxu0 0
        %834 = vmatprep.subr.bf16.mxu0 0
        %835 = vmatpush1.bf16.xpose.msra.mxu0 0
        %836 = vmatprep.subr.bf16.mxu0 0
        %837 = vmatpush1.bf16.xpose.msra.mxu0 0
        %838 = vmatprep.subr.bf16.mxu0 0
        %839 = vmatpush1.bf16.xpose.msra.mxu0 0
        %840 = vmatprep.subr.bf16.mxu0 0
        %841 = vmatpush1.bf16.xpose.msra.mxu0 0
        %842 = vmatprep.subr.bf16.mxu0 0
        %843 = vmatpush1.bf16.xpose.msra.mxu0 0
        %844 = vmatprep.subr.bf16.mxu0 0
        %845 = vmatpush1.bf16.xpose.msra.mxu0 0
        %846 = vmatprep.subr.bf16.mxu0 0
        %847 = vmatpush1.bf16.xpose.msra.mxu0 0
        %848 = vmatprep.subr.bf16.mxu0 0
        %849 = vmatpush1.bf16.xpose.msra.mxu0 0
        %850 = vmatprep.subr.bf16.mxu0 0
        %851 = vmatpush1.bf16.xpose.msra.mxu0 0
        %852 = vmatprep.subr.bf16.mxu0 0
        %853 = vmatpush1.bf16.xpose.msra.mxu0 0
        %854 = vmatprep.subr.bf16.mxu0 0
        %855 = vmatpush1.bf16.xpose.msra.mxu0 0
        %856 = vmatprep.subr.bf16.mxu0 0
        %857 = vmatpush1.bf16.xpose.msra.mxu0 0
        %858 = vmatprep.subr.bf16.mxu0 0
        %859 = vmatpush1.bf16.xpose.msra.mxu0 0
        %860 = vmatprep.mubr.bf16.mxu0 0
        %861 = vmatmul.mubr.bf16.gmra.mrb[0].mxu0 %v823
        %v862 = vpop.f32.mrb[0].mxu0
        %v863 = vadd.f32 0.0, %v862
        %v864 = vpop.f32.mrb[0].mxu0
        %v865 = vpop.f32.mrb[0].mxu0
        %v866 = vpop.f32.mrb[0].mxu0
        %867 = vdwg.mxu0
        %v868 = vmul.f32 %v863, 0.17677669
        %vm869 = vcmask 64512
        %v870 = vsel %vm869, %v868, -inf
        %871 = vmax.xlane.f32.xlu0 %v870
        %v872 = vpop.xlane.xlu0 %871
        %v873 = vsub.f32 %v868, %v872
        %v874 = vmul.f32 %v873, 1.442695
        %v875 = vpow.pop %v874
        %v876 = vsel %vm869, %v875, 0.0
        %877 = vadd.xlane.f32.xlu0 %v876
        %v878 = vpop.xlane.xlu0 %877
        %v879 = vrcp.pop %v878
        %v880 = vmul.f32 %v875, %v879
        %v881 = vpack.c.bf16 %v880, %v880
        %882 = vrot.lane.b32.xlu0 %v818, 64
        %v883 = vpop.permute.xlu0 %882
        %v885 = vsel %vm869, %v881, 0
        %vm887 = vcmask 1043456
        %v889 = vsel %vm887, %v883, 0
        %891 = vmatprep.subr.bf16.mxu0 0
        %892 = vmatpush1.bf16.msra.mxu0 %v889
        %893 = vmatprep.subr.bf16.mxu0 0
        %894 = vmatpush1.bf16.msra.mxu0 0
        %895 = vmatprep.subr.bf16.mxu0 0
        %896 = vmatpush1.bf16.msra.mxu0 0
        %897 = vmatprep.subr.bf16.mxu0 0
        %898 = vmatpush1.bf16.msra.mxu0 0
        %899 = vmatprep.subr.bf16.mxu0 0
        %900 = vmatpush1.bf16.msra.mxu0 0
        %901 = vmatprep.subr.bf16.mxu0 0
        %902 = vmatpush1.bf16.msra.mxu0 0
        %903 = vmatprep.subr.bf16.mxu0 0
        %904 = vmatpush1.bf16.msra.mxu0 0
        %905 = vmatprep.subr.bf16.mxu0 0
        %906 = vmatpush1.bf16.msra.mxu0 0
        %907 = vmatprep.subr.bf16.mxu0 0
        %908 = vmatpush1.bf16.msra.mxu0 0
        %909 = vmatprep.subr.bf16.mxu0 0
        %910 = vmatpush1.bf16.msra.mxu0 0
        %911 = vmatprep.subr.bf16.mxu0 0
        %912 = vmatpush1.bf16.msra.mxu0 0
        %913 = vmatprep.subr.bf16.mxu0 0
        %914 = vmatpush1.bf16.msra.mxu0 0
        %915 = vmatprep.subr.bf16.mxu0 0
        %916 = vmatpush1.bf16.msra.mxu0 0
        %917 = vmatprep.subr.bf16.mxu0 0
        %918 = vmatpush1.bf16.msra.mxu0 0
        %919 = vmatprep.subr.bf16.mxu0 0
        %920 = vmatpush1.bf16.msra.mxu0 0
        %921 = vmatprep.subr.bf16.mxu0 0
        %922 = vmatpush1.bf16.msra.mxu0 0
        %923 = vmatprep.mubr.bf16.mxu0 0
        %924 = vmatmul.mubr.bf16.gmra.mrb[0].mxu0 %v885
        %v925 = vpop.f32.mrb[0].mxu0
        %v926 = vadd.f32 0.0, %v925
        %v927 = vpop.f32.mrb[0].mxu0
        %v928 = vpop.f32.mrb[0].mxu0
        %v929 = vpop.f32.mrb[0].mxu0
        %930 = vdwg.mxu0
        %v931 = vpack.c.bf16 %v926, %v926
        %v932 = vld [vmem:[%s4] sm:$0xf]
        %v933 = vld [vmem:[%s4 + $0x4] sm:$0xf]
        %v934 = vld [vmem:[%s4 + $0x8] sm:$0xf]
        %v935 = vld [vmem:[%s4 + $0xc] sm:$0xf]
        %v936 = vld [vmem:[%s5] sm:$0x1]
        %v938 = vlaneseq
        %v939 = vshrl.u32 %v938, 7
        %v940 = vsub.s32 0, %v939
        %v941 = vrot.slane %v936, %v940
        %v947 = vunpack.c.l.b16 %v932
        %v948 = vunpack.c.l.b16 %v933
        %v949 = vunpack.c.l.b16 %v934
        %v950 = vunpack.c.l.b16 %v935
        %v951 = vpack.c.b16 %v948, %v947
        %v952 = vpack.c.b16 %v950, %v949
        %v956 = vsel %vm774, %v931, 0
        %958 = vmatprep.subr.bf16.mxu0 0
        %959 = vmatpush1.bf16.msra.mxu0 %v951
        %960 = vmatprep.subr.bf16.mxu0 0
        %961 = vmatpush1.bf16.msra.mxu0 %v952
        %962 = vmatprep.subr.bf16.mxu0 0
        %963 = vmatpush1.bf16.msra.mxu0 0
        %964 = vmatprep.subr.bf16.mxu0 0
        %965 = vmatpush1.bf16.msra.mxu0 0
        %966 = vmatprep.subr.bf16.mxu0 0
        %967 = vmatpush1.bf16.msra.mxu0 0
        %968 = vmatprep.subr.bf16.mxu0 0
        %969 = vmatpush1.bf16.msra.mxu0 0
        %970 = vmatprep.subr.bf16.mxu0 0
        %971 = vmatpush1.bf16.msra.mxu0 0
        %972 = vmatprep.subr.bf16.mxu0 0
        %973 = vmatpush1.bf16.msra.mxu0 0
        %974 = vmatprep.subr.bf16.mxu0 0
        %975 = vmatpush1.bf16.msra.mxu0 0
        %976 = vmatprep.subr.bf16.mxu0 0
        %977 = vmatpush1.bf16.msra.mxu0 0
        %978 = vmatprep.subr.bf16.mxu0 0
        %979 = vmatpush1.bf16.msra.mxu0 0
        %980 = vmatprep.subr.bf16.mxu0 0
        %981 = vmatpush1.bf16.msra.mxu0 0
        %982 = vmatprep.subr.bf16.mxu0 0
        %983 = vmatpush1.bf16.msra.mxu0 0
        %984 = vmatprep.subr.bf16.mxu0 0
        %985 = vmatpush1.bf16.msra.mxu0 0
        %986 = vmatprep.subr.bf16.mxu0 0
        %987 = vmatpush1.bf16.msra.mxu0 0
        %988 = vmatprep.subr.bf16.mxu0 0
        %989 = vmatpush1.bf16.msra.mxu0 0
        %990 = vmatprep.mubr.bf16.mxu0 0
        %991 = vmatmul.mubr.bf16.gmra.mrb[0].mxu0 %v956
        %v992 = vpop.f32.mrb[0].mxu0
        %v993 = vadd.f32 %v941, %v992
        %v994 = vpop.f32.mrb[0].mxu0
        %v995 = vpop.f32.mrb[0].mxu0
        %v996 = vpop.f32.mrb[0].mxu0
        %997 = vdwg.mxu0
        %v998 = vadd.f32 %v748, %v993
        %v999 = vld [vmem:[%s6] sm:$0x1]
        %v1000 = vld [vmem:[%s7] sm:$0x1]
        %v1001 = vsel %vm774, %v998, 0.0
        %1002 = vadd.xlane.f32.xlu0 %v1001
        %v1003 = vpop.xlane.xlu0 %1002
        %v1004 = vrcp.pop 32.0
        %v1005 = vmul.f32 %v1003, %v1004
        %v1006 = vsub.f32 %v998, %v1005
        %v1007 = vmul.f32 %v1006, %v1006
        %v1008 = vsel %vm774, %v1007, 0.0
        %1009 = vadd.xlane.f32.xlu0 %v1008
        %v1010 = vpop.xlane.xlu0 %1009
        %v1011 = vmul.f32 %v1010, %v1004
        %v1012 = vadd.f32 %v1011, 1e-05
        %v1013 = vrsqrt.pop %v1012
        %v1014 = vmul.f32 %v1006, %v1013
        %v1016 = vlaneseq
        %v1017 = vshrl.u32 %v1016, 7
        %v1018 = vsub.s32 0, %v1017
        %v1019 = vrot.slane %v999, %v1018
        %v1021 = vmul.f32 %v1014, %v1019
        %v1023 = vlaneseq
        %v1024 = vshrl.u32 %v1023, 7
        %v1025 = vsub.s32 0, %v1024
        %v1026 = vrot.slane %v1000, %v1025
        %v1028 = vadd.f32 %v1021, %v1026
        %v1029 = vpack.c.bf16 %v1028, %v1028
        %v1030 = vld [vmem:[%s8] sm:$0xf]
        %v1031 = vld [vmem:[%s8 + $0x4] sm:$0xf]
        %v1032 = vld [vmem:[%s8 + $0x8] sm:$0xf]
        %v1033 = vld [vmem:[%s8 + $0xc] sm:$0xf]
        %v1034 = vld [vmem:[%s9] sm:$0x1]
        %v1036 = vlaneseq
        %v1037 = vshrl.u32 %v1036, 7
        %v1038 = vsub.s32 0, %v1037
        %v1039 = vrot.slane %v1034, %v1038
        %v1045 = vunpack.c.l.b16 %v1030
        %v1046 = vunpack.c.l.b16 %v1031
        %v1047 = vunpack.c.l.b16 %v1032
        %v1048 = vunpack.c.l.b16 %v1033
        %v1049 = vpack.c.b16 %v1046, %v1045
        %v1050 = vpack.c.b16 %v1048, %v1047
        %v1054 = vsel %vm774, %v1029, 0
        %1056 = vmatprep.subr.bf16.mxu0 0
        %1057 = vmatpush1.bf16.msra.mxu0 %v1049
        %1058 = vmatprep.subr.bf16.mxu0 0
        %1059 = vmatpush1.bf16.msra.mxu0 %v1050
        %1060 = vmatprep.subr.bf16.mxu0 0
        %1061 = vmatpush1.bf16.msra.mxu0 0
        %1062 = vmatprep.subr.bf16.mxu0 0
        %1063 = vmatpush1.bf16.msra.mxu0 0
        %1064 = vmatprep.subr.bf16.mxu0 0
        %1065 = vmatpush1.bf16.msra.mxu0 0
        %1066 = vmatprep.subr.bf16.mxu0 0
        %1067 = vmatpush1.bf16.msra.mxu0 0
        %1068 = vmatprep.subr.bf16.mxu0 0
        %1069 = vmatpush1.bf16.msra.mxu0 0
        %1070 = vmatprep.subr.bf16.mxu0 0
        %1071 = vmatpush1.bf16.msra.mxu0 0
        %1072 = vmatprep.subr.bf16.mxu0 0
        %1073 = vmatpush1.bf16.msra.mxu0 0
        %1074 = vmatprep.subr.bf16.mxu0 0
        %1075 = vmatpush1.bf16.msra.mxu0 0
        %1076 = vmatprep.subr.bf16.mxu0 0
        %1077 = vmatpush1.bf16.msra.mxu0 0
        %1078 = vmatprep.subr.bf16.mxu0 0
        %1079 = vmatpush1.bf16.msra.mxu0 0
        %1080 = vmatprep.subr.bf16.mxu0 0
        %1081 = vmatpush1.bf16.msra.mxu0 0
        %1082 = vmatprep.subr.bf16.mxu0 0
        %1083 = vmatpush1.bf16.msra.mxu0 0
        %1084 = vmatprep.subr.bf16.mxu0 0
        %1085 = vmatpush1.bf16.msra.mxu0 0
        %1086 = vmatprep.subr.bf16.mxu0 0
        %1087 = vmatpush1.bf16.msra.mxu0 0
        %1088 = vmatprep.mubr.bf16.mxu0 0
        %1089 = vmatmul.mubr.bf16.gmra.mrb[0].mxu0 %v1054
        %v1090 = vpop.f32.mrb[0].mxu0
        %v1091 = vadd.f32 %v1039, %v1090
        %v1092 = vpop.f32.mrb[0].mxu0
        %v1093 = vpop.f32.mrb[0].mxu0
        %v1094 = vpop.f32.mrb[0].mxu0
        %1095 = vdwg.mxu0
        %v1096 = vpack.c.bf16 %v749, %v749
        %v1097 = vld [vmem:[%s10] sm:$0xf]
        %v1098 = vld [vmem:[%s10 + $0x4] sm:$0xf]
        %v1099 = vld [vmem:[%s10 + $0x8] sm:$0xf]
        %v1100 = vld [vmem:[%s10 + $0xc] sm:$0xf]
        %v1101 = vld [vmem:[%s11] sm:$0x1]
        %v1103 = vlaneseq
        %v1104 = vshrl.u32 %v1103, 7
        %v1105 = vsub.s32 0, %v1104
        %v1106 = vrot.slane %v1101, %v1105
        %v1112 = vunpack.c.l.b16 %v1097
        %v1113 = vunpack.c.l.b16 %v1098
        %v1114 = vunpack.c.l.b16 %v1099
        %v1115 = vunpack.c.l.b16 %v1100
        %v1116 = vpack.c.b16 %v1113, %v1112
        %v1117 = vpack.c.b16 %v1115, %v1114
        %v1121 = vsel %vm774, %v1096, 0
        %1123 = vmatprep.subr.bf16.mxu0 0
        %1124 = vmatpush1.bf16.msra.mxu0 %v1116
        %1125 = vmatprep.subr.bf16.mxu0 0
        %1126 = vmatpush1.bf16.msra.mxu0 %v1117
        %1127 = vmatprep.subr.bf16.mxu0 0
        %1128 = vmatpush1.bf16.msra.mxu0 0
        %1129 = vmatprep.subr.bf16.mxu0 0
        %1130 = vmatpush1.bf16.msra.mxu0 0
        %1131 = vmatprep.subr.bf16.mxu0 0
        %1132 = vmatpush1.bf16.msra.mxu0 0
        %1133 = vmatprep.subr.bf16.mxu0 0
        %1134 = vmatpush1.bf16.msra.mxu0 0
        %1135 = vmatprep.subr.bf16.mxu0 0
        %1136 = vmatpush1.bf16.msra.mxu0 0
        %1137 = vmatprep.subr.bf16.mxu0 0
        %1138 = vmatpush1.bf16.msra.mxu0 0
        %1139 = vmatprep.subr.bf16.mxu0 0
        %1140 = vmatpush1.bf16.msra.mxu0 0
        %1141 = vmatprep.subr.bf16.mxu0 0
        %1142 = vmatpush1.bf16.msra.mxu0 0
        %1143 = vmatprep.subr.bf16.mxu0 0
        %1144 = vmatpush1.bf16.msra.mxu0 0
        %1145 = vmatprep.subr.bf16.mxu0 0
        %1146 = vmatpush1.bf16.msra.mxu0 0
        %1147 = vmatprep.subr.bf16.mxu0 0
        %1148 = vmatpush1.bf16.msra.mxu0 0
        %1149 = vmatprep.subr.bf16.mxu0 0
        %1150 = vmatpush1.bf16.msra.mxu0 0
        %1151 = vmatprep.subr.bf16.mxu0 0
        %1152 = vmatpush1.bf16.msra.mxu0 0
        %1153 = vmatprep.subr.bf16.mxu0 0
        %1154 = vmatpush1.bf16.msra.mxu0 0
        %1155 = vmatprep.mubr.bf16.mxu0 0
        %1156 = vmatmul.mubr.bf16.gmra.mrb[0].mxu0 %v1121
        %v1157 = vpop.f32.mrb[0].mxu0
        %v1158 = vadd.f32 %v1106, %v1157
        %v1159 = vpop.f32.mrb[0].mxu0
        %v1160 = vpop.f32.mrb[0].mxu0
        %v1161 = vpop.f32.mrb[0].mxu0
        %1162 = vdwg.mxu0
        %v1163 = vpack.c.bf16 %v1091, %v1091
        %v1164 = vpack.c.bf16 %v1158, %v1158
        %v1166 = vsel %vm774, %v1163, 0
        %v1169 = vsel %vm774, %v1164, 0
        %1171 = vmatprep.subr.bf16.mxu0 0
        %1172 = vmatpush1.bf16.xpose.msra.mxu0 %v1169
        %1173 = vmatprep.subr.bf16.mxu0 0
        %1174 = vmatpush1.bf16.xpose.msra.mxu0 0
        %1175 = vmatprep.subr.bf16.mxu0 0
        %1176 = vmatpush1.bf16.xpose.msra.mxu0 0
        %1177 = vmatprep.subr.bf16.mxu0 0
        %1178 = vmatpush1.bf16.xpose.msra.mxu0 0
        %1179 = vmatprep.subr.bf16.mxu0 0
        %1180 = vmatpush1.bf16.xpose.msra.mxu0 0
        %1181 = vmatprep.subr.bf16.mxu0 0
        %1182 = vmatpush1.bf16.xpose.msra.mxu0 0
        %1183 = vmatprep.subr.bf16.mxu0 0
        %1184 = vmatpush1.bf16.xpose.msra.mxu0 0
        %1185 = vmatprep.subr.bf16.mxu0 0
        %1186 = vmatpush1.bf16.xpose.msra.mxu0 0
        %1187 = vmatprep.subr.bf16.mxu0 0
        %1188 = vmatpush1.bf16.xpose.msra.mxu0 0
        %1189 = vmatprep.subr.bf16.mxu0 0
        %1190 = vmatpush1.bf16.xpose.msra.mxu0 0
        %1191 = vmatprep.subr.bf16.mxu0 0
        %1192 = vmatpush1.bf16.xpose.msra.mxu0 0
        %1193 = vmatprep.subr.bf16.mxu0 0
        %1194 = vmatpush1.bf16.xpose.msra.mxu0 0
        %1195 = vmatprep.subr.bf16.mxu0 0
        %1196 = vmatpush1.bf16.xpose.msra.mxu0 0
        %1197 = vmatprep.subr.bf16.mxu0 0
        %1198 = vmatpush1.bf16.xpose.msra.mxu0 0
        %1199 = vmatprep.subr.bf16.mxu0 0
        %1200 = vmatpush1.bf16.xpose.msra.mxu0 0
        %1201 = vmatprep.subr.bf16.mxu0 0
        %1202 = vmatpush1.bf16.xpose.msra.mxu0 0
        %1203 = vmatprep.mubr.bf16.mxu0 0
        %1204 = vmatmul.mubr.bf16.gmra.mrb[0].mxu0 %v1166
        %v1205 = vpop.f32.mrb[0].mxu0
        %v1206 = vadd.f32 0.0, %v1205
        %v1207 = vpop.f32.mrb[0].mxu0
        %v1208 = vpop.f32.mrb[0].mxu0
        %v1209 = vpop.f32.mrb[0].mxu0
        %1210 = vdwg.mxu0
        %v1211 = vmul.f32 %v1206, 0.17677669
        %v1212 = vsel %vm869, %v1211, -inf
        %1213 = vmax.xlane.f32.xlu0 %v1212
        %v1214 = vpop.xlane.xlu0 %1213
        %v1215 = vsub.f32 %v1211, %v1214
        %v1216 = vmul.f32 %v1215, 1.442695
        %v1217 = vpow.pop %v1216
        %v1218 = vsel %vm869, %v1217, 0.0
        %1219 = vadd.xlane.f32.xlu0 %v1218
        %v1220 = vpop.xlane.xlu0 %1219
        %v1221 = vrcp.pop %v1220
        %v1222 = vmul.f32 %v1217, %v1221
        %v1223 = vpack.c.bf16 %v1222, %v1222
        %1225 = vrot.lane.b32.xlu0 %v1164, 96
        %v1226 = vpop.permute.xlu0 %1225
        %v1228 = vsel %vm869, %v1223, 0
        %v1231 = vsel %vm887, %v1226, 0
        %1233 = vmatprep.subr.bf16.mxu0 0
        %1234 = vmatpush1.bf16.msra.mxu0 %v1231
        %1235 = vmatprep.subr.bf16.mxu0 0
        %1236 = vmatpush1.bf16.msra.mxu0 0
        %1237 = vmatprep.subr.bf16.mxu0 0
        %1238 = vmatpush1.bf16.msra.mxu0 0
        %1239 = vmatprep.subr.bf16.mxu0 0
        %1240 = vmatpush1.bf16.msra.mxu0 0
        %1241 = vmatprep.subr.bf16.mxu0 0
        %1242 = vmatpush1.bf16.msra.mxu0 0
        %1243 = vmatprep.subr.bf16.mxu0 0
        %1244 = vmatpush1.bf16.msra.mxu0 0
        %1245 = vmatprep.subr.bf16.mxu0 0
        %1246 = vmatpush1.bf16.msra.mxu0 0
        %1247 = vmatprep.subr.bf16.mxu0 0
        %1248 = vmatpush1.bf16.msra.mxu0 0
        %1249 = vmatprep.subr.bf16.mxu0 0
        %1250 = vmatpush1.bf16.msra.mxu0 0
        %1251 = vmatprep.subr.bf16.mxu0 0
        %1252 = vmatpush1.bf16.msra.mxu0 0
        %1253 = vmatprep.subr.bf16.mxu0 0
        %1254 = vmatpush1.bf16.msra.mxu0 0
        %1255 = vmatprep.subr.bf16.mxu0 0
        %1256 = vmatpush1.bf16.msra.mxu0 0
        %1257 = vmatprep.subr.bf16.mxu0 0
        %1258 = vmatpush1.bf16.msra.mxu0 0
        %1259 = vmatprep.subr.bf16.mxu0 0
        %1260 = vmatpush1.bf16.msra.mxu0 0
        %1261 = vmatprep.subr.bf16.mxu0 0
        %1262 = vmatpush1.bf16.msra.mxu0 0
        %1263 = vmatprep.subr.bf16.mxu0 0
        %1264 = vmatpush1.bf16.msra.mxu0 0
        %1265 = vmatprep.mubr.bf16.mxu0 0
        %1266 = vmatmul.mubr.bf16.gmra.mrb[0].mxu0 %v1228
        %v1267 = vpop.f32.mrb[0].mxu0
        %v1268 = vadd.f32 0.0, %v1267
        %v1269 = vpop.f32.mrb[0].mxu0
        %v1270 = vpop.f32.mrb[0].mxu0
        %v1271 = vpop.f32.mrb[0].mxu0
        %1272 = vdwg.mxu0
        %v1273 = vpack.c.bf16 %v1268, %v1268
        %v1274 = vld [vmem:[%s12] sm:$0xf]
        %v1275 = vld [vmem:[%s12 + $0x4] sm:$0xf]
        %v1276 = vld [vmem:[%s12 + $0x8] sm:$0xf]
        %v1277 = vld [vmem:[%s12 + $0xc] sm:$0xf]
        %v1278 = vld [vmem:[%s13] sm:$0x1]
        %v1280 = vlaneseq
        %v1281 = vshrl.u32 %v1280, 7
        %v1282 = vsub.s32 0, %v1281
        %v1283 = vrot.slane %v1278, %v1282
        %v1289 = vunpack.c.l.b16 %v1274
        %v1290 = vunpack.c.l.b16 %v1275
        %v1291 = vunpack.c.l.b16 %v1276
        %v1292 = vunpack.c.l.b16 %v1277
        %v1293 = vpack.c.b16 %v1290, %v1289
        %v1294 = vpack.c.b16 %v1292, %v1291
        %v1298 = vsel %vm774, %v1273, 0
        %1300 = vmatprep.subr.bf16.mxu0 0
        %1301 = vmatpush1.bf16.msra.mxu0 %v1293
        %1302 = vmatprep.subr.bf16.mxu0 0
        %1303 = vmatpush1.bf16.msra.mxu0 %v1294
        %1304 = vmatprep.subr.bf16.mxu0 0
        %1305 = vmatpush1.bf16.msra.mxu0 0
        %1306 = vmatprep.subr.bf16.mxu0 0
        %1307 = vmatpush1.bf16.msra.mxu0 0
        %1308 = vmatprep.subr.bf16.mxu0 0
        %1309 = vmatpush1.bf16.msra.mxu0 0
        %1310 = vmatprep.subr.bf16.mxu0 0
        %1311 = vmatpush1.bf16.msra.mxu0 0
        %1312 = vmatprep.subr.bf16.mxu0 0
        %1313 = vmatpush1.bf16.msra.mxu0 0
        %1314 = vmatprep.subr.bf16.mxu0 0
        %1315 = vmatpush1.bf16.msra.mxu0 0
        %1316 = vmatprep.subr.bf16.mxu0 0
        %1317 = vmatpush1.bf16.msra.mxu0 0
        %1318 = vmatprep.subr.bf16.mxu0 0
        %1319 = vmatpush1.bf16.msra.mxu0 0
        %1320 = vmatprep.subr.bf16.mxu0 0
        %1321 = vmatpush1.bf16.msra.mxu0 0
        %1322 = vmatprep.subr.bf16.mxu0 0
        %1323 = vmatpush1.bf16.msra.mxu0 0
        %1324 = vmatprep.subr.bf16.mxu0 0
        %1325 = vmatpush1.bf16.msra.mxu0 0
        %1326 = vmatprep.subr.bf16.mxu0 0
        %1327 = vmatpush1.bf16.msra.mxu0 0
        %1328 = vmatprep.subr.bf16.mxu0 0
        %1329 = vmatpush1.bf16.msra.mxu0 0
        %1330 = vmatprep.subr.bf16.mxu0 0
        %1331 = vmatpush1.bf16.msra.mxu0 0
        %1332 = vmatprep.mubr.bf16.mxu0 0
        %1333 = vmatmul.mubr.bf16.gmra.mrb[0].mxu0 %v1298
        %v1334 = vpop.f32.mrb[0].mxu0
        %v1335 = vadd.f32 %v1283, %v1334
        %v1336 = vpop.f32.mrb[0].mxu0
        %v1337 = vpop.f32.mrb[0].mxu0
        %v1338 = vpop.f32.mrb[0].mxu0
        %1339 = vdwg.mxu0
        %v1340 = vadd.f32 %v1028, %v1335
        %v1341 = vld [vmem:[%s14] sm:$0x1]
        %v1342 = vld [vmem:[%s15] sm:$0x1]
        %v1343 = vsel %vm774, %v1340, 0.0
        %1344 = vadd.xlane.f32.xlu0 %v1343
        %v1345 = vpop.xlane.xlu0 %1344
        %v1346 = vmul.f32 %v1345, %v1004
        %v1347 = vsub.f32 %v1340, %v1346
        %v1348 = vmul.f32 %v1347, %v1347
        %v1349 = vsel %vm774, %v1348, 0.0
        %1350 = vadd.xlane.f32.xlu0 %v1349
        %v1351 = vpop.xlane.xlu0 %1350
        %v1352 = vmul.f32 %v1351, %v1004
        %v1353 = vadd.f32 %v1352, 1e-05
        %v1354 = vrsqrt.pop %v1353
        %v1355 = vmul.f32 %v1347, %v1354
        %v1357 = vlaneseq
        %v1358 = vshrl.u32 %v1357, 7
        %v1359 = vsub.s32 0, %v1358
        %v1360 = vrot.slane %v1341, %v1359
        %v1362 = vmul.f32 %v1355, %v1360
        %v1364 = vlaneseq
        %v1365 = vshrl.u32 %v1364, 7
        %v1366 = vsub.s32 0, %v1365
        %v1367 = vrot.slane %v1342, %v1366
        %v1369 = vadd.f32 %v1362, %v1367
        %v1370 = vpack.c.bf16 %v1369, %v1369
        %v1371 = vld [vmem:[%s16] sm:$0xf]
        %v1372 = vld [vmem:[%s16 + $0x4] sm:$0xf]
        %v1373 = vld [vmem:[%s16 + $0x8] sm:$0xf]
        %v1374 = vld [vmem:[%s16 + $0xc] sm:$0xf]
        %v1375 = vld [vmem:[#allocation2] sm:$0x1]
        %v1377 = vlaneseq
        %v1378 = vshrl.u32 %v1377, 7
        %v1379 = vsub.s32 0, %v1378
        %v1380 = vrot.slane %v1375, %v1379
        %v1386 = vunpack.c.l.b16 %v1371
        %v1387 = vunpack.c.l.b16 %v1372
        %v1388 = vunpack.c.l.b16 %v1373
        %v1389 = vunpack.c.l.b16 %v1374
        %v1390 = vpack.c.b16 %v1387, %v1386
        %v1391 = vpack.c.b16 %v1389, %v1388
        %v1395 = vsel %vm774, %v1370, 0
        %1397 = vmatprep.subr.bf16.mxu0 0
        %1398 = vmatpush1.bf16.msra.mxu0 %v1390
        %1399 = vmatprep.subr.bf16.mxu0 0
        %1400 = vmatpush1.bf16.msra.mxu0 %v1391
        %1401 = vmatprep.subr.bf16.mxu0 0
        %1402 = vmatpush1.bf16.msra.mxu0 0
        %1403 = vmatprep.subr.bf16.mxu0 0
        %1404 = vmatpush1.bf16.msra.mxu0 0
        %1405 = vmatprep.subr.bf16.mxu0 0
        %1406 = vmatpush1.bf16.msra.mxu0 0
        %1407 = vmatprep.subr.bf16.mxu0 0
        %1408 = vmatpush1.bf16.msra.mxu0 0
        %1409 = vmatprep.subr.bf16.mxu0 0
        %1410 = vmatpush1.bf16.msra.mxu0 0
        %1411 = vmatprep.subr.bf16.mxu0 0
        %1412 = vmatpush1.bf16.msra.mxu0 0
        %1413 = vmatprep.subr.bf16.mxu0 0
        %1414 = vmatpush1.bf16.msra.mxu0 0
        %1415 = vmatprep.subr.bf16.mxu0 0
        %1416 = vmatpush1.bf16.msra.mxu0 0
        %1417 = vmatprep.subr.bf16.mxu0 0
        %1418 = vmatpush1.bf16.msra.mxu0 0
        %1419 = vmatprep.subr.bf16.mxu0 0
        %1420 = vmatpush1.bf16.msra.mxu0 0
        %1421 = vmatprep.subr.bf16.mxu0 0
        %1422 = vmatpush1.bf16.msra.mxu0 0
        %1423 = vmatprep.subr.bf16.mxu0 0
        %1424 = vmatpush1.bf16.msra.mxu0 0
        %1425 = vmatprep.subr.bf16.mxu0 0
        %1426 = vmatpush1.bf16.msra.mxu0 0
        %1427 = vmatprep.subr.bf16.mxu0 0
        %1428 = vmatpush1.bf16.msra.mxu0 0
        %1429 = vmatprep.mubr.bf16.mxu0 0
        %1430 = vmatmul.mubr.bf16.gmra.mrb[0].mxu0 %v1395
        %v1431 = vpop.f32.mrb[0].mxu0
        %v1432 = vadd.f32 %v1380, %v1431
        %v1433 = vpop.f32.mrb[0].mxu0
        %v1434 = vpop.f32.mrb[0].mxu0
        %v1435 = vpop.f32.mrb[0].mxu0
        %1436 = vdwg.mxu0
        %v1437 = vsub.f32 0.0, %v1432
        %v1438 = vmul.f32 %v1437, 1.442695
        %v1439 = vpow.pop %v1438
        %v1440 = vadd.f32 %v1439, 1.0
        %v1441 = vrcp.pop %v1440
        %v1442 = vmul.f32 1.0, %v1441
        %v1443 = vmul.f32 %v1432, %v1442
        %v1444 = vpack.c.bf16 %v1443, %v1443
        %v1445 = vld [vmem:[%s18] sm:$0x3]
        %v1446 = vld [vmem:[#allocation4] sm:$0x1]
        %v1448 = vlaneseq
        %v1449 = vshrl.u32 %v1448, 7
        %v1450 = vsub.s32 0, %v1449
        %v1451 = vrot.slane %v1446, %v1450
        %vm1453 = vcmask 31744
        %v1455 = vsel %vm1453, %v1444, 0
        %vm1457 = vcmask 1041408
        %v1459 = vsel %vm1457, %v1445, 0
        %1461 = vmatprep.subr.bf16.mxu0 0
        %1462 = vmatpush1.bf16.msra.mxu0 %v1459
        %1463 = vmatprep.subr.bf16.mxu0 0
        %1464 = vmatpush1.bf16.msra.mxu0 0
        %1465 = vmatprep.subr.bf16.mxu0 0
        %1466 = vmatpush1.bf16.msra.mxu0 0
        %1467 = vmatprep.subr.bf16.mxu0 0
        %1468 = vmatpush1.bf16.msra.mxu0 0
        %1469 = vmatprep.subr.bf16.mxu0 0
        %1470 = vmatpush1.bf16.msra.mxu0 0
        %1471 = vmatprep.subr.bf16.mxu0 0
        %1472 = vmatpush1.bf16.msra.mxu0 0
        %1473 = vmatprep.subr.bf16.mxu0 0
        %1474 = vmatpush1.bf16.msra.mxu0 0
        %1475 = vmatprep.subr.bf16.mxu0 0
        %1476 = vmatpush1.bf16.msra.mxu0 0
        %1477 = vmatprep.subr.bf16.mxu0 0
        %1478 = vmatpush1.bf16.msra.mxu0 0
        %1479 = vmatprep.subr.bf16.mxu0 0
        %1480 = vmatpush1.bf16.msra.mxu0 0
        %1481 = vmatprep.subr.bf16.mxu0 0
        %1482 = vmatpush1.bf16.msra.mxu0 0
        %1483 = vmatprep.subr.bf16.mxu0 0
        %1484 = vmatpush1.bf16.msra.mxu0 0
        %1485 = vmatprep.subr.bf16.mxu0 0
        %1486 = vmatpush1.bf16.msra.mxu0 0
        %1487 = vmatprep.subr.bf16.mxu0 0
        %1488 = vmatpush1.bf16.msra.mxu0 0
        %1489 = vmatprep.subr.bf16.mxu0 0
        %1490 = vmatpush1.bf16.msra.mxu0 0
        %1491 = vmatprep.subr.bf16.mxu0 0
        %1492 = vmatpush1.bf16.msra.mxu0 0
        %1493 = vmatprep.mubr.bf16.mxu0 0
        %1494 = vmatmul.mubr.bf16.gmra.mrb[0].mxu0 %v1455
        %v1495 = vpop.f32.mrb[0].mxu0
        %v1496 = vadd.f32 %v1451, %v1495
        %v1497 = vpop.f32.mrb[0].mxu0
        %v1498 = vpop.f32.mrb[0].mxu0
        %v1499 = vpop.f32.mrb[0].mxu0
        %1500 = vdwg.mxu0
        %v1501 = vadd.f32 %v1369, %v1496
        %v1502 = vld [vmem:[#allocation6] sm:$0x1]
        %v1503 = vld [vmem:[#allocation7] sm:$0x1]
        %v1504 = vsel %vm774, %v1501, 0.0
        %1505 = vadd.xlane.f32.xlu0 %v1504
        %v1506 = vpop.xlane.xlu0 %1505
        %v1507 = vmul.f32 %v1506, %v1004
        %v1508 = vsub.f32 %v1501, %v1507
        %v1509 = vmul.f32 %v1508, %v1508
        %v1510 = vsel %vm774, %v1509, 0.0
        %1511 = vadd.xlane.f32.xlu0 %v1510
        %v1512 = vpop.xlane.xlu0 %1511
        %v1513 = vmul.f32 %v1512, %v1004
        %v1514 = vadd.f32 %v1513, 1e-05
        %v1515 = vrsqrt.pop %v1514
        %v1516 = vmul.f32 %v1508, %v1515
        %v1518 = vlaneseq
        %v1519 = vshrl.u32 %v1518, 7
        %v1520 = vsub.s32 0, %v1519
        %v1521 = vrot.slane %v1502, %v1520
        %v1523 = vmul.f32 %v1516, %v1521
        %v1525 = vlaneseq
        %v1526 = vshrl.u32 %v1525, 7
        %v1527 = vsub.s32 0, %v1526
        %v1528 = vrot.slane %v1503, %v1527
        %v1530 = vadd.f32 %v1523, %v1528
        %1531 = vst.msk [vmem:[%s746] sm:$0xff] %vm774, %v1530
        %p1532 = scmp.lt.s32.totalorder %s36, 1
        %s1533 = scalar_select %p1532, %s36, 1
        %s1534 = smul.addr %s1533, 8
        %s1535 = scalar_lea.vmem %s22, %s1534
        // Predicated region
        $region125: #{transformer_autoencoder_separator.19} parent=107 // pred_check
          %p1536 = pneg %p526
        $region126: #{transformer_autoencoder_separator.19} parent=107 // pred_check_branch
          %1538 = sbr.rel (%p1536) target = $region128
        $region127: #{transformer_autoencoder_separator.19} parent=107 // pred_region
          _
        $region128: #{transformer_autoencoder_separator.19} parent=107 // pred_fallthru
          _
      $region108: #{transformer_autoencoder_separator.19} parent=5 // pred_fallthru
        _
      %p1539 = scmp.le.s32.totalorder 2, %s31
      // Predicated region
      $region129: #{transformer_autoencoder_separator.19} parent=5 // pred_check
        %p1540 = pneg %p1539
      $region130: #{transformer_autoencoder_separator.19} parent=5 // pred_check_branch
        %1542 = sbr.rel (%p1540) target = $region132
      $region131: #{transformer_autoencoder_separator.19} parent=5 // pred_region
        %s1543 = ssub.s32 %s31, 2
        // Predicated region
        $region133: #{transformer_autoencoder_separator.19} parent=131 // pred_check
          %p1544 = pneg %p532
        $region134: #{transformer_autoencoder_separator.19} parent=131 // pred_check_branch
          %1546 = sbr.rel (%p1544) target = $region136
        $region135: #{transformer_autoencoder_separator.19} parent=131 // pred_region
          %p1547 = scmp.lt.s32.totalorder %s37, 1
          %s1548 = scalar_select %p1547, %s37, 1
          %s1549 = smul.addr %s1548, 8
          %s1550 = scalar_lea.vmem %s22, %s1549
        $region136: #{transformer_autoencoder_separator.19} parent=131 // pred_fallthru
          _
      $region132: #{transformer_autoencoder_separator.19} parent=5 // pred_fallthru
        _
    $region6: #{transformer_autoencoder_separator.19} parent=1 // loop_footer
      %s35 = sadd.s32 1, %s31
    $region7: #{transformer_autoencoder_separator.19} parent=1 // loop_footer_branch
      %30 = sbr.rel target = $region3
    $region8: #{transformer_autoencoder_separator.19} parent=1 // loop_exit
      _
    %1551 = vsyncpa [#allocation3], 1
    %s1552 = scalar_lea.sflag [#allocation3], 1
    %1553 = vsyncpa %s1552, 1
    %1554 = vsyncpa [#allocation5], 1
    %1555 = vsyncpa [#allocation8], 1

</llo_original>
